<compile_context>
chip_gen: v6e
topology: v6e:2x2x1
jax: 0.10.0
libtpu: 0.0.40
codegen_flags: <defaults>
</compile_context>

<pallas_src>
import functools

import jax
import jax.numpy as jnp
import numpy as np
from jax.experimental import pallas as pl
from jax.experimental.pallas import tpu as pltpu

LANES = 128


def _round_up(c, m=LANES):
    return ((c + m - 1) // m) * m


def _pad_axis(a, axis, target):
    if a.shape[axis] == target:
        return a
    cfg = [(0, 0)] * a.ndim
    cfg[axis] = (0, target - a.shape[axis])
    return jnp.pad(a, cfg)


def _fold_bn(gamma, beta, mean, var, c_pad, eps=1e-5):
    scale = gamma / jnp.sqrt(var + eps)
    shift = beta - mean * scale
    scale = _pad_axis(scale.reshape(1, -1).astype(jnp.float32), 1, c_pad)
    shift = _pad_axis(shift.reshape(1, -1).astype(jnp.float32), 1, c_pad)
    return scale, shift


def _res_block_kernel(x_ref, w1_ref, s1_ref, b1_ref, w2_ref, s2_ref, b2_ref,
                      wd_ref, sd_ref, bd_ref, out_ref, pad_ref, *,
                      has_downsample):
    # x_ref   : (H+2, W+2, Cin_p)   zero-padded input, one batch element
    # w1_ref  : (9*Cin_p, Cmid_p)   conv1 weights, tap-major (im2col layout)
    # w2_ref  : (9*Cmid_p, Cout_p)  conv2 weights, tap-major
    # wd_ref  : (Cin_p, Cout_p)     1x1 downsample weights (unused if identity)
    # s*/b*   : (1, C_p)            folded BatchNorm scale / shift (f32)
    # out_ref : (H, W, Cout_p)      lane-dense (Cout_p multiple of 128)
    # pad_ref : (H+2, W+2, Cmid_p)  bf16 VMEM scratch: zero-padded conv1 output
    H, W, Cout = out_ref.shape
    Cin = x_ref.shape[-1]
    Cmid = pad_ref.shape[-1]

    x = x_ref[...]
    x_bf = x.astype(jnp.bfloat16)

    # ---- conv1: im2col -> one big-K bf16 MXU matmul (K = 9*Cin_p).
    patches1 = jnp.concatenate(
        [x_bf[dy:dy + H, dx:dx + W, :].reshape(H * W, Cin)
         for dy in range(3) for dx in range(3)], axis=-1)
    acc1 = jnp.dot(patches1, w1_ref[...], preferred_element_type=jnp.float32)

    # ---- bn1 + relu (f32).
    h1 = jnp.maximum(acc1 * s1_ref[...] + b1_ref[...], 0.0)

    # ---- zero-pad h1 for conv2: zero only the 1px border (interior is fully
    #      overwritten each iteration; border-every-step is safe under a
    #      "parallel" batch axis where scratch is per-core and uninitialized).
    zrow = jnp.zeros((W + 2, Cmid), pad_ref.dtype)
    zcol = jnp.zeros((H + 2, 1, Cmid), pad_ref.dtype)
    pad_ref[0, :, :] = zrow
    pad_ref[H + 1, :, :] = zrow
    pad_ref[:, 0:1, :] = zcol
    pad_ref[:, W + 1:W + 2, :] = zcol
    pad_ref[1:H + 1, 1:W + 1, :] = h1.reshape(H, W, Cmid).astype(pad_ref.dtype)

    # ---- conv2: im2col -> one big-K bf16 MXU matmul.
    patches2 = jnp.concatenate(
        [pad_ref[dy:dy + H, dx:dx + W, :].reshape(H * W, Cmid)
         for dy in range(3) for dx in range(3)], axis=-1)
    acc2 = jnp.dot(patches2, w2_ref[...], preferred_element_type=jnp.float32)

    # ---- bn2.
    h2 = acc2 * s2_ref[...] + b2_ref[...]

    # ---- residual branch.
    x_center = x[1:H + 1, 1:W + 1, :].reshape(H * W, Cin)
    if has_downsample:
        res = jnp.dot(x_center.astype(jnp.bfloat16), wd_ref[...],
                      preferred_element_type=jnp.float32)
        res = res * sd_ref[...] + bd_ref[...]
    else:
        # Identity residual (Cin == Cout, stride == 1): full-precision input.
        res = x_center.astype(jnp.float32)

    # ---- add + relu, lane-dense store.
    out = jnp.maximum(h2 + res, 0.0)
    out_ref[...] = out.reshape(H, W, Cout).astype(out_ref.dtype)


def basic_res_block(x_nchw, params):
    """BasicResBlock forward (stride=1). x_nchw: (N, Cin, H, W) f32, returns NCHW."""
    # TODO(synk): stride > 1 (strided conv / strided 1x1 downsample) not implemented.
    N, Cin, H, W = x_nchw.shape
    w1 = params["w1"]          # (3, 3, Cin, Cmid)  HWIO
    w2 = params["w2"]          # (3, 3, Cmid, Cout) HWIO
    Cmid, Cout = w1.shape[-1], w2.shape[-1]
    has_downsample = (Cin != Cout)

    Cin_p, Cmid_p, Cout_p = _round_up(Cin), _round_up(Cmid), _round_up(Cout)

    # NCHW -> NHWC. In the downsample case the residual is recomputed from a
    # 1x1 conv, so the input can travel as bf16 (halves transpose/DMA bytes).
    x_dtype = jnp.bfloat16 if has_downsample else jnp.float32
    x = jnp.transpose(x_nchw.astype(x_dtype), (0, 2, 3, 1))
    # Spatial pad (padding=1 of the 3x3 convs) + channel pad to lane-dense 128.
    x_pad = jnp.pad(x, ((0, 0), (1, 1), (1, 1), (0, Cin_p - Cin)))

    # Weights: channel-pad, flatten taps to im2col layout, cast to bf16.
    w1_r = _pad_axis(_pad_axis(w1, 2, Cin_p), 3, Cmid_p)
    w1_r = w1_r.reshape(9 * Cin_p, Cmid_p).astype(jnp.bfloat16)
    w2_r = _pad_axis(_pad_axis(w2, 2, Cmid_p), 3, Cout_p)
    w2_r = w2_r.reshape(9 * Cmid_p, Cout_p).astype(jnp.bfloat16)

    s1, b1 = _fold_bn(params["g1"], params["be1"], params["m1"], params["v1"], Cmid_p)
    s2, b2 = _fold_bn(params["g2"], params["be2"], params["m2"], params["v2"], Cout_p)
    if has_downsample:
        wd_r = _pad_axis(_pad_axis(params["wd"], 0, Cin_p), 1, Cout_p)
        wd_r = wd_r.astype(jnp.bfloat16)
        sd, bd = _fold_bn(params["gd"], params["bed"], params["md"], params["vd"], Cout_p)
    else:
        wd_r = jnp.zeros((Cin_p, Cout_p), jnp.bfloat16)      # unused
        sd = jnp.zeros((1, Cout_p), jnp.float32)
        bd = jnp.zeros((1, Cout_p), jnp.float32)

    full = lambda shape: pl.BlockSpec(shape, lambda n: (0,) * len(shape))
    kernel = functools.partial(_res_block_kernel, has_downsample=has_downsample)

    out = pl.pallas_call(
        kernel,
        out_shape=jax.ShapeDtypeStruct((N, H, W, Cout_p), jnp.float32),
        grid_spec=pltpu.PrefetchScalarGridSpec(
            num_scalar_prefetch=0,
            grid=(N,),
            in_specs=[
                pl.BlockSpec((pl.Squeezed(), H + 2, W + 2, Cin_p),
                             lambda n: (n, 0, 0, 0)),
                full((9 * Cin_p, Cmid_p)),
                full((1, Cmid_p)), full((1, Cmid_p)),
                full((9 * Cmid_p, Cout_p)),
                full((1, Cout_p)), full((1, Cout_p)),
                full((Cin_p, Cout_p)),
                full((1, Cout_p)), full((1, Cout_p)),
            ],
            out_specs=pl.BlockSpec((pl.Squeezed(), H, W, Cout_p),
                                   lambda n: (n, 0, 0, 0)),
            scratch_shapes=[pltpu.VMEM((H + 2, W + 2, Cmid_p), jnp.bfloat16)],
        ),
        compiler_params=pltpu.CompilerParams(
            dimension_semantics=("parallel",)),   # v7x: shard batch over 2 TCs
    )(x_pad, w1_r, s1, b1, w2_r, s2, b2, wd_r, sd, bd)

    # NHWC -> NCHW, drop channel padding.
    return jnp.transpose(out[..., :Cout], (0, 3, 1, 2))


def reference_res_block(x_nchw, params):
    """Pure-JAX reference (inference BN, bf16 matmuls / f32 accum), NCHW in/out."""
    Cin = x_nchw.shape[1]
    Cout = params["w2"].shape[-1]
    has_downsample = (Cin != Cout)
    x = jnp.transpose(x_nchw, (0, 2, 3, 1)).astype(jnp.float32)

    def conv(v, w):
        return jax.lax.conv_general_dilated(
            v.astype(jnp.bfloat16), w.astype(jnp.bfloat16), (1, 1), "SAME",
            dimension_numbers=("NHWC", "HWIO", "NHWC"),
            preferred_element_type=jnp.float32)

    def bn(v, g, b, m, var):
        return (v - m) / jnp.sqrt(var + 1e-5) * g + b

    h = jax.nn.relu(bn(conv(x, params["w1"]),
                       params["g1"], params["be1"], params["m1"], params["v1"]))
    h = bn(conv(h, params["w2"]),
           params["g2"], params["be2"], params["m2"], params["v2"])
    if has_downsample:
        wd_1x1 = params["wd"].reshape(1, 1, *params["wd"].shape)
        res = bn(conv(x, wd_1x1),
                 params["gd"], params["bed"], params["md"], params["vd"])
    else:
        res = x
    return jnp.transpose(jax.nn.relu(h + res), (0, 3, 1, 2))


def make_params(key, in_ch, out_ch):
    ks = jax.random.split(key, 16)
    return {
        "w1": 0.1 * jax.random.normal(ks[0], (3, 3, in_ch, out_ch), jnp.float32),
        "w2": 0.1 * jax.random.normal(ks[1], (3, 3, out_ch, out_ch), jnp.float32),
        "wd": 0.1 * jax.random.normal(ks[2], (in_ch, out_ch), jnp.float32),
        "g1": 1.0 + 0.1 * jax.random.normal(ks[3], (out_ch,), jnp.float32),
        "be1": 0.1 * jax.random.normal(ks[4], (out_ch,), jnp.float32),
        "m1": 0.1 * jax.random.normal(ks[5], (out_ch,), jnp.float32),
        "v1": jax.random.uniform(ks[6], (out_ch,), jnp.float32, 0.5, 1.5),
        "g2": 1.0 + 0.1 * jax.random.normal(ks[7], (out_ch,), jnp.float32),
        "be2": 0.1 * jax.random.normal(ks[8], (out_ch,), jnp.float32),
        "m2": 0.1 * jax.random.normal(ks[9], (out_ch,), jnp.float32),
        "v2": jax.random.uniform(ks[10], (out_ch,), jnp.float32, 0.5, 1.5),
        "gd": 1.0 + 0.1 * jax.random.normal(ks[11], (out_ch,), jnp.float32),
        "bed": 0.1 * jax.random.normal(ks[12], (out_ch,), jnp.float32),
        "md": 0.1 * jax.random.normal(ks[13], (out_ch,), jnp.float32),
        "vd": jax.random.uniform(ks[14], (out_ch,), jnp.float32, 0.5, 1.5),
    }


if __name__ == "__main__":
    key = jax.random.PRNGKey(0)
    k_x, k_p, k_x2, k_p2 = jax.random.split(key, 4)

    # Case 1: Cin != Cout -> 1x1-conv + BN downsample branch active.
    N, Cin, H, W = 2, 4, 16, 16
    Cout = 8
    x = jax.random.normal(k_x, (N, Cin, H, W), jnp.float32)
    params = make_params(k_p, Cin, Cout)

    out = jax.block_until_ready(basic_res_block(x, params))
    ref = jax.block_until_ready(reference_res_block(x, params))
    np.testing.assert_allclose(np.asarray(out), np.asarray(ref),
                               rtol=2e-3, atol=2e-3)
    assert out.shape == (N, Cout, H, W)

    # Case 2: Cin == Cout -> identity residual (no downsample), per PyTorch spec.
    x2 = jax.random.normal(k_x2, (N, 8, H, W), jnp.float32)
    params2 = make_params(k_p2, 8, 8)
    out2 = jax.block_until_ready(basic_res_block(x2, params2))
    ref2 = jax.block_until_ready(reference_res_block(x2, params2))
    np.testing.assert_allclose(np.asarray(out2), np.asarray(ref2),
                               rtol=2e-3, atol=2e-3)
    assert out2.shape == (N, 8, H, W)

    print("KERNEL_OK")
</pallas_src>

<mosaic_0001>
module attributes {stable_mosaic.version = 11 : i64} {
  func.func @_res_block_kernel(%arg0: i32, %arg1: memref<1x18x18x128xbf16, #tpu.memory_space<vmem>>, %arg2: memref<1152x128xbf16, #tpu.memory_space<vmem>>, %arg3: memref<1x128xf32, #tpu.memory_space<vmem>>, %arg4: memref<1x128xf32, #tpu.memory_space<vmem>>, %arg5: memref<1152x128xbf16, #tpu.memory_space<vmem>>, %arg6: memref<1x128xf32, #tpu.memory_space<vmem>>, %arg7: memref<1x128xf32, #tpu.memory_space<vmem>>, %arg8: memref<128x128xbf16, #tpu.memory_space<vmem>>, %arg9: memref<1x128xf32, #tpu.memory_space<vmem>>, %arg10: memref<1x128xf32, #tpu.memory_space<vmem>>, %arg11: memref<1x16x16x128xf32, #tpu.memory_space<vmem>>, %arg12: memref<18x18x128xbf16, #tpu.memory_space<vmem>>) attributes {dimension_semantics = [#tpu.dimension_semantics<parallel>], iteration_bounds = array<i64: 2>, scalar_prefetch = 0 : i64, scratch_operands = 1 : i64, tpu.core_type = #tpu.core_type<tc>, window_params = [{transform_indices = @transform_0, window_bounds = array<i64: 1, 18, 18, 128>}, {pipeline_mode = #tpu.pipeline_mode<synchronous>, transform_indices = @transform_1, window_bounds = array<i64: 1152, 128>}, {pipeline_mode = #tpu.pipeline_mode<synchronous>, transform_indices = @transform_2, window_bounds = array<i64: 1, 128>}, {pipeline_mode = #tpu.pipeline_mode<synchronous>, transform_indices = @transform_3, window_bounds = array<i64: 1, 128>}, {pipeline_mode = #tpu.pipeline_mode<synchronous>, transform_indices = @transform_4, window_bounds = array<i64: 1152, 128>}, {pipeline_mode = #tpu.pipeline_mode<synchronous>, transform_indices = @transform_5, window_bounds = array<i64: 1, 128>}, {pipeline_mode = #tpu.pipeline_mode<synchronous>, transform_indices = @transform_6, window_bounds = array<i64: 1, 128>}, {pipeline_mode = #tpu.pipeline_mode<synchronous>, transform_indices = @transform_7, window_bounds = array<i64: 128, 128>}, {pipeline_mode = #tpu.pipeline_mode<synchronous>, transform_indices = @transform_8, window_bounds = array<i64: 1, 128>}, {pipeline_mode = #tpu.pipeline_mode<synchronous>, transform_indices = @transform_9, window_bounds = array<i64: 1, 128>}, {transform_indices = @transform_10, window_bounds = array<i64: 1, 16, 16, 128>}]} {
    %c0 = arith.constant 0 : index
    %c0_0 = arith.constant 0 : index
    %c0_1 = arith.constant 0 : index
    %c0_2 = arith.constant 0 : index
    %0 = vector.load %arg1[%c0, %c0_0, %c0_1, %c0_2] : memref<1x18x18x128xbf16, #tpu.memory_space<vmem>>, vector<1x18x18x128xbf16>
    %1 = vector.shape_cast %0 : vector<1x18x18x128xbf16> to vector<18x18x128xbf16>
    %2 = vector.extract_strided_slice %1 {offsets = [0, 0, 0], sizes = [16, 16, 128], strides = [1, 1, 1]} : vector<18x18x128xbf16> to vector<16x16x128xbf16>
    %3 = vector.shape_cast %2 : vector<16x16x128xbf16> to vector<256x128xbf16>
    %4 = vector.extract_strided_slice %1 {offsets = [0, 1, 0], sizes = [16, 16, 128], strides = [1, 1, 1]} : vector<18x18x128xbf16> to vector<16x16x128xbf16>
    %5 = vector.shape_cast %4 : vector<16x16x128xbf16> to vector<256x128xbf16>
    %6 = vector.extract_strided_slice %1 {offsets = [0, 2, 0], sizes = [16, 16, 128], strides = [1, 1, 1]} : vector<18x18x128xbf16> to vector<16x16x128xbf16>
    %7 = vector.shape_cast %6 : vector<16x16x128xbf16> to vector<256x128xbf16>
    %8 = vector.extract_strided_slice %1 {offsets = [1, 0, 0], sizes = [16, 16, 128], strides = [1, 1, 1]} : vector<18x18x128xbf16> to vector<16x16x128xbf16>
    %9 = vector.shape_cast %8 : vector<16x16x128xbf16> to vector<256x128xbf16>
    %10 = vector.extract_strided_slice %1 {offsets = [1, 1, 0], sizes = [16, 16, 128], strides = [1, 1, 1]} : vector<18x18x128xbf16> to vector<16x16x128xbf16>
    %11 = vector.shape_cast %10 : vector<16x16x128xbf16> to vector<256x128xbf16>
    %12 = vector.extract_strided_slice %1 {offsets = [1, 2, 0], sizes = [16, 16, 128], strides = [1, 1, 1]} : vector<18x18x128xbf16> to vector<16x16x128xbf16>
    %13 = vector.shape_cast %12 : vector<16x16x128xbf16> to vector<256x128xbf16>
    %14 = vector.extract_strided_slice %1 {offsets = [2, 0, 0], sizes = [16, 16, 128], strides = [1, 1, 1]} : vector<18x18x128xbf16> to vector<16x16x128xbf16>
    %15 = vector.shape_cast %14 : vector<16x16x128xbf16> to vector<256x128xbf16>
    %16 = vector.extract_strided_slice %1 {offsets = [2, 1, 0], sizes = [16, 16, 128], strides = [1, 1, 1]} : vector<18x18x128xbf16> to vector<16x16x128xbf16>
    %17 = vector.shape_cast %16 : vector<16x16x128xbf16> to vector<256x128xbf16>
    %18 = vector.extract_strided_slice %1 {offsets = [2, 2, 0], sizes = [16, 16, 128], strides = [1, 1, 1]} : vector<18x18x128xbf16> to vector<16x16x128xbf16>
    %19 = vector.shape_cast %18 : vector<16x16x128xbf16> to vector<256x128xbf16>
    %20 = tpu.concatenate %3, %5, %7, %9, %11, %13, %15, %17, %19 in 1 : vector<256x128xbf16>, vector<256x128xbf16>, vector<256x128xbf16>, vector<256x128xbf16>, vector<256x128xbf16>, vector<256x128xbf16>, vector<256x128xbf16>, vector<256x128xbf16>, vector<256x128xbf16> -> vector<256x1152xbf16>
    %c0_3 = arith.constant 0 : index
    %c0_4 = arith.constant 0 : index
    %21 = vector.load %arg2[%c0_3, %c0_4] : memref<1152x128xbf16, #tpu.memory_space<vmem>>, vector<1152x128xbf16>
    %cst = arith.constant dense<0.000000e+00> : vector<256x128xf32>
    %22 = tpu.matmul %20, %21, %cst {dimension_numbers = #tpu.dot_dimension_numbers<[1], [0], [0], [1], [0, 0, 1, 1], [], []>} : vector<256x1152xbf16>, vector<1152x128xbf16>, vector<256x128xf32> -> vector<256x128xf32>
    %c0_5 = arith.constant 0 : index
    %c0_6 = arith.constant 0 : index
    %23 = vector.load %arg3[%c0_5, %c0_6] : memref<1x128xf32, #tpu.memory_space<vmem>>, vector<1x128xf32>
    %24 = vector.broadcast %23 : vector<1x128xf32> to vector<256x128xf32>
    %25 = arith.mulf %22, %24 : vector<256x128xf32>
    %c0_7 = arith.constant 0 : index
    %c0_8 = arith.constant 0 : index
    %26 = vector.load %arg4[%c0_7, %c0_8] : memref<1x128xf32, #tpu.memory_space<vmem>>, vector<1x128xf32>
    %27 = vector.broadcast %26 : vector<1x128xf32> to vector<256x128xf32>
    %28 = arith.addf %25, %27 : vector<256x128xf32>
    %cst_9 = arith.constant 0.000000e+00 : f32
    %29 = vector.broadcast %cst_9 : f32 to vector<256x128xf32>
    %30 = arith.maximumf %28, %29 : vector<256x128xf32>
    %cst_10 = arith.constant 0.000000e+00 : bf16
    %31 = vector.broadcast %cst_10 : bf16 to vector<18x128xbf16>
    %cst_11 = arith.constant 0.000000e+00 : bf16
    %32 = vector.broadcast %cst_11 : bf16 to vector<18x1x128xbf16>
    %c0_12 = arith.constant 0 : index
    %c0_13 = arith.constant 0 : index
    %c0_14 = arith.constant 0 : index
    %33 = vector.load %arg12[%c0_12, %c0_13, %c0_14] : memref<18x18x128xbf16, #tpu.memory_space<vmem>>, vector<1x18x128xbf16>
    %34 = vector.shape_cast %33 : vector<1x18x128xbf16> to vector<18x128xbf16>
    %35 = vector.shape_cast %31 : vector<18x128xbf16> to vector<1x18x128xbf16>
    tpu.vector_store %arg12[%c0_12, %c0_13, %c0_14], %35 {strides = array<i32>} : memref<18x18x128xbf16, #tpu.memory_space<vmem>>, vector<1x18x128xbf16>,
    %c17 = arith.constant 17 : index
    %c0_15 = arith.constant 0 : index
    %c0_16 = arith.constant 0 : index
    %36 = vector.load %arg12[%c17, %c0_15, %c0_16] : memref<18x18x128xbf16, #tpu.memory_space<vmem>>, vector<1x18x128xbf16>
    %37 = vector.shape_cast %36 : vector<1x18x128xbf16> to vector<18x128xbf16>
    %38 = vector.shape_cast %31 : vector<18x128xbf16> to vector<1x18x128xbf16>
    tpu.vector_store %arg12[%c17, %c0_15, %c0_16], %38 {strides = array<i32>} : memref<18x18x128xbf16, #tpu.memory_space<vmem>>, vector<1x18x128xbf16>,
    %c0_17 = arith.constant 0 : index
    %c0_18 = arith.constant 0 : index
    %c0_19 = arith.constant 0 : index
    %39 = vector.load %arg12[%c0_17, %c0_18, %c0_19] : memref<18x18x128xbf16, #tpu.memory_space<vmem>>, vector<18x1x128xbf16>
    tpu.vector_store %arg12[%c0_17, %c0_18, %c0_19], %32 {strides = array<i32>} : memref<18x18x128xbf16, #tpu.memory_space<vmem>>, vector<18x1x128xbf16>,
    %c0_20 = arith.constant 0 : index
    %c17_21 = arith.constant 17 : index
    %c0_22 = arith.constant 0 : index
    %40 = vector.load %arg12[%c0_20, %c17_21, %c0_22] : memref<18x18x128xbf16, #tpu.memory_space<vmem>>, vector<18x1x128xbf16>
    tpu.vector_store %arg12[%c0_20, %c17_21, %c0_22], %32 {strides = array<i32>} : memref<18x18x128xbf16, #tpu.memory_space<vmem>>, vector<18x1x128xbf16>,
    %41 = vector.shape_cast %30 : vector<256x128xf32> to vector<16x16x128xf32>
    %42 = arith.truncf %41 : vector<16x16x128xf32> to vector<16x16x128xbf16>
    %c1 = arith.constant 1 : index
    %c1_23 = arith.constant 1 : index
    %c0_24 = arith.constant 0 : index
    %43 = vector.load %arg12[%c1, %c1_23, %c0_24] : memref<18x18x128xbf16, #tpu.memory_space<vmem>>, vector<16x16x128xbf16>
    tpu.vector_store %arg12[%c1, %c1_23, %c0_24], %42 {strides = array<i32>} : memref<18x18x128xbf16, #tpu.memory_space<vmem>>, vector<16x16x128xbf16>,
    %c0_25 = arith.constant 0 : index
    %c0_26 = arith.constant 0 : index
    %c0_27 = arith.constant 0 : index
    %44 = vector.load %arg12[%c0_25, %c0_26, %c0_27] : memref<18x18x128xbf16, #tpu.memory_space<vmem>>, vector<16x16x128xbf16>
    %45 = vector.shape_cast %44 : vector<16x16x128xbf16> to vector<256x128xbf16>
    %c0_28 = arith.constant 0 : index
    %c1_29 = arith.constant 1 : index
    %c0_30 = arith.constant 0 : index
    %46 = vector.load %arg12[%c0_28, %c1_29, %c0_30] : memref<18x18x128xbf16, #tpu.memory_space<vmem>>, vector<16x16x128xbf16>
    %47 = vector.shape_cast %46 : vector<16x16x128xbf16> to vector<256x128xbf16>
    %c0_31 = arith.constant 0 : index
    %c2 = arith.constant 2 : index
    %c0_32 = arith.constant 0 : index
    %48 = vector.load %arg12[%c0_31, %c2, %c0_32] : memref<18x18x128xbf16, #tpu.memory_space<vmem>>, vector<16x16x128xbf16>
    %49 = vector.shape_cast %48 : vector<16x16x128xbf16> to vector<256x128xbf16>
    %c1_33 = arith.constant 1 : index
    %c0_34 = arith.constant 0 : index
    %c0_35 = arith.constant 0 : index
    %50 = vector.load %arg12[%c1_33, %c0_34, %c0_35] : memref<18x18x128xbf16, #tpu.memory_space<vmem>>, vector<16x16x128xbf16>
    %51 = vector.shape_cast %50 : vector<16x16x128xbf16> to vector<256x128xbf16>
    %c1_36 = arith.constant 1 : index
    %c1_37 = arith.constant 1 : index
    %c0_38 = arith.constant 0 : index
    %52 = vector.load %arg12[%c1_36, %c1_37, %c0_38] : memref<18x18x128xbf16, #tpu.memory_space<vmem>>, vector<16x16x128xbf16>
    %53 = vector.shape_cast %52 : vector<16x16x128xbf16> to vector<256x128xbf16>
    %c1_39 = arith.constant 1 : index
    %c2_40 = arith.constant 2 : index
    %c0_41 = arith.constant 0 : index
    %54 = vector.load %arg12[%c1_39, %c2_40, %c0_41] : memref<18x18x128xbf16, #tpu.memory_space<vmem>>, vector<16x16x128xbf16>
    %55 = vector.shape_cast %54 : vector<16x16x128xbf16> to vector<256x128xbf16>
    %c2_42 = arith.constant 2 : index
    %c0_43 = arith.constant 0 : index
    %c0_44 = arith.constant 0 : index
    %56 = vector.load %arg12[%c2_42, %c0_43, %c0_44] : memref<18x18x128xbf16, #tpu.memory_space<vmem>>, vector<16x16x128xbf16>
    %57 = vector.shape_cast %56 : vector<16x16x128xbf16> to vector<256x128xbf16>
    %c2_45 = arith.constant 2 : index
    %c1_46 = arith.constant 1 : index
    %c0_47 = arith.constant 0 : index
    %58 = vector.load %arg12[%c2_45, %c1_46, %c0_47] : memref<18x18x128xbf16, #tpu.memory_space<vmem>>, vector<16x16x128xbf16>
    %59 = vector.shape_cast %58 : vector<16x16x128xbf16> to vector<256x128xbf16>
    %c2_48 = arith.constant 2 : index
    %c2_49 = arith.constant 2 : index
    %c0_50 = arith.constant 0 : index
    %60 = vector.load %arg12[%c2_48, %c2_49, %c0_50] : memref<18x18x128xbf16, #tpu.memory_space<vmem>>, vector<16x16x128xbf16>
    %61 = vector.shape_cast %60 : vector<16x16x128xbf16> to vector<256x128xbf16>
    %62 = tpu.concatenate %45, %47, %49, %51, %53, %55, %57, %59, %61 in 1 : vector<256x128xbf16>, vector<256x128xbf16>, vector<256x128xbf16>, vector<256x128xbf16>, vector<256x128xbf16>, vector<256x128xbf16>, vector<256x128xbf16>, vector<256x128xbf16>, vector<256x128xbf16> -> vector<256x1152xbf16>
    %c0_51 = arith.constant 0 : index
    %c0_52 = arith.constant 0 : index
    %63 = vector.load %arg5[%c0_51, %c0_52] : memref<1152x128xbf16, #tpu.memory_space<vmem>>, vector<1152x128xbf16>
    %cst_53 = arith.constant dense<0.000000e+00> : vector<256x128xf32>
    %64 = tpu.matmul %62, %63, %cst_53 {dimension_numbers = #tpu.dot_dimension_numbers<[1], [0], [0], [1], [0, 0, 1, 1], [], []>} : vector<256x1152xbf16>, vector<1152x128xbf16>, vector<256x128xf32> -> vector<256x128xf32>
    %c0_54 = arith.constant 0 : index
    %c0_55 = arith.constant 0 : index
    %65 = vector.load %arg6[%c0_54, %c0_55] : memref<1x128xf32, #tpu.memory_space<vmem>>, vector<1x128xf32>
    %66 = vector.broadcast %65 : vector<1x128xf32> to vector<256x128xf32>
    %67 = arith.mulf %64, %66 : vector<256x128xf32>
    %c0_56 = arith.constant 0 : index
    %c0_57 = arith.constant 0 : index
    %68 = vector.load %arg7[%c0_56, %c0_57] : memref<1x128xf32, #tpu.memory_space<vmem>>, vector<1x128xf32>
    %69 = vector.broadcast %68 : vector<1x128xf32> to vector<256x128xf32>
    %70 = arith.addf %67, %69 : vector<256x128xf32>
    %71 = vector.extract_strided_slice %1 {offsets = [1, 1, 0], sizes = [16, 16, 128], strides = [1, 1, 1]} : vector<18x18x128xbf16> to vector<16x16x128xbf16>
    %72 = vector.shape_cast %71 : vector<16x16x128xbf16> to vector<256x128xbf16>
    %c0_58 = arith.constant 0 : index
    %c0_59 = arith.constant 0 : index
    %73 = vector.load %arg8[%c0_58, %c0_59] : memref<128x128xbf16, #tpu.memory_space<vmem>>, vector<128x128xbf16>
    %cst_60 = arith.constant dense<0.000000e+00> : vector<256x128xf32>
    %74 = tpu.matmul %72, %73, %cst_60 {dimension_numbers = #tpu.dot_dimension_numbers<[1], [0], [0], [1], [0, 0, 1, 1], [], []>} : vector<256x128xbf16>, vector<128x128xbf16>, vector<256x128xf32> -> vector<256x128xf32>
    %c0_61 = arith.constant 0 : index
    %c0_62 = arith.constant 0 : index
    %75 = vector.load %arg9[%c0_61, %c0_62] : memref<1x128xf32, #tpu.memory_space<vmem>>, vector<1x128xf32>
    %76 = vector.broadcast %75 : vector<1x128xf32> to vector<256x128xf32>
    %77 = arith.mulf %74, %76 : vector<256x128xf32>
    %c0_63 = arith.constant 0 : index
    %c0_64 = arith.constant 0 : index
    %78 = vector.load %arg10[%c0_63, %c0_64] : memref<1x128xf32, #tpu.memory_space<vmem>>, vector<1x128xf32>
    %79 = vector.broadcast %78 : vector<1x128xf32> to vector<256x128xf32>
    %80 = arith.addf %77, %79 : vector<256x128xf32>
    %81 = arith.addf %70, %80 : vector<256x128xf32>
    %cst_65 = arith.constant 0.000000e+00 : f32
    %82 = vector.broadcast %cst_65 : f32 to vector<256x128xf32>
    %83 = arith.maximumf %81, %82 : vector<256x128xf32>
    %84 = vector.shape_cast %83 : vector<256x128xf32> to vector<16x16x128xf32>
    %c0_66 = arith.constant 0 : index
    %c0_67 = arith.constant 0 : index
    %c0_68 = arith.constant 0 : index
    %c0_69 = arith.constant 0 : index
    %85 = vector.load %arg11[%c0_66, %c0_67, %c0_68, %c0_69] : memref<1x16x16x128xf32, #tpu.memory_space<vmem>>, vector<1x16x16x128xf32>
    %86 = vector.shape_cast %85 : vector<1x16x16x128xf32> to vector<16x16x128xf32>
    %87 = vector.shape_cast %84 : vector<16x16x128xf32> to vector<1x16x16x128xf32>
    tpu.vector_store %arg11[%c0_66, %c0_67, %c0_68, %c0_69], %87 {strides = array<i32>} : memref<1x16x16x128xf32, #tpu.memory_space<vmem>>, vector<1x16x16x128xf32>,
    return
  }
  func.func @transform_0(%arg0: i32) -> (i32, i32, i32, i32) {
    %c0_i32 = arith.constant 0 : i32
    %c0_i32_0 = arith.constant 0 : i32
    %c0_i32_1 = arith.constant 0 : i32
    %c0_i32_2 = arith.constant 0 : i32
    return %arg0, %c0_i32, %c0_i32_0, %c0_i32_1 : i32, i32, i32, i32
  }
  func.func @transform_1(%arg0: i32) -> (i32, i32) {
    %c0_i32 = arith.constant 0 : i32
    %c0_i32_0 = arith.constant 0 : i32
    %c0_i32_1 = arith.constant 0 : i32
    return %c0_i32, %c0_i32_0 : i32, i32
  }
  func.func @transform_2(%arg0: i32) -> (i32, i32) {
    %c0_i32 = arith.constant 0 : i32
    %c0_i32_0 = arith.constant 0 : i32
    %c0_i32_1 = arith.constant 0 : i32
    return %c0_i32, %c0_i32_0 : i32, i32
  }
  func.func @transform_3(%arg0: i32) -> (i32, i32) {
    %c0_i32 = arith.constant 0 : i32
    %c0_i32_0 = arith.constant 0 : i32
    %c0_i32_1 = arith.constant 0 : i32
    return %c0_i32, %c0_i32_0 : i32, i32
  }
  func.func @transform_4(%arg0: i32) -> (i32, i32) {
    %c0_i32 = arith.constant 0 : i32
    %c0_i32_0 = arith.constant 0 : i32
    %c0_i32_1 = arith.constant 0 : i32
    return %c0_i32, %c0_i32_0 : i32, i32
  }
  func.func @transform_5(%arg0: i32) -> (i32, i32) {
    %c0_i32 = arith.constant 0 : i32
    %c0_i32_0 = arith.constant 0 : i32
    %c0_i32_1 = arith.constant 0 : i32
    return %c0_i32, %c0_i32_0 : i32, i32
  }
  func.func @transform_6(%arg0: i32) -> (i32, i32) {
    %c0_i32 = arith.constant 0 : i32
    %c0_i32_0 = arith.constant 0 : i32
    %c0_i32_1 = arith.constant 0 : i32
    return %c0_i32, %c0_i32_0 : i32, i32
  }
  func.func @transform_7(%arg0: i32) -> (i32, i32) {
    %c0_i32 = arith.constant 0 : i32
    %c0_i32_0 = arith.constant 0 : i32
    %c0_i32_1 = arith.constant 0 : i32
    return %c0_i32, %c0_i32_0 : i32, i32
  }
  func.func @transform_8(%arg0: i32) -> (i32, i32) {
    %c0_i32 = arith.constant 0 : i32
    %c0_i32_0 = arith.constant 0 : i32
    %c0_i32_1 = arith.constant 0 : i32
    return %c0_i32, %c0_i32_0 : i32, i32
  }
  func.func @transform_9(%arg0: i32) -> (i32, i32) {
    %c0_i32 = arith.constant 0 : i32
    %c0_i32_0 = arith.constant 0 : i32
    %c0_i32_1 = arith.constant 0 : i32
    return %c0_i32, %c0_i32_0 : i32, i32
  }
  func.func @transform_10(%arg0: i32) -> (i32, i32, i32, i32) {
    %c0_i32 = arith.constant 0 : i32
    %c0_i32_0 = arith.constant 0 : i32
    %c0_i32_1 = arith.constant 0 : i32
    %c0_i32_2 = arith.constant 0 : i32
    return %arg0, %c0_i32, %c0_i32_0, %c0_i32_1 : i32, i32, i32, i32
  }
}

</mosaic_0001>

<llo_original>
// kernel: tpu_custom_call.1
$region0: #{tpu_custom_call.1}
  #allocation0 [shape = 'u32[]', space=smem, size = 0x4, offset = 0x4, fixed_abs, tag = 'smem constant byte address 0x4 - core index']
  #allocation1 [shape = 'u32[144,128]{1,0:T(1,128)}', space=vmem, size = 0x12000, scoped, tag = 'internal scratch']
  #allocation2 [shape = 'bf16[18,18,128]{2,1,0:T(8,128)(2,1)}', space=vmem, size = 0x1b000, scoped, tag = 'scratch operand']
  %s0 = inlined_call_operand.vmem [shape: bf16[2,18,18,128], index: 0, kind: input, shape index: {}]
  %s1 = inlined_call_operand.vmem [shape: bf16[1152,128], index: 1, kind: input, shape index: {}]
  %s2 = inlined_call_operand.vmem [shape: f32[1,128], index: 2, kind: input, shape index: {}]
  %s3 = inlined_call_operand.vmem [shape: f32[1,128], index: 3, kind: input, shape index: {}]
  %s4 = inlined_call_operand.hbm [shape: bf16[1152,128], index: 4, kind: input, shape index: {}]
  %s5 = inlined_call_operand.vmem [shape: f32[1,128], index: 5, kind: input, shape index: {}]
  %s6 = inlined_call_operand.vmem [shape: f32[1,128], index: 6, kind: input, shape index: {}]
  %s7 = inlined_call_operand.vmem [shape: bf16[128,128], index: 7, kind: input, shape index: {}]
  %s8 = inlined_call_operand.vmem [shape: f32[1,128], index: 8, kind: input, shape index: {}]
  %s9 = inlined_call_operand.vmem [shape: f32[1,128], index: 9, kind: input, shape index: {}]
  %s10 = inlined_call_operand.hbm [shape: f32[2,16,16,128], index: 10, kind: output, shape index: {}]
  %s11 = sld [smem:[#allocation0]]
  $region77: #{tpu_custom_call.1} parent=0
    _
  %s13 = ssub.s32 1, %s11
  %s14 = scalar_select 0, %s13, %s11
  $region1: #{tpu_custom_call.1} parent=0
    #allocation3 [shape = 'u8[294912]{0}', space=vmem, size = 0x48000, scoped, tag = 'input window, operand 4, single buffered']
    #allocation4 [shape = 's32[2]{0}', space=sflag, size = 0x8, scoped, tag = 'scoped memory for tpu_custom_call.1']
    #allocation5 [shape = 's32[2]{0}', space=sflag, size = 0x8, scoped, tag = 'scoped memory for tpu_custom_call.1']
    #allocation6 [shape = 'u8[262144]{0}', space=vmem, size = 0x40000, scoped, tag = 'output window, operand 0']
    %15 = vsyncpa [#allocation4], 0
    %16 = vsyncpa [#allocation5], 0
    %s17 = scalar_lea.sflag [#allocation5], 1
    %18 = vsyncpa %s17, 0
    loop: start=0, step=1, limit=4
    $region2: #{tpu_custom_call.1} parent=1 // loop_pre_header
      _
    $region3: #{tpu_custom_call.1} parent=1 // loop_header
      %s20 = sphi 0, %s24
      %p21 = scmp.ge.s32.totalorder %s20, 4
      %s30 = sphi 0, %s32
      %s33 = sphi 0, %s30
      %s34 = sphi 0, %s33
      %s50 = sphi 0, %s34
      %s54 = sphi 0, %s54
      %s56 = sphi 0, %s54
      %s57 = sphi 0, %s56
      %s71 = sphi 0, %s57
      %s75 = sphi 0, %s75
      %s77 = sphi 0, %s75
      %s78 = sphi 0, %s77
      %s92 = sphi 0, %s78
      %s96 = sphi 0, %s96
      %s98 = sphi 0, %s96
      %s99 = sphi 0, %s98
      %s113 = sphi 0, %s99
      %s117 = sphi 0, %s117
      %s119 = sphi 0, %s117
      %s120 = sphi 0, %s119
      %s134 = sphi 0, %s120
      %s138 = sphi 0, %s138
      %s140 = sphi 0, %s138
      %s141 = sphi 0, %s140
      %s155 = sphi 0, %s141
      %s159 = sphi 0, %s159
      %s161 = sphi 0, %s159
      %s162 = sphi 0, %s161
      %s176 = sphi 0, %s162
      %s180 = sphi 0, %s180
      %s182 = sphi 0, %s180
      %s183 = sphi 0, %s182
      %s197 = sphi 0, %s183
      %s201 = sphi 0, %s201
      %s203 = sphi 0, %s201
      %s204 = sphi 0, %s203
      %s218 = sphi 0, %s204
      %s222 = sphi 0, %s222
      %s224 = sphi 0, %s222
      %s225 = sphi 0, %s224
      %s239 = sphi 0, %s225
      %s245 = sphi 0, %s247
      %s248 = sphi 0, %s245
      %s249 = sphi 0, %s248
      %s265 = sphi 0, %s249
    $region4: #{tpu_custom_call.1} parent=1 // loop_header_branch
      %23 = sbr.rel (%p21) target = $region8
    $region5: #{tpu_custom_call.1} parent=1 // loop_body
      %s25 = ssub.s32 %s20, 1
      %s26 = ssub.s32 %s20, 2
      %s27 = sadd.s32 %s20, 1
      %s28 = ssub.s32 %s20, %s27
      %p29 = scmp.eq.s32.totalorder %s28, 0
      %s31 = sadd.s32 %s30, 1
      %s32 = scalar_select %p29, %s30, %s31
      %p35 = pneg %p29
      %p36 = scmp.eq.s32.totalorder %s20, 1
      %p37 = por %p35, %p36
      %p38 = scmp.ne.s32.totalorder %s30, %s33
      %p39 = scmp.eq.s32.totalorder %s20, 0
      %p40 = por %p38, %p39
      %p41 = scmp.ne.s32.totalorder %s30, %s33
      %p42 = scmp.eq.s32.totalorder %s25, 1
      %p43 = por %p41, %p42
      %p44 = scmp.ne.s32.totalorder %s33, %s34
      %p45 = scmp.eq.s32.totalorder %s25, 0
      %p46 = por %p44, %p45
      %p47 = scmp.ne.s32.totalorder %s33, %s34
      %p48 = scmp.eq.s32.totalorder %s26, 1
      %p49 = por %p47, %p48
      %p51 = scmp.ne.s32.totalorder %s34, %s50
      %p52 = scmp.eq.s32.totalorder %s26, 0
      %p53 = por %p51, %p52
      %s55 = sadd.s32 %s54, 1
      %p58 = scmp.eq.s32.totalorder %s20, 1
      %p59 = scmp.ne.s32.totalorder %s54, %s56
      %p60 = scmp.eq.s32.totalorder %s20, 0
      %p61 = por %p59, %p60
      %p62 = scmp.ne.s32.totalorder %s54, %s56
      %p63 = scmp.eq.s32.totalorder %s25, 1
      %p64 = por %p62, %p63
      %p65 = scmp.ne.s32.totalorder %s56, %s57
      %p66 = scmp.eq.s32.totalorder %s25, 0
      %p67 = por %p65, %p66
      %p68 = scmp.ne.s32.totalorder %s56, %s57
      %p69 = scmp.eq.s32.totalorder %s26, 1
      %p70 = por %p68, %p69
      %p72 = scmp.ne.s32.totalorder %s57, %s71
      %p73 = scmp.eq.s32.totalorder %s26, 0
      %p74 = por %p72, %p73
      %s76 = sadd.s32 %s75, 1
      %p79 = scmp.eq.s32.totalorder %s20, 1
      %p80 = scmp.ne.s32.totalorder %s75, %s77
      %p81 = scmp.eq.s32.totalorder %s20, 0
      %p82 = por %p80, %p81
      %p83 = scmp.ne.s32.totalorder %s75, %s77
      %p84 = scmp.eq.s32.totalorder %s25, 1
      %p85 = por %p83, %p84
      %p86 = scmp.ne.s32.totalorder %s77, %s78
      %p87 = scmp.eq.s32.totalorder %s25, 0
      %p88 = por %p86, %p87
      %p89 = scmp.ne.s32.totalorder %s77, %s78
      %p90 = scmp.eq.s32.totalorder %s26, 1
      %p91 = por %p89, %p90
      %p93 = scmp.ne.s32.totalorder %s78, %s92
      %p94 = scmp.eq.s32.totalorder %s26, 0
      %p95 = por %p93, %p94
      %s97 = sadd.s32 %s96, 1
      %p100 = scmp.eq.s32.totalorder %s20, 1
      %p101 = scmp.ne.s32.totalorder %s96, %s98
      %p102 = scmp.eq.s32.totalorder %s20, 0
      %p103 = por %p101, %p102
      %p104 = scmp.ne.s32.totalorder %s96, %s98
      %p105 = scmp.eq.s32.totalorder %s25, 1
      %p106 = por %p104, %p105
      %p107 = scmp.ne.s32.totalorder %s98, %s99
      %p108 = scmp.eq.s32.totalorder %s25, 0
      %p109 = por %p107, %p108
      %p110 = scmp.ne.s32.totalorder %s98, %s99
      %p111 = scmp.eq.s32.totalorder %s26, 1
      %p112 = por %p110, %p111
      %p114 = scmp.ne.s32.totalorder %s99, %s113
      %p115 = scmp.eq.s32.totalorder %s26, 0
      %p116 = por %p114, %p115
      %s118 = sadd.s32 %s117, 1
      %p121 = scmp.eq.s32.totalorder %s20, 1
      %p122 = scmp.ne.s32.totalorder %s117, %s119
      %p123 = scmp.eq.s32.totalorder %s20, 0
      %p124 = por %p122, %p123
      %p125 = scmp.ne.s32.totalorder %s117, %s119
      %p126 = scmp.eq.s32.totalorder %s25, 1
      %p127 = por %p125, %p126
      %p128 = scmp.ne.s32.totalorder %s119, %s120
      %p129 = scmp.eq.s32.totalorder %s25, 0
      %p130 = por %p128, %p129
      %p131 = scmp.ne.s32.totalorder %s119, %s120
      %p132 = scmp.eq.s32.totalorder %s26, 1
      %p133 = por %p131, %p132
      %p135 = scmp.ne.s32.totalorder %s120, %s134
      %p136 = scmp.eq.s32.totalorder %s26, 0
      %p137 = por %p135, %p136
      %s139 = sadd.s32 %s138, 1
      %p142 = scmp.eq.s32.totalorder %s20, 1
      %p143 = scmp.ne.s32.totalorder %s138, %s140
      %p144 = scmp.eq.s32.totalorder %s20, 0
      %p145 = por %p143, %p144
      %p146 = scmp.ne.s32.totalorder %s138, %s140
      %p147 = scmp.eq.s32.totalorder %s25, 1
      %p148 = por %p146, %p147
      %p149 = scmp.ne.s32.totalorder %s140, %s141
      %p150 = scmp.eq.s32.totalorder %s25, 0
      %p151 = por %p149, %p150
      %p152 = scmp.ne.s32.totalorder %s140, %s141
      %p153 = scmp.eq.s32.totalorder %s26, 1
      %p154 = por %p152, %p153
      %p156 = scmp.ne.s32.totalorder %s141, %s155
      %p157 = scmp.eq.s32.totalorder %s26, 0
      %p158 = por %p156, %p157
      %s160 = sadd.s32 %s159, 1
      %p163 = scmp.eq.s32.totalorder %s20, 1
      %p164 = scmp.ne.s32.totalorder %s159, %s161
      %p165 = scmp.eq.s32.totalorder %s20, 0
      %p166 = por %p164, %p165
      %p167 = scmp.ne.s32.totalorder %s159, %s161
      %p168 = scmp.eq.s32.totalorder %s25, 1
      %p169 = por %p167, %p168
      %p170 = scmp.ne.s32.totalorder %s161, %s162
      %p171 = scmp.eq.s32.totalorder %s25, 0
      %p172 = por %p170, %p171
      %p173 = scmp.ne.s32.totalorder %s161, %s162
      %p174 = scmp.eq.s32.totalorder %s26, 1
      %p175 = por %p173, %p174
      %p177 = scmp.ne.s32.totalorder %s162, %s176
      %p178 = scmp.eq.s32.totalorder %s26, 0
      %p179 = por %p177, %p178
      %s181 = sadd.s32 %s180, 1
      %p184 = scmp.eq.s32.totalorder %s20, 1
      %p185 = scmp.ne.s32.totalorder %s180, %s182
      %p186 = scmp.eq.s32.totalorder %s20, 0
      %p187 = por %p185, %p186
      %p188 = scmp.ne.s32.totalorder %s180, %s182
      %p189 = scmp.eq.s32.totalorder %s25, 1
      %p190 = por %p188, %p189
      %p191 = scmp.ne.s32.totalorder %s182, %s183
      %p192 = scmp.eq.s32.totalorder %s25, 0
      %p193 = por %p191, %p192
      %p194 = scmp.ne.s32.totalorder %s182, %s183
      %p195 = scmp.eq.s32.totalorder %s26, 1
      %p196 = por %p194, %p195
      %p198 = scmp.ne.s32.totalorder %s183, %s197
      %p199 = scmp.eq.s32.totalorder %s26, 0
      %p200 = por %p198, %p199
      %s202 = sadd.s32 %s201, 1
      %p205 = scmp.eq.s32.totalorder %s20, 1
      %p206 = scmp.ne.s32.totalorder %s201, %s203
      %p207 = scmp.eq.s32.totalorder %s20, 0
      %p208 = por %p206, %p207
      %p209 = scmp.ne.s32.totalorder %s201, %s203
      %p210 = scmp.eq.s32.totalorder %s25, 1
      %p211 = por %p209, %p210
      %p212 = scmp.ne.s32.totalorder %s203, %s204
      %p213 = scmp.eq.s32.totalorder %s25, 0
      %p214 = por %p212, %p213
      %p215 = scmp.ne.s32.totalorder %s203, %s204
      %p216 = scmp.eq.s32.totalorder %s26, 1
      %p217 = por %p215, %p216
      %p219 = scmp.ne.s32.totalorder %s204, %s218
      %p220 = scmp.eq.s32.totalorder %s26, 0
      %p221 = por %p219, %p220
      %s223 = sadd.s32 %s222, 1
      %p226 = scmp.eq.s32.totalorder %s20, 1
      %p227 = scmp.ne.s32.totalorder %s222, %s224
      %p228 = scmp.eq.s32.totalorder %s20, 0
      %p229 = por %p227, %p228
      %p230 = scmp.ne.s32.totalorder %s222, %s224
      %p231 = scmp.eq.s32.totalorder %s25, 1
      %p232 = por %p230, %p231
      %p233 = scmp.ne.s32.totalorder %s224, %s225
      %p234 = scmp.eq.s32.totalorder %s25, 0
      %p235 = por %p233, %p234
      %p236 = scmp.ne.s32.totalorder %s224, %s225
      %p237 = scmp.eq.s32.totalorder %s26, 1
      %p238 = por %p236, %p237
      %p240 = scmp.ne.s32.totalorder %s225, %s239
      %p241 = scmp.eq.s32.totalorder %s26, 0
      %p242 = por %p240, %p241
      %s243 = ssub.s32 %s20, %s27
      %p244 = scmp.eq.s32.totalorder %s243, 0
      %s246 = sadd.s32 %s245, 1
      %s247 = scalar_select %p244, %s245, %s246
      %p250 = pneg %p244
      %p251 = scmp.eq.s32.totalorder %s20, 1
      %p252 = por %p250, %p251
      %p253 = scmp.ne.s32.totalorder %s245, %s248
      %p254 = scmp.eq.s32.totalorder %s20, 0
      %p255 = por %p253, %p254
      %p256 = scmp.ne.s32.totalorder %s245, %s248
      %p257 = scmp.eq.s32.totalorder %s25, 1
      %p258 = por %p256, %p257
      %p259 = scmp.ne.s32.totalorder %s248, %s249
      %p260 = scmp.eq.s32.totalorder %s25, 0
      %p261 = por %p259, %p260
      %p262 = scmp.ne.s32.totalorder %s248, %s249
      %p263 = scmp.eq.s32.totalorder %s26, 1
      %p264 = por %p262, %p263
      %p266 = scmp.ne.s32.totalorder %s249, %s265
      %p267 = scmp.eq.s32.totalorder %s26, 0
      %p268 = por %p266, %p267
      %p269 = scmp.le.s32.totalorder 1, %s20
      %p270 = scmp.lt.s32.totalorder %s20, 3
      %p271 = pnand %p269, %p270
      %p272 = pneg %p271
      // Predicated region
      $region9: #{tpu_custom_call.1} parent=5 // pred_check
        _
      $region10: #{tpu_custom_call.1} parent=5 // pred_check_branch
        %274 = sbr.rel (%p271) target = $region12
      $region11: #{tpu_custom_call.1} parent=5 // pred_region
        %s275 = ssub.s32 %s20, 1
        // Predicated region
        $region13: #{tpu_custom_call.1} parent=11 // pred_check
          %p276 = pneg %p67
        $region14: #{tpu_custom_call.1} parent=11 // pred_check_branch
          %278 = sbr.rel (%p276) target = $region16
        $region15: #{tpu_custom_call.1} parent=11 // pred_region
          _
        $region16: #{tpu_custom_call.1} parent=11 // pred_fallthru
          _
        // Predicated region
        $region17: #{tpu_custom_call.1} parent=11 // pred_check
          %p279 = pneg %p88
        $region18: #{tpu_custom_call.1} parent=11 // pred_check_branch
          %281 = sbr.rel (%p279) target = $region20
        $region19: #{tpu_custom_call.1} parent=11 // pred_region
          _
        $region20: #{tpu_custom_call.1} parent=11 // pred_fallthru
          _
        // Predicated region
        $region21: #{tpu_custom_call.1} parent=11 // pred_check
          %p282 = pneg %p109
        $region22: #{tpu_custom_call.1} parent=11 // pred_check_branch
          %284 = sbr.rel (%p282) target = $region24
        $region23: #{tpu_custom_call.1} parent=11 // pred_region
          _
        $region24: #{tpu_custom_call.1} parent=11 // pred_fallthru
          _
        // Predicated region
        $region25: #{tpu_custom_call.1} parent=11 // pred_check
          %p285 = pneg %p130
        $region26: #{tpu_custom_call.1} parent=11 // pred_check_branch
          %287 = sbr.rel (%p285) target = $region28
        $region27: #{tpu_custom_call.1} parent=11 // pred_region
          %s289 = ssub.s32 9216, 9216
          %290 = vsyncadd [#allocation4], %s289
          %s291 = sshll.u32 [#allocation3], 4
          %s292 = int_to_ptr.vmem [resolvable:$true] %s291
          %297 = dma.hbm_to_vmem [thread:$0]  %s4, 9216, %s292, [#allocation4], 64, 64, 4
        $region28: #{tpu_custom_call.1} parent=11 // pred_fallthru
          _
        // Predicated region
        $region29: #{tpu_custom_call.1} parent=11 // pred_check
          %p298 = pneg %p151
        $region30: #{tpu_custom_call.1} parent=11 // pred_check_branch
          %300 = sbr.rel (%p298) target = $region32
        $region31: #{tpu_custom_call.1} parent=11 // pred_region
          _
        $region32: #{tpu_custom_call.1} parent=11 // pred_fallthru
          _
        // Predicated region
        $region33: #{tpu_custom_call.1} parent=11 // pred_check
          %p301 = pneg %p172
        $region34: #{tpu_custom_call.1} parent=11 // pred_check_branch
          %303 = sbr.rel (%p301) target = $region36
        $region35: #{tpu_custom_call.1} parent=11 // pred_region
          _
        $region36: #{tpu_custom_call.1} parent=11 // pred_fallthru
          _
        // Predicated region
        $region37: #{tpu_custom_call.1} parent=11 // pred_check
          %p304 = pneg %p193
        $region38: #{tpu_custom_call.1} parent=11 // pred_check_branch
          %306 = sbr.rel (%p304) target = $region40
        $region39: #{tpu_custom_call.1} parent=11 // pred_region
          _
        $region40: #{tpu_custom_call.1} parent=11 // pred_fallthru
          _
        // Predicated region
        $region41: #{tpu_custom_call.1} parent=11 // pred_check
          %p307 = pneg %p214
        $region42: #{tpu_custom_call.1} parent=11 // pred_check_branch
          %309 = sbr.rel (%p307) target = $region44
        $region43: #{tpu_custom_call.1} parent=11 // pred_region
          _
        $region44: #{tpu_custom_call.1} parent=11 // pred_fallthru
          _
        // Predicated region
        $region45: #{tpu_custom_call.1} parent=11 // pred_check
          %p310 = pneg %p235
        $region46: #{tpu_custom_call.1} parent=11 // pred_check_branch
          %312 = sbr.rel (%p310) target = $region48
        $region47: #{tpu_custom_call.1} parent=11 // pred_region
          _
        $region48: #{tpu_custom_call.1} parent=11 // pred_fallthru
          _
      $region12: #{tpu_custom_call.1} parent=5 // pred_fallthru
        _
      %p313 = scmp.lt.s32.totalorder %s20, 2
      // Predicated region
      $region49: #{tpu_custom_call.1} parent=5 // pred_check
        %p314 = pneg %p313
      $region50: #{tpu_custom_call.1} parent=5 // pred_check_branch
        %316 = sbr.rel (%p314) target = $region52
      $region51: #{tpu_custom_call.1} parent=5 // pred_region
        // Predicated region
        $region53: #{tpu_custom_call.1} parent=51 // pred_check
          %p317 = pneg %p40
        $region54: #{tpu_custom_call.1} parent=51 // pred_check_branch
          %319 = sbr.rel (%p317) target = $region56
        $region55: #{tpu_custom_call.1} parent=51 // pred_region
          %p320 = scmp.lt.s32.totalorder %s20, 1
          %s321 = scalar_select %p320, %s20, 1
          %s322 = smul.addr %s321, 54
          %s323 = smul.addr %s322, 4
          %s324 = scalar_lea.vmem %s0, %s323
        $region56: #{tpu_custom_call.1} parent=51 // pred_fallthru
          _
      $region52: #{tpu_custom_call.1} parent=5 // pred_fallthru
        _
      %p325 = scmp.le.s32.totalorder 1, %s20
      %p326 = scmp.lt.s32.totalorder %s20, 3
      %p327 = pnand %p325, %p326
      %p328 = pneg %p327
      // Predicated region
      $region57: #{tpu_custom_call.1} parent=5 // pred_check
        _
      $region58: #{tpu_custom_call.1} parent=5 // pred_check_branch
        %330 = sbr.rel (%p327) target = $region60
      $region59: #{tpu_custom_call.1} parent=5 // pred_region
        %s331 = ssub.s32 %s20, 1
        // Predicated region
        $region61: #{tpu_custom_call.1} parent=59 // pred_check
          %p332 = pneg %p130
        $region62: #{tpu_custom_call.1} parent=59 // pred_check_branch
          %334 = sbr.rel (%p332) target = $region64
        $region63: #{tpu_custom_call.1} parent=59 // pred_region
          %335 = dma.done [#allocation4], 9216
        $region64: #{tpu_custom_call.1} parent=59 // pred_fallthru
          _
        %p336 = scmp.lt.s32.totalorder %s25, 1
        %s337 = scalar_select %p336, %s25, 1
        %s338 = smul.addr %s337, 54
        %s339 = smul.addr %s338, 4
        %s340 = scalar_lea.vmem %s0, %s339
        %p341 = pneg %p46
        %p342 = pneg %p43
        %p343 = pneg %p67
        %p344 = pneg %p64
        %p345 = pneg %p88
        %p346 = pneg %p85
        %p347 = pneg %p109
        %p348 = pneg %p106
        %p349 = pneg %p130
        %p350 = pneg %p127
        %p351 = pneg %p151
        %p352 = pneg %p148
        %p353 = pneg %p172
        %p354 = pneg %p169
        %p355 = pneg %p193
        %p356 = pneg %p190
        %p357 = pneg %p214
        %p358 = pneg %p211
        %p359 = pneg %p235
        %p360 = pneg %p232
        %p361 = pneg %p261
        %p362 = pneg %p258
        %s363 = sand.u32 %s248, 1
        %s364 = scalar_lea.sflag [#allocation5], %s363
        %s365 = sand.u32 %s248, 1
        %s366 = smul.addr %s365, 256
        %s367 = scalar_lea.vmem [#allocation6], %s366
        %p368 = scmp.lt.s32.totalorder %s25, 1
        %s369 = scalar_select %p368, %s25, 1
        %s370 = smul.addr %s369, 54
        %s371 = smul.addr %s370, 4
        %s372 = scalar_lea.vmem %s0, %s371
        %v374 = vld [vmem:[%s372] sm:$0xf]
        %v375 = vld [vmem:[%s372 + $0x4] sm:$0xf]
        %v376 = vld [vmem:[%s372 + $0x8] sm:$0x1]
        %v377 = vld [vmem:[%s372 + $0xc] sm:$0xf]
        %v378 = vld [vmem:[%s372 + $0x10] sm:$0xf]
        %v379 = vld [vmem:[%s372 + $0x14] sm:$0x1]
        %v380 = vld [vmem:[%s372 + $0x18] sm:$0xf]
        %v381 = vld [vmem:[%s372 + $0x1c] sm:$0xf]
        %v382 = vld [vmem:[%s372 + $0x20] sm:$0x1]
        %v383 = vld [vmem:[%s372 + $0x24] sm:$0xf]
        %v384 = vld [vmem:[%s372 + $0x28] sm:$0xf]
        %v385 = vld [vmem:[%s372 + $0x2c] sm:$0x1]
        %v386 = vld [vmem:[%s372 + $0x30] sm:$0xf]
        %v387 = vld [vmem:[%s372 + $0x34] sm:$0xf]
        %v388 = vld [vmem:[%s372 + $0x38] sm:$0x1]
        %v389 = vld [vmem:[%s372 + $0x3c] sm:$0xf]
        %v390 = vld [vmem:[%s372 + $0x40] sm:$0xf]
        %v391 = vld [vmem:[%s372 + $0x44] sm:$0x1]
        %v392 = vld [vmem:[%s372 + $0x48] sm:$0xf]
        %v393 = vld [vmem:[%s372 + $0x4c] sm:$0xf]
        %v394 = vld [vmem:[%s372 + $0x50] sm:$0x1]
        %v395 = vld [vmem:[%s372 + $0x54] sm:$0xf]
        %v396 = vld [vmem:[%s372 + $0x58] sm:$0xf]
        %v397 = vld [vmem:[%s372 + $0x5c] sm:$0x1]
        %v398 = vld [vmem:[%s372 + $0x60] sm:$0xf]
        %v399 = vld [vmem:[%s372 + $0x64] sm:$0xf]
        %v400 = vld [vmem:[%s372 + $0x68] sm:$0x1]
        %v401 = vld [vmem:[%s372 + $0x6c] sm:$0xf]
        %v402 = vld [vmem:[%s372 + $0x70] sm:$0xf]
        %v403 = vld [vmem:[%s372 + $0x74] sm:$0x1]
        %v404 = vld [vmem:[%s372 + $0x78] sm:$0xf]
        %v405 = vld [vmem:[%s372 + $0x7c] sm:$0xf]
        %v406 = vld [vmem:[%s372 + $0x80] sm:$0x1]
        %v407 = vld [vmem:[%s372 + $0x84] sm:$0xf]
        %v408 = vld [vmem:[%s372 + $0x88] sm:$0xf]
        %v409 = vld [vmem:[%s372 + $0x8c] sm:$0x1]
        %v410 = vld [vmem:[%s372 + $0x90] sm:$0xf]
        %v411 = vld [vmem:[%s372 + $0x94] sm:$0xf]
        %v412 = vld [vmem:[%s372 + $0x98] sm:$0x1]
        %v413 = vld [vmem:[%s372 + $0x9c] sm:$0xf]
        %v414 = vld [vmem:[%s372 + $0xa0] sm:$0xf]
        %v415 = vld [vmem:[%s372 + $0xa4] sm:$0x1]
        %v416 = vld [vmem:[%s372 + $0xa8] sm:$0xf]
        %v417 = vld [vmem:[%s372 + $0xac] sm:$0xf]
        %v418 = vld [vmem:[%s372 + $0xb0] sm:$0x1]
        %v419 = vld [vmem:[%s372 + $0xb4] sm:$0xf]
        %v420 = vld [vmem:[%s372 + $0xb8] sm:$0xf]
        %v421 = vld [vmem:[%s372 + $0xbc] sm:$0x1]
        %v422 = vld [vmem:[%s372 + $0xc0] sm:$0xf]
        %v423 = vld [vmem:[%s372 + $0xc4] sm:$0xf]
        %v424 = vld [vmem:[%s372 + $0xc8] sm:$0x1]
        %v425 = vld [vmem:[%s372 + $0xcc] sm:$0xf]
        %v426 = vld [vmem:[%s372 + $0xd0] sm:$0xf]
        %v427 = vld [vmem:[%s372 + $0xd4] sm:$0x1]
        %vm428 = vsmask.f32 3328
        %vm429 = vsmask.f32 7440
        %vm430 = vmor %vm428, %vm429
        %v432 = vshrl.u32 %v374, 16
        %v434 = vrot.slane %v432, 4
        %v435 = vshll.u32 %v374, 16
        %v437 = vrot.slane %v435, 5
        %v438 = vor.u32 %v434, %v437
        %v439 = vrot.slane %v438, 4
        %v441 = vshll.u32 %v375, 16
        %v443 = vrot.slane %v441, 5
        %v444 = vsel %vm430, %v439, %v443
        %v445 = vshrl.u32 %v375, 16
        %v447 = vrot.slane %v445, 4
        %v448 = vor.u32 %v447, %v443
        %v449 = vrot.slane %v448, 4
        %v451 = vshll.u32 %v376, 16
        %v453 = vrot.slane %v451, 5
        %v454 = vsel %vm430, %v449, %v453
        %v456 = vshrl.u32 %v377, 16
        %v458 = vrot.slane %v456, 4
        %v459 = vshll.u32 %v377, 16
        %v461 = vrot.slane %v459, 5
        %v462 = vor.u32 %v458, %v461
        %v463 = vrot.slane %v462, 4
        %v465 = vshll.u32 %v378, 16
        %v467 = vrot.slane %v465, 5
        %v468 = vsel %vm430, %v463, %v467
        %v469 = vshrl.u32 %v378, 16
        %v471 = vrot.slane %v469, 4
        %v472 = vor.u32 %v471, %v467
        %v473 = vrot.slane %v472, 4
        %v475 = vshll.u32 %v379, 16
        %v477 = vrot.slane %v475, 5
        %v478 = vsel %vm430, %v473, %v477
        %v480 = vshrl.u32 %v380, 16
        %v482 = vrot.slane %v480, 4
        %v483 = vshll.u32 %v380, 16
        %v485 = vrot.slane %v483, 5
        %v486 = vor.u32 %v482, %v485
        %v487 = vrot.slane %v486, 4
        %v489 = vshll.u32 %v381, 16
        %v491 = vrot.slane %v489, 5
        %v492 = vsel %vm430, %v487, %v491
        %v493 = vshrl.u32 %v381, 16
        %v495 = vrot.slane %v493, 4
        %v496 = vor.u32 %v495, %v491
        %v497 = vrot.slane %v496, 4
        %v499 = vshll.u32 %v382, 16
        %v501 = vrot.slane %v499, 5
        %v502 = vsel %vm430, %v497, %v501
        %v504 = vshrl.u32 %v383, 16
        %v506 = vrot.slane %v504, 4
        %v507 = vshll.u32 %v383, 16
        %v509 = vrot.slane %v507, 5
        %v510 = vor.u32 %v506, %v509
        %v511 = vrot.slane %v510, 4
        %v513 = vshll.u32 %v384, 16
        %v515 = vrot.slane %v513, 5
        %v516 = vsel %vm430, %v511, %v515
        %v517 = vshrl.u32 %v384, 16
        %v519 = vrot.slane %v517, 4
        %v520 = vor.u32 %v519, %v515
        %v521 = vrot.slane %v520, 4
        %v523 = vshll.u32 %v385, 16
        %v525 = vrot.slane %v523, 5
        %v526 = vsel %vm430, %v521, %v525
        %v528 = vshrl.u32 %v386, 16
        %v530 = vrot.slane %v528, 4
        %v531 = vshll.u32 %v386, 16
        %v533 = vrot.slane %v531, 5
        %v534 = vor.u32 %v530, %v533
        %v535 = vrot.slane %v534, 4
        %v537 = vshll.u32 %v387, 16
        %v539 = vrot.slane %v537, 5
        %v540 = vsel %vm430, %v535, %v539
        %v541 = vshrl.u32 %v387, 16
        %v543 = vrot.slane %v541, 4
        %v544 = vor.u32 %v543, %v539
        %v545 = vrot.slane %v544, 4
        %v547 = vshll.u32 %v388, 16
        %v549 = vrot.slane %v547, 5
        %v550 = vsel %vm430, %v545, %v549
        %v552 = vshrl.u32 %v389, 16
        %v554 = vrot.slane %v552, 4
        %v555 = vshll.u32 %v389, 16
        %v557 = vrot.slane %v555, 5
        %v558 = vor.u32 %v554, %v557
        %v559 = vrot.slane %v558, 4
        %v561 = vshll.u32 %v390, 16
        %v563 = vrot.slane %v561, 5
        %v564 = vsel %vm430, %v559, %v563
        %v565 = vshrl.u32 %v390, 16
        %v567 = vrot.slane %v565, 4
        %v568 = vor.u32 %v567, %v563
        %v569 = vrot.slane %v568, 4
        %v571 = vshll.u32 %v391, 16
        %v573 = vrot.slane %v571, 5
        %v574 = vsel %vm430, %v569, %v573
        %v576 = vshrl.u32 %v392, 16
        %v578 = vrot.slane %v576, 4
        %v579 = vshll.u32 %v392, 16
        %v581 = vrot.slane %v579, 5
        %v582 = vor.u32 %v578, %v581
        %v583 = vrot.slane %v582, 4
        %v585 = vshll.u32 %v393, 16
        %v587 = vrot.slane %v585, 5
        %v588 = vsel %vm430, %v583, %v587
        %v589 = vshrl.u32 %v393, 16
        %v591 = vrot.slane %v589, 4
        %v592 = vor.u32 %v591, %v587
        %v593 = vrot.slane %v592, 4
        %v595 = vshll.u32 %v394, 16
        %v597 = vrot.slane %v595, 5
        %v598 = vsel %vm430, %v593, %v597
        %v600 = vshrl.u32 %v395, 16
        %v602 = vrot.slane %v600, 4
        %v603 = vshll.u32 %v395, 16
        %v605 = vrot.slane %v603, 5
        %v606 = vor.u32 %v602, %v605
        %v607 = vrot.slane %v606, 4
        %v609 = vshll.u32 %v396, 16
        %v611 = vrot.slane %v609, 5
        %v612 = vsel %vm430, %v607, %v611
        %v613 = vshrl.u32 %v396, 16
        %v615 = vrot.slane %v613, 4
        %v616 = vor.u32 %v615, %v611
        %v617 = vrot.slane %v616, 4
        %v619 = vshll.u32 %v397, 16
        %v621 = vrot.slane %v619, 5
        %v622 = vsel %vm430, %v617, %v621
        %v624 = vshrl.u32 %v398, 16
        %v626 = vrot.slane %v624, 4
        %v627 = vshll.u32 %v398, 16
        %v629 = vrot.slane %v627, 5
        %v630 = vor.u32 %v626, %v629
        %v631 = vrot.slane %v630, 4
        %v633 = vshll.u32 %v399, 16
        %v635 = vrot.slane %v633, 5
        %v636 = vsel %vm430, %v631, %v635
        %v637 = vshrl.u32 %v399, 16
        %v639 = vrot.slane %v637, 4
        %v640 = vor.u32 %v639, %v635
        %v641 = vrot.slane %v640, 4
        %v643 = vshll.u32 %v400, 16
        %v645 = vrot.slane %v643, 5
        %v646 = vsel %vm430, %v641, %v645
        %v648 = vshrl.u32 %v401, 16
        %v650 = vrot.slane %v648, 4
        %v651 = vshll.u32 %v401, 16
        %v653 = vrot.slane %v651, 5
        %v654 = vor.u32 %v650, %v653
        %v655 = vrot.slane %v654, 4
        %v657 = vshll.u32 %v402, 16
        %v659 = vrot.slane %v657, 5
        %v660 = vsel %vm430, %v655, %v659
        %v661 = vshrl.u32 %v402, 16
        %v663 = vrot.slane %v661, 4
        %v664 = vor.u32 %v663, %v659
        %v665 = vrot.slane %v664, 4
        %v667 = vshll.u32 %v403, 16
        %v669 = vrot.slane %v667, 5
        %v670 = vsel %vm430, %v665, %v669
        %v672 = vshrl.u32 %v404, 16
        %v674 = vrot.slane %v672, 4
        %v675 = vshll.u32 %v404, 16
        %v677 = vrot.slane %v675, 5
        %v678 = vor.u32 %v674, %v677
        %v679 = vrot.slane %v678, 4
        %v681 = vshll.u32 %v405, 16
        %v683 = vrot.slane %v681, 5
        %v684 = vsel %vm430, %v679, %v683
        %v685 = vshrl.u32 %v405, 16
        %v687 = vrot.slane %v685, 4
        %v688 = vor.u32 %v687, %v683
        %v689 = vrot.slane %v688, 4
        %v691 = vshll.u32 %v406, 16
        %v693 = vrot.slane %v691, 5
        %v694 = vsel %vm430, %v689, %v693
        %v696 = vshrl.u32 %v407, 16
        %v698 = vrot.slane %v696, 4
        %v699 = vshll.u32 %v407, 16
        %v701 = vrot.slane %v699, 5
        %v702 = vor.u32 %v698, %v701
        %v703 = vrot.slane %v702, 4
        %v705 = vshll.u32 %v408, 16
        %v707 = vrot.slane %v705, 5
        %v708 = vsel %vm430, %v703, %v707
        %v709 = vshrl.u32 %v408, 16
        %v711 = vrot.slane %v709, 4
        %v712 = vor.u32 %v711, %v707
        %v713 = vrot.slane %v712, 4
        %v715 = vshll.u32 %v409, 16
        %v717 = vrot.slane %v715, 5
        %v718 = vsel %vm430, %v713, %v717
        %v720 = vshrl.u32 %v410, 16
        %v722 = vrot.slane %v720, 4
        %v723 = vshll.u32 %v410, 16
        %v725 = vrot.slane %v723, 5
        %v726 = vor.u32 %v722, %v725
        %v727 = vrot.slane %v726, 4
        %v729 = vshll.u32 %v411, 16
        %v731 = vrot.slane %v729, 5
        %v732 = vsel %vm430, %v727, %v731
        %v733 = vshrl.u32 %v411, 16
        %v735 = vrot.slane %v733, 4
        %v736 = vor.u32 %v735, %v731
        %v737 = vrot.slane %v736, 4
        %v739 = vshll.u32 %v412, 16
        %v741 = vrot.slane %v739, 5
        %v742 = vsel %vm430, %v737, %v741
        %v744 = vshrl.u32 %v413, 16
        %v746 = vrot.slane %v744, 4
        %v747 = vshll.u32 %v413, 16
        %v749 = vrot.slane %v747, 5
        %v750 = vor.u32 %v746, %v749
        %v751 = vrot.slane %v750, 4
        %v753 = vshll.u32 %v414, 16
        %v755 = vrot.slane %v753, 5
        %v756 = vsel %vm430, %v751, %v755
        %v757 = vshrl.u32 %v414, 16
        %v759 = vrot.slane %v757, 4
        %v760 = vor.u32 %v759, %v755
        %v761 = vrot.slane %v760, 4
        %v763 = vshll.u32 %v415, 16
        %v765 = vrot.slane %v763, 5
        %v766 = vsel %vm430, %v761, %v765
        %v768 = vshrl.u32 %v416, 16
        %v770 = vrot.slane %v768, 4
        %v771 = vshll.u32 %v416, 16
        %v773 = vrot.slane %v771, 5
        %v774 = vor.u32 %v770, %v773
        %v775 = vrot.slane %v774, 4
        %v777 = vshll.u32 %v417, 16
        %v779 = vrot.slane %v777, 5
        %v780 = vsel %vm430, %v775, %v779
        %v781 = vshrl.u32 %v417, 16
        %v783 = vrot.slane %v781, 4
        %v784 = vor.u32 %v783, %v779
        %v785 = vrot.slane %v784, 4
        %v787 = vshll.u32 %v418, 16
        %v789 = vrot.slane %v787, 5
        %v790 = vsel %vm430, %v785, %v789
        %v792 = vshrl.u32 %v419, 16
        %v794 = vrot.slane %v792, 4
        %v795 = vshll.u32 %v419, 16
        %v797 = vrot.slane %v795, 5
        %v798 = vor.u32 %v794, %v797
        %v799 = vrot.slane %v798, 4
        %v801 = vshll.u32 %v420, 16
        %v803 = vrot.slane %v801, 5
        %v804 = vsel %vm430, %v799, %v803
        %v805 = vshrl.u32 %v420, 16
        %v807 = vrot.slane %v805, 4
        %v808 = vor.u32 %v807, %v803
        %v809 = vrot.slane %v808, 4
        %v811 = vshll.u32 %v421, 16
        %v813 = vrot.slane %v811, 5
        %v814 = vsel %vm430, %v809, %v813
        %vm863 = vcmask 1042432
        %vm864 = vcmask 1046532
        %vm865 = vmor %vm863, %vm864
        %v866 = vrot.slane %v374, 5
        %v867 = vrot.slane %v866, 4
        %v868 = vrot.slane %v375, 5
        %v869 = vsel %vm865, %v867, %v868
        %v870 = vrot.slane %v868, 4
        %v871 = vrot.slane %v376, 5
        %v872 = vsel %vm865, %v870, %v871
        %v873 = vrot.slane %v377, 5
        %v874 = vrot.slane %v873, 4
        %v875 = vrot.slane %v378, 5
        %v876 = vsel %vm865, %v874, %v875
        %v877 = vrot.slane %v875, 4
        %v878 = vrot.slane %v379, 5
        %v879 = vsel %vm865, %v877, %v878
        %v880 = vrot.slane %v380, 5
        %v881 = vrot.slane %v880, 4
        %v882 = vrot.slane %v381, 5
        %v883 = vsel %vm865, %v881, %v882
        %v884 = vrot.slane %v882, 4
        %v885 = vrot.slane %v382, 5
        %v886 = vsel %vm865, %v884, %v885
        %v887 = vrot.slane %v383, 5
        %v888 = vrot.slane %v887, 4
        %v889 = vrot.slane %v384, 5
        %v890 = vsel %vm865, %v888, %v889
        %v891 = vrot.slane %v889, 4
        %v892 = vrot.slane %v385, 5
        %v893 = vsel %vm865, %v891, %v892
        %v894 = vrot.slane %v386, 5
        %v895 = vrot.slane %v894, 4
        %v896 = vrot.slane %v387, 5
        %v897 = vsel %vm865, %v895, %v896
        %v898 = vrot.slane %v896, 4
        %v899 = vrot.slane %v388, 5
        %v900 = vsel %vm865, %v898, %v899
        %v901 = vrot.slane %v389, 5
        %v902 = vrot.slane %v901, 4
        %v903 = vrot.slane %v390, 5
        %v904 = vsel %vm865, %v902, %v903
        %v905 = vrot.slane %v903, 4
        %v906 = vrot.slane %v391, 5
        %v907 = vsel %vm865, %v905, %v906
        %v908 = vrot.slane %v392, 5
        %v909 = vrot.slane %v908, 4
        %v910 = vrot.slane %v393, 5
        %v911 = vsel %vm865, %v909, %v910
        %v912 = vrot.slane %v910, 4
        %v913 = vrot.slane %v394, 5
        %v914 = vsel %vm865, %v912, %v913
        %v915 = vrot.slane %v395, 5
        %v916 = vrot.slane %v915, 4
        %v917 = vrot.slane %v396, 5
        %v918 = vsel %vm865, %v916, %v917
        %v919 = vrot.slane %v917, 4
        %v920 = vrot.slane %v397, 5
        %v921 = vsel %vm865, %v919, %v920
        %v922 = vrot.slane %v398, 5
        %v923 = vrot.slane %v922, 4
        %v924 = vrot.slane %v399, 5
        %v925 = vsel %vm865, %v923, %v924
        %v926 = vrot.slane %v924, 4
        %v927 = vrot.slane %v400, 5
        %v928 = vsel %vm865, %v926, %v927
        %v929 = vrot.slane %v401, 5
        %v930 = vrot.slane %v929, 4
        %v931 = vrot.slane %v402, 5
        %v932 = vsel %vm865, %v930, %v931
        %v933 = vrot.slane %v931, 4
        %v934 = vrot.slane %v403, 5
        %v935 = vsel %vm865, %v933, %v934
        %v936 = vrot.slane %v404, 5
        %v937 = vrot.slane %v936, 4
        %v938 = vrot.slane %v405, 5
        %v939 = vsel %vm865, %v937, %v938
        %v940 = vrot.slane %v938, 4
        %v941 = vrot.slane %v406, 5
        %v942 = vsel %vm865, %v940, %v941
        %v943 = vrot.slane %v407, 5
        %v944 = vrot.slane %v943, 4
        %v945 = vrot.slane %v408, 5
        %v946 = vsel %vm865, %v944, %v945
        %v947 = vrot.slane %v945, 4
        %v948 = vrot.slane %v409, 5
        %v949 = vsel %vm865, %v947, %v948
        %v950 = vrot.slane %v410, 5
        %v951 = vrot.slane %v950, 4
        %v952 = vrot.slane %v411, 5
        %v953 = vsel %vm865, %v951, %v952
        %v954 = vrot.slane %v952, 4
        %v955 = vrot.slane %v412, 5
        %v956 = vsel %vm865, %v954, %v955
        %v957 = vrot.slane %v413, 5
        %v958 = vrot.slane %v957, 4
        %v959 = vrot.slane %v414, 5
        %v960 = vsel %vm865, %v958, %v959
        %v961 = vrot.slane %v959, 4
        %v962 = vrot.slane %v415, 5
        %v963 = vsel %vm865, %v961, %v962
        %v964 = vrot.slane %v416, 5
        %v965 = vrot.slane %v964, 4
        %v966 = vrot.slane %v417, 5
        %v967 = vsel %vm865, %v965, %v966
        %v968 = vrot.slane %v966, 4
        %v969 = vrot.slane %v418, 5
        %v970 = vsel %vm865, %v968, %v969
        %v971 = vrot.slane %v419, 5
        %v972 = vrot.slane %v971, 4
        %v973 = vrot.slane %v420, 5
        %v974 = vsel %vm865, %v972, %v973
        %v975 = vrot.slane %v973, 4
        %v976 = vrot.slane %v421, 5
        %v977 = vsel %vm865, %v975, %v976
        %v979 = vshrl.u32 %v422, 16
        %v981 = vrot.slane %v979, 4
        %v982 = vshll.u32 %v422, 16
        %v984 = vrot.slane %v982, 5
        %v985 = vor.u32 %v981, %v984
        %v986 = vrot.slane %v985, 4
        %v988 = vshll.u32 %v423, 16
        %v990 = vrot.slane %v988, 5
        %v991 = vsel %vm430, %v986, %v990
        %v992 = vshrl.u32 %v423, 16
        %v994 = vrot.slane %v992, 4
        %v995 = vor.u32 %v994, %v990
        %v996 = vrot.slane %v995, 4
        %v998 = vshll.u32 %v424, 16
        %v1000 = vrot.slane %v998, 5
        %v1001 = vsel %vm430, %v996, %v1000
        %v1005 = vrot.slane %v422, 5
        %v1006 = vrot.slane %v1005, 4
        %v1007 = vrot.slane %v423, 5
        %v1008 = vsel %vm865, %v1006, %v1007
        %v1009 = vrot.slane %v1007, 4
        %v1010 = vrot.slane %v424, 5
        %v1011 = vsel %vm865, %v1009, %v1010
        %v1013 = vshrl.u32 %v425, 16
        %v1015 = vrot.slane %v1013, 4
        %v1016 = vshll.u32 %v425, 16
        %v1018 = vrot.slane %v1016, 5
        %v1019 = vor.u32 %v1015, %v1018
        %v1020 = vrot.slane %v1019, 4
        %v1022 = vshll.u32 %v426, 16
        %v1024 = vrot.slane %v1022, 5
        %v1025 = vsel %vm430, %v1020, %v1024
        %v1026 = vshrl.u32 %v426, 16
        %v1028 = vrot.slane %v1026, 4
        %v1029 = vor.u32 %v1028, %v1024
        %v1030 = vrot.slane %v1029, 4
        %v1032 = vshll.u32 %v427, 16
        %v1034 = vrot.slane %v1032, 5
        %v1035 = vsel %vm430, %v1030, %v1034
        %v1039 = vrot.slane %v425, 5
        %v1040 = vrot.slane %v1039, 4
        %v1041 = vrot.slane %v426, 5
        %v1042 = vsel %vm865, %v1040, %v1041
        %v1043 = vrot.slane %v1041, 4
        %v1044 = vrot.slane %v427, 5
        %v1045 = vsel %vm865, %v1043, %v1044
        %v1046 = vunpack.c.l.b16 %v374
        %v1047 = vunpack.c.l.b16 %v375
        %v1048 = vunpack.c.l.b16 %v377
        %v1049 = vunpack.c.l.b16 %v378
        %v1050 = vunpack.c.l.b16 %v380
        %v1051 = vunpack.c.l.b16 %v381
        %v1052 = vunpack.c.l.b16 %v383
        %v1053 = vunpack.c.l.b16 %v384
        %v1054 = vunpack.c.l.b16 %v386
        %v1055 = vunpack.c.l.b16 %v387
        %v1056 = vunpack.c.l.b16 %v389
        %v1057 = vunpack.c.l.b16 %v390
        %v1058 = vunpack.c.l.b16 %v392
        %v1059 = vunpack.c.l.b16 %v393
        %v1060 = vunpack.c.l.b16 %v395
        %v1061 = vunpack.c.l.b16 %v396
        %v1062 = vunpack.c.l.b16 %v398
        %v1063 = vunpack.c.l.b16 %v399
        %v1064 = vunpack.c.l.b16 %v401
        %v1065 = vunpack.c.l.b16 %v402
        %v1066 = vunpack.c.l.b16 %v404
        %v1067 = vunpack.c.l.b16 %v405
        %v1068 = vunpack.c.l.b16 %v407
        %v1069 = vunpack.c.l.b16 %v408
        %v1070 = vunpack.c.l.b16 %v410
        %v1071 = vunpack.c.l.b16 %v411
        %v1072 = vunpack.c.l.b16 %v413
        %v1073 = vunpack.c.l.b16 %v414
        %v1074 = vunpack.c.l.b16 %v416
        %v1075 = vunpack.c.l.b16 %v417
        %v1076 = vunpack.c.l.b16 %v419
        %v1077 = vunpack.c.l.b16 %v420
        %v1078 = vpack.c.b16 %v1047, %v1046
        %v1079 = vpack.c.b16 %v1049, %v1048
        %v1080 = vpack.c.b16 %v1051, %v1050
        %v1081 = vpack.c.b16 %v1053, %v1052
        %v1082 = vpack.c.b16 %v1055, %v1054
        %v1083 = vpack.c.b16 %v1057, %v1056
        %v1084 = vpack.c.b16 %v1059, %v1058
        %v1085 = vpack.c.b16 %v1061, %v1060
        %v1086 = vpack.c.b16 %v1063, %v1062
        %v1087 = vpack.c.b16 %v1065, %v1064
        %v1088 = vpack.c.b16 %v1067, %v1066
        %v1089 = vpack.c.b16 %v1069, %v1068
        %v1090 = vpack.c.b16 %v1071, %v1070
        %v1091 = vpack.c.b16 %v1073, %v1072
        %v1092 = vpack.c.b16 %v1075, %v1074
        %v1093 = vpack.c.b16 %v1077, %v1076
        %v1110 = vunpack.c.l.b16 %v444
        %v1111 = vunpack.c.l.b16 %v454
        %v1112 = vunpack.c.l.b16 %v468
        %v1113 = vunpack.c.l.b16 %v478
        %v1114 = vunpack.c.l.b16 %v492
        %v1115 = vunpack.c.l.b16 %v502
        %v1116 = vunpack.c.l.b16 %v516
        %v1117 = vunpack.c.l.b16 %v526
        %v1118 = vunpack.c.l.b16 %v540
        %v1119 = vunpack.c.l.b16 %v550
        %v1120 = vunpack.c.l.b16 %v564
        %v1121 = vunpack.c.l.b16 %v574
        %v1122 = vunpack.c.l.b16 %v588
        %v1123 = vunpack.c.l.b16 %v598
        %v1124 = vunpack.c.l.b16 %v612
        %v1125 = vunpack.c.l.b16 %v622
        %v1126 = vunpack.c.l.b16 %v636
        %v1127 = vunpack.c.l.b16 %v646
        %v1128 = vunpack.c.l.b16 %v660
        %v1129 = vunpack.c.l.b16 %v670
        %v1130 = vunpack.c.l.b16 %v684
        %v1131 = vunpack.c.l.b16 %v694
        %v1132 = vunpack.c.l.b16 %v708
        %v1133 = vunpack.c.l.b16 %v718
        %v1134 = vunpack.c.l.b16 %v732
        %v1135 = vunpack.c.l.b16 %v742
        %v1136 = vunpack.c.l.b16 %v756
        %v1137 = vunpack.c.l.b16 %v766
        %v1138 = vunpack.c.l.b16 %v780
        %v1139 = vunpack.c.l.b16 %v790
        %v1140 = vunpack.c.l.b16 %v804
        %v1141 = vunpack.c.l.b16 %v814
        %v1142 = vpack.c.b16 %v1111, %v1110
        %v1143 = vpack.c.b16 %v1113, %v1112
        %v1144 = vpack.c.b16 %v1115, %v1114
        %v1145 = vpack.c.b16 %v1117, %v1116
        %v1146 = vpack.c.b16 %v1119, %v1118
        %v1147 = vpack.c.b16 %v1121, %v1120
        %v1148 = vpack.c.b16 %v1123, %v1122
        %v1149 = vpack.c.b16 %v1125, %v1124
        %v1150 = vpack.c.b16 %v1127, %v1126
        %v1151 = vpack.c.b16 %v1129, %v1128
        %v1152 = vpack.c.b16 %v1131, %v1130
        %v1153 = vpack.c.b16 %v1133, %v1132
        %v1154 = vpack.c.b16 %v1135, %v1134
        %v1155 = vpack.c.b16 %v1137, %v1136
        %v1156 = vpack.c.b16 %v1139, %v1138
        %v1157 = vpack.c.b16 %v1141, %v1140
        %v1174 = vunpack.c.l.b16 %v869
        %v1175 = vunpack.c.l.b16 %v872
        %v1176 = vunpack.c.l.b16 %v876
        %v1177 = vunpack.c.l.b16 %v879
        %v1178 = vunpack.c.l.b16 %v883
        %v1179 = vunpack.c.l.b16 %v886
        %v1180 = vunpack.c.l.b16 %v890
        %v1181 = vunpack.c.l.b16 %v893
        %v1182 = vunpack.c.l.b16 %v897
        %v1183 = vunpack.c.l.b16 %v900
        %v1184 = vunpack.c.l.b16 %v904
        %v1185 = vunpack.c.l.b16 %v907
        %v1186 = vunpack.c.l.b16 %v911
        %v1187 = vunpack.c.l.b16 %v914
        %v1188 = vunpack.c.l.b16 %v918
        %v1189 = vunpack.c.l.b16 %v921
        %v1190 = vunpack.c.l.b16 %v925
        %v1191 = vunpack.c.l.b16 %v928
        %v1192 = vunpack.c.l.b16 %v932
        %v1193 = vunpack.c.l.b16 %v935
        %v1194 = vunpack.c.l.b16 %v939
        %v1195 = vunpack.c.l.b16 %v942
        %v1196 = vunpack.c.l.b16 %v946
        %v1197 = vunpack.c.l.b16 %v949
        %v1198 = vunpack.c.l.b16 %v953
        %v1199 = vunpack.c.l.b16 %v956
        %v1200 = vunpack.c.l.b16 %v960
        %v1201 = vunpack.c.l.b16 %v963
        %v1202 = vunpack.c.l.b16 %v967
        %v1203 = vunpack.c.l.b16 %v970
        %v1204 = vunpack.c.l.b16 %v974
        %v1205 = vunpack.c.l.b16 %v977
        %v1206 = vpack.c.b16 %v1175, %v1174
        %v1207 = vpack.c.b16 %v1177, %v1176
        %v1208 = vpack.c.b16 %v1179, %v1178
        %v1209 = vpack.c.b16 %v1181, %v1180
        %v1210 = vpack.c.b16 %v1183, %v1182
        %v1211 = vpack.c.b16 %v1185, %v1184
        %v1212 = vpack.c.b16 %v1187, %v1186
        %v1213 = vpack.c.b16 %v1189, %v1188
        %v1214 = vpack.c.b16 %v1191, %v1190
        %v1215 = vpack.c.b16 %v1193, %v1192
        %v1216 = vpack.c.b16 %v1195, %v1194
        %v1217 = vpack.c.b16 %v1197, %v1196
        %v1218 = vpack.c.b16 %v1199, %v1198
        %v1219 = vpack.c.b16 %v1201, %v1200
        %v1220 = vpack.c.b16 %v1203, %v1202
        %v1221 = vpack.c.b16 %v1205, %v1204
        %v1238 = vunpack.c.l.b16 %v422
        %v1239 = vunpack.c.l.b16 %v423
        %v1240 = vpack.c.b16 %v1239, %v1238
        %v1242 = vunpack.c.l.b16 %v991
        %v1243 = vunpack.c.l.b16 %v1001
        %v1244 = vpack.c.b16 %v1243, %v1242
        %v1246 = vunpack.c.l.b16 %v1008
        %v1247 = vunpack.c.l.b16 %v1011
        %v1248 = vpack.c.b16 %v1247, %v1246
        %v1250 = vunpack.c.l.b16 %v425
        %v1251 = vunpack.c.l.b16 %v426
        %v1252 = vpack.c.b16 %v1251, %v1250
        %v1254 = vunpack.c.l.b16 %v1025
        %v1255 = vunpack.c.l.b16 %v1035
        %v1256 = vpack.c.b16 %v1255, %v1254
        %v1258 = vunpack.c.l.b16 %v1042
        %v1259 = vunpack.c.l.b16 %v1045
        %v1260 = vpack.c.b16 %v1259, %v1258
        %v1262 = vld [vmem:[%s1] sm:$0xf]
        %v1263 = vld [vmem:[%s1 + $0x4] sm:$0xf]
        %v1264 = vld [vmem:[%s1 + $0x8] sm:$0xf]
        %v1265 = vld [vmem:[%s1 + $0xc] sm:$0xf]
        %v1266 = vld [vmem:[%s1 + $0x10] sm:$0xf]
        %v1267 = vld [vmem:[%s1 + $0x14] sm:$0xf]
        %v1268 = vld [vmem:[%s1 + $0x18] sm:$0xf]
        %v1269 = vld [vmem:[%s1 + $0x1c] sm:$0xf]
        %v1270 = vld [vmem:[%s1 + $0x20] sm:$0xf]
        %v1271 = vld [vmem:[%s1 + $0x24] sm:$0xf]
        %v1272 = vld [vmem:[%s1 + $0x28] sm:$0xf]
        %v1273 = vld [vmem:[%s1 + $0x2c] sm:$0xf]
        %v1274 = vld [vmem:[%s1 + $0x30] sm:$0xf]
        %v1275 = vld [vmem:[%s1 + $0x34] sm:$0xf]
        %v1276 = vld [vmem:[%s1 + $0x38] sm:$0xf]
        %v1277 = vld [vmem:[%s1 + $0x3c] sm:$0xf]
        %v1278 = vld [vmem:[%s1 + $0x40] sm:$0xf]
        %v1279 = vld [vmem:[%s1 + $0x44] sm:$0xf]
        %v1280 = vld [vmem:[%s1 + $0x48] sm:$0xf]
        %v1281 = vld [vmem:[%s1 + $0x4c] sm:$0xf]
        %v1282 = vld [vmem:[%s1 + $0x50] sm:$0xf]
        %v1283 = vld [vmem:[%s1 + $0x54] sm:$0xf]
        %v1284 = vld [vmem:[%s1 + $0x58] sm:$0xf]
        %v1285 = vld [vmem:[%s1 + $0x5c] sm:$0xf]
        %v1286 = vld [vmem:[%s1 + $0x60] sm:$0xf]
        %v1287 = vld [vmem:[%s1 + $0x64] sm:$0xf]
        %v1288 = vld [vmem:[%s1 + $0x68] sm:$0xf]
        %v1289 = vld [vmem:[%s1 + $0x6c] sm:$0xf]
        %v1290 = vld [vmem:[%s1 + $0x70] sm:$0xf]
        %v1291 = vld [vmem:[%s1 + $0x74] sm:$0xf]
        %v1292 = vld [vmem:[%s1 + $0x78] sm:$0xf]
        %v1293 = vld [vmem:[%s1 + $0x7c] sm:$0xf]
        %v1294 = vld [vmem:[%s1 + $0x80] sm:$0xf]
        %v1295 = vld [vmem:[%s1 + $0x84] sm:$0xf]
        %v1296 = vld [vmem:[%s1 + $0x88] sm:$0xf]
        %v1297 = vld [vmem:[%s1 + $0x8c] sm:$0xf]
        %v1298 = vld [vmem:[%s1 + $0x90] sm:$0xf]
        %v1299 = vld [vmem:[%s1 + $0x94] sm:$0xf]
        %v1300 = vld [vmem:[%s1 + $0x98] sm:$0xf]
        %v1301 = vld [vmem:[%s1 + $0x9c] sm:$0xf]
        %v1302 = vld [vmem:[%s1 + $0xa0] sm:$0xf]
        %v1303 = vld [vmem:[%s1 + $0xa4] sm:$0xf]
        %v1304 = vld [vmem:[%s1 + $0xa8] sm:$0xf]
        %v1305 = vld [vmem:[%s1 + $0xac] sm:$0xf]
        %v1306 = vld [vmem:[%s1 + $0xb0] sm:$0xf]
        %v1307 = vld [vmem:[%s1 + $0xb4] sm:$0xf]
        %v1308 = vld [vmem:[%s1 + $0xb8] sm:$0xf]
        %v1309 = vld [vmem:[%s1 + $0xbc] sm:$0xf]
        %v1310 = vld [vmem:[%s1 + $0xc0] sm:$0xf]
        %v1311 = vld [vmem:[%s1 + $0xc4] sm:$0xf]
        %v1312 = vld [vmem:[%s1 + $0xc8] sm:$0xf]
        %v1313 = vld [vmem:[%s1 + $0xcc] sm:$0xf]
        %v1314 = vld [vmem:[%s1 + $0xd0] sm:$0xf]
        %v1315 = vld [vmem:[%s1 + $0xd4] sm:$0xf]
        %v1316 = vld [vmem:[%s1 + $0xd8] sm:$0xf]
        %v1317 = vld [vmem:[%s1 + $0xdc] sm:$0xf]
        %v1318 = vld [vmem:[%s1 + $0xe0] sm:$0xf]
        %v1319 = vld [vmem:[%s1 + $0xe4] sm:$0xf]
        %v1320 = vld [vmem:[%s1 + $0xe8] sm:$0xf]
        %v1321 = vld [vmem:[%s1 + $0xec] sm:$0xf]
        %v1322 = vld [vmem:[%s1 + $0xf0] sm:$0xf]
        %v1323 = vld [vmem:[%s1 + $0xf4] sm:$0xf]
        %v1324 = vld [vmem:[%s1 + $0xf8] sm:$0xf]
        %v1325 = vld [vmem:[%s1 + $0xfc] sm:$0xf]
        %v1326 = vld [vmem:[%s1 + $0x100] sm:$0xf]
        %v1327 = vld [vmem:[%s1 + $0x104] sm:$0xf]
        %v1328 = vld [vmem:[%s1 + $0x108] sm:$0xf]
        %v1329 = vld [vmem:[%s1 + $0x10c] sm:$0xf]
        %v1330 = vld [vmem:[%s1 + $0x110] sm:$0xf]
        %v1331 = vld [vmem:[%s1 + $0x114] sm:$0xf]
        %v1332 = vld [vmem:[%s1 + $0x118] sm:$0xf]
        %v1333 = vld [vmem:[%s1 + $0x11c] sm:$0xf]
        %v1334 = vld [vmem:[%s1 + $0x120] sm:$0xf]
        %v1335 = vld [vmem:[%s1 + $0x124] sm:$0xf]
        %v1336 = vld [vmem:[%s1 + $0x128] sm:$0xf]
        %v1337 = vld [vmem:[%s1 + $0x12c] sm:$0xf]
        %v1338 = vld [vmem:[%s1 + $0x130] sm:$0xf]
        %v1339 = vld [vmem:[%s1 + $0x134] sm:$0xf]
        %v1340 = vld [vmem:[%s1 + $0x138] sm:$0xf]
        %v1341 = vld [vmem:[%s1 + $0x13c] sm:$0xf]
        %v1342 = vld [vmem:[%s1 + $0x140] sm:$0xf]
        %v1343 = vld [vmem:[%s1 + $0x144] sm:$0xf]
        %v1344 = vld [vmem:[%s1 + $0x148] sm:$0xf]
        %v1345 = vld [vmem:[%s1 + $0x14c] sm:$0xf]
        %v1346 = vld [vmem:[%s1 + $0x150] sm:$0xf]
        %v1347 = vld [vmem:[%s1 + $0x154] sm:$0xf]
        %v1348 = vld [vmem:[%s1 + $0x158] sm:$0xf]
        %v1349 = vld [vmem:[%s1 + $0x15c] sm:$0xf]
        %v1350 = vld [vmem:[%s1 + $0x160] sm:$0xf]
        %v1351 = vld [vmem:[%s1 + $0x164] sm:$0xf]
        %v1352 = vld [vmem:[%s1 + $0x168] sm:$0xf]
        %v1353 = vld [vmem:[%s1 + $0x16c] sm:$0xf]
        %v1354 = vld [vmem:[%s1 + $0x170] sm:$0xf]
        %v1355 = vld [vmem:[%s1 + $0x174] sm:$0xf]
        %v1356 = vld [vmem:[%s1 + $0x178] sm:$0xf]
        %v1357 = vld [vmem:[%s1 + $0x17c] sm:$0xf]
        %v1358 = vld [vmem:[%s1 + $0x180] sm:$0xf]
        %v1359 = vld [vmem:[%s1 + $0x184] sm:$0xf]
        %v1360 = vld [vmem:[%s1 + $0x188] sm:$0xf]
        %v1361 = vld [vmem:[%s1 + $0x18c] sm:$0xf]
        %v1362 = vld [vmem:[%s1 + $0x190] sm:$0xf]
        %v1363 = vld [vmem:[%s1 + $0x194] sm:$0xf]
        %v1364 = vld [vmem:[%s1 + $0x198] sm:$0xf]
        %v1365 = vld [vmem:[%s1 + $0x19c] sm:$0xf]
        %v1366 = vld [vmem:[%s1 + $0x1a0] sm:$0xf]
        %v1367 = vld [vmem:[%s1 + $0x1a4] sm:$0xf]
        %v1368 = vld [vmem:[%s1 + $0x1a8] sm:$0xf]
        %v1369 = vld [vmem:[%s1 + $0x1ac] sm:$0xf]
        %v1370 = vld [vmem:[%s1 + $0x1b0] sm:$0xf]
        %v1371 = vld [vmem:[%s1 + $0x1b4] sm:$0xf]
        %v1372 = vld [vmem:[%s1 + $0x1b8] sm:$0xf]
        %v1373 = vld [vmem:[%s1 + $0x1bc] sm:$0xf]
        %v1374 = vld [vmem:[%s1 + $0x1c0] sm:$0xf]
        %v1375 = vld [vmem:[%s1 + $0x1c4] sm:$0xf]
        %v1376 = vld [vmem:[%s1 + $0x1c8] sm:$0xf]
        %v1377 = vld [vmem:[%s1 + $0x1cc] sm:$0xf]
        %v1378 = vld [vmem:[%s1 + $0x1d0] sm:$0xf]
        %v1379 = vld [vmem:[%s1 + $0x1d4] sm:$0xf]
        %v1380 = vld [vmem:[%s1 + $0x1d8] sm:$0xf]
        %v1381 = vld [vmem:[%s1 + $0x1dc] sm:$0xf]
        %v1382 = vld [vmem:[%s1 + $0x1e0] sm:$0xf]
        %v1383 = vld [vmem:[%s1 + $0x1e4] sm:$0xf]
        %v1384 = vld [vmem:[%s1 + $0x1e8] sm:$0xf]
        %v1385 = vld [vmem:[%s1 + $0x1ec] sm:$0xf]
        %v1386 = vld [vmem:[%s1 + $0x1f0] sm:$0xf]
        %v1387 = vld [vmem:[%s1 + $0x1f4] sm:$0xf]
        %v1388 = vld [vmem:[%s1 + $0x1f8] sm:$0xf]
        %v1389 = vld [vmem:[%s1 + $0x1fc] sm:$0xf]
        %v1390 = vld [vmem:[%s1 + $0x200] sm:$0xf]
        %v1391 = vld [vmem:[%s1 + $0x204] sm:$0xf]
        %v1392 = vld [vmem:[%s1 + $0x208] sm:$0xf]
        %v1393 = vld [vmem:[%s1 + $0x20c] sm:$0xf]
        %v1394 = vld [vmem:[%s1 + $0x210] sm:$0xf]
        %v1395 = vld [vmem:[%s1 + $0x214] sm:$0xf]
        %v1396 = vld [vmem:[%s1 + $0x218] sm:$0xf]
        %v1397 = vld [vmem:[%s1 + $0x21c] sm:$0xf]
        %v1398 = vld [vmem:[%s1 + $0x220] sm:$0xf]
        %v1399 = vld [vmem:[%s1 + $0x224] sm:$0xf]
        %v1400 = vld [vmem:[%s1 + $0x228] sm:$0xf]
        %v1401 = vld [vmem:[%s1 + $0x22c] sm:$0xf]
        %v1402 = vld [vmem:[%s1 + $0x230] sm:$0xf]
        %v1403 = vld [vmem:[%s1 + $0x234] sm:$0xf]
        %v1404 = vld [vmem:[%s1 + $0x238] sm:$0xf]
        %v1405 = vld [vmem:[%s1 + $0x23c] sm:$0xf]
        %v1550 = vunpack.c.l.b16 %v1262
        %v1551 = vunpack.c.l.b16 %v1263
        %v1552 = vunpack.c.l.b16 %v1264
        %v1553 = vunpack.c.l.b16 %v1265
        %v1554 = vunpack.c.l.b16 %v1266
        %v1555 = vunpack.c.l.b16 %v1267
        %v1556 = vunpack.c.l.b16 %v1268
        %v1557 = vunpack.c.l.b16 %v1269
        %v1558 = vunpack.c.l.b16 %v1270
        %v1559 = vunpack.c.l.b16 %v1271
        %v1560 = vunpack.c.l.b16 %v1272
        %v1561 = vunpack.c.l.b16 %v1273
        %v1562 = vunpack.c.l.b16 %v1274
        %v1563 = vunpack.c.l.b16 %v1275
        %v1564 = vunpack.c.l.b16 %v1276
        %v1565 = vunpack.c.l.b16 %v1277
        %v1566 = vunpack.c.l.b16 %v1278
        %v1567 = vunpack.c.l.b16 %v1279
        %v1568 = vunpack.c.l.b16 %v1280
        %v1569 = vunpack.c.l.b16 %v1281
        %v1570 = vunpack.c.l.b16 %v1282
        %v1571 = vunpack.c.l.b16 %v1283
        %v1572 = vunpack.c.l.b16 %v1284
        %v1573 = vunpack.c.l.b16 %v1285
        %v1574 = vunpack.c.l.b16 %v1286
        %v1575 = vunpack.c.l.b16 %v1287
        %v1576 = vunpack.c.l.b16 %v1288
        %v1577 = vunpack.c.l.b16 %v1289
        %v1578 = vunpack.c.l.b16 %v1290
        %v1579 = vunpack.c.l.b16 %v1291
        %v1580 = vunpack.c.l.b16 %v1292
        %v1581 = vunpack.c.l.b16 %v1293
        %v1582 = vunpack.c.l.b16 %v1294
        %v1583 = vunpack.c.l.b16 %v1295
        %v1584 = vunpack.c.l.b16 %v1296
        %v1585 = vunpack.c.l.b16 %v1297
        %v1586 = vunpack.c.l.b16 %v1298
        %v1587 = vunpack.c.l.b16 %v1299
        %v1588 = vunpack.c.l.b16 %v1300
        %v1589 = vunpack.c.l.b16 %v1301
        %v1590 = vunpack.c.l.b16 %v1302
        %v1591 = vunpack.c.l.b16 %v1303
        %v1592 = vunpack.c.l.b16 %v1304
        %v1593 = vunpack.c.l.b16 %v1305
        %v1594 = vunpack.c.l.b16 %v1306
        %v1595 = vunpack.c.l.b16 %v1307
        %v1596 = vunpack.c.l.b16 %v1308
        %v1597 = vunpack.c.l.b16 %v1309
        %v1598 = vunpack.c.l.b16 %v1310
        %v1599 = vunpack.c.l.b16 %v1311
        %v1600 = vunpack.c.l.b16 %v1312
        %v1601 = vunpack.c.l.b16 %v1313
        %v1602 = vunpack.c.l.b16 %v1314
        %v1603 = vunpack.c.l.b16 %v1315
        %v1604 = vunpack.c.l.b16 %v1316
        %v1605 = vunpack.c.l.b16 %v1317
        %v1606 = vunpack.c.l.b16 %v1318
        %v1607 = vunpack.c.l.b16 %v1319
        %v1608 = vunpack.c.l.b16 %v1320
        %v1609 = vunpack.c.l.b16 %v1321
        %v1610 = vunpack.c.l.b16 %v1322
        %v1611 = vunpack.c.l.b16 %v1323
        %v1612 = vunpack.c.l.b16 %v1324
        %v1613 = vunpack.c.l.b16 %v1325
        %v1614 = vunpack.c.l.b16 %v1326
        %v1615 = vunpack.c.l.b16 %v1327
        %v1616 = vunpack.c.l.b16 %v1328
        %v1617 = vunpack.c.l.b16 %v1329
        %v1618 = vunpack.c.l.b16 %v1330
        %v1619 = vunpack.c.l.b16 %v1331
        %v1620 = vunpack.c.l.b16 %v1332
        %v1621 = vunpack.c.l.b16 %v1333
        %v1622 = vunpack.c.l.b16 %v1334
        %v1623 = vunpack.c.l.b16 %v1335
        %v1624 = vunpack.c.l.b16 %v1336
        %v1625 = vunpack.c.l.b16 %v1337
        %v1626 = vunpack.c.l.b16 %v1338
        %v1627 = vunpack.c.l.b16 %v1339
        %v1628 = vunpack.c.l.b16 %v1340
        %v1629 = vunpack.c.l.b16 %v1341
        %v1630 = vunpack.c.l.b16 %v1342
        %v1631 = vunpack.c.l.b16 %v1343
        %v1632 = vunpack.c.l.b16 %v1344
        %v1633 = vunpack.c.l.b16 %v1345
        %v1634 = vunpack.c.l.b16 %v1346
        %v1635 = vunpack.c.l.b16 %v1347
        %v1636 = vunpack.c.l.b16 %v1348
        %v1637 = vunpack.c.l.b16 %v1349
        %v1638 = vunpack.c.l.b16 %v1350
        %v1639 = vunpack.c.l.b16 %v1351
        %v1640 = vunpack.c.l.b16 %v1352
        %v1641 = vunpack.c.l.b16 %v1353
        %v1642 = vunpack.c.l.b16 %v1354
        %v1643 = vunpack.c.l.b16 %v1355
        %v1644 = vunpack.c.l.b16 %v1356
        %v1645 = vunpack.c.l.b16 %v1357
        %v1646 = vunpack.c.l.b16 %v1358
        %v1647 = vunpack.c.l.b16 %v1359
        %v1648 = vunpack.c.l.b16 %v1360
        %v1649 = vunpack.c.l.b16 %v1361
        %v1650 = vunpack.c.l.b16 %v1362
        %v1651 = vunpack.c.l.b16 %v1363
        %v1652 = vunpack.c.l.b16 %v1364
        %v1653 = vunpack.c.l.b16 %v1365
        %v1654 = vunpack.c.l.b16 %v1366
        %v1655 = vunpack.c.l.b16 %v1367
        %v1656 = vunpack.c.l.b16 %v1368
        %v1657 = vunpack.c.l.b16 %v1369
        %v1658 = vunpack.c.l.b16 %v1370
        %v1659 = vunpack.c.l.b16 %v1371
        %v1660 = vunpack.c.l.b16 %v1372
        %v1661 = vunpack.c.l.b16 %v1373
        %v1662 = vunpack.c.l.b16 %v1374
        %v1663 = vunpack.c.l.b16 %v1375
        %v1664 = vunpack.c.l.b16 %v1376
        %v1665 = vunpack.c.l.b16 %v1377
        %v1666 = vunpack.c.l.b16 %v1378
        %v1667 = vunpack.c.l.b16 %v1379
        %v1668 = vunpack.c.l.b16 %v1380
        %v1669 = vunpack.c.l.b16 %v1381
        %v1670 = vunpack.c.l.b16 %v1382
        %v1671 = vunpack.c.l.b16 %v1383
        %v1672 = vunpack.c.l.b16 %v1384
        %v1673 = vunpack.c.l.b16 %v1385
        %v1674 = vunpack.c.l.b16 %v1386
        %v1675 = vunpack.c.l.b16 %v1387
        %v1676 = vunpack.c.l.b16 %v1388
        %v1677 = vunpack.c.l.b16 %v1389
        %v1678 = vunpack.c.l.b16 %v1390
        %v1679 = vunpack.c.l.b16 %v1391
        %v1680 = vunpack.c.l.b16 %v1392
        %v1681 = vunpack.c.l.b16 %v1393
        %v1682 = vunpack.c.l.b16 %v1394
        %v1683 = vunpack.c.l.b16 %v1395
        %v1684 = vunpack.c.l.b16 %v1396
        %v1685 = vunpack.c.l.b16 %v1397
        %v1686 = vunpack.c.l.b16 %v1398
        %v1687 = vunpack.c.l.b16 %v1399
        %v1688 = vunpack.c.l.b16 %v1400
        %v1689 = vunpack.c.l.b16 %v1401
        %v1690 = vunpack.c.l.b16 %v1402
        %v1691 = vunpack.c.l.b16 %v1403
        %v1692 = vunpack.c.l.b16 %v1404
        %v1693 = vunpack.c.l.b16 %v1405
        %v1694 = vpack.c.b16 %v1551, %v1550
        %v1695 = vpack.c.b16 %v1553, %v1552
        %v1696 = vpack.c.b16 %v1555, %v1554
        %v1697 = vpack.c.b16 %v1557, %v1556
        %v1698 = vpack.c.b16 %v1559, %v1558
        %v1699 = vpack.c.b16 %v1561, %v1560
        %v1700 = vpack.c.b16 %v1563, %v1562
        %v1701 = vpack.c.b16 %v1565, %v1564
        %v1702 = vpack.c.b16 %v1567, %v1566
        %v1703 = vpack.c.b16 %v1569, %v1568
        %v1704 = vpack.c.b16 %v1571, %v1570
        %v1705 = vpack.c.b16 %v1573, %v1572
        %v1706 = vpack.c.b16 %v1575, %v1574
        %v1707 = vpack.c.b16 %v1577, %v1576
        %v1708 = vpack.c.b16 %v1579, %v1578
        %v1709 = vpack.c.b16 %v1581, %v1580
        %v1710 = vpack.c.b16 %v1583, %v1582
        %v1711 = vpack.c.b16 %v1585, %v1584
        %v1712 = vpack.c.b16 %v1587, %v1586
        %v1713 = vpack.c.b16 %v1589, %v1588
        %v1714 = vpack.c.b16 %v1591, %v1590
        %v1715 = vpack.c.b16 %v1593, %v1592
        %v1716 = vpack.c.b16 %v1595, %v1594
        %v1717 = vpack.c.b16 %v1597, %v1596
        %v1718 = vpack.c.b16 %v1599, %v1598
        %v1719 = vpack.c.b16 %v1601, %v1600
        %v1720 = vpack.c.b16 %v1603, %v1602
        %v1721 = vpack.c.b16 %v1605, %v1604
        %v1722 = vpack.c.b16 %v1607, %v1606
        %v1723 = vpack.c.b16 %v1609, %v1608
        %v1724 = vpack.c.b16 %v1611, %v1610
        %v1725 = vpack.c.b16 %v1613, %v1612
        %v1726 = vpack.c.b16 %v1615, %v1614
        %v1727 = vpack.c.b16 %v1617, %v1616
        %v1728 = vpack.c.b16 %v1619, %v1618
        %v1729 = vpack.c.b16 %v1621, %v1620
        %v1730 = vpack.c.b16 %v1623, %v1622
        %v1731 = vpack.c.b16 %v1625, %v1624
        %v1732 = vpack.c.b16 %v1627, %v1626
        %v1733 = vpack.c.b16 %v1629, %v1628
        %v1734 = vpack.c.b16 %v1631, %v1630
        %v1735 = vpack.c.b16 %v1633, %v1632
        %v1736 = vpack.c.b16 %v1635, %v1634
        %v1737 = vpack.c.b16 %v1637, %v1636
        %v1738 = vpack.c.b16 %v1639, %v1638
        %v1739 = vpack.c.b16 %v1641, %v1640
        %v1740 = vpack.c.b16 %v1643, %v1642
        %v1741 = vpack.c.b16 %v1645, %v1644
        %v1742 = vpack.c.b16 %v1647, %v1646
        %v1743 = vpack.c.b16 %v1649, %v1648
        %v1744 = vpack.c.b16 %v1651, %v1650
        %v1745 = vpack.c.b16 %v1653, %v1652
        %v1746 = vpack.c.b16 %v1655, %v1654
        %v1747 = vpack.c.b16 %v1657, %v1656
        %v1748 = vpack.c.b16 %v1659, %v1658
        %v1749 = vpack.c.b16 %v1661, %v1660
        %v1750 = vpack.c.b16 %v1663, %v1662
        %v1751 = vpack.c.b16 %v1665, %v1664
        %v1752 = vpack.c.b16 %v1667, %v1666
        %v1753 = vpack.c.b16 %v1669, %v1668
        %v1754 = vpack.c.b16 %v1671, %v1670
        %v1755 = vpack.c.b16 %v1673, %v1672
        %v1756 = vpack.c.b16 %v1675, %v1674
        %v1757 = vpack.c.b16 %v1677, %v1676
        %v1758 = vpack.c.b16 %v1679, %v1678
        %v1759 = vpack.c.b16 %v1681, %v1680
        %v1760 = vpack.c.b16 %v1683, %v1682
        %v1761 = vpack.c.b16 %v1685, %v1684
        %v1762 = vpack.c.b16 %v1687, %v1686
        %v1763 = vpack.c.b16 %v1689, %v1688
        %v1764 = vpack.c.b16 %v1691, %v1690
        %v1765 = vpack.c.b16 %v1693, %v1692
        %1838 = vmatprep.subr.bf16.mxu0 0
        %1839 = vmatpush1.bf16.msra.mxu0 %v1701
        %1840 = vmatprep.subr.bf16.mxu0 0
        %1841 = vmatpush1.bf16.msra.mxu0 %v1700
        %1842 = vmatprep.subr.bf16.mxu0 0
        %1843 = vmatpush1.bf16.msra.mxu0 %v1699
        %1844 = vmatprep.subr.bf16.mxu0 0
        %1845 = vmatpush1.bf16.msra.mxu0 %v1698
        %1846 = vmatprep.subr.bf16.mxu0 0
        %1847 = vmatpush1.bf16.msra.mxu0 %v1697
        %1848 = vmatprep.subr.bf16.mxu0 0
        %1849 = vmatpush1.bf16.msra.mxu0 %v1696
        %1850 = vmatprep.subr.bf16.mxu0 0
        %1851 = vmatpush1.bf16.msra.mxu0 %v1695
        %1852 = vmatprep.subr.bf16.mxu0 0
        %1853 = vmatpush1.bf16.msra.mxu0 %v1694
        %1854 = vmatprep.subr.bf16.mxu0 0
        %1855 = vmatpush2.bf16.msra.mxu0 %v1709
        %1856 = vmatprep.subr.bf16.mxu0 0
        %1857 = vmatpush2.bf16.msra.mxu0 %v1708
        %1858 = vmatprep.subr.bf16.mxu0 0
        %1859 = vmatpush2.bf16.msra.mxu0 %v1707
        %1860 = vmatprep.subr.bf16.mxu0 0
        %1861 = vmatpush2.bf16.msra.mxu0 %v1706
        %1862 = vmatprep.subr.bf16.mxu0 0
        %1863 = vmatpush2.bf16.msra.mxu0 %v1705
        %1864 = vmatprep.subr.bf16.mxu0 0
        %1865 = vmatpush2.bf16.msra.mxu0 %v1704
        %1866 = vmatprep.subr.bf16.mxu0 0
        %1867 = vmatpush2.bf16.msra.mxu0 %v1703
        %1868 = vmatprep.subr.bf16.mxu0 0
        %1869 = vmatpush2.bf16.msra.mxu0 %v1702
        %1870 = vmatprep.mubr.bf16.mxu0 %v1142
        %1871 = vmatmul.mubr.bf16.gmra.mxu0 %v1078
        %v1872 = vpop.f32.mrf.mxu0
        %v1873 = vadd.f32 0.0, %v1872
        %v1874 = vpop.f32.mrf.mxu0
        %v1875 = vpop.f32.mrf.mxu0
        %v1876 = vadd.f32 0.0, %v1875
        %v1877 = vpop.f32.mrf.mxu0
        %1878 = vmatprep.mubr.bf16.mxu0 %v1143
        %1879 = vmatmul.mubr.bf16.gmra.mxu0 %v1079
        %v1880 = vpop.f32.mrf.mxu0
        %v1881 = vadd.f32 0.0, %v1880
        %v1882 = vpop.f32.mrf.mxu0
        %v1883 = vpop.f32.mrf.mxu0
        %v1884 = vadd.f32 0.0, %v1883
        %v1885 = vpop.f32.mrf.mxu0
        %1886 = vmatprep.mubr.bf16.mxu0 %v1144
        %1887 = vmatmul.mubr.bf16.gmra.mxu0 %v1080
        %v1888 = vpop.f32.mrf.mxu0
        %v1889 = vadd.f32 0.0, %v1888
        %v1890 = vpop.f32.mrf.mxu0
        %v1891 = vpop.f32.mrf.mxu0
        %v1892 = vadd.f32 0.0, %v1891
        %v1893 = vpop.f32.mrf.mxu0
        %1894 = vmatprep.mubr.bf16.mxu0 %v1145
        %1895 = vmatmul.mubr.bf16.gmra.mxu0 %v1081
        %v1896 = vpop.f32.mrf.mxu0
        %v1897 = vadd.f32 0.0, %v1896
        %v1898 = vpop.f32.mrf.mxu0
        %v1899 = vpop.f32.mrf.mxu0
        %v1900 = vadd.f32 0.0, %v1899
        %v1901 = vpop.f32.mrf.mxu0
        %1902 = vmatprep.mubr.bf16.mxu0 %v1146
        %1903 = vmatmul.mubr.bf16.gmra.mxu0 %v1082
        %v1904 = vpop.f32.mrf.mxu0
        %v1905 = vadd.f32 0.0, %v1904
        %v1906 = vpop.f32.mrf.mxu0
        %v1907 = vpop.f32.mrf.mxu0
        %v1908 = vadd.f32 0.0, %v1907
        %v1909 = vpop.f32.mrf.mxu0
        %1910 = vmatprep.mubr.bf16.mxu0 %v1147
        %1911 = vmatmul.mubr.bf16.gmra.mxu0 %v1083
        %v1912 = vpop.f32.mrf.mxu0
        %v1913 = vadd.f32 0.0, %v1912
        %v1914 = vpop.f32.mrf.mxu0
        %v1915 = vpop.f32.mrf.mxu0
        %v1916 = vadd.f32 0.0, %v1915
        %v1917 = vpop.f32.mrf.mxu0
        %1918 = vmatprep.mubr.bf16.mxu0 %v1148
        %1919 = vmatmul.mubr.bf16.gmra.mxu0 %v1084
        %v1920 = vpop.f32.mrf.mxu0
        %v1921 = vadd.f32 0.0, %v1920
        %v1922 = vpop.f32.mrf.mxu0
        %v1923 = vpop.f32.mrf.mxu0
        %v1924 = vadd.f32 0.0, %v1923
        %v1925 = vpop.f32.mrf.mxu0
        %1926 = vmatprep.mubr.bf16.mxu0 %v1149
        %1927 = vmatmul.mubr.bf16.gmra.mxu0 %v1085
        %v1928 = vpop.f32.mrf.mxu0
        %v1929 = vadd.f32 0.0, %v1928
        %v1930 = vpop.f32.mrf.mxu0
        %v1931 = vpop.f32.mrf.mxu0
        %v1932 = vadd.f32 0.0, %v1931
        %v1933 = vpop.f32.mrf.mxu0
        %1934 = vmatprep.mubr.bf16.mxu0 %v1150
        %1935 = vmatmul.mubr.bf16.gmra.mxu0 %v1086
        %v1936 = vpop.f32.mrf.mxu0
        %v1937 = vadd.f32 0.0, %v1936
        %v1938 = vpop.f32.mrf.mxu0
        %v1939 = vpop.f32.mrf.mxu0
        %v1940 = vadd.f32 0.0, %v1939
        %v1941 = vpop.f32.mrf.mxu0
        %1942 = vmatprep.mubr.bf16.mxu0 %v1151
        %1943 = vmatmul.mubr.bf16.gmra.mxu0 %v1087
        %v1944 = vpop.f32.mrf.mxu0
        %v1945 = vadd.f32 0.0, %v1944
        %v1946 = vpop.f32.mrf.mxu0
        %v1947 = vpop.f32.mrf.mxu0
        %v1948 = vadd.f32 0.0, %v1947
        %v1949 = vpop.f32.mrf.mxu0
        %1950 = vmatprep.mubr.bf16.mxu0 %v1152
        %1951 = vmatmul.mubr.bf16.gmra.mxu0 %v1088
        %v1952 = vpop.f32.mrf.mxu0
        %v1953 = vadd.f32 0.0, %v1952
        %v1954 = vpop.f32.mrf.mxu0
        %v1955 = vpop.f32.mrf.mxu0
        %v1956 = vadd.f32 0.0, %v1955
        %v1957 = vpop.f32.mrf.mxu0
        %1958 = vmatprep.mubr.bf16.mxu0 %v1153
        %1959 = vmatmul.mubr.bf16.gmra.mxu0 %v1089
        %v1960 = vpop.f32.mrf.mxu0
        %v1961 = vadd.f32 0.0, %v1960
        %v1962 = vpop.f32.mrf.mxu0
        %v1963 = vpop.f32.mrf.mxu0
        %v1964 = vadd.f32 0.0, %v1963
        %v1965 = vpop.f32.mrf.mxu0
        %1966 = vmatprep.mubr.bf16.mxu0 %v1154
        %1967 = vmatmul.mubr.bf16.gmra.mxu0 %v1090
        %v1968 = vpop.f32.mrf.mxu0
        %v1969 = vadd.f32 0.0, %v1968
        %v1970 = vpop.f32.mrf.mxu0
        %v1971 = vpop.f32.mrf.mxu0
        %v1972 = vadd.f32 0.0, %v1971
        %v1973 = vpop.f32.mrf.mxu0
        %1974 = vmatprep.mubr.bf16.mxu0 %v1155
        %1975 = vmatmul.mubr.bf16.gmra.mxu0 %v1091
        %v1976 = vpop.f32.mrf.mxu0
        %v1977 = vadd.f32 0.0, %v1976
        %v1978 = vpop.f32.mrf.mxu0
        %v1979 = vpop.f32.mrf.mxu0
        %v1980 = vadd.f32 0.0, %v1979
        %v1981 = vpop.f32.mrf.mxu0
        %1982 = vmatprep.mubr.bf16.mxu0 %v1156
        %1983 = vmatmul.mubr.bf16.gmra.mxu0 %v1092
        %v1984 = vpop.f32.mrf.mxu0
        %v1985 = vadd.f32 0.0, %v1984
        %v1986 = vpop.f32.mrf.mxu0
        %v1987 = vpop.f32.mrf.mxu0
        %v1988 = vadd.f32 0.0, %v1987
        %v1989 = vpop.f32.mrf.mxu0
        %1990 = vmatprep.mubr.bf16.mxu0 %v1157
        %1991 = vmatmul.mubr.bf16.gmra.mxu0 %v1093
        %v1992 = vpop.f32.mrf.mxu0
        %v1993 = vadd.f32 0.0, %v1992
        %v1994 = vpop.f32.mrf.mxu0
        %v1995 = vpop.f32.mrf.mxu0
        %v1996 = vadd.f32 0.0, %v1995
        %v1997 = vpop.f32.mrf.mxu0
        %1998 = vdwg.mxu0
        %1999 = vmatprep.subr.bf16.mxu0 0
        %2000 = vmatpush1.bf16.msra.mxu0 %v1717
        %2001 = vmatprep.subr.bf16.mxu0 0
        %2002 = vmatpush1.bf16.msra.mxu0 %v1716
        %2003 = vmatprep.subr.bf16.mxu0 0
        %2004 = vmatpush1.bf16.msra.mxu0 %v1715
        %2005 = vmatprep.subr.bf16.mxu0 0
        %2006 = vmatpush1.bf16.msra.mxu0 %v1714
        %2007 = vmatprep.subr.bf16.mxu0 0
        %2008 = vmatpush1.bf16.msra.mxu0 %v1713
        %2009 = vmatprep.subr.bf16.mxu0 0
        %2010 = vmatpush1.bf16.msra.mxu0 %v1712
        %2011 = vmatprep.subr.bf16.mxu0 0
        %2012 = vmatpush1.bf16.msra.mxu0 %v1711
        %2013 = vmatprep.subr.bf16.mxu0 0
        %2014 = vmatpush1.bf16.msra.mxu0 %v1710
        %2015 = vmatprep.subr.bf16.mxu0 0
        %2016 = vmatpush2.bf16.msra.mxu0 %v1725
        %2017 = vmatprep.subr.bf16.mxu0 0
        %2018 = vmatpush2.bf16.msra.mxu0 %v1724
        %2019 = vmatprep.subr.bf16.mxu0 0
        %2020 = vmatpush2.bf16.msra.mxu0 %v1723
        %2021 = vmatprep.subr.bf16.mxu0 0
        %2022 = vmatpush2.bf16.msra.mxu0 %v1722
        %2023 = vmatprep.subr.bf16.mxu0 0
        %2024 = vmatpush2.bf16.msra.mxu0 %v1721
        %2025 = vmatprep.subr.bf16.mxu0 0
        %2026 = vmatpush2.bf16.msra.mxu0 %v1720
        %2027 = vmatprep.subr.bf16.mxu0 0
        %2028 = vmatpush2.bf16.msra.mxu0 %v1719
        %2029 = vmatprep.subr.bf16.mxu0 0
        %2030 = vmatpush2.bf16.msra.mxu0 %v1718
        %2031 = vmatprep.mubr.bf16.mxu0 %v1079
        %2032 = vmatmul.mubr.bf16.gmra.mxu0 %v1206
        %v2033 = vpop.f32.mrf.mxu0
        %v2034 = vadd.f32 %v1873, %v2033
        %v2035 = vpop.f32.mrf.mxu0
        %v2036 = vpop.f32.mrf.mxu0
        %v2037 = vadd.f32 %v1876, %v2036
        %v2038 = vpop.f32.mrf.mxu0
        %2039 = vmatprep.mubr.bf16.mxu0 %v1080
        %2040 = vmatmul.mubr.bf16.gmra.mxu0 %v1207
        %v2041 = vpop.f32.mrf.mxu0
        %v2042 = vadd.f32 %v1881, %v2041
        %v2043 = vpop.f32.mrf.mxu0
        %v2044 = vpop.f32.mrf.mxu0
        %v2045 = vadd.f32 %v1884, %v2044
        %v2046 = vpop.f32.mrf.mxu0
        %2047 = vmatprep.mubr.bf16.mxu0 %v1081
        %2048 = vmatmul.mubr.bf16.gmra.mxu0 %v1208
        %v2049 = vpop.f32.mrf.mxu0
        %v2050 = vadd.f32 %v1889, %v2049
        %v2051 = vpop.f32.mrf.mxu0
        %v2052 = vpop.f32.mrf.mxu0
        %v2053 = vadd.f32 %v1892, %v2052
        %v2054 = vpop.f32.mrf.mxu0
        %2055 = vmatprep.mubr.bf16.mxu0 %v1082
        %2056 = vmatmul.mubr.bf16.gmra.mxu0 %v1209
        %v2057 = vpop.f32.mrf.mxu0
        %v2058 = vadd.f32 %v1897, %v2057
        %v2059 = vpop.f32.mrf.mxu0
        %v2060 = vpop.f32.mrf.mxu0
        %v2061 = vadd.f32 %v1900, %v2060
        %v2062 = vpop.f32.mrf.mxu0
        %2063 = vmatprep.mubr.bf16.mxu0 %v1083
        %2064 = vmatmul.mubr.bf16.gmra.mxu0 %v1210
        %v2065 = vpop.f32.mrf.mxu0
        %v2066 = vadd.f32 %v1905, %v2065
        %v2067 = vpop.f32.mrf.mxu0
        %v2068 = vpop.f32.mrf.mxu0
        %v2069 = vadd.f32 %v1908, %v2068
        %v2070 = vpop.f32.mrf.mxu0
        %2071 = vmatprep.mubr.bf16.mxu0 %v1084
        %2072 = vmatmul.mubr.bf16.gmra.mxu0 %v1211
        %v2073 = vpop.f32.mrf.mxu0
        %v2074 = vadd.f32 %v1913, %v2073
        %v2075 = vpop.f32.mrf.mxu0
        %v2076 = vpop.f32.mrf.mxu0
        %v2077 = vadd.f32 %v1916, %v2076
        %v2078 = vpop.f32.mrf.mxu0
        %2079 = vmatprep.mubr.bf16.mxu0 %v1085
        %2080 = vmatmul.mubr.bf16.gmra.mxu0 %v1212
        %v2081 = vpop.f32.mrf.mxu0
        %v2082 = vadd.f32 %v1921, %v2081
        %v2083 = vpop.f32.mrf.mxu0
        %v2084 = vpop.f32.mrf.mxu0
        %v2085 = vadd.f32 %v1924, %v2084
        %v2086 = vpop.f32.mrf.mxu0
        %2087 = vmatprep.mubr.bf16.mxu0 %v1086
        %2088 = vmatmul.mubr.bf16.gmra.mxu0 %v1213
        %v2089 = vpop.f32.mrf.mxu0
        %v2090 = vadd.f32 %v1929, %v2089
        %v2091 = vpop.f32.mrf.mxu0
        %v2092 = vpop.f32.mrf.mxu0
        %v2093 = vadd.f32 %v1932, %v2092
        %v2094 = vpop.f32.mrf.mxu0
        %2095 = vmatprep.mubr.bf16.mxu0 %v1087
        %2096 = vmatmul.mubr.bf16.gmra.mxu0 %v1214
        %v2097 = vpop.f32.mrf.mxu0
        %v2098 = vadd.f32 %v1937, %v2097
        %v2099 = vpop.f32.mrf.mxu0
        %v2100 = vpop.f32.mrf.mxu0
        %v2101 = vadd.f32 %v1940, %v2100
        %v2102 = vpop.f32.mrf.mxu0
        %2103 = vmatprep.mubr.bf16.mxu0 %v1088
        %2104 = vmatmul.mubr.bf16.gmra.mxu0 %v1215
        %v2105 = vpop.f32.mrf.mxu0
        %v2106 = vadd.f32 %v1945, %v2105
        %v2107 = vpop.f32.mrf.mxu0
        %v2108 = vpop.f32.mrf.mxu0
        %v2109 = vadd.f32 %v1948, %v2108
        %v2110 = vpop.f32.mrf.mxu0
        %2111 = vmatprep.mubr.bf16.mxu0 %v1089
        %2112 = vmatmul.mubr.bf16.gmra.mxu0 %v1216
        %v2113 = vpop.f32.mrf.mxu0
        %v2114 = vadd.f32 %v1953, %v2113
        %v2115 = vpop.f32.mrf.mxu0
        %v2116 = vpop.f32.mrf.mxu0
        %v2117 = vadd.f32 %v1956, %v2116
        %v2118 = vpop.f32.mrf.mxu0
        %2119 = vmatprep.mubr.bf16.mxu0 %v1090
        %2120 = vmatmul.mubr.bf16.gmra.mxu0 %v1217
        %v2121 = vpop.f32.mrf.mxu0
        %v2122 = vadd.f32 %v1961, %v2121
        %v2123 = vpop.f32.mrf.mxu0
        %v2124 = vpop.f32.mrf.mxu0
        %v2125 = vadd.f32 %v1964, %v2124
        %v2126 = vpop.f32.mrf.mxu0
        %2127 = vmatprep.mubr.bf16.mxu0 %v1091
        %2128 = vmatmul.mubr.bf16.gmra.mxu0 %v1218
        %v2129 = vpop.f32.mrf.mxu0
        %v2130 = vadd.f32 %v1969, %v2129
        %v2131 = vpop.f32.mrf.mxu0
        %v2132 = vpop.f32.mrf.mxu0
        %v2133 = vadd.f32 %v1972, %v2132
        %v2134 = vpop.f32.mrf.mxu0
        %2135 = vmatprep.mubr.bf16.mxu0 %v1092
        %2136 = vmatmul.mubr.bf16.gmra.mxu0 %v1219
        %v2137 = vpop.f32.mrf.mxu0
        %v2138 = vadd.f32 %v1977, %v2137
        %v2139 = vpop.f32.mrf.mxu0
        %v2140 = vpop.f32.mrf.mxu0
        %v2141 = vadd.f32 %v1980, %v2140
        %v2142 = vpop.f32.mrf.mxu0
        %2143 = vmatprep.mubr.bf16.mxu0 %v1093
        %2144 = vmatmul.mubr.bf16.gmra.mxu0 %v1220
        %v2145 = vpop.f32.mrf.mxu0
        %v2146 = vadd.f32 %v1985, %v2145
        %v2147 = vpop.f32.mrf.mxu0
        %v2148 = vpop.f32.mrf.mxu0
        %v2149 = vadd.f32 %v1988, %v2148
        %v2150 = vpop.f32.mrf.mxu0
        %2151 = vmatprep.mubr.bf16.mxu0 %v1240
        %2152 = vmatmul.mubr.bf16.gmra.mxu0 %v1221
        %v2153 = vpop.f32.mrf.mxu0
        %v2154 = vadd.f32 %v1993, %v2153
        %v2155 = vpop.f32.mrf.mxu0
        %v2156 = vpop.f32.mrf.mxu0
        %v2157 = vadd.f32 %v1996, %v2156
        %v2158 = vpop.f32.mrf.mxu0
        %2159 = vdwg.mxu0
        %2160 = vmatprep.subr.bf16.mxu0 0
        %2161 = vmatpush1.bf16.msra.mxu0 %v1733
        %2162 = vmatprep.subr.bf16.mxu0 0
        %2163 = vmatpush1.bf16.msra.mxu0 %v1732
        %2164 = vmatprep.subr.bf16.mxu0 0
        %2165 = vmatpush1.bf16.msra.mxu0 %v1731
        %2166 = vmatprep.subr.bf16.mxu0 0
        %2167 = vmatpush1.bf16.msra.mxu0 %v1730
        %2168 = vmatprep.subr.bf16.mxu0 0
        %2169 = vmatpush1.bf16.msra.mxu0 %v1729
        %2170 = vmatprep.subr.bf16.mxu0 0
        %2171 = vmatpush1.bf16.msra.mxu0 %v1728
        %2172 = vmatprep.subr.bf16.mxu0 0
        %2173 = vmatpush1.bf16.msra.mxu0 %v1727
        %2174 = vmatprep.subr.bf16.mxu0 0
        %2175 = vmatpush1.bf16.msra.mxu0 %v1726
        %2176 = vmatprep.subr.bf16.mxu0 0
        %2177 = vmatpush2.bf16.msra.mxu0 %v1741
        %2178 = vmatprep.subr.bf16.mxu0 0
        %2179 = vmatpush2.bf16.msra.mxu0 %v1740
        %2180 = vmatprep.subr.bf16.mxu0 0
        %2181 = vmatpush2.bf16.msra.mxu0 %v1739
        %2182 = vmatprep.subr.bf16.mxu0 0
        %2183 = vmatpush2.bf16.msra.mxu0 %v1738
        %2184 = vmatprep.subr.bf16.mxu0 0
        %2185 = vmatpush2.bf16.msra.mxu0 %v1737
        %2186 = vmatprep.subr.bf16.mxu0 0
        %2187 = vmatpush2.bf16.msra.mxu0 %v1736
        %2188 = vmatprep.subr.bf16.mxu0 0
        %2189 = vmatpush2.bf16.msra.mxu0 %v1735
        %2190 = vmatprep.subr.bf16.mxu0 0
        %2191 = vmatpush2.bf16.msra.mxu0 %v1734
        %2192 = vmatprep.mubr.bf16.mxu0 %v1207
        %2193 = vmatmul.mubr.bf16.gmra.mxu0 %v1143
        %v2194 = vpop.f32.mrf.mxu0
        %v2195 = vadd.f32 %v2034, %v2194
        %v2196 = vpop.f32.mrf.mxu0
        %v2197 = vpop.f32.mrf.mxu0
        %v2198 = vadd.f32 %v2037, %v2197
        %v2199 = vpop.f32.mrf.mxu0
        %2200 = vmatprep.mubr.bf16.mxu0 %v1208
        %2201 = vmatmul.mubr.bf16.gmra.mxu0 %v1144
        %v2202 = vpop.f32.mrf.mxu0
        %v2203 = vadd.f32 %v2042, %v2202
        %v2204 = vpop.f32.mrf.mxu0
        %v2205 = vpop.f32.mrf.mxu0
        %v2206 = vadd.f32 %v2045, %v2205
        %v2207 = vpop.f32.mrf.mxu0
        %2208 = vmatprep.mubr.bf16.mxu0 %v1209
        %2209 = vmatmul.mubr.bf16.gmra.mxu0 %v1145
        %v2210 = vpop.f32.mrf.mxu0
        %v2211 = vadd.f32 %v2050, %v2210
        %v2212 = vpop.f32.mrf.mxu0
        %v2213 = vpop.f32.mrf.mxu0
        %v2214 = vadd.f32 %v2053, %v2213
        %v2215 = vpop.f32.mrf.mxu0
        %2216 = vmatprep.mubr.bf16.mxu0 %v1210
        %2217 = vmatmul.mubr.bf16.gmra.mxu0 %v1146
        %v2218 = vpop.f32.mrf.mxu0
        %v2219 = vadd.f32 %v2058, %v2218
        %v2220 = vpop.f32.mrf.mxu0
        %v2221 = vpop.f32.mrf.mxu0
        %v2222 = vadd.f32 %v2061, %v2221
        %v2223 = vpop.f32.mrf.mxu0
        %2224 = vmatprep.mubr.bf16.mxu0 %v1211
        %2225 = vmatmul.mubr.bf16.gmra.mxu0 %v1147
        %v2226 = vpop.f32.mrf.mxu0
        %v2227 = vadd.f32 %v2066, %v2226
        %v2228 = vpop.f32.mrf.mxu0
        %v2229 = vpop.f32.mrf.mxu0
        %v2230 = vadd.f32 %v2069, %v2229
        %v2231 = vpop.f32.mrf.mxu0
        %2232 = vmatprep.mubr.bf16.mxu0 %v1212
        %2233 = vmatmul.mubr.bf16.gmra.mxu0 %v1148
        %v2234 = vpop.f32.mrf.mxu0
        %v2235 = vadd.f32 %v2074, %v2234
        %v2236 = vpop.f32.mrf.mxu0
        %v2237 = vpop.f32.mrf.mxu0
        %v2238 = vadd.f32 %v2077, %v2237
        %v2239 = vpop.f32.mrf.mxu0
        %2240 = vmatprep.mubr.bf16.mxu0 %v1213
        %2241 = vmatmul.mubr.bf16.gmra.mxu0 %v1149
        %v2242 = vpop.f32.mrf.mxu0
        %v2243 = vadd.f32 %v2082, %v2242
        %v2244 = vpop.f32.mrf.mxu0
        %v2245 = vpop.f32.mrf.mxu0
        %v2246 = vadd.f32 %v2085, %v2245
        %v2247 = vpop.f32.mrf.mxu0
        %2248 = vmatprep.mubr.bf16.mxu0 %v1214
        %2249 = vmatmul.mubr.bf16.gmra.mxu0 %v1150
        %v2250 = vpop.f32.mrf.mxu0
        %v2251 = vadd.f32 %v2090, %v2250
        %v2252 = vpop.f32.mrf.mxu0
        %v2253 = vpop.f32.mrf.mxu0
        %v2254 = vadd.f32 %v2093, %v2253
        %v2255 = vpop.f32.mrf.mxu0
        %2256 = vmatprep.mubr.bf16.mxu0 %v1215
        %2257 = vmatmul.mubr.bf16.gmra.mxu0 %v1151
        %v2258 = vpop.f32.mrf.mxu0
        %v2259 = vadd.f32 %v2098, %v2258
        %v2260 = vpop.f32.mrf.mxu0
        %v2261 = vpop.f32.mrf.mxu0
        %v2262 = vadd.f32 %v2101, %v2261
        %v2263 = vpop.f32.mrf.mxu0
        %2264 = vmatprep.mubr.bf16.mxu0 %v1216
        %2265 = vmatmul.mubr.bf16.gmra.mxu0 %v1152
        %v2266 = vpop.f32.mrf.mxu0
        %v2267 = vadd.f32 %v2106, %v2266
        %v2268 = vpop.f32.mrf.mxu0
        %v2269 = vpop.f32.mrf.mxu0
        %v2270 = vadd.f32 %v2109, %v2269
        %v2271 = vpop.f32.mrf.mxu0
        %2272 = vmatprep.mubr.bf16.mxu0 %v1217
        %2273 = vmatmul.mubr.bf16.gmra.mxu0 %v1153
        %v2274 = vpop.f32.mrf.mxu0
        %v2275 = vadd.f32 %v2114, %v2274
        %v2276 = vpop.f32.mrf.mxu0
        %v2277 = vpop.f32.mrf.mxu0
        %v2278 = vadd.f32 %v2117, %v2277
        %v2279 = vpop.f32.mrf.mxu0
        %2280 = vmatprep.mubr.bf16.mxu0 %v1218
        %2281 = vmatmul.mubr.bf16.gmra.mxu0 %v1154
        %v2282 = vpop.f32.mrf.mxu0
        %v2283 = vadd.f32 %v2122, %v2282
        %v2284 = vpop.f32.mrf.mxu0
        %v2285 = vpop.f32.mrf.mxu0
        %v2286 = vadd.f32 %v2125, %v2285
        %v2287 = vpop.f32.mrf.mxu0
        %2288 = vmatprep.mubr.bf16.mxu0 %v1219
        %2289 = vmatmul.mubr.bf16.gmra.mxu0 %v1155
        %v2290 = vpop.f32.mrf.mxu0
        %v2291 = vadd.f32 %v2130, %v2290
        %v2292 = vpop.f32.mrf.mxu0
        %v2293 = vpop.f32.mrf.mxu0
        %v2294 = vadd.f32 %v2133, %v2293
        %v2295 = vpop.f32.mrf.mxu0
        %2296 = vmatprep.mubr.bf16.mxu0 %v1220
        %2297 = vmatmul.mubr.bf16.gmra.mxu0 %v1156
        %v2298 = vpop.f32.mrf.mxu0
        %v2299 = vadd.f32 %v2138, %v2298
        %v2300 = vpop.f32.mrf.mxu0
        %v2301 = vpop.f32.mrf.mxu0
        %v2302 = vadd.f32 %v2141, %v2301
        %v2303 = vpop.f32.mrf.mxu0
        %2304 = vmatprep.mubr.bf16.mxu0 %v1221
        %2305 = vmatmul.mubr.bf16.gmra.mxu0 %v1157
        %v2306 = vpop.f32.mrf.mxu0
        %v2307 = vadd.f32 %v2146, %v2306
        %v2308 = vpop.f32.mrf.mxu0
        %v2309 = vpop.f32.mrf.mxu0
        %v2310 = vadd.f32 %v2149, %v2309
        %v2311 = vpop.f32.mrf.mxu0
        %2312 = vmatprep.mubr.bf16.mxu0 %v1248
        %2313 = vmatmul.mubr.bf16.gmra.mxu0 %v1244
        %v2314 = vpop.f32.mrf.mxu0
        %v2315 = vadd.f32 %v2154, %v2314
        %v2316 = vpop.f32.mrf.mxu0
        %v2317 = vpop.f32.mrf.mxu0
        %v2318 = vadd.f32 %v2157, %v2317
        %v2319 = vpop.f32.mrf.mxu0
        %2320 = vdwg.mxu0
        %2321 = vmatprep.subr.bf16.mxu0 0
        %2322 = vmatpush1.bf16.msra.mxu0 %v1749
        %2323 = vmatprep.subr.bf16.mxu0 0
        %2324 = vmatpush1.bf16.msra.mxu0 %v1748
        %2325 = vmatprep.subr.bf16.mxu0 0
        %2326 = vmatpush1.bf16.msra.mxu0 %v1747
        %2327 = vmatprep.subr.bf16.mxu0 0
        %2328 = vmatpush1.bf16.msra.mxu0 %v1746
        %2329 = vmatprep.subr.bf16.mxu0 0
        %2330 = vmatpush1.bf16.msra.mxu0 %v1745
        %2331 = vmatprep.subr.bf16.mxu0 0
        %2332 = vmatpush1.bf16.msra.mxu0 %v1744
        %2333 = vmatprep.subr.bf16.mxu0 0
        %2334 = vmatpush1.bf16.msra.mxu0 %v1743
        %2335 = vmatprep.subr.bf16.mxu0 0
        %2336 = vmatpush1.bf16.msra.mxu0 %v1742
        %2337 = vmatprep.subr.bf16.mxu0 0
        %2338 = vmatpush2.bf16.msra.mxu0 %v1757
        %2339 = vmatprep.subr.bf16.mxu0 0
        %2340 = vmatpush2.bf16.msra.mxu0 %v1756
        %2341 = vmatprep.subr.bf16.mxu0 0
        %2342 = vmatpush2.bf16.msra.mxu0 %v1755
        %2343 = vmatprep.subr.bf16.mxu0 0
        %2344 = vmatpush2.bf16.msra.mxu0 %v1754
        %2345 = vmatprep.subr.bf16.mxu0 0
        %2346 = vmatpush2.bf16.msra.mxu0 %v1753
        %2347 = vmatprep.subr.bf16.mxu0 0
        %2348 = vmatpush2.bf16.msra.mxu0 %v1752
        %2349 = vmatprep.subr.bf16.mxu0 0
        %2350 = vmatpush2.bf16.msra.mxu0 %v1751
        %2351 = vmatprep.subr.bf16.mxu0 0
        %2352 = vmatpush2.bf16.msra.mxu0 %v1750
        %2353 = vmatprep.mubr.bf16.mxu0 %v1144
        %2354 = vmatmul.mubr.bf16.gmra.mxu0 %v1080
        %v2355 = vpop.f32.mrf.mxu0
        %v2356 = vadd.f32 %v2195, %v2355
        %v2357 = vpop.f32.mrf.mxu0
        %v2358 = vpop.f32.mrf.mxu0
        %v2359 = vadd.f32 %v2198, %v2358
        %v2360 = vpop.f32.mrf.mxu0
        %2361 = vmatprep.mubr.bf16.mxu0 %v1145
        %2362 = vmatmul.mubr.bf16.gmra.mxu0 %v1081
        %v2363 = vpop.f32.mrf.mxu0
        %v2364 = vadd.f32 %v2203, %v2363
        %v2365 = vpop.f32.mrf.mxu0
        %v2366 = vpop.f32.mrf.mxu0
        %v2367 = vadd.f32 %v2206, %v2366
        %v2368 = vpop.f32.mrf.mxu0
        %2369 = vmatprep.mubr.bf16.mxu0 %v1146
        %2370 = vmatmul.mubr.bf16.gmra.mxu0 %v1082
        %v2371 = vpop.f32.mrf.mxu0
        %v2372 = vadd.f32 %v2211, %v2371
        %v2373 = vpop.f32.mrf.mxu0
        %v2374 = vpop.f32.mrf.mxu0
        %v2375 = vadd.f32 %v2214, %v2374
        %v2376 = vpop.f32.mrf.mxu0
        %2377 = vmatprep.mubr.bf16.mxu0 %v1147
        %2378 = vmatmul.mubr.bf16.gmra.mxu0 %v1083
        %v2379 = vpop.f32.mrf.mxu0
        %v2380 = vadd.f32 %v2219, %v2379
        %v2381 = vpop.f32.mrf.mxu0
        %v2382 = vpop.f32.mrf.mxu0
        %v2383 = vadd.f32 %v2222, %v2382
        %v2384 = vpop.f32.mrf.mxu0
        %2385 = vmatprep.mubr.bf16.mxu0 %v1148
        %2386 = vmatmul.mubr.bf16.gmra.mxu0 %v1084
        %v2387 = vpop.f32.mrf.mxu0
        %v2388 = vadd.f32 %v2227, %v2387
        %v2389 = vpop.f32.mrf.mxu0
        %v2390 = vpop.f32.mrf.mxu0
        %v2391 = vadd.f32 %v2230, %v2390
        %v2392 = vpop.f32.mrf.mxu0
        %2393 = vmatprep.mubr.bf16.mxu0 %v1149
        %2394 = vmatmul.mubr.bf16.gmra.mxu0 %v1085
        %v2395 = vpop.f32.mrf.mxu0
        %v2396 = vadd.f32 %v2235, %v2395
        %v2397 = vpop.f32.mrf.mxu0
        %v2398 = vpop.f32.mrf.mxu0
        %v2399 = vadd.f32 %v2238, %v2398
        %v2400 = vpop.f32.mrf.mxu0
        %2401 = vmatprep.mubr.bf16.mxu0 %v1150
        %2402 = vmatmul.mubr.bf16.gmra.mxu0 %v1086
        %v2403 = vpop.f32.mrf.mxu0
        %v2404 = vadd.f32 %v2243, %v2403
        %v2405 = vpop.f32.mrf.mxu0
        %v2406 = vpop.f32.mrf.mxu0
        %v2407 = vadd.f32 %v2246, %v2406
        %v2408 = vpop.f32.mrf.mxu0
        %2409 = vmatprep.mubr.bf16.mxu0 %v1151
        %2410 = vmatmul.mubr.bf16.gmra.mxu0 %v1087
        %v2411 = vpop.f32.mrf.mxu0
        %v2412 = vadd.f32 %v2251, %v2411
        %v2413 = vpop.f32.mrf.mxu0
        %v2414 = vpop.f32.mrf.mxu0
        %v2415 = vadd.f32 %v2254, %v2414
        %v2416 = vpop.f32.mrf.mxu0
        %2417 = vmatprep.mubr.bf16.mxu0 %v1152
        %2418 = vmatmul.mubr.bf16.gmra.mxu0 %v1088
        %v2419 = vpop.f32.mrf.mxu0
        %v2420 = vadd.f32 %v2259, %v2419
        %v2421 = vpop.f32.mrf.mxu0
        %v2422 = vpop.f32.mrf.mxu0
        %v2423 = vadd.f32 %v2262, %v2422
        %v2424 = vpop.f32.mrf.mxu0
        %2425 = vmatprep.mubr.bf16.mxu0 %v1153
        %2426 = vmatmul.mubr.bf16.gmra.mxu0 %v1089
        %v2427 = vpop.f32.mrf.mxu0
        %v2428 = vadd.f32 %v2267, %v2427
        %v2429 = vpop.f32.mrf.mxu0
        %v2430 = vpop.f32.mrf.mxu0
        %v2431 = vadd.f32 %v2270, %v2430
        %v2432 = vpop.f32.mrf.mxu0
        %2433 = vmatprep.mubr.bf16.mxu0 %v1154
        %2434 = vmatmul.mubr.bf16.gmra.mxu0 %v1090
        %v2435 = vpop.f32.mrf.mxu0
        %v2436 = vadd.f32 %v2275, %v2435
        %v2437 = vpop.f32.mrf.mxu0
        %v2438 = vpop.f32.mrf.mxu0
        %v2439 = vadd.f32 %v2278, %v2438
        %v2440 = vpop.f32.mrf.mxu0
        %2441 = vmatprep.mubr.bf16.mxu0 %v1155
        %2442 = vmatmul.mubr.bf16.gmra.mxu0 %v1091
        %v2443 = vpop.f32.mrf.mxu0
        %v2444 = vadd.f32 %v2283, %v2443
        %v2445 = vpop.f32.mrf.mxu0
        %v2446 = vpop.f32.mrf.mxu0
        %v2447 = vadd.f32 %v2286, %v2446
        %v2448 = vpop.f32.mrf.mxu0
        %2449 = vmatprep.mubr.bf16.mxu0 %v1156
        %2450 = vmatmul.mubr.bf16.gmra.mxu0 %v1092
        %v2451 = vpop.f32.mrf.mxu0
        %v2452 = vadd.f32 %v2291, %v2451
        %v2453 = vpop.f32.mrf.mxu0
        %v2454 = vpop.f32.mrf.mxu0
        %v2455 = vadd.f32 %v2294, %v2454
        %v2456 = vpop.f32.mrf.mxu0
        %2457 = vmatprep.mubr.bf16.mxu0 %v1157
        %2458 = vmatmul.mubr.bf16.gmra.mxu0 %v1093
        %v2459 = vpop.f32.mrf.mxu0
        %v2460 = vadd.f32 %v2299, %v2459
        %v2461 = vpop.f32.mrf.mxu0
        %v2462 = vpop.f32.mrf.mxu0
        %v2463 = vadd.f32 %v2302, %v2462
        %v2464 = vpop.f32.mrf.mxu0
        %2465 = vmatprep.mubr.bf16.mxu0 %v1244
        %2466 = vmatmul.mubr.bf16.gmra.mxu0 %v1240
        %v2467 = vpop.f32.mrf.mxu0
        %v2468 = vadd.f32 %v2307, %v2467
        %v2469 = vpop.f32.mrf.mxu0
        %v2470 = vpop.f32.mrf.mxu0
        %v2471 = vadd.f32 %v2310, %v2470
        %v2472 = vpop.f32.mrf.mxu0
        %2473 = vmatprep.mubr.bf16.mxu0 %v1256
        %2474 = vmatmul.mubr.bf16.gmra.mxu0 %v1252
        %v2475 = vpop.f32.mrf.mxu0
        %v2476 = vadd.f32 %v2315, %v2475
        %v2477 = vpop.f32.mrf.mxu0
        %v2478 = vpop.f32.mrf.mxu0
        %v2479 = vadd.f32 %v2318, %v2478
        %v2480 = vpop.f32.mrf.mxu0
        %2481 = vdwg.mxu0
        %2482 = vmatprep.subr.bf16.mxu0 0
        %2483 = vmatpush1.bf16.msra.mxu0 %v1765
        %2484 = vmatprep.subr.bf16.mxu0 0
        %2485 = vmatpush1.bf16.msra.mxu0 %v1764
        %2486 = vmatprep.subr.bf16.mxu0 0
        %2487 = vmatpush1.bf16.msra.mxu0 %v1763
        %2488 = vmatprep.subr.bf16.mxu0 0
        %2489 = vmatpush1.bf16.msra.mxu0 %v1762
        %2490 = vmatprep.subr.bf16.mxu0 0
        %2491 = vmatpush1.bf16.msra.mxu0 %v1761
        %2492 = vmatprep.subr.bf16.mxu0 0
        %2493 = vmatpush1.bf16.msra.mxu0 %v1760
        %2494 = vmatprep.subr.bf16.mxu0 0
        %2495 = vmatpush1.bf16.msra.mxu0 %v1759
        %2496 = vmatprep.subr.bf16.mxu0 0
        %2497 = vmatpush1.bf16.msra.mxu0 %v1758
        %2498 = vmatprep.subr.bf16.mxu0 0
        %2499 = vmatpush2.bf16.msra.mxu0 0
        %2500 = vmatprep.subr.bf16.mxu0 0
        %2501 = vmatpush2.bf16.msra.mxu0 0
        %2502 = vmatprep.subr.bf16.mxu0 0
        %2503 = vmatpush2.bf16.msra.mxu0 0
        %2504 = vmatprep.subr.bf16.mxu0 0
        %2505 = vmatpush2.bf16.msra.mxu0 0
        %2506 = vmatprep.subr.bf16.mxu0 0
        %2507 = vmatpush2.bf16.msra.mxu0 0
        %2508 = vmatprep.subr.bf16.mxu0 0
        %2509 = vmatpush2.bf16.msra.mxu0 0
        %2510 = vmatprep.subr.bf16.mxu0 0
        %2511 = vmatpush2.bf16.msra.mxu0 0
        %2512 = vmatprep.subr.bf16.mxu0 0
        %2513 = vmatpush2.bf16.msra.mxu0 0
        %2514 = vmatprep.mubr.bf16.mxu0 0
        %2515 = vmatmul.mubr.bf16.gmra.mxu0 %v1208
        %v2516 = vpop.f32.mrf.mxu0
        %v2517 = vadd.f32 %v2356, %v2516
        %v2518 = vpop.f32.mrf.mxu0
        %v2519 = vpop.f32.mrf.mxu0
        %v2520 = vadd.f32 %v2359, %v2519
        %v2521 = vpop.f32.mrf.mxu0
        %2522 = vmatprep.mubr.bf16.mxu0 0
        %2523 = vmatmul.mubr.bf16.gmra.mxu0 %v1209
        %v2524 = vpop.f32.mrf.mxu0
        %v2525 = vadd.f32 %v2364, %v2524
        %v2526 = vpop.f32.mrf.mxu0
        %v2527 = vpop.f32.mrf.mxu0
        %v2528 = vadd.f32 %v2367, %v2527
        %v2529 = vpop.f32.mrf.mxu0
        %2530 = vmatprep.mubr.bf16.mxu0 0
        %2531 = vmatmul.mubr.bf16.gmra.mxu0 %v1210
        %v2532 = vpop.f32.mrf.mxu0
        %v2533 = vadd.f32 %v2372, %v2532
        %v2534 = vpop.f32.mrf.mxu0
        %v2535 = vpop.f32.mrf.mxu0
        %v2536 = vadd.f32 %v2375, %v2535
        %v2537 = vpop.f32.mrf.mxu0
        %2538 = vmatprep.mubr.bf16.mxu0 0
        %2539 = vmatmul.mubr.bf16.gmra.mxu0 %v1211
        %v2540 = vpop.f32.mrf.mxu0
        %v2541 = vadd.f32 %v2380, %v2540
        %v2542 = vpop.f32.mrf.mxu0
        %v2543 = vpop.f32.mrf.mxu0
        %v2544 = vadd.f32 %v2383, %v2543
        %v2545 = vpop.f32.mrf.mxu0
        %2546 = vmatprep.mubr.bf16.mxu0 0
        %2547 = vmatmul.mubr.bf16.gmra.mxu0 %v1212
        %v2548 = vpop.f32.mrf.mxu0
        %v2549 = vadd.f32 %v2388, %v2548
        %v2550 = vpop.f32.mrf.mxu0
        %v2551 = vpop.f32.mrf.mxu0
        %v2552 = vadd.f32 %v2391, %v2551
        %v2553 = vpop.f32.mrf.mxu0
        %2554 = vmatprep.mubr.bf16.mxu0 0
        %2555 = vmatmul.mubr.bf16.gmra.mxu0 %v1213
        %v2556 = vpop.f32.mrf.mxu0
        %v2557 = vadd.f32 %v2396, %v2556
        %v2558 = vpop.f32.mrf.mxu0
        %v2559 = vpop.f32.mrf.mxu0
        %v2560 = vadd.f32 %v2399, %v2559
        %v2561 = vpop.f32.mrf.mxu0
        %2562 = vmatprep.mubr.bf16.mxu0 0
        %2563 = vmatmul.mubr.bf16.gmra.mxu0 %v1214
        %v2564 = vpop.f32.mrf.mxu0
        %v2565 = vadd.f32 %v2404, %v2564
        %v2566 = vpop.f32.mrf.mxu0
        %v2567 = vpop.f32.mrf.mxu0
        %v2568 = vadd.f32 %v2407, %v2567
        %v2569 = vpop.f32.mrf.mxu0
        %2570 = vmatprep.mubr.bf16.mxu0 0
        %2571 = vmatmul.mubr.bf16.gmra.mxu0 %v1215
        %v2572 = vpop.f32.mrf.mxu0
        %v2573 = vadd.f32 %v2412, %v2572
        %v2574 = vpop.f32.mrf.mxu0
        %v2575 = vpop.f32.mrf.mxu0
        %v2576 = vadd.f32 %v2415, %v2575
        %v2577 = vpop.f32.mrf.mxu0
        %2578 = vmatprep.mubr.bf16.mxu0 0
        %2579 = vmatmul.mubr.bf16.gmra.mxu0 %v1216
        %v2580 = vpop.f32.mrf.mxu0
        %v2581 = vadd.f32 %v2420, %v2580
        %v2582 = vpop.f32.mrf.mxu0
        %v2583 = vpop.f32.mrf.mxu0
        %v2584 = vadd.f32 %v2423, %v2583
        %v2585 = vpop.f32.mrf.mxu0
        %2586 = vmatprep.mubr.bf16.mxu0 0
        %2587 = vmatmul.mubr.bf16.gmra.mxu0 %v1217
        %v2588 = vpop.f32.mrf.mxu0
        %v2589 = vadd.f32 %v2428, %v2588
        %v2590 = vpop.f32.mrf.mxu0
        %v2591 = vpop.f32.mrf.mxu0
        %v2592 = vadd.f32 %v2431, %v2591
        %v2593 = vpop.f32.mrf.mxu0
        %2594 = vmatprep.mubr.bf16.mxu0 0
        %2595 = vmatmul.mubr.bf16.gmra.mxu0 %v1218
        %v2596 = vpop.f32.mrf.mxu0
        %v2597 = vadd.f32 %v2436, %v2596
        %v2598 = vpop.f32.mrf.mxu0
        %v2599 = vpop.f32.mrf.mxu0
        %v2600 = vadd.f32 %v2439, %v2599
        %v2601 = vpop.f32.mrf.mxu0
        %2602 = vmatprep.mubr.bf16.mxu0 0
        %2603 = vmatmul.mubr.bf16.gmra.mxu0 %v1219
        %v2604 = vpop.f32.mrf.mxu0
        %v2605 = vadd.f32 %v2444, %v2604
        %v2606 = vpop.f32.mrf.mxu0
        %v2607 = vpop.f32.mrf.mxu0
        %v2608 = vadd.f32 %v2447, %v2607
        %v2609 = vpop.f32.mrf.mxu0
        %2610 = vmatprep.mubr.bf16.mxu0 0
        %2611 = vmatmul.mubr.bf16.gmra.mxu0 %v1220
        %v2612 = vpop.f32.mrf.mxu0
        %v2613 = vadd.f32 %v2452, %v2612
        %v2614 = vpop.f32.mrf.mxu0
        %v2615 = vpop.f32.mrf.mxu0
        %v2616 = vadd.f32 %v2455, %v2615
        %v2617 = vpop.f32.mrf.mxu0
        %2618 = vmatprep.mubr.bf16.mxu0 0
        %2619 = vmatmul.mubr.bf16.gmra.mxu0 %v1221
        %v2620 = vpop.f32.mrf.mxu0
        %v2621 = vadd.f32 %v2460, %v2620
        %v2622 = vpop.f32.mrf.mxu0
        %v2623 = vpop.f32.mrf.mxu0
        %v2624 = vadd.f32 %v2463, %v2623
        %v2625 = vpop.f32.mrf.mxu0
        %2626 = vmatprep.mubr.bf16.mxu0 0
        %2627 = vmatmul.mubr.bf16.gmra.mxu0 %v1248
        %v2628 = vpop.f32.mrf.mxu0
        %v2629 = vadd.f32 %v2468, %v2628
        %v2630 = vpop.f32.mrf.mxu0
        %v2631 = vpop.f32.mrf.mxu0
        %v2632 = vadd.f32 %v2471, %v2631
        %v2633 = vpop.f32.mrf.mxu0
        %2634 = vmatprep.mubr.bf16.mxu0 0
        %2635 = vmatmul.mubr.bf16.gmra.mxu0 %v1260
        %v2636 = vpop.f32.mrf.mxu0
        %v2637 = vadd.f32 %v2476, %v2636
        %v2638 = vpop.f32.mrf.mxu0
        %v2639 = vpop.f32.mrf.mxu0
        %v2640 = vadd.f32 %v2479, %v2639
        %v2641 = vpop.f32.mrf.mxu0
        %2642 = vdwg.mxu0
        %v2643 = vld [vmem:[%s2] sm:$0x1]
        %v2645 = vlaneseq
        %v2646 = vshrl.u32 %v2645, 7
        %v2647 = vsub.s32 0, %v2646
        %v2648 = vrot.slane %v2643, %v2647
        %v2650 = vmul.f32 %v2517, %v2648
        %v2651 = vmul.f32 %v2520, %v2648
        %v2652 = vmul.f32 %v2525, %v2648
        %v2653 = vmul.f32 %v2528, %v2648
        %v2654 = vmul.f32 %v2533, %v2648
        %v2655 = vmul.f32 %v2536, %v2648
        %v2656 = vmul.f32 %v2541, %v2648
        %v2657 = vmul.f32 %v2544, %v2648
        %v2658 = vmul.f32 %v2549, %v2648
        %v2659 = vmul.f32 %v2552, %v2648
        %v2660 = vmul.f32 %v2557, %v2648
        %v2661 = vmul.f32 %v2560, %v2648
        %v2662 = vmul.f32 %v2565, %v2648
        %v2663 = vmul.f32 %v2568, %v2648
        %v2664 = vmul.f32 %v2573, %v2648
        %v2665 = vmul.f32 %v2576, %v2648
        %v2666 = vmul.f32 %v2581, %v2648
        %v2667 = vmul.f32 %v2584, %v2648
        %v2668 = vmul.f32 %v2589, %v2648
        %v2669 = vmul.f32 %v2592, %v2648
        %v2670 = vmul.f32 %v2597, %v2648
        %v2671 = vmul.f32 %v2600, %v2648
        %v2672 = vmul.f32 %v2605, %v2648
        %v2673 = vmul.f32 %v2608, %v2648
        %v2674 = vmul.f32 %v2613, %v2648
        %v2675 = vmul.f32 %v2616, %v2648
        %v2676 = vmul.f32 %v2621, %v2648
        %v2677 = vmul.f32 %v2624, %v2648
        %v2678 = vmul.f32 %v2629, %v2648
        %v2679 = vmul.f32 %v2632, %v2648
        %v2680 = vmul.f32 %v2637, %v2648
        %v2681 = vmul.f32 %v2640, %v2648
        %v2682 = vld [vmem:[%s3] sm:$0x1]
        %v2684 = vlaneseq
        %v2685 = vshrl.u32 %v2684, 7
        %v2686 = vsub.s32 0, %v2685
        %v2687 = vrot.slane %v2682, %v2686
        %v2689 = vadd.f32 %v2650, %v2687
        %v2690 = vadd.f32 %v2651, %v2687
        %v2691 = vadd.f32 %v2652, %v2687
        %v2692 = vadd.f32 %v2653, %v2687
        %v2693 = vadd.f32 %v2654, %v2687
        %v2694 = vadd.f32 %v2655, %v2687
        %v2695 = vadd.f32 %v2656, %v2687
        %v2696 = vadd.f32 %v2657, %v2687
        %v2697 = vadd.f32 %v2658, %v2687
        %v2698 = vadd.f32 %v2659, %v2687
        %v2699 = vadd.f32 %v2660, %v2687
        %v2700 = vadd.f32 %v2661, %v2687
        %v2701 = vadd.f32 %v2662, %v2687
        %v2702 = vadd.f32 %v2663, %v2687
        %v2703 = vadd.f32 %v2664, %v2687
        %v2704 = vadd.f32 %v2665, %v2687
        %v2705 = vadd.f32 %v2666, %v2687
        %v2706 = vadd.f32 %v2667, %v2687
        %v2707 = vadd.f32 %v2668, %v2687
        %v2708 = vadd.f32 %v2669, %v2687
        %v2709 = vadd.f32 %v2670, %v2687
        %v2710 = vadd.f32 %v2671, %v2687
        %v2711 = vadd.f32 %v2672, %v2687
        %v2712 = vadd.f32 %v2673, %v2687
        %v2713 = vadd.f32 %v2674, %v2687
        %v2714 = vadd.f32 %v2675, %v2687
        %v2715 = vadd.f32 %v2676, %v2687
        %v2716 = vadd.f32 %v2677, %v2687
        %v2717 = vadd.f32 %v2678, %v2687
        %v2718 = vadd.f32 %v2679, %v2687
        %v2719 = vadd.f32 %v2680, %v2687
        %v2720 = vadd.f32 %v2681, %v2687
        %v2721 = vmax.f32 %v2689, 0.0
        %v2722 = vmax.f32 %v2690, 0.0
        %v2723 = vmax.f32 %v2691, 0.0
        %v2724 = vmax.f32 %v2692, 0.0
        %v2725 = vmax.f32 %v2693, 0.0
        %v2726 = vmax.f32 %v2694, 0.0
        %v2727 = vmax.f32 %v2695, 0.0
        %v2728 = vmax.f32 %v2696, 0.0
        %v2729 = vmax.f32 %v2697, 0.0
        %v2730 = vmax.f32 %v2698, 0.0
        %v2731 = vmax.f32 %v2699, 0.0
        %v2732 = vmax.f32 %v2700, 0.0
        %v2733 = vmax.f32 %v2701, 0.0
        %v2734 = vmax.f32 %v2702, 0.0
        %v2735 = vmax.f32 %v2703, 0.0
        %v2736 = vmax.f32 %v2704, 0.0
        %v2737 = vmax.f32 %v2705, 0.0
        %v2738 = vmax.f32 %v2706, 0.0
        %v2739 = vmax.f32 %v2707, 0.0
        %v2740 = vmax.f32 %v2708, 0.0
        %v2741 = vmax.f32 %v2709, 0.0
        %v2742 = vmax.f32 %v2710, 0.0
        %v2743 = vmax.f32 %v2711, 0.0
        %v2744 = vmax.f32 %v2712, 0.0
        %v2745 = vmax.f32 %v2713, 0.0
        %v2746 = vmax.f32 %v2714, 0.0
        %v2747 = vmax.f32 %v2715, 0.0
        %v2748 = vmax.f32 %v2716, 0.0
        %v2749 = vmax.f32 %v2717, 0.0
        %v2750 = vmax.f32 %v2718, 0.0
        %v2751 = vmax.f32 %v2719, 0.0
        %v2752 = vmax.f32 %v2720, 0.0
        %2753 = vst [vmem:[#allocation2] sm:$0xf] 0
        %2754 = vst [vmem:[#allocation2 + $0x4] sm:$0xf] 0
        %2755 = vst [vmem:[#allocation2 + $0x8] sm:$0x1] 0
        %s2756 = scalar_lea.vmem [#allocation2], 204
        %2757 = vst [vmem:[%s2756] sm:$0xf] 0
        %2758 = vst [vmem:[%s2756 + $0x4] sm:$0xf] 0
        %2759 = vst [vmem:[%s2756 + $0x8] sm:$0x1] 0
        %vm2760 = vcmask 1040384
        %vm2761 = vsmask.f32 256
        %vm2762 = vmand %vm2760, %vm2761
        %v2763 = vld [vmem:[#allocation2] sm:$0x1]
        %v2764 = vsel %vm2762, 0, %v2763
        %2765 = vst [vmem:[#allocation2] sm:$0x1] %v2764
        %v2766 = vld [vmem:[#allocation2 + $0xc] sm:$0x1]
        %v2767 = vsel %vm2762, 0, %v2766
        %2768 = vst [vmem:[#allocation2 + $0xc] sm:$0x1] %v2767
        %v2769 = vld [vmem:[#allocation2 + $0x18] sm:$0x1]
        %v2770 = vsel %vm2762, 0, %v2769
        %2771 = vst [vmem:[#allocation2 + $0x18] sm:$0x1] %v2770
        %v2772 = vld [vmem:[#allocation2 + $0x24] sm:$0x1]
        %v2773 = vsel %vm2762, 0, %v2772
        %2774 = vst [vmem:[#allocation2 + $0x24] sm:$0x1] %v2773
        %v2775 = vld [vmem:[#allocation2 + $0x30] sm:$0x1]
        %v2776 = vsel %vm2762, 0, %v2775
        %2777 = vst [vmem:[#allocation2 + $0x30] sm:$0x1] %v2776
        %v2778 = vld [vmem:[#allocation2 + $0x3c] sm:$0x1]
        %v2779 = vsel %vm2762, 0, %v2778
        %2780 = vst [vmem:[#allocation2 + $0x3c] sm:$0x1] %v2779
        %v2781 = vld [vmem:[#allocation2 + $0x48] sm:$0x1]
        %v2782 = vsel %vm2762, 0, %v2781
        %2783 = vst [vmem:[#allocation2 + $0x48] sm:$0x1] %v2782
        %v2784 = vld [vmem:[#allocation2 + $0x54] sm:$0x1]
        %v2785 = vsel %vm2762, 0, %v2784
        %2786 = vst [vmem:[#allocation2 + $0x54] sm:$0x1] %v2785
        %v2787 = vld [vmem:[#allocation2 + $0x60] sm:$0x1]
        %v2788 = vsel %vm2762, 0, %v2787
        %2789 = vst [vmem:[#allocation2 + $0x60] sm:$0x1] %v2788
        %v2790 = vld [vmem:[#allocation2 + $0x6c] sm:$0x1]
        %v2791 = vsel %vm2762, 0, %v2790
        %2792 = vst [vmem:[#allocation2 + $0x6c] sm:$0x1] %v2791
        %v2793 = vld [vmem:[#allocation2 + $0x78] sm:$0x1]
        %v2794 = vsel %vm2762, 0, %v2793
        %2795 = vst [vmem:[#allocation2 + $0x78] sm:$0x1] %v2794
        %v2796 = vld [vmem:[#allocation2 + $0x84] sm:$0x1]
        %v2797 = vsel %vm2762, 0, %v2796
        %2798 = vst [vmem:[#allocation2 + $0x84] sm:$0x1] %v2797
        %v2799 = vld [vmem:[#allocation2 + $0x90] sm:$0x1]
        %v2800 = vsel %vm2762, 0, %v2799
        %2801 = vst [vmem:[#allocation2 + $0x90] sm:$0x1] %v2800
        %v2802 = vld [vmem:[#allocation2 + $0x9c] sm:$0x1]
        %v2803 = vsel %vm2762, 0, %v2802
        %2804 = vst [vmem:[#allocation2 + $0x9c] sm:$0x1] %v2803
        %v2805 = vld [vmem:[#allocation2 + $0xa8] sm:$0x1]
        %v2806 = vsel %vm2762, 0, %v2805
        %2807 = vst [vmem:[#allocation2 + $0xa8] sm:$0x1] %v2806
        %v2808 = vld [vmem:[#allocation2 + $0xb4] sm:$0x1]
        %v2809 = vsel %vm2762, 0, %v2808
        %2810 = vst [vmem:[#allocation2 + $0xb4] sm:$0x1] %v2809
        %v2811 = vld [vmem:[#allocation2 + $0xc0] sm:$0x1]
        %v2812 = vsel %vm2762, 0, %v2811
        %2813 = vst [vmem:[#allocation2 + $0xc0] sm:$0x1] %v2812
        %v2814 = vld [vmem:[#allocation2 + $0xcc] sm:$0x1]
        %v2815 = vsel %vm2762, 0, %v2814
        %2816 = vst [vmem:[#allocation2 + $0xcc] sm:$0x1] %v2815
        %vm2817 = vsmask.f32 7938
        %vm2818 = vmand %vm2760, %vm2817
        %v2819 = vld [vmem:[#allocation2 + $0x8] sm:$0x1]
        %v2820 = vsel %vm2818, 0, %v2819
        %2821 = vst [vmem:[#allocation2 + $0x8] sm:$0x1] %v2820
        %v2822 = vld [vmem:[#allocation2 + $0x14] sm:$0x1]
        %v2823 = vsel %vm2818, 0, %v2822
        %2824 = vst [vmem:[#allocation2 + $0x14] sm:$0x1] %v2823
        %v2825 = vld [vmem:[#allocation2 + $0x20] sm:$0x1]
        %v2826 = vsel %vm2818, 0, %v2825
        %2827 = vst [vmem:[#allocation2 + $0x20] sm:$0x1] %v2826
        %v2828 = vld [vmem:[#allocation2 + $0x2c] sm:$0x1]
        %v2829 = vsel %vm2818, 0, %v2828
        %2830 = vst [vmem:[#allocation2 + $0x2c] sm:$0x1] %v2829
        %v2831 = vld [vmem:[#allocation2 + $0x38] sm:$0x1]
        %v2832 = vsel %vm2818, 0, %v2831
        %2833 = vst [vmem:[#allocation2 + $0x38] sm:$0x1] %v2832
        %v2834 = vld [vmem:[#allocation2 + $0x44] sm:$0x1]
        %v2835 = vsel %vm2818, 0, %v2834
        %2836 = vst [vmem:[#allocation2 + $0x44] sm:$0x1] %v2835
        %v2837 = vld [vmem:[#allocation2 + $0x50] sm:$0x1]
        %v2838 = vsel %vm2818, 0, %v2837
        %2839 = vst [vmem:[#allocation2 + $0x50] sm:$0x1] %v2838
        %v2840 = vld [vmem:[#allocation2 + $0x5c] sm:$0x1]
        %v2841 = vsel %vm2818, 0, %v2840
        %2842 = vst [vmem:[#allocation2 + $0x5c] sm:$0x1] %v2841
        %v2843 = vld [vmem:[#allocation2 + $0x68] sm:$0x1]
        %v2844 = vsel %vm2818, 0, %v2843
        %2845 = vst [vmem:[#allocation2 + $0x68] sm:$0x1] %v2844
        %v2846 = vld [vmem:[#allocation2 + $0x74] sm:$0x1]
        %v2847 = vsel %vm2818, 0, %v2846
        %2848 = vst [vmem:[#allocation2 + $0x74] sm:$0x1] %v2847
        %v2849 = vld [vmem:[#allocation2 + $0x80] sm:$0x1]
        %v2850 = vsel %vm2818, 0, %v2849
        %2851 = vst [vmem:[#allocation2 + $0x80] sm:$0x1] %v2850
        %v2852 = vld [vmem:[#allocation2 + $0x8c] sm:$0x1]
        %v2853 = vsel %vm2818, 0, %v2852
        %2854 = vst [vmem:[#allocation2 + $0x8c] sm:$0x1] %v2853
        %v2855 = vld [vmem:[#allocation2 + $0x98] sm:$0x1]
        %v2856 = vsel %vm2818, 0, %v2855
        %2857 = vst [vmem:[#allocation2 + $0x98] sm:$0x1] %v2856
        %v2858 = vld [vmem:[#allocation2 + $0xa4] sm:$0x1]
        %v2859 = vsel %vm2818, 0, %v2858
        %2860 = vst [vmem:[#allocation2 + $0xa4] sm:$0x1] %v2859
        %v2861 = vld [vmem:[#allocation2 + $0xb0] sm:$0x1]
        %v2862 = vsel %vm2818, 0, %v2861
        %2863 = vst [vmem:[#allocation2 + $0xb0] sm:$0x1] %v2862
        %v2864 = vld [vmem:[#allocation2 + $0xbc] sm:$0x1]
        %v2865 = vsel %vm2818, 0, %v2864
        %2866 = vst [vmem:[#allocation2 + $0xbc] sm:$0x1] %v2865
        %v2867 = vld [vmem:[#allocation2 + $0xc8] sm:$0x1]
        %v2868 = vsel %vm2818, 0, %v2867
        %2869 = vst [vmem:[#allocation2 + $0xc8] sm:$0x1] %v2868
        %v2870 = vld [vmem:[#allocation2 + $0xd4] sm:$0x1]
        %v2871 = vsel %vm2818, 0, %v2870
        %2872 = vst [vmem:[#allocation2 + $0xd4] sm:$0x1] %v2871
        %v2873 = vpack.c.bf16 %v2722, %v2721
        %v2874 = vpack.c.bf16 %v2724, %v2723
        %v2875 = vpack.c.bf16 %v2726, %v2725
        %v2876 = vpack.c.bf16 %v2728, %v2727
        %v2877 = vpack.c.bf16 %v2730, %v2729
        %v2878 = vpack.c.bf16 %v2732, %v2731
        %v2879 = vpack.c.bf16 %v2734, %v2733
        %v2880 = vpack.c.bf16 %v2736, %v2735
        %v2881 = vpack.c.bf16 %v2738, %v2737
        %v2882 = vpack.c.bf16 %v2740, %v2739
        %v2883 = vpack.c.bf16 %v2742, %v2741
        %v2884 = vpack.c.bf16 %v2744, %v2743
        %v2885 = vpack.c.bf16 %v2746, %v2745
        %v2886 = vpack.c.bf16 %v2748, %v2747
        %v2887 = vpack.c.bf16 %v2750, %v2749
        %v2888 = vpack.c.bf16 %v2752, %v2751
        %v2905 = vunpack.c.l.b16 %v2873
        %v2906 = vunpack.c.h.b16 %v2873
        %v2907 = vunpack.c.l.b16 %v2874
        %v2908 = vunpack.c.h.b16 %v2874
        %v2909 = vunpack.c.l.b16 %v2875
        %v2910 = vunpack.c.h.b16 %v2875
        %v2911 = vunpack.c.l.b16 %v2876
        %v2912 = vunpack.c.h.b16 %v2876
        %v2913 = vunpack.c.l.b16 %v2877
        %v2914 = vunpack.c.h.b16 %v2877
        %v2915 = vunpack.c.l.b16 %v2878
        %v2916 = vunpack.c.h.b16 %v2878
        %v2917 = vunpack.c.l.b16 %v2879
        %v2918 = vunpack.c.h.b16 %v2879
        %v2919 = vunpack.c.l.b16 %v2880
        %v2920 = vunpack.c.h.b16 %v2880
        %v2921 = vunpack.c.l.b16 %v2881
        %v2922 = vunpack.c.h.b16 %v2881
        %v2923 = vunpack.c.l.b16 %v2882
        %v2924 = vunpack.c.h.b16 %v2882
        %v2925 = vunpack.c.l.b16 %v2883
        %v2926 = vunpack.c.h.b16 %v2883
        %v2927 = vunpack.c.l.b16 %v2884
        %v2928 = vunpack.c.h.b16 %v2884
        %v2929 = vunpack.c.l.b16 %v2885
        %v2930 = vunpack.c.h.b16 %v2885
        %v2931 = vunpack.c.l.b16 %v2886
        %v2932 = vunpack.c.h.b16 %v2886
        %v2933 = vunpack.c.l.b16 %v2887
        %v2934 = vunpack.c.h.b16 %v2887
        %v2935 = vunpack.c.l.b16 %v2888
        %v2936 = vunpack.c.h.b16 %v2888
        %v2937 = vpack.c.b16 %v2905, %v2905
        %v2938 = vpack.c.b16 %v2906, %v2906
        %v2939 = vpack.c.b16 %v2907, %v2907
        %v2940 = vpack.c.b16 %v2908, %v2908
        %v2941 = vpack.c.b16 %v2909, %v2909
        %v2942 = vpack.c.b16 %v2910, %v2910
        %v2943 = vpack.c.b16 %v2911, %v2911
        %v2944 = vpack.c.b16 %v2912, %v2912
        %v2945 = vpack.c.b16 %v2913, %v2913
        %v2946 = vpack.c.b16 %v2914, %v2914
        %v2947 = vpack.c.b16 %v2915, %v2915
        %v2948 = vpack.c.b16 %v2916, %v2916
        %v2949 = vpack.c.b16 %v2917, %v2917
        %v2950 = vpack.c.b16 %v2918, %v2918
        %v2951 = vpack.c.b16 %v2919, %v2919
        %v2952 = vpack.c.b16 %v2920, %v2920
        %v2953 = vpack.c.b16 %v2921, %v2921
        %v2954 = vpack.c.b16 %v2922, %v2922
        %v2955 = vpack.c.b16 %v2923, %v2923
        %v2956 = vpack.c.b16 %v2924, %v2924
        %v2957 = vpack.c.b16 %v2925, %v2925
        %v2958 = vpack.c.b16 %v2926, %v2926
        %v2959 = vpack.c.b16 %v2927, %v2927
        %v2960 = vpack.c.b16 %v2928, %v2928
        %v2961 = vpack.c.b16 %v2929, %v2929
        %v2962 = vpack.c.b16 %v2930, %v2930
        %v2963 = vpack.c.b16 %v2931, %v2931
        %v2964 = vpack.c.b16 %v2932, %v2932
        %v2965 = vpack.c.b16 %v2933, %v2933
        %v2966 = vpack.c.b16 %v2934, %v2934
        %v2967 = vpack.c.b16 %v2935, %v2935
        %v2968 = vpack.c.b16 %v2936, %v2936
        %vm2969 = vsmask.f32 4368
        %vm2970 = vmor %vm2761, %vm2969
        %v2972 = vshrl.u32 %v2937, 16
        %v2974 = vrot.slane %v2972, 7
        %v2975 = vshll.u32 %v2937, 16
        %v2977 = vor.u32 %v2974, %v2975
        %v2978 = vrot.slane %v2974, 4
        %v2980 = vshrl.u32 %v2938, 16
        %v2982 = vrot.slane %v2980, 7
        %v2983 = vshll.u32 %v2938, 16
        %v2985 = vor.u32 %v2982, %v2983
        %v2986 = vsel %vm2970, %v2978, %v2985
        %v2987 = vrot.slane %v2982, 4
        %v2989 = vshrl.u32 %v2939, 16
        %v2991 = vrot.slane %v2989, 7
        %v2992 = vshll.u32 %v2939, 16
        %v2994 = vor.u32 %v2991, %v2992
        %v2995 = vrot.slane %v2991, 4
        %v2997 = vshrl.u32 %v2940, 16
        %v2999 = vrot.slane %v2997, 7
        %v3000 = vshll.u32 %v2940, 16
        %v3002 = vor.u32 %v2999, %v3000
        %v3003 = vsel %vm2970, %v2995, %v3002
        %v3004 = vrot.slane %v2999, 4
        %v3006 = vshrl.u32 %v2941, 16
        %v3008 = vrot.slane %v3006, 7
        %v3009 = vshll.u32 %v2941, 16
        %v3011 = vor.u32 %v3008, %v3009
        %v3012 = vrot.slane %v3008, 4
        %v3014 = vshrl.u32 %v2942, 16
        %v3016 = vrot.slane %v3014, 7
        %v3017 = vshll.u32 %v2942, 16
        %v3019 = vor.u32 %v3016, %v3017
        %v3020 = vsel %vm2970, %v3012, %v3019
        %v3021 = vrot.slane %v3016, 4
        %v3023 = vshrl.u32 %v2943, 16
        %v3025 = vrot.slane %v3023, 7
        %v3026 = vshll.u32 %v2943, 16
        %v3028 = vor.u32 %v3025, %v3026
        %v3029 = vrot.slane %v3025, 4
        %v3031 = vshrl.u32 %v2944, 16
        %v3033 = vrot.slane %v3031, 7
        %v3034 = vshll.u32 %v2944, 16
        %v3036 = vor.u32 %v3033, %v3034
        %v3037 = vsel %vm2970, %v3029, %v3036
        %v3038 = vrot.slane %v3033, 4
        %v3040 = vshrl.u32 %v2945, 16
        %v3042 = vrot.slane %v3040, 7
        %v3043 = vshll.u32 %v2945, 16
        %v3045 = vor.u32 %v3042, %v3043
        %v3046 = vrot.slane %v3042, 4
        %v3048 = vshrl.u32 %v2946, 16
        %v3050 = vrot.slane %v3048, 7
        %v3051 = vshll.u32 %v2946, 16
        %v3053 = vor.u32 %v3050, %v3051
        %v3054 = vsel %vm2970, %v3046, %v3053
        %v3055 = vrot.slane %v3050, 4
        %v3057 = vshrl.u32 %v2947, 16
        %v3059 = vrot.slane %v3057, 7
        %v3060 = vshll.u32 %v2947, 16
        %v3062 = vor.u32 %v3059, %v3060
        %v3063 = vrot.slane %v3059, 4
        %v3065 = vshrl.u32 %v2948, 16
        %v3067 = vrot.slane %v3065, 7
        %v3068 = vshll.u32 %v2948, 16
        %v3070 = vor.u32 %v3067, %v3068
        %v3071 = vsel %vm2970, %v3063, %v3070
        %v3072 = vrot.slane %v3067, 4
        %v3074 = vshrl.u32 %v2949, 16
        %v3076 = vrot.slane %v3074, 7
        %v3077 = vshll.u32 %v2949, 16
        %v3079 = vor.u32 %v3076, %v3077
        %v3080 = vrot.slane %v3076, 4
        %v3082 = vshrl.u32 %v2950, 16
        %v3084 = vrot.slane %v3082, 7
        %v3085 = vshll.u32 %v2950, 16
        %v3087 = vor.u32 %v3084, %v3085
        %v3088 = vsel %vm2970, %v3080, %v3087
        %v3089 = vrot.slane %v3084, 4
        %v3091 = vshrl.u32 %v2951, 16
        %v3093 = vrot.slane %v3091, 7
        %v3094 = vshll.u32 %v2951, 16
        %v3096 = vor.u32 %v3093, %v3094
        %v3097 = vrot.slane %v3093, 4
        %v3099 = vshrl.u32 %v2952, 16
        %v3101 = vrot.slane %v3099, 7
        %v3102 = vshll.u32 %v2952, 16
        %v3104 = vor.u32 %v3101, %v3102
        %v3105 = vsel %vm2970, %v3097, %v3104
        %v3106 = vrot.slane %v3101, 4
        %v3108 = vshrl.u32 %v2953, 16
        %v3110 = vrot.slane %v3108, 7
        %v3111 = vshll.u32 %v2953, 16
        %v3113 = vor.u32 %v3110, %v3111
        %v3114 = vrot.slane %v3110, 4
        %v3116 = vshrl.u32 %v2954, 16
        %v3118 = vrot.slane %v3116, 7
        %v3119 = vshll.u32 %v2954, 16
        %v3121 = vor.u32 %v3118, %v3119
        %v3122 = vsel %vm2970, %v3114, %v3121
        %v3123 = vrot.slane %v3118, 4
        %v3125 = vshrl.u32 %v2955, 16
        %v3127 = vrot.slane %v3125, 7
        %v3128 = vshll.u32 %v2955, 16
        %v3130 = vor.u32 %v3127, %v3128
        %v3131 = vrot.slane %v3127, 4
        %v3133 = vshrl.u32 %v2956, 16
        %v3135 = vrot.slane %v3133, 7
        %v3136 = vshll.u32 %v2956, 16
        %v3138 = vor.u32 %v3135, %v3136
        %v3139 = vsel %vm2970, %v3131, %v3138
        %v3140 = vrot.slane %v3135, 4
        %v3142 = vshrl.u32 %v2957, 16
        %v3144 = vrot.slane %v3142, 7
        %v3145 = vshll.u32 %v2957, 16
        %v3147 = vor.u32 %v3144, %v3145
        %v3148 = vrot.slane %v3144, 4
        %v3150 = vshrl.u32 %v2958, 16
        %v3152 = vrot.slane %v3150, 7
        %v3153 = vshll.u32 %v2958, 16
        %v3155 = vor.u32 %v3152, %v3153
        %v3156 = vsel %vm2970, %v3148, %v3155
        %v3157 = vrot.slane %v3152, 4
        %v3159 = vshrl.u32 %v2959, 16
        %v3161 = vrot.slane %v3159, 7
        %v3162 = vshll.u32 %v2959, 16
        %v3164 = vor.u32 %v3161, %v3162
        %v3165 = vrot.slane %v3161, 4
        %v3167 = vshrl.u32 %v2960, 16
        %v3169 = vrot.slane %v3167, 7
        %v3170 = vshll.u32 %v2960, 16
        %v3172 = vor.u32 %v3169, %v3170
        %v3173 = vsel %vm2970, %v3165, %v3172
        %v3174 = vrot.slane %v3169, 4
        %v3176 = vshrl.u32 %v2961, 16
        %v3178 = vrot.slane %v3176, 7
        %v3179 = vshll.u32 %v2961, 16
        %v3181 = vor.u32 %v3178, %v3179
        %v3182 = vrot.slane %v3178, 4
        %v3184 = vshrl.u32 %v2962, 16
        %v3186 = vrot.slane %v3184, 7
        %v3187 = vshll.u32 %v2962, 16
        %v3189 = vor.u32 %v3186, %v3187
        %v3190 = vsel %vm2970, %v3182, %v3189
        %v3191 = vrot.slane %v3186, 4
        %v3193 = vshrl.u32 %v2963, 16
        %v3195 = vrot.slane %v3193, 7
        %v3196 = vshll.u32 %v2963, 16
        %v3198 = vor.u32 %v3195, %v3196
        %v3199 = vrot.slane %v3195, 4
        %v3201 = vshrl.u32 %v2964, 16
        %v3203 = vrot.slane %v3201, 7
        %v3204 = vshll.u32 %v2964, 16
        %v3206 = vor.u32 %v3203, %v3204
        %v3207 = vsel %vm2970, %v3199, %v3206
        %v3208 = vrot.slane %v3203, 4
        %v3210 = vshrl.u32 %v2965, 16
        %v3212 = vrot.slane %v3210, 7
        %v3213 = vshll.u32 %v2965, 16
        %v3215 = vor.u32 %v3212, %v3213
        %v3216 = vrot.slane %v3212, 4
        %v3218 = vshrl.u32 %v2966, 16
        %v3220 = vrot.slane %v3218, 7
        %v3221 = vshll.u32 %v2966, 16
        %v3223 = vor.u32 %v3220, %v3221
        %v3224 = vsel %vm2970, %v3216, %v3223
        %v3225 = vrot.slane %v3220, 4
        %v3227 = vshrl.u32 %v2967, 16
        %v3229 = vrot.slane %v3227, 7
        %v3230 = vshll.u32 %v2967, 16
        %v3232 = vor.u32 %v3229, %v3230
        %v3233 = vrot.slane %v3229, 4
        %v3235 = vshrl.u32 %v2968, 16
        %v3237 = vrot.slane %v3235, 7
        %v3238 = vshll.u32 %v2968, 16
        %v3240 = vor.u32 %v3237, %v3238
        %v3241 = vsel %vm2970, %v3233, %v3240
        %v3242 = vrot.slane %v3237, 4
        %s3291 = scalar_lea.vmem [#allocation2], 12
        %vm3292 = vcmask 1043456
        %vm3293 = vmand %vm3292, %vm2817
        %v3294 = vld [vmem:[%s3291] sm:$0xf]
        %v3295 = vsel %vm3293, %v2977, %v3294
        %3296 = vst [vmem:[%s3291] sm:$0xf] %v3295
        %3297 = vst [vmem:[%s3291 + $0x4] sm:$0xf] %v2986
        %v3298 = vld [vmem:[%s3291 + $0x8] sm:$0x1]
        %v3299 = vsel %vm2762, %v2987, %v3298
        %3300 = vst [vmem:[%s3291 + $0x8] sm:$0x1] %v3299
        %v3301 = vld [vmem:[%s3291 + $0xc] sm:$0xf]
        %v3302 = vsel %vm3293, %v2994, %v3301
        %3303 = vst [vmem:[%s3291 + $0xc] sm:$0xf] %v3302
        %3304 = vst [vmem:[%s3291 + $0x10] sm:$0xf] %v3003
        %v3305 = vld [vmem:[%s3291 + $0x14] sm:$0x1]
        %v3306 = vsel %vm2762, %v3004, %v3305
        %3307 = vst [vmem:[%s3291 + $0x14] sm:$0x1] %v3306
        %v3308 = vld [vmem:[%s3291 + $0x18] sm:$0xf]
        %v3309 = vsel %vm3293, %v3011, %v3308
        %3310 = vst [vmem:[%s3291 + $0x18] sm:$0xf] %v3309
        %3311 = vst [vmem:[%s3291 + $0x1c] sm:$0xf] %v3020
        %v3312 = vld [vmem:[%s3291 + $0x20] sm:$0x1]
        %v3313 = vsel %vm2762, %v3021, %v3312
        %3314 = vst [vmem:[%s3291 + $0x20] sm:$0x1] %v3313
        %v3315 = vld [vmem:[%s3291 + $0x24] sm:$0xf]
        %v3316 = vsel %vm3293, %v3028, %v3315
        %3317 = vst [vmem:[%s3291 + $0x24] sm:$0xf] %v3316
        %3318 = vst [vmem:[%s3291 + $0x28] sm:$0xf] %v3037
        %v3319 = vld [vmem:[%s3291 + $0x2c] sm:$0x1]
        %v3320 = vsel %vm2762, %v3038, %v3319
        %3321 = vst [vmem:[%s3291 + $0x2c] sm:$0x1] %v3320
        %v3322 = vld [vmem:[%s3291 + $0x30] sm:$0xf]
        %v3323 = vsel %vm3293, %v3045, %v3322
        %3324 = vst [vmem:[%s3291 + $0x30] sm:$0xf] %v3323
        %3325 = vst [vmem:[%s3291 + $0x34] sm:$0xf] %v3054
        %v3326 = vld [vmem:[%s3291 + $0x38] sm:$0x1]
        %v3327 = vsel %vm2762, %v3055, %v3326
        %3328 = vst [vmem:[%s3291 + $0x38] sm:$0x1] %v3327
        %v3329 = vld [vmem:[%s3291 + $0x3c] sm:$0xf]
        %v3330 = vsel %vm3293, %v3062, %v3329
        %3331 = vst [vmem:[%s3291 + $0x3c] sm:$0xf] %v3330
        %3332 = vst [vmem:[%s3291 + $0x40] sm:$0xf] %v3071
        %v3333 = vld [vmem:[%s3291 + $0x44] sm:$0x1]
        %v3334 = vsel %vm2762, %v3072, %v3333
        %3335 = vst [vmem:[%s3291 + $0x44] sm:$0x1] %v3334
        %v3336 = vld [vmem:[%s3291 + $0x48] sm:$0xf]
        %v3337 = vsel %vm3293, %v3079, %v3336
        %3338 = vst [vmem:[%s3291 + $0x48] sm:$0xf] %v3337
        %3339 = vst [vmem:[%s3291 + $0x4c] sm:$0xf] %v3088
        %v3340 = vld [vmem:[%s3291 + $0x50] sm:$0x1]
        %v3341 = vsel %vm2762, %v3089, %v3340
        %3342 = vst [vmem:[%s3291 + $0x50] sm:$0x1] %v3341
        %v3343 = vld [vmem:[%s3291 + $0x54] sm:$0xf]
        %v3344 = vsel %vm3293, %v3096, %v3343
        %3345 = vst [vmem:[%s3291 + $0x54] sm:$0xf] %v3344
        %3346 = vst [vmem:[%s3291 + $0x58] sm:$0xf] %v3105
        %v3347 = vld [vmem:[%s3291 + $0x5c] sm:$0x1]
        %v3348 = vsel %vm2762, %v3106, %v3347
        %3349 = vst [vmem:[%s3291 + $0x5c] sm:$0x1] %v3348
        %v3350 = vld [vmem:[%s3291 + $0x60] sm:$0xf]
        %v3351 = vsel %vm3293, %v3113, %v3350
        %3352 = vst [vmem:[%s3291 + $0x60] sm:$0xf] %v3351
        %3353 = vst [vmem:[%s3291 + $0x64] sm:$0xf] %v3122
        %v3354 = vld [vmem:[%s3291 + $0x68] sm:$0x1]
        %v3355 = vsel %vm2762, %v3123, %v3354
        %3356 = vst [vmem:[%s3291 + $0x68] sm:$0x1] %v3355
        %v3357 = vld [vmem:[%s3291 + $0x6c] sm:$0xf]
        %v3358 = vsel %vm3293, %v3130, %v3357
        %3359 = vst [vmem:[%s3291 + $0x6c] sm:$0xf] %v3358
        %3360 = vst [vmem:[%s3291 + $0x70] sm:$0xf] %v3139
        %v3361 = vld [vmem:[%s3291 + $0x74] sm:$0x1]
        %v3362 = vsel %vm2762, %v3140, %v3361
        %3363 = vst [vmem:[%s3291 + $0x74] sm:$0x1] %v3362
        %v3364 = vld [vmem:[%s3291 + $0x78] sm:$0xf]
        %v3365 = vsel %vm3293, %v3147, %v3364
        %3366 = vst [vmem:[%s3291 + $0x78] sm:$0xf] %v3365
        %3367 = vst [vmem:[%s3291 + $0x7c] sm:$0xf] %v3156
        %v3368 = vld [vmem:[%s3291 + $0x80] sm:$0x1]
        %v3369 = vsel %vm2762, %v3157, %v3368
        %3370 = vst [vmem:[%s3291 + $0x80] sm:$0x1] %v3369
        %v3371 = vld [vmem:[%s3291 + $0x84] sm:$0xf]
        %v3372 = vsel %vm3293, %v3164, %v3371
        %3373 = vst [vmem:[%s3291 + $0x84] sm:$0xf] %v3372
        %3374 = vst [vmem:[%s3291 + $0x88] sm:$0xf] %v3173
        %v3375 = vld [vmem:[%s3291 + $0x8c] sm:$0x1]
        %v3376 = vsel %vm2762, %v3174, %v3375
        %3377 = vst [vmem:[%s3291 + $0x8c] sm:$0x1] %v3376
        %v3378 = vld [vmem:[%s3291 + $0x90] sm:$0xf]
        %v3379 = vsel %vm3293, %v3181, %v3378
        %3380 = vst [vmem:[%s3291 + $0x90] sm:$0xf] %v3379
        %3381 = vst [vmem:[%s3291 + $0x94] sm:$0xf] %v3190
        %v3382 = vld [vmem:[%s3291 + $0x98] sm:$0x1]
        %v3383 = vsel %vm2762, %v3191, %v3382
        %3384 = vst [vmem:[%s3291 + $0x98] sm:$0x1] %v3383
        %v3385 = vld [vmem:[%s3291 + $0x9c] sm:$0xf]
        %v3386 = vsel %vm3293, %v3198, %v3385
        %3387 = vst [vmem:[%s3291 + $0x9c] sm:$0xf] %v3386
        %3388 = vst [vmem:[%s3291 + $0xa0] sm:$0xf] %v3207
        %v3389 = vld [vmem:[%s3291 + $0xa4] sm:$0x1]
        %v3390 = vsel %vm2762, %v3208, %v3389
        %3391 = vst [vmem:[%s3291 + $0xa4] sm:$0x1] %v3390
        %v3392 = vld [vmem:[%s3291 + $0xa8] sm:$0xf]
        %v3393 = vsel %vm3293, %v3215, %v3392
        %3394 = vst [vmem:[%s3291 + $0xa8] sm:$0xf] %v3393
        %3395 = vst [vmem:[%s3291 + $0xac] sm:$0xf] %v3224
        %v3396 = vld [vmem:[%s3291 + $0xb0] sm:$0x1]
        %v3397 = vsel %vm2762, %v3225, %v3396
        %3398 = vst [vmem:[%s3291 + $0xb0] sm:$0x1] %v3397
        %v3399 = vld [vmem:[%s3291 + $0xb4] sm:$0xf]
        %v3400 = vsel %vm3293, %v3232, %v3399
        %3401 = vst [vmem:[%s3291 + $0xb4] sm:$0xf] %v3400
        %3402 = vst [vmem:[%s3291 + $0xb8] sm:$0xf] %v3241
        %v3403 = vld [vmem:[%s3291 + $0xbc] sm:$0x1]
        %v3404 = vsel %vm2762, %v3242, %v3403
        %3405 = vst [vmem:[%s3291 + $0xbc] sm:$0x1] %v3404
        %v3406 = vld [vmem:[#allocation2] sm:$0xf]
        %v3407 = vld [vmem:[#allocation2 + $0x4] sm:$0xf]
        %v3408 = vld [vmem:[#allocation2 + $0xc] sm:$0xf]
        %v3409 = vld [vmem:[#allocation2 + $0x10] sm:$0xf]
        %v3410 = vld [vmem:[#allocation2 + $0x18] sm:$0xf]
        %v3411 = vld [vmem:[#allocation2 + $0x1c] sm:$0xf]
        %v3412 = vld [vmem:[#allocation2 + $0x24] sm:$0xf]
        %v3413 = vld [vmem:[#allocation2 + $0x28] sm:$0xf]
        %v3414 = vld [vmem:[#allocation2 + $0x30] sm:$0xf]
        %v3415 = vld [vmem:[#allocation2 + $0x34] sm:$0xf]
        %v3416 = vld [vmem:[#allocation2 + $0x3c] sm:$0xf]
        %v3417 = vld [vmem:[#allocation2 + $0x40] sm:$0xf]
        %v3418 = vld [vmem:[#allocation2 + $0x48] sm:$0xf]
        %v3419 = vld [vmem:[#allocation2 + $0x4c] sm:$0xf]
        %v3420 = vld [vmem:[#allocation2 + $0x54] sm:$0xf]
        %v3421 = vld [vmem:[#allocation2 + $0x58] sm:$0xf]
        %v3422 = vld [vmem:[#allocation2 + $0x60] sm:$0xf]
        %v3423 = vld [vmem:[#allocation2 + $0x64] sm:$0xf]
        %v3424 = vld [vmem:[#allocation2 + $0x6c] sm:$0xf]
        %v3425 = vld [vmem:[#allocation2 + $0x70] sm:$0xf]
        %v3426 = vld [vmem:[#allocation2 + $0x78] sm:$0xf]
        %v3427 = vld [vmem:[#allocation2 + $0x7c] sm:$0xf]
        %v3428 = vld [vmem:[#allocation2 + $0x84] sm:$0xf]
        %v3429 = vld [vmem:[#allocation2 + $0x88] sm:$0xf]
        %v3430 = vld [vmem:[#allocation2 + $0x90] sm:$0xf]
        %v3431 = vld [vmem:[#allocation2 + $0x94] sm:$0xf]
        %v3432 = vld [vmem:[#allocation2 + $0x9c] sm:$0xf]
        %v3433 = vld [vmem:[#allocation2 + $0xa0] sm:$0xf]
        %v3434 = vld [vmem:[#allocation2 + $0xa8] sm:$0xf]
        %v3435 = vld [vmem:[#allocation2 + $0xac] sm:$0xf]
        %v3436 = vld [vmem:[#allocation2 + $0xb4] sm:$0xf]
        %v3437 = vld [vmem:[#allocation2 + $0xb8] sm:$0xf]
        %v3438 = vld [vmem:[#allocation2 + $0x8] sm:$0x1]
        %v3439 = vld [vmem:[#allocation2 + $0x14] sm:$0x1]
        %v3440 = vld [vmem:[#allocation2 + $0x20] sm:$0x1]
        %v3441 = vld [vmem:[#allocation2 + $0x2c] sm:$0x1]
        %v3442 = vld [vmem:[#allocation2 + $0x38] sm:$0x1]
        %v3443 = vld [vmem:[#allocation2 + $0x44] sm:$0x1]
        %v3444 = vld [vmem:[#allocation2 + $0x50] sm:$0x1]
        %v3445 = vld [vmem:[#allocation2 + $0x5c] sm:$0x1]
        %v3446 = vld [vmem:[#allocation2 + $0x68] sm:$0x1]
        %v3447 = vld [vmem:[#allocation2 + $0x74] sm:$0x1]
        %v3448 = vld [vmem:[#allocation2 + $0x80] sm:$0x1]
        %v3449 = vld [vmem:[#allocation2 + $0x8c] sm:$0x1]
        %v3450 = vld [vmem:[#allocation2 + $0x98] sm:$0x1]
        %v3451 = vld [vmem:[#allocation2 + $0xa4] sm:$0x1]
        %v3452 = vld [vmem:[#allocation2 + $0xb0] sm:$0x1]
        %v3453 = vld [vmem:[#allocation2 + $0xbc] sm:$0x1]
        %v3455 = vshrl.u32 %v3406, 16
        %v3457 = vrot.slane %v3455, 4
        %v3458 = vshll.u32 %v3406, 16
        %v3460 = vrot.slane %v3458, 5
        %v3461 = vor.u32 %v3457, %v3460
        %v3462 = vrot.slane %v3461, 4
        %v3464 = vshll.u32 %v3407, 16
        %v3466 = vrot.slane %v3464, 5
        %v3467 = vsel %vm430, %v3462, %v3466
        %v3468 = vshrl.u32 %v3407, 16
        %v3470 = vrot.slane %v3468, 4
        %v3471 = vor.u32 %v3470, %v3466
        %v3472 = vrot.slane %v3471, 4
        %v3474 = vshll.u32 %v3438, 16
        %v3476 = vrot.slane %v3474, 5
        %v3477 = vsel %vm430, %v3472, %v3476
        %v3479 = vshrl.u32 %v3408, 16
        %v3481 = vrot.slane %v3479, 4
        %v3482 = vshll.u32 %v3408, 16
        %v3484 = vrot.slane %v3482, 5
        %v3485 = vor.u32 %v3481, %v3484
        %v3486 = vrot.slane %v3485, 4
        %v3488 = vshll.u32 %v3409, 16
        %v3490 = vrot.slane %v3488, 5
        %v3491 = vsel %vm430, %v3486, %v3490
        %v3492 = vshrl.u32 %v3409, 16
        %v3494 = vrot.slane %v3492, 4
        %v3495 = vor.u32 %v3494, %v3490
        %v3496 = vrot.slane %v3495, 4
        %v3498 = vshll.u32 %v3439, 16
        %v3500 = vrot.slane %v3498, 5
        %v3501 = vsel %vm430, %v3496, %v3500
        %v3503 = vshrl.u32 %v3410, 16
        %v3505 = vrot.slane %v3503, 4
        %v3506 = vshll.u32 %v3410, 16
        %v3508 = vrot.slane %v3506, 5
        %v3509 = vor.u32 %v3505, %v3508
        %v3510 = vrot.slane %v3509, 4
        %v3512 = vshll.u32 %v3411, 16
        %v3514 = vrot.slane %v3512, 5
        %v3515 = vsel %vm430, %v3510, %v3514
        %v3516 = vshrl.u32 %v3411, 16
        %v3518 = vrot.slane %v3516, 4
        %v3519 = vor.u32 %v3518, %v3514
        %v3520 = vrot.slane %v3519, 4
        %v3522 = vshll.u32 %v3440, 16
        %v3524 = vrot.slane %v3522, 5
        %v3525 = vsel %vm430, %v3520, %v3524
        %v3527 = vshrl.u32 %v3412, 16
        %v3529 = vrot.slane %v3527, 4
        %v3530 = vshll.u32 %v3412, 16
        %v3532 = vrot.slane %v3530, 5
        %v3533 = vor.u32 %v3529, %v3532
        %v3534 = vrot.slane %v3533, 4
        %v3536 = vshll.u32 %v3413, 16
        %v3538 = vrot.slane %v3536, 5
        %v3539 = vsel %vm430, %v3534, %v3538
        %v3540 = vshrl.u32 %v3413, 16
        %v3542 = vrot.slane %v3540, 4
        %v3543 = vor.u32 %v3542, %v3538
        %v3544 = vrot.slane %v3543, 4
        %v3546 = vshll.u32 %v3441, 16
        %v3548 = vrot.slane %v3546, 5
        %v3549 = vsel %vm430, %v3544, %v3548
        %v3551 = vshrl.u32 %v3414, 16
        %v3553 = vrot.slane %v3551, 4
        %v3554 = vshll.u32 %v3414, 16
        %v3556 = vrot.slane %v3554, 5
        %v3557 = vor.u32 %v3553, %v3556
        %v3558 = vrot.slane %v3557, 4
        %v3560 = vshll.u32 %v3415, 16
        %v3562 = vrot.slane %v3560, 5
        %v3563 = vsel %vm430, %v3558, %v3562
        %v3564 = vshrl.u32 %v3415, 16
        %v3566 = vrot.slane %v3564, 4
        %v3567 = vor.u32 %v3566, %v3562
        %v3568 = vrot.slane %v3567, 4
        %v3570 = vshll.u32 %v3442, 16
        %v3572 = vrot.slane %v3570, 5
        %v3573 = vsel %vm430, %v3568, %v3572
        %v3575 = vshrl.u32 %v3416, 16
        %v3577 = vrot.slane %v3575, 4
        %v3578 = vshll.u32 %v3416, 16
        %v3580 = vrot.slane %v3578, 5
        %v3581 = vor.u32 %v3577, %v3580
        %v3582 = vrot.slane %v3581, 4
        %v3584 = vshll.u32 %v3417, 16
        %v3586 = vrot.slane %v3584, 5
        %v3587 = vsel %vm430, %v3582, %v3586
        %v3588 = vshrl.u32 %v3417, 16
        %v3590 = vrot.slane %v3588, 4
        %v3591 = vor.u32 %v3590, %v3586
        %v3592 = vrot.slane %v3591, 4
        %v3594 = vshll.u32 %v3443, 16
        %v3596 = vrot.slane %v3594, 5
        %v3597 = vsel %vm430, %v3592, %v3596
        %v3599 = vshrl.u32 %v3418, 16
        %v3601 = vrot.slane %v3599, 4
        %v3602 = vshll.u32 %v3418, 16
        %v3604 = vrot.slane %v3602, 5
        %v3605 = vor.u32 %v3601, %v3604
        %v3606 = vrot.slane %v3605, 4
        %v3608 = vshll.u32 %v3419, 16
        %v3610 = vrot.slane %v3608, 5
        %v3611 = vsel %vm430, %v3606, %v3610
        %v3612 = vshrl.u32 %v3419, 16
        %v3614 = vrot.slane %v3612, 4
        %v3615 = vor.u32 %v3614, %v3610
        %v3616 = vrot.slane %v3615, 4
        %v3618 = vshll.u32 %v3444, 16
        %v3620 = vrot.slane %v3618, 5
        %v3621 = vsel %vm430, %v3616, %v3620
        %v3623 = vshrl.u32 %v3420, 16
        %v3625 = vrot.slane %v3623, 4
        %v3626 = vshll.u32 %v3420, 16
        %v3628 = vrot.slane %v3626, 5
        %v3629 = vor.u32 %v3625, %v3628
        %v3630 = vrot.slane %v3629, 4
        %v3632 = vshll.u32 %v3421, 16
        %v3634 = vrot.slane %v3632, 5
        %v3635 = vsel %vm430, %v3630, %v3634
        %v3636 = vshrl.u32 %v3421, 16
        %v3638 = vrot.slane %v3636, 4
        %v3639 = vor.u32 %v3638, %v3634
        %v3640 = vrot.slane %v3639, 4
        %v3642 = vshll.u32 %v3445, 16
        %v3644 = vrot.slane %v3642, 5
        %v3645 = vsel %vm430, %v3640, %v3644
        %v3647 = vshrl.u32 %v3422, 16
        %v3649 = vrot.slane %v3647, 4
        %v3650 = vshll.u32 %v3422, 16
        %v3652 = vrot.slane %v3650, 5
        %v3653 = vor.u32 %v3649, %v3652
        %v3654 = vrot.slane %v3653, 4
        %v3656 = vshll.u32 %v3423, 16
        %v3658 = vrot.slane %v3656, 5
        %v3659 = vsel %vm430, %v3654, %v3658
        %v3660 = vshrl.u32 %v3423, 16
        %v3662 = vrot.slane %v3660, 4
        %v3663 = vor.u32 %v3662, %v3658
        %v3664 = vrot.slane %v3663, 4
        %v3666 = vshll.u32 %v3446, 16
        %v3668 = vrot.slane %v3666, 5
        %v3669 = vsel %vm430, %v3664, %v3668
        %v3671 = vshrl.u32 %v3424, 16
        %v3673 = vrot.slane %v3671, 4
        %v3674 = vshll.u32 %v3424, 16
        %v3676 = vrot.slane %v3674, 5
        %v3677 = vor.u32 %v3673, %v3676
        %v3678 = vrot.slane %v3677, 4
        %v3680 = vshll.u32 %v3425, 16
        %v3682 = vrot.slane %v3680, 5
        %v3683 = vsel %vm430, %v3678, %v3682
        %v3684 = vshrl.u32 %v3425, 16
        %v3686 = vrot.slane %v3684, 4
        %v3687 = vor.u32 %v3686, %v3682
        %v3688 = vrot.slane %v3687, 4
        %v3690 = vshll.u32 %v3447, 16
        %v3692 = vrot.slane %v3690, 5
        %v3693 = vsel %vm430, %v3688, %v3692
        %v3695 = vshrl.u32 %v3426, 16
        %v3697 = vrot.slane %v3695, 4
        %v3698 = vshll.u32 %v3426, 16
        %v3700 = vrot.slane %v3698, 5
        %v3701 = vor.u32 %v3697, %v3700
        %v3702 = vrot.slane %v3701, 4
        %v3704 = vshll.u32 %v3427, 16
        %v3706 = vrot.slane %v3704, 5
        %v3707 = vsel %vm430, %v3702, %v3706
        %v3708 = vshrl.u32 %v3427, 16
        %v3710 = vrot.slane %v3708, 4
        %v3711 = vor.u32 %v3710, %v3706
        %v3712 = vrot.slane %v3711, 4
        %v3714 = vshll.u32 %v3448, 16
        %v3716 = vrot.slane %v3714, 5
        %v3717 = vsel %vm430, %v3712, %v3716
        %v3719 = vshrl.u32 %v3428, 16
        %v3721 = vrot.slane %v3719, 4
        %v3722 = vshll.u32 %v3428, 16
        %v3724 = vrot.slane %v3722, 5
        %v3725 = vor.u32 %v3721, %v3724
        %v3726 = vrot.slane %v3725, 4
        %v3728 = vshll.u32 %v3429, 16
        %v3730 = vrot.slane %v3728, 5
        %v3731 = vsel %vm430, %v3726, %v3730
        %v3732 = vshrl.u32 %v3429, 16
        %v3734 = vrot.slane %v3732, 4
        %v3735 = vor.u32 %v3734, %v3730
        %v3736 = vrot.slane %v3735, 4
        %v3738 = vshll.u32 %v3449, 16
        %v3740 = vrot.slane %v3738, 5
        %v3741 = vsel %vm430, %v3736, %v3740
        %v3743 = vshrl.u32 %v3430, 16
        %v3745 = vrot.slane %v3743, 4
        %v3746 = vshll.u32 %v3430, 16
        %v3748 = vrot.slane %v3746, 5
        %v3749 = vor.u32 %v3745, %v3748
        %v3750 = vrot.slane %v3749, 4
        %v3752 = vshll.u32 %v3431, 16
        %v3754 = vrot.slane %v3752, 5
        %v3755 = vsel %vm430, %v3750, %v3754
        %v3756 = vshrl.u32 %v3431, 16
        %v3758 = vrot.slane %v3756, 4
        %v3759 = vor.u32 %v3758, %v3754
        %v3760 = vrot.slane %v3759, 4
        %v3762 = vshll.u32 %v3450, 16
        %v3764 = vrot.slane %v3762, 5
        %v3765 = vsel %vm430, %v3760, %v3764
        %v3767 = vshrl.u32 %v3432, 16
        %v3769 = vrot.slane %v3767, 4
        %v3770 = vshll.u32 %v3432, 16
        %v3772 = vrot.slane %v3770, 5
        %v3773 = vor.u32 %v3769, %v3772
        %v3774 = vrot.slane %v3773, 4
        %v3776 = vshll.u32 %v3433, 16
        %v3778 = vrot.slane %v3776, 5
        %v3779 = vsel %vm430, %v3774, %v3778
        %v3780 = vshrl.u32 %v3433, 16
        %v3782 = vrot.slane %v3780, 4
        %v3783 = vor.u32 %v3782, %v3778
        %v3784 = vrot.slane %v3783, 4
        %v3786 = vshll.u32 %v3451, 16
        %v3788 = vrot.slane %v3786, 5
        %v3789 = vsel %vm430, %v3784, %v3788
        %v3791 = vshrl.u32 %v3434, 16
        %v3793 = vrot.slane %v3791, 4
        %v3794 = vshll.u32 %v3434, 16
        %v3796 = vrot.slane %v3794, 5
        %v3797 = vor.u32 %v3793, %v3796
        %v3798 = vrot.slane %v3797, 4
        %v3800 = vshll.u32 %v3435, 16
        %v3802 = vrot.slane %v3800, 5
        %v3803 = vsel %vm430, %v3798, %v3802
        %v3804 = vshrl.u32 %v3435, 16
        %v3806 = vrot.slane %v3804, 4
        %v3807 = vor.u32 %v3806, %v3802
        %v3808 = vrot.slane %v3807, 4
        %v3810 = vshll.u32 %v3452, 16
        %v3812 = vrot.slane %v3810, 5
        %v3813 = vsel %vm430, %v3808, %v3812
        %v3815 = vshrl.u32 %v3436, 16
        %v3817 = vrot.slane %v3815, 4
        %v3818 = vshll.u32 %v3436, 16
        %v3820 = vrot.slane %v3818, 5
        %v3821 = vor.u32 %v3817, %v3820
        %v3822 = vrot.slane %v3821, 4
        %v3824 = vshll.u32 %v3437, 16
        %v3826 = vrot.slane %v3824, 5
        %v3827 = vsel %vm430, %v3822, %v3826
        %v3828 = vshrl.u32 %v3437, 16
        %v3830 = vrot.slane %v3828, 4
        %v3831 = vor.u32 %v3830, %v3826
        %v3832 = vrot.slane %v3831, 4
        %v3834 = vshll.u32 %v3453, 16
        %v3836 = vrot.slane %v3834, 5
        %v3837 = vsel %vm430, %v3832, %v3836
        %v3838 = vld [vmem:[#allocation2] sm:$0xe]
        %v3839 = vld [vmem:[#allocation2 + $0xc] sm:$0xe]
        %v3840 = vld [vmem:[#allocation2 + $0x18] sm:$0xe]
        %v3841 = vld [vmem:[#allocation2 + $0x24] sm:$0xe]
        %v3842 = vld [vmem:[#allocation2 + $0x30] sm:$0xe]
        %v3843 = vld [vmem:[#allocation2 + $0x3c] sm:$0xe]
        %v3844 = vld [vmem:[#allocation2 + $0x48] sm:$0xe]
        %v3845 = vld [vmem:[#allocation2 + $0x54] sm:$0xe]
        %v3846 = vld [vmem:[#allocation2 + $0x60] sm:$0xe]
        %v3847 = vld [vmem:[#allocation2 + $0x6c] sm:$0xe]
        %v3848 = vld [vmem:[#allocation2 + $0x78] sm:$0xe]
        %v3849 = vld [vmem:[#allocation2 + $0x84] sm:$0xe]
        %v3850 = vld [vmem:[#allocation2 + $0x90] sm:$0xe]
        %v3851 = vld [vmem:[#allocation2 + $0x9c] sm:$0xe]
        %v3852 = vld [vmem:[#allocation2 + $0xa8] sm:$0xe]
        %v3853 = vld [vmem:[#allocation2 + $0xb4] sm:$0xe]
        %v3902 = vrot.slane %v3838, 5
        %v3903 = vrot.slane %v3902, 4
        %v3904 = vrot.slane %v3407, 5
        %v3905 = vsel %vm865, %v3903, %v3904
        %v3906 = vrot.slane %v3904, 4
        %v3907 = vrot.slane %v3438, 5
        %v3908 = vsel %vm865, %v3906, %v3907
        %v3909 = vrot.slane %v3839, 5
        %v3910 = vrot.slane %v3909, 4
        %v3911 = vrot.slane %v3409, 5
        %v3912 = vsel %vm865, %v3910, %v3911
        %v3913 = vrot.slane %v3911, 4
        %v3914 = vrot.slane %v3439, 5
        %v3915 = vsel %vm865, %v3913, %v3914
        %v3916 = vrot.slane %v3840, 5
        %v3917 = vrot.slane %v3916, 4
        %v3918 = vrot.slane %v3411, 5
        %v3919 = vsel %vm865, %v3917, %v3918
        %v3920 = vrot.slane %v3918, 4
        %v3921 = vrot.slane %v3440, 5
        %v3922 = vsel %vm865, %v3920, %v3921
        %v3923 = vrot.slane %v3841, 5
        %v3924 = vrot.slane %v3923, 4
        %v3925 = vrot.slane %v3413, 5
        %v3926 = vsel %vm865, %v3924, %v3925
        %v3927 = vrot.slane %v3925, 4
        %v3928 = vrot.slane %v3441, 5
        %v3929 = vsel %vm865, %v3927, %v3928
        %v3930 = vrot.slane %v3842, 5
        %v3931 = vrot.slane %v3930, 4
        %v3932 = vrot.slane %v3415, 5
        %v3933 = vsel %vm865, %v3931, %v3932
        %v3934 = vrot.slane %v3932, 4
        %v3935 = vrot.slane %v3442, 5
        %v3936 = vsel %vm865, %v3934, %v3935
        %v3937 = vrot.slane %v3843, 5
        %v3938 = vrot.slane %v3937, 4
        %v3939 = vrot.slane %v3417, 5
        %v3940 = vsel %vm865, %v3938, %v3939
        %v3941 = vrot.slane %v3939, 4
        %v3942 = vrot.slane %v3443, 5
        %v3943 = vsel %vm865, %v3941, %v3942
        %v3944 = vrot.slane %v3844, 5
        %v3945 = vrot.slane %v3944, 4
        %v3946 = vrot.slane %v3419, 5
        %v3947 = vsel %vm865, %v3945, %v3946
        %v3948 = vrot.slane %v3946, 4
        %v3949 = vrot.slane %v3444, 5
        %v3950 = vsel %vm865, %v3948, %v3949
        %v3951 = vrot.slane %v3845, 5
        %v3952 = vrot.slane %v3951, 4
        %v3953 = vrot.slane %v3421, 5
        %v3954 = vsel %vm865, %v3952, %v3953
        %v3955 = vrot.slane %v3953, 4
        %v3956 = vrot.slane %v3445, 5
        %v3957 = vsel %vm865, %v3955, %v3956
        %v3958 = vrot.slane %v3846, 5
        %v3959 = vrot.slane %v3958, 4
        %v3960 = vrot.slane %v3423, 5
        %v3961 = vsel %vm865, %v3959, %v3960
        %v3962 = vrot.slane %v3960, 4
        %v3963 = vrot.slane %v3446, 5
        %v3964 = vsel %vm865, %v3962, %v3963
        %v3965 = vrot.slane %v3847, 5
        %v3966 = vrot.slane %v3965, 4
        %v3967 = vrot.slane %v3425, 5
        %v3968 = vsel %vm865, %v3966, %v3967
        %v3969 = vrot.slane %v3967, 4
        %v3970 = vrot.slane %v3447, 5
        %v3971 = vsel %vm865, %v3969, %v3970
        %v3972 = vrot.slane %v3848, 5
        %v3973 = vrot.slane %v3972, 4
        %v3974 = vrot.slane %v3427, 5
        %v3975 = vsel %vm865, %v3973, %v3974
        %v3976 = vrot.slane %v3974, 4
        %v3977 = vrot.slane %v3448, 5
        %v3978 = vsel %vm865, %v3976, %v3977
        %v3979 = vrot.slane %v3849, 5
        %v3980 = vrot.slane %v3979, 4
        %v3981 = vrot.slane %v3429, 5
        %v3982 = vsel %vm865, %v3980, %v3981
        %v3983 = vrot.slane %v3981, 4
        %v3984 = vrot.slane %v3449, 5
        %v3985 = vsel %vm865, %v3983, %v3984
        %v3986 = vrot.slane %v3850, 5
        %v3987 = vrot.slane %v3986, 4
        %v3988 = vrot.slane %v3431, 5
        %v3989 = vsel %vm865, %v3987, %v3988
        %v3990 = vrot.slane %v3988, 4
        %v3991 = vrot.slane %v3450, 5
        %v3992 = vsel %vm865, %v3990, %v3991
        %v3993 = vrot.slane %v3851, 5
        %v3994 = vrot.slane %v3993, 4
        %v3995 = vrot.slane %v3433, 5
        %v3996 = vsel %vm865, %v3994, %v3995
        %v3997 = vrot.slane %v3995, 4
        %v3998 = vrot.slane %v3451, 5
        %v3999 = vsel %vm865, %v3997, %v3998
        %v4000 = vrot.slane %v3852, 5
        %v4001 = vrot.slane %v4000, 4
        %v4002 = vrot.slane %v3435, 5
        %v4003 = vsel %vm865, %v4001, %v4002
        %v4004 = vrot.slane %v4002, 4
        %v4005 = vrot.slane %v3452, 5
        %v4006 = vsel %vm865, %v4004, %v4005
        %v4007 = vrot.slane %v3853, 5
        %v4008 = vrot.slane %v4007, 4
        %v4009 = vrot.slane %v3437, 5
        %v4010 = vsel %vm865, %v4008, %v4009
        %v4011 = vrot.slane %v4009, 4
        %v4012 = vrot.slane %v3453, 5
        %v4013 = vsel %vm865, %v4011, %v4012
        %v4014 = vld [vmem:[%s3291] sm:$0xf]
        %v4015 = vld [vmem:[%s3291 + $0x4] sm:$0xf]
        %v4016 = vld [vmem:[%s3291 + $0xc] sm:$0xf]
        %v4017 = vld [vmem:[%s3291 + $0x10] sm:$0xf]
        %v4018 = vld [vmem:[%s3291 + $0x18] sm:$0xf]
        %v4019 = vld [vmem:[%s3291 + $0x1c] sm:$0xf]
        %v4020 = vld [vmem:[%s3291 + $0x24] sm:$0xf]
        %v4021 = vld [vmem:[%s3291 + $0x28] sm:$0xf]
        %v4022 = vld [vmem:[%s3291 + $0x30] sm:$0xf]
        %v4023 = vld [vmem:[%s3291 + $0x34] sm:$0xf]
        %v4024 = vld [vmem:[%s3291 + $0x3c] sm:$0xf]
        %v4025 = vld [vmem:[%s3291 + $0x40] sm:$0xf]
        %v4026 = vld [vmem:[%s3291 + $0x48] sm:$0xf]
        %v4027 = vld [vmem:[%s3291 + $0x4c] sm:$0xf]
        %v4028 = vld [vmem:[%s3291 + $0x54] sm:$0xf]
        %v4029 = vld [vmem:[%s3291 + $0x58] sm:$0xf]
        %v4030 = vld [vmem:[%s3291 + $0x60] sm:$0xf]
        %v4031 = vld [vmem:[%s3291 + $0x64] sm:$0xf]
        %v4032 = vld [vmem:[%s3291 + $0x6c] sm:$0xf]
        %v4033 = vld [vmem:[%s3291 + $0x70] sm:$0xf]
        %v4034 = vld [vmem:[%s3291 + $0x78] sm:$0xf]
        %v4035 = vld [vmem:[%s3291 + $0x7c] sm:$0xf]
        %v4036 = vld [vmem:[%s3291 + $0x84] sm:$0xf]
        %v4037 = vld [vmem:[%s3291 + $0x88] sm:$0xf]
        %v4038 = vld [vmem:[%s3291 + $0x90] sm:$0xf]
        %v4039 = vld [vmem:[%s3291 + $0x94] sm:$0xf]
        %v4040 = vld [vmem:[%s3291 + $0x9c] sm:$0xf]
        %v4041 = vld [vmem:[%s3291 + $0xa0] sm:$0xf]
        %v4042 = vld [vmem:[%s3291 + $0xa8] sm:$0xf]
        %v4043 = vld [vmem:[%s3291 + $0xac] sm:$0xf]
        %v4044 = vld [vmem:[%s3291 + $0xb4] sm:$0xf]
        %v4045 = vld [vmem:[%s3291 + $0xb8] sm:$0xf]
        %v4046 = vld [vmem:[%s3291 + $0x8] sm:$0x1]
        %v4047 = vld [vmem:[%s3291 + $0x14] sm:$0x1]
        %v4048 = vld [vmem:[%s3291 + $0x20] sm:$0x1]
        %v4049 = vld [vmem:[%s3291 + $0x2c] sm:$0x1]
        %v4050 = vld [vmem:[%s3291 + $0x38] sm:$0x1]
        %v4051 = vld [vmem:[%s3291 + $0x44] sm:$0x1]
        %v4052 = vld [vmem:[%s3291 + $0x50] sm:$0x1]
        %v4053 = vld [vmem:[%s3291 + $0x5c] sm:$0x1]
        %v4054 = vld [vmem:[%s3291 + $0x68] sm:$0x1]
        %v4055 = vld [vmem:[%s3291 + $0x74] sm:$0x1]
        %v4056 = vld [vmem:[%s3291 + $0x80] sm:$0x1]
        %v4057 = vld [vmem:[%s3291 + $0x8c] sm:$0x1]
        %v4058 = vld [vmem:[%s3291 + $0x98] sm:$0x1]
        %v4059 = vld [vmem:[%s3291 + $0xa4] sm:$0x1]
        %v4060 = vld [vmem:[%s3291 + $0xb0] sm:$0x1]
        %v4061 = vld [vmem:[%s3291 + $0xbc] sm:$0x1]
        %v4063 = vshrl.u32 %v4014, 16
        %v4065 = vrot.slane %v4063, 4
        %v4066 = vshll.u32 %v4014, 16
        %v4068 = vrot.slane %v4066, 5
        %v4069 = vor.u32 %v4065, %v4068
        %v4070 = vrot.slane %v4069, 4
        %v4072 = vshll.u32 %v4015, 16
        %v4074 = vrot.slane %v4072, 5
        %v4075 = vsel %vm430, %v4070, %v4074
        %v4076 = vshrl.u32 %v4015, 16
        %v4078 = vrot.slane %v4076, 4
        %v4079 = vor.u32 %v4078, %v4074
        %v4080 = vrot.slane %v4079, 4
        %v4082 = vshll.u32 %v4046, 16
        %v4084 = vrot.slane %v4082, 5
        %v4085 = vsel %vm430, %v4080, %v4084
        %v4087 = vshrl.u32 %v4016, 16
        %v4089 = vrot.slane %v4087, 4
        %v4090 = vshll.u32 %v4016, 16
        %v4092 = vrot.slane %v4090, 5
        %v4093 = vor.u32 %v4089, %v4092
        %v4094 = vrot.slane %v4093, 4
        %v4096 = vshll.u32 %v4017, 16
        %v4098 = vrot.slane %v4096, 5
        %v4099 = vsel %vm430, %v4094, %v4098
        %v4100 = vshrl.u32 %v4017, 16
        %v4102 = vrot.slane %v4100, 4
        %v4103 = vor.u32 %v4102, %v4098
        %v4104 = vrot.slane %v4103, 4
        %v4106 = vshll.u32 %v4047, 16
        %v4108 = vrot.slane %v4106, 5
        %v4109 = vsel %vm430, %v4104, %v4108
        %v4111 = vshrl.u32 %v4018, 16
        %v4113 = vrot.slane %v4111, 4
        %v4114 = vshll.u32 %v4018, 16
        %v4116 = vrot.slane %v4114, 5
        %v4117 = vor.u32 %v4113, %v4116
        %v4118 = vrot.slane %v4117, 4
        %v4120 = vshll.u32 %v4019, 16
        %v4122 = vrot.slane %v4120, 5
        %v4123 = vsel %vm430, %v4118, %v4122
        %v4124 = vshrl.u32 %v4019, 16
        %v4126 = vrot.slane %v4124, 4
        %v4127 = vor.u32 %v4126, %v4122
        %v4128 = vrot.slane %v4127, 4
        %v4130 = vshll.u32 %v4048, 16
        %v4132 = vrot.slane %v4130, 5
        %v4133 = vsel %vm430, %v4128, %v4132
        %v4135 = vshrl.u32 %v4020, 16
        %v4137 = vrot.slane %v4135, 4
        %v4138 = vshll.u32 %v4020, 16
        %v4140 = vrot.slane %v4138, 5
        %v4141 = vor.u32 %v4137, %v4140
        %v4142 = vrot.slane %v4141, 4
        %v4144 = vshll.u32 %v4021, 16
        %v4146 = vrot.slane %v4144, 5
        %v4147 = vsel %vm430, %v4142, %v4146
        %v4148 = vshrl.u32 %v4021, 16
        %v4150 = vrot.slane %v4148, 4
        %v4151 = vor.u32 %v4150, %v4146
        %v4152 = vrot.slane %v4151, 4
        %v4154 = vshll.u32 %v4049, 16
        %v4156 = vrot.slane %v4154, 5
        %v4157 = vsel %vm430, %v4152, %v4156
        %v4159 = vshrl.u32 %v4022, 16
        %v4161 = vrot.slane %v4159, 4
        %v4162 = vshll.u32 %v4022, 16
        %v4164 = vrot.slane %v4162, 5
        %v4165 = vor.u32 %v4161, %v4164
        %v4166 = vrot.slane %v4165, 4
        %v4168 = vshll.u32 %v4023, 16
        %v4170 = vrot.slane %v4168, 5
        %v4171 = vsel %vm430, %v4166, %v4170
        %v4172 = vshrl.u32 %v4023, 16
        %v4174 = vrot.slane %v4172, 4
        %v4175 = vor.u32 %v4174, %v4170
        %v4176 = vrot.slane %v4175, 4
        %v4178 = vshll.u32 %v4050, 16
        %v4180 = vrot.slane %v4178, 5
        %v4181 = vsel %vm430, %v4176, %v4180
        %v4183 = vshrl.u32 %v4024, 16
        %v4185 = vrot.slane %v4183, 4
        %v4186 = vshll.u32 %v4024, 16
        %v4188 = vrot.slane %v4186, 5
        %v4189 = vor.u32 %v4185, %v4188
        %v4190 = vrot.slane %v4189, 4
        %v4192 = vshll.u32 %v4025, 16
        %v4194 = vrot.slane %v4192, 5
        %v4195 = vsel %vm430, %v4190, %v4194
        %v4196 = vshrl.u32 %v4025, 16
        %v4198 = vrot.slane %v4196, 4
        %v4199 = vor.u32 %v4198, %v4194
        %v4200 = vrot.slane %v4199, 4
        %v4202 = vshll.u32 %v4051, 16
        %v4204 = vrot.slane %v4202, 5
        %v4205 = vsel %vm430, %v4200, %v4204
        %v4207 = vshrl.u32 %v4026, 16
        %v4209 = vrot.slane %v4207, 4
        %v4210 = vshll.u32 %v4026, 16
        %v4212 = vrot.slane %v4210, 5
        %v4213 = vor.u32 %v4209, %v4212
        %v4214 = vrot.slane %v4213, 4
        %v4216 = vshll.u32 %v4027, 16
        %v4218 = vrot.slane %v4216, 5
        %v4219 = vsel %vm430, %v4214, %v4218
        %v4220 = vshrl.u32 %v4027, 16
        %v4222 = vrot.slane %v4220, 4
        %v4223 = vor.u32 %v4222, %v4218
        %v4224 = vrot.slane %v4223, 4
        %v4226 = vshll.u32 %v4052, 16
        %v4228 = vrot.slane %v4226, 5
        %v4229 = vsel %vm430, %v4224, %v4228
        %v4231 = vshrl.u32 %v4028, 16
        %v4233 = vrot.slane %v4231, 4
        %v4234 = vshll.u32 %v4028, 16
        %v4236 = vrot.slane %v4234, 5
        %v4237 = vor.u32 %v4233, %v4236
        %v4238 = vrot.slane %v4237, 4
        %v4240 = vshll.u32 %v4029, 16
        %v4242 = vrot.slane %v4240, 5
        %v4243 = vsel %vm430, %v4238, %v4242
        %v4244 = vshrl.u32 %v4029, 16
        %v4246 = vrot.slane %v4244, 4
        %v4247 = vor.u32 %v4246, %v4242
        %v4248 = vrot.slane %v4247, 4
        %v4250 = vshll.u32 %v4053, 16
        %v4252 = vrot.slane %v4250, 5
        %v4253 = vsel %vm430, %v4248, %v4252
        %v4255 = vshrl.u32 %v4030, 16
        %v4257 = vrot.slane %v4255, 4
        %v4258 = vshll.u32 %v4030, 16
        %v4260 = vrot.slane %v4258, 5
        %v4261 = vor.u32 %v4257, %v4260
        %v4262 = vrot.slane %v4261, 4
        %v4264 = vshll.u32 %v4031, 16
        %v4266 = vrot.slane %v4264, 5
        %v4267 = vsel %vm430, %v4262, %v4266
        %v4268 = vshrl.u32 %v4031, 16
        %v4270 = vrot.slane %v4268, 4
        %v4271 = vor.u32 %v4270, %v4266
        %v4272 = vrot.slane %v4271, 4
        %v4274 = vshll.u32 %v4054, 16
        %v4276 = vrot.slane %v4274, 5
        %v4277 = vsel %vm430, %v4272, %v4276
        %v4279 = vshrl.u32 %v4032, 16
        %v4281 = vrot.slane %v4279, 4
        %v4282 = vshll.u32 %v4032, 16
        %v4284 = vrot.slane %v4282, 5
        %v4285 = vor.u32 %v4281, %v4284
        %v4286 = vrot.slane %v4285, 4
        %v4288 = vshll.u32 %v4033, 16
        %v4290 = vrot.slane %v4288, 5
        %v4291 = vsel %vm430, %v4286, %v4290
        %v4292 = vshrl.u32 %v4033, 16
        %v4294 = vrot.slane %v4292, 4
        %v4295 = vor.u32 %v4294, %v4290
        %v4296 = vrot.slane %v4295, 4
        %v4298 = vshll.u32 %v4055, 16
        %v4300 = vrot.slane %v4298, 5
        %v4301 = vsel %vm430, %v4296, %v4300
        %v4303 = vshrl.u32 %v4034, 16
        %v4305 = vrot.slane %v4303, 4
        %v4306 = vshll.u32 %v4034, 16
        %v4308 = vrot.slane %v4306, 5
        %v4309 = vor.u32 %v4305, %v4308
        %v4310 = vrot.slane %v4309, 4
        %v4312 = vshll.u32 %v4035, 16
        %v4314 = vrot.slane %v4312, 5
        %v4315 = vsel %vm430, %v4310, %v4314
        %v4316 = vshrl.u32 %v4035, 16
        %v4318 = vrot.slane %v4316, 4
        %v4319 = vor.u32 %v4318, %v4314
        %v4320 = vrot.slane %v4319, 4
        %v4322 = vshll.u32 %v4056, 16
        %v4324 = vrot.slane %v4322, 5
        %v4325 = vsel %vm430, %v4320, %v4324
        %v4327 = vshrl.u32 %v4036, 16
        %v4329 = vrot.slane %v4327, 4
        %v4330 = vshll.u32 %v4036, 16
        %v4332 = vrot.slane %v4330, 5
        %v4333 = vor.u32 %v4329, %v4332
        %v4334 = vrot.slane %v4333, 4
        %v4336 = vshll.u32 %v4037, 16
        %v4338 = vrot.slane %v4336, 5
        %v4339 = vsel %vm430, %v4334, %v4338
        %v4340 = vshrl.u32 %v4037, 16
        %v4342 = vrot.slane %v4340, 4
        %v4343 = vor.u32 %v4342, %v4338
        %v4344 = vrot.slane %v4343, 4
        %v4346 = vshll.u32 %v4057, 16
        %v4348 = vrot.slane %v4346, 5
        %v4349 = vsel %vm430, %v4344, %v4348
        %v4351 = vshrl.u32 %v4038, 16
        %v4353 = vrot.slane %v4351, 4
        %v4354 = vshll.u32 %v4038, 16
        %v4356 = vrot.slane %v4354, 5
        %v4357 = vor.u32 %v4353, %v4356
        %v4358 = vrot.slane %v4357, 4
        %v4360 = vshll.u32 %v4039, 16
        %v4362 = vrot.slane %v4360, 5
        %v4363 = vsel %vm430, %v4358, %v4362
        %v4364 = vshrl.u32 %v4039, 16
        %v4366 = vrot.slane %v4364, 4
        %v4367 = vor.u32 %v4366, %v4362
        %v4368 = vrot.slane %v4367, 4
        %v4370 = vshll.u32 %v4058, 16
        %v4372 = vrot.slane %v4370, 5
        %v4373 = vsel %vm430, %v4368, %v4372
        %v4375 = vshrl.u32 %v4040, 16
        %v4377 = vrot.slane %v4375, 4
        %v4378 = vshll.u32 %v4040, 16
        %v4380 = vrot.slane %v4378, 5
        %v4381 = vor.u32 %v4377, %v4380
        %v4382 = vrot.slane %v4381, 4
        %v4384 = vshll.u32 %v4041, 16
        %v4386 = vrot.slane %v4384, 5
        %v4387 = vsel %vm430, %v4382, %v4386
        %v4388 = vshrl.u32 %v4041, 16
        %v4390 = vrot.slane %v4388, 4
        %v4391 = vor.u32 %v4390, %v4386
        %v4392 = vrot.slane %v4391, 4
        %v4394 = vshll.u32 %v4059, 16
        %v4396 = vrot.slane %v4394, 5
        %v4397 = vsel %vm430, %v4392, %v4396
        %v4399 = vshrl.u32 %v4042, 16
        %v4401 = vrot.slane %v4399, 4
        %v4402 = vshll.u32 %v4042, 16
        %v4404 = vrot.slane %v4402, 5
        %v4405 = vor.u32 %v4401, %v4404
        %v4406 = vrot.slane %v4405, 4
        %v4408 = vshll.u32 %v4043, 16
        %v4410 = vrot.slane %v4408, 5
        %v4411 = vsel %vm430, %v4406, %v4410
        %v4412 = vshrl.u32 %v4043, 16
        %v4414 = vrot.slane %v4412, 4
        %v4415 = vor.u32 %v4414, %v4410
        %v4416 = vrot.slane %v4415, 4
        %v4418 = vshll.u32 %v4060, 16
        %v4420 = vrot.slane %v4418, 5
        %v4421 = vsel %vm430, %v4416, %v4420
        %v4423 = vshrl.u32 %v4044, 16
        %v4425 = vrot.slane %v4423, 4
        %v4426 = vshll.u32 %v4044, 16
        %v4428 = vrot.slane %v4426, 5
        %v4429 = vor.u32 %v4425, %v4428
        %v4430 = vrot.slane %v4429, 4
        %v4432 = vshll.u32 %v4045, 16
        %v4434 = vrot.slane %v4432, 5
        %v4435 = vsel %vm430, %v4430, %v4434
        %v4436 = vshrl.u32 %v4045, 16
        %v4438 = vrot.slane %v4436, 4
        %v4439 = vor.u32 %v4438, %v4434
        %v4440 = vrot.slane %v4439, 4
        %v4442 = vshll.u32 %v4061, 16
        %v4444 = vrot.slane %v4442, 5
        %v4445 = vsel %vm430, %v4440, %v4444
        %v4446 = vld [vmem:[%s3291] sm:$0xe]
        %v4447 = vld [vmem:[%s3291 + $0xc] sm:$0xe]
        %v4448 = vld [vmem:[%s3291 + $0x18] sm:$0xe]
        %v4449 = vld [vmem:[%s3291 + $0x24] sm:$0xe]
        %v4450 = vld [vmem:[%s3291 + $0x30] sm:$0xe]
        %v4451 = vld [vmem:[%s3291 + $0x3c] sm:$0xe]
        %v4452 = vld [vmem:[%s3291 + $0x48] sm:$0xe]
        %v4453 = vld [vmem:[%s3291 + $0x54] sm:$0xe]
        %v4454 = vld [vmem:[%s3291 + $0x60] sm:$0xe]
        %v4455 = vld [vmem:[%s3291 + $0x6c] sm:$0xe]
        %v4456 = vld [vmem:[%s3291 + $0x78] sm:$0xe]
        %v4457 = vld [vmem:[%s3291 + $0x84] sm:$0xe]
        %v4458 = vld [vmem:[%s3291 + $0x90] sm:$0xe]
        %v4459 = vld [vmem:[%s3291 + $0x9c] sm:$0xe]
        %v4460 = vld [vmem:[%s3291 + $0xa8] sm:$0xe]
        %v4461 = vld [vmem:[%s3291 + $0xb4] sm:$0xe]
        %v4510 = vrot.slane %v4446, 5
        %v4511 = vrot.slane %v4510, 4
        %v4512 = vrot.slane %v4015, 5
        %v4513 = vsel %vm865, %v4511, %v4512
        %v4514 = vrot.slane %v4512, 4
        %v4515 = vrot.slane %v4046, 5
        %v4516 = vsel %vm865, %v4514, %v4515
        %v4517 = vrot.slane %v4447, 5
        %v4518 = vrot.slane %v4517, 4
        %v4519 = vrot.slane %v4017, 5
        %v4520 = vsel %vm865, %v4518, %v4519
        %v4521 = vrot.slane %v4519, 4
        %v4522 = vrot.slane %v4047, 5
        %v4523 = vsel %vm865, %v4521, %v4522
        %v4524 = vrot.slane %v4448, 5
        %v4525 = vrot.slane %v4524, 4
        %v4526 = vrot.slane %v4019, 5
        %v4527 = vsel %vm865, %v4525, %v4526
        %v4528 = vrot.slane %v4526, 4
        %v4529 = vrot.slane %v4048, 5
        %v4530 = vsel %vm865, %v4528, %v4529
        %v4531 = vrot.slane %v4449, 5
        %v4532 = vrot.slane %v4531, 4
        %v4533 = vrot.slane %v4021, 5
        %v4534 = vsel %vm865, %v4532, %v4533
        %v4535 = vrot.slane %v4533, 4
        %v4536 = vrot.slane %v4049, 5
        %v4537 = vsel %vm865, %v4535, %v4536
        %v4538 = vrot.slane %v4450, 5
        %v4539 = vrot.slane %v4538, 4
        %v4540 = vrot.slane %v4023, 5
        %v4541 = vsel %vm865, %v4539, %v4540
        %v4542 = vrot.slane %v4540, 4
        %v4543 = vrot.slane %v4050, 5
        %v4544 = vsel %vm865, %v4542, %v4543
        %v4545 = vrot.slane %v4451, 5
        %v4546 = vrot.slane %v4545, 4
        %v4547 = vrot.slane %v4025, 5
        %v4548 = vsel %vm865, %v4546, %v4547
        %v4549 = vrot.slane %v4547, 4
        %v4550 = vrot.slane %v4051, 5
        %v4551 = vsel %vm865, %v4549, %v4550
        %v4552 = vrot.slane %v4452, 5
        %v4553 = vrot.slane %v4552, 4
        %v4554 = vrot.slane %v4027, 5
        %v4555 = vsel %vm865, %v4553, %v4554
        %v4556 = vrot.slane %v4554, 4
        %v4557 = vrot.slane %v4052, 5
        %v4558 = vsel %vm865, %v4556, %v4557
        %v4559 = vrot.slane %v4453, 5
        %v4560 = vrot.slane %v4559, 4
        %v4561 = vrot.slane %v4029, 5
        %v4562 = vsel %vm865, %v4560, %v4561
        %v4563 = vrot.slane %v4561, 4
        %v4564 = vrot.slane %v4053, 5
        %v4565 = vsel %vm865, %v4563, %v4564
        %v4566 = vrot.slane %v4454, 5
        %v4567 = vrot.slane %v4566, 4
        %v4568 = vrot.slane %v4031, 5
        %v4569 = vsel %vm865, %v4567, %v4568
        %v4570 = vrot.slane %v4568, 4
        %v4571 = vrot.slane %v4054, 5
        %v4572 = vsel %vm865, %v4570, %v4571
        %v4573 = vrot.slane %v4455, 5
        %v4574 = vrot.slane %v4573, 4
        %v4575 = vrot.slane %v4033, 5
        %v4576 = vsel %vm865, %v4574, %v4575
        %v4577 = vrot.slane %v4575, 4
        %v4578 = vrot.slane %v4055, 5
        %v4579 = vsel %vm865, %v4577, %v4578
        %v4580 = vrot.slane %v4456, 5
        %v4581 = vrot.slane %v4580, 4
        %v4582 = vrot.slane %v4035, 5
        %v4583 = vsel %vm865, %v4581, %v4582
        %v4584 = vrot.slane %v4582, 4
        %v4585 = vrot.slane %v4056, 5
        %v4586 = vsel %vm865, %v4584, %v4585
        %v4587 = vrot.slane %v4457, 5
        %v4588 = vrot.slane %v4587, 4
        %v4589 = vrot.slane %v4037, 5
        %v4590 = vsel %vm865, %v4588, %v4589
        %v4591 = vrot.slane %v4589, 4
        %v4592 = vrot.slane %v4057, 5
        %v4593 = vsel %vm865, %v4591, %v4592
        %v4594 = vrot.slane %v4458, 5
        %v4595 = vrot.slane %v4594, 4
        %v4596 = vrot.slane %v4039, 5
        %v4597 = vsel %vm865, %v4595, %v4596
        %v4598 = vrot.slane %v4596, 4
        %v4599 = vrot.slane %v4058, 5
        %v4600 = vsel %vm865, %v4598, %v4599
        %v4601 = vrot.slane %v4459, 5
        %v4602 = vrot.slane %v4601, 4
        %v4603 = vrot.slane %v4041, 5
        %v4604 = vsel %vm865, %v4602, %v4603
        %v4605 = vrot.slane %v4603, 4
        %v4606 = vrot.slane %v4059, 5
        %v4607 = vsel %vm865, %v4605, %v4606
        %v4608 = vrot.slane %v4460, 5
        %v4609 = vrot.slane %v4608, 4
        %v4610 = vrot.slane %v4043, 5
        %v4611 = vsel %vm865, %v4609, %v4610
        %v4612 = vrot.slane %v4610, 4
        %v4613 = vrot.slane %v4060, 5
        %v4614 = vsel %vm865, %v4612, %v4613
        %v4615 = vrot.slane %v4461, 5
        %v4616 = vrot.slane %v4615, 4
        %v4617 = vrot.slane %v4045, 5
        %v4618 = vsel %vm865, %v4616, %v4617
        %v4619 = vrot.slane %v4617, 4
        %v4620 = vrot.slane %v4061, 5
        %v4621 = vsel %vm865, %v4619, %v4620
        %s4622 = scalar_lea.vmem [#allocation2], 24
        %v4623 = vld [vmem:[%s4622] sm:$0xf]
        %v4624 = vld [vmem:[%s4622 + $0x4] sm:$0xf]
        %v4625 = vld [vmem:[%s4622 + $0xc] sm:$0xf]
        %v4626 = vld [vmem:[%s4622 + $0x10] sm:$0xf]
        %v4627 = vld [vmem:[%s4622 + $0x18] sm:$0xf]
        %v4628 = vld [vmem:[%s4622 + $0x1c] sm:$0xf]
        %v4629 = vld [vmem:[%s4622 + $0x24] sm:$0xf]
        %v4630 = vld [vmem:[%s4622 + $0x28] sm:$0xf]
        %v4631 = vld [vmem:[%s4622 + $0x30] sm:$0xf]
        %v4632 = vld [vmem:[%s4622 + $0x34] sm:$0xf]
        %v4633 = vld [vmem:[%s4622 + $0x3c] sm:$0xf]
        %v4634 = vld [vmem:[%s4622 + $0x40] sm:$0xf]
        %v4635 = vld [vmem:[%s4622 + $0x48] sm:$0xf]
        %v4636 = vld [vmem:[%s4622 + $0x4c] sm:$0xf]
        %v4637 = vld [vmem:[%s4622 + $0x54] sm:$0xf]
        %v4638 = vld [vmem:[%s4622 + $0x58] sm:$0xf]
        %v4639 = vld [vmem:[%s4622 + $0x60] sm:$0xf]
        %v4640 = vld [vmem:[%s4622 + $0x64] sm:$0xf]
        %v4641 = vld [vmem:[%s4622 + $0x6c] sm:$0xf]
        %v4642 = vld [vmem:[%s4622 + $0x70] sm:$0xf]
        %v4643 = vld [vmem:[%s4622 + $0x78] sm:$0xf]
        %v4644 = vld [vmem:[%s4622 + $0x7c] sm:$0xf]
        %v4645 = vld [vmem:[%s4622 + $0x84] sm:$0xf]
        %v4646 = vld [vmem:[%s4622 + $0x88] sm:$0xf]
        %v4647 = vld [vmem:[%s4622 + $0x90] sm:$0xf]
        %v4648 = vld [vmem:[%s4622 + $0x94] sm:$0xf]
        %v4649 = vld [vmem:[%s4622 + $0x9c] sm:$0xf]
        %v4650 = vld [vmem:[%s4622 + $0xa0] sm:$0xf]
        %v4651 = vld [vmem:[%s4622 + $0xa8] sm:$0xf]
        %v4652 = vld [vmem:[%s4622 + $0xac] sm:$0xf]
        %v4653 = vld [vmem:[%s4622 + $0xb4] sm:$0xf]
        %v4654 = vld [vmem:[%s4622 + $0xb8] sm:$0xf]
        %v4655 = vld [vmem:[%s4622 + $0x8] sm:$0x1]
        %v4656 = vld [vmem:[%s4622 + $0x14] sm:$0x1]
        %v4657 = vld [vmem:[%s4622 + $0x20] sm:$0x1]
        %v4658 = vld [vmem:[%s4622 + $0x2c] sm:$0x1]
        %v4659 = vld [vmem:[%s4622 + $0x38] sm:$0x1]
        %v4660 = vld [vmem:[%s4622 + $0x44] sm:$0x1]
        %v4661 = vld [vmem:[%s4622 + $0x50] sm:$0x1]
        %v4662 = vld [vmem:[%s4622 + $0x5c] sm:$0x1]
        %v4663 = vld [vmem:[%s4622 + $0x68] sm:$0x1]
        %v4664 = vld [vmem:[%s4622 + $0x74] sm:$0x1]
        %v4665 = vld [vmem:[%s4622 + $0x80] sm:$0x1]
        %v4666 = vld [vmem:[%s4622 + $0x8c] sm:$0x1]
        %v4667 = vld [vmem:[%s4622 + $0x98] sm:$0x1]
        %v4668 = vld [vmem:[%s4622 + $0xa4] sm:$0x1]
        %v4669 = vld [vmem:[%s4622 + $0xb0] sm:$0x1]
        %v4670 = vld [vmem:[%s4622 + $0xbc] sm:$0x1]
        %v4672 = vshrl.u32 %v4623, 16
        %v4674 = vrot.slane %v4672, 4
        %v4675 = vshll.u32 %v4623, 16
        %v4677 = vrot.slane %v4675, 5
        %v4678 = vor.u32 %v4674, %v4677
        %v4679 = vrot.slane %v4678, 4
        %v4681 = vshll.u32 %v4624, 16
        %v4683 = vrot.slane %v4681, 5
        %v4684 = vsel %vm430, %v4679, %v4683
        %v4685 = vshrl.u32 %v4624, 16
        %v4687 = vrot.slane %v4685, 4
        %v4688 = vor.u32 %v4687, %v4683
        %v4689 = vrot.slane %v4688, 4
        %v4691 = vshll.u32 %v4655, 16
        %v4693 = vrot.slane %v4691, 5
        %v4694 = vsel %vm430, %v4689, %v4693
        %v4696 = vshrl.u32 %v4625, 16
        %v4698 = vrot.slane %v4696, 4
        %v4699 = vshll.u32 %v4625, 16
        %v4701 = vrot.slane %v4699, 5
        %v4702 = vor.u32 %v4698, %v4701
        %v4703 = vrot.slane %v4702, 4
        %v4705 = vshll.u32 %v4626, 16
        %v4707 = vrot.slane %v4705, 5
        %v4708 = vsel %vm430, %v4703, %v4707
        %v4709 = vshrl.u32 %v4626, 16
        %v4711 = vrot.slane %v4709, 4
        %v4712 = vor.u32 %v4711, %v4707
        %v4713 = vrot.slane %v4712, 4
        %v4715 = vshll.u32 %v4656, 16
        %v4717 = vrot.slane %v4715, 5
        %v4718 = vsel %vm430, %v4713, %v4717
        %v4720 = vshrl.u32 %v4627, 16
        %v4722 = vrot.slane %v4720, 4
        %v4723 = vshll.u32 %v4627, 16
        %v4725 = vrot.slane %v4723, 5
        %v4726 = vor.u32 %v4722, %v4725
        %v4727 = vrot.slane %v4726, 4
        %v4729 = vshll.u32 %v4628, 16
        %v4731 = vrot.slane %v4729, 5
        %v4732 = vsel %vm430, %v4727, %v4731
        %v4733 = vshrl.u32 %v4628, 16
        %v4735 = vrot.slane %v4733, 4
        %v4736 = vor.u32 %v4735, %v4731
        %v4737 = vrot.slane %v4736, 4
        %v4739 = vshll.u32 %v4657, 16
        %v4741 = vrot.slane %v4739, 5
        %v4742 = vsel %vm430, %v4737, %v4741
        %v4744 = vshrl.u32 %v4629, 16
        %v4746 = vrot.slane %v4744, 4
        %v4747 = vshll.u32 %v4629, 16
        %v4749 = vrot.slane %v4747, 5
        %v4750 = vor.u32 %v4746, %v4749
        %v4751 = vrot.slane %v4750, 4
        %v4753 = vshll.u32 %v4630, 16
        %v4755 = vrot.slane %v4753, 5
        %v4756 = vsel %vm430, %v4751, %v4755
        %v4757 = vshrl.u32 %v4630, 16
        %v4759 = vrot.slane %v4757, 4
        %v4760 = vor.u32 %v4759, %v4755
        %v4761 = vrot.slane %v4760, 4
        %v4763 = vshll.u32 %v4658, 16
        %v4765 = vrot.slane %v4763, 5
        %v4766 = vsel %vm430, %v4761, %v4765
        %v4768 = vshrl.u32 %v4631, 16
        %v4770 = vrot.slane %v4768, 4
        %v4771 = vshll.u32 %v4631, 16
        %v4773 = vrot.slane %v4771, 5
        %v4774 = vor.u32 %v4770, %v4773
        %v4775 = vrot.slane %v4774, 4
        %v4777 = vshll.u32 %v4632, 16
        %v4779 = vrot.slane %v4777, 5
        %v4780 = vsel %vm430, %v4775, %v4779
        %v4781 = vshrl.u32 %v4632, 16
        %v4783 = vrot.slane %v4781, 4
        %v4784 = vor.u32 %v4783, %v4779
        %v4785 = vrot.slane %v4784, 4
        %v4787 = vshll.u32 %v4659, 16
        %v4789 = vrot.slane %v4787, 5
        %v4790 = vsel %vm430, %v4785, %v4789
        %v4792 = vshrl.u32 %v4633, 16
        %v4794 = vrot.slane %v4792, 4
        %v4795 = vshll.u32 %v4633, 16
        %v4797 = vrot.slane %v4795, 5
        %v4798 = vor.u32 %v4794, %v4797
        %v4799 = vrot.slane %v4798, 4
        %v4801 = vshll.u32 %v4634, 16
        %v4803 = vrot.slane %v4801, 5
        %v4804 = vsel %vm430, %v4799, %v4803
        %v4805 = vshrl.u32 %v4634, 16
        %v4807 = vrot.slane %v4805, 4
        %v4808 = vor.u32 %v4807, %v4803
        %v4809 = vrot.slane %v4808, 4
        %v4811 = vshll.u32 %v4660, 16
        %v4813 = vrot.slane %v4811, 5
        %v4814 = vsel %vm430, %v4809, %v4813
        %v4816 = vshrl.u32 %v4635, 16
        %v4818 = vrot.slane %v4816, 4
        %v4819 = vshll.u32 %v4635, 16
        %v4821 = vrot.slane %v4819, 5
        %v4822 = vor.u32 %v4818, %v4821
        %v4823 = vrot.slane %v4822, 4
        %v4825 = vshll.u32 %v4636, 16
        %v4827 = vrot.slane %v4825, 5
        %v4828 = vsel %vm430, %v4823, %v4827
        %v4829 = vshrl.u32 %v4636, 16
        %v4831 = vrot.slane %v4829, 4
        %v4832 = vor.u32 %v4831, %v4827
        %v4833 = vrot.slane %v4832, 4
        %v4835 = vshll.u32 %v4661, 16
        %v4837 = vrot.slane %v4835, 5
        %v4838 = vsel %vm430, %v4833, %v4837
        %v4840 = vshrl.u32 %v4637, 16
        %v4842 = vrot.slane %v4840, 4
        %v4843 = vshll.u32 %v4637, 16
        %v4845 = vrot.slane %v4843, 5
        %v4846 = vor.u32 %v4842, %v4845
        %v4847 = vrot.slane %v4846, 4
        %v4849 = vshll.u32 %v4638, 16
        %v4851 = vrot.slane %v4849, 5
        %v4852 = vsel %vm430, %v4847, %v4851
        %v4853 = vshrl.u32 %v4638, 16
        %v4855 = vrot.slane %v4853, 4
        %v4856 = vor.u32 %v4855, %v4851
        %v4857 = vrot.slane %v4856, 4
        %v4859 = vshll.u32 %v4662, 16
        %v4861 = vrot.slane %v4859, 5
        %v4862 = vsel %vm430, %v4857, %v4861
        %v4864 = vshrl.u32 %v4639, 16
        %v4866 = vrot.slane %v4864, 4
        %v4867 = vshll.u32 %v4639, 16
        %v4869 = vrot.slane %v4867, 5
        %v4870 = vor.u32 %v4866, %v4869
        %v4871 = vrot.slane %v4870, 4
        %v4873 = vshll.u32 %v4640, 16
        %v4875 = vrot.slane %v4873, 5
        %v4876 = vsel %vm430, %v4871, %v4875
        %v4877 = vshrl.u32 %v4640, 16
        %v4879 = vrot.slane %v4877, 4
        %v4880 = vor.u32 %v4879, %v4875
        %v4881 = vrot.slane %v4880, 4
        %v4883 = vshll.u32 %v4663, 16
        %v4885 = vrot.slane %v4883, 5
        %v4886 = vsel %vm430, %v4881, %v4885
        %v4888 = vshrl.u32 %v4641, 16
        %v4890 = vrot.slane %v4888, 4
        %v4891 = vshll.u32 %v4641, 16
        %v4893 = vrot.slane %v4891, 5
        %v4894 = vor.u32 %v4890, %v4893
        %v4895 = vrot.slane %v4894, 4
        %v4897 = vshll.u32 %v4642, 16
        %v4899 = vrot.slane %v4897, 5
        %v4900 = vsel %vm430, %v4895, %v4899
        %v4901 = vshrl.u32 %v4642, 16
        %v4903 = vrot.slane %v4901, 4
        %v4904 = vor.u32 %v4903, %v4899
        %v4905 = vrot.slane %v4904, 4
        %v4907 = vshll.u32 %v4664, 16
        %v4909 = vrot.slane %v4907, 5
        %v4910 = vsel %vm430, %v4905, %v4909
        %v4912 = vshrl.u32 %v4643, 16
        %v4914 = vrot.slane %v4912, 4
        %v4915 = vshll.u32 %v4643, 16
        %v4917 = vrot.slane %v4915, 5
        %v4918 = vor.u32 %v4914, %v4917
        %v4919 = vrot.slane %v4918, 4
        %v4921 = vshll.u32 %v4644, 16
        %v4923 = vrot.slane %v4921, 5
        %v4924 = vsel %vm430, %v4919, %v4923
        %v4925 = vshrl.u32 %v4644, 16
        %v4927 = vrot.slane %v4925, 4
        %v4928 = vor.u32 %v4927, %v4923
        %v4929 = vrot.slane %v4928, 4
        %v4931 = vshll.u32 %v4665, 16
        %v4933 = vrot.slane %v4931, 5
        %v4934 = vsel %vm430, %v4929, %v4933
        %v4936 = vshrl.u32 %v4645, 16
        %v4938 = vrot.slane %v4936, 4
        %v4939 = vshll.u32 %v4645, 16
        %v4941 = vrot.slane %v4939, 5
        %v4942 = vor.u32 %v4938, %v4941
        %v4943 = vrot.slane %v4942, 4
        %v4945 = vshll.u32 %v4646, 16
        %v4947 = vrot.slane %v4945, 5
        %v4948 = vsel %vm430, %v4943, %v4947
        %v4949 = vshrl.u32 %v4646, 16
        %v4951 = vrot.slane %v4949, 4
        %v4952 = vor.u32 %v4951, %v4947
        %v4953 = vrot.slane %v4952, 4
        %v4955 = vshll.u32 %v4666, 16
        %v4957 = vrot.slane %v4955, 5
        %v4958 = vsel %vm430, %v4953, %v4957
        %v4960 = vshrl.u32 %v4647, 16
        %v4962 = vrot.slane %v4960, 4
        %v4963 = vshll.u32 %v4647, 16
        %v4965 = vrot.slane %v4963, 5
        %v4966 = vor.u32 %v4962, %v4965
        %v4967 = vrot.slane %v4966, 4
        %v4969 = vshll.u32 %v4648, 16
        %v4971 = vrot.slane %v4969, 5
        %v4972 = vsel %vm430, %v4967, %v4971
        %v4973 = vshrl.u32 %v4648, 16
        %v4975 = vrot.slane %v4973, 4
        %v4976 = vor.u32 %v4975, %v4971
        %v4977 = vrot.slane %v4976, 4
        %v4979 = vshll.u32 %v4667, 16
        %v4981 = vrot.slane %v4979, 5
        %v4982 = vsel %vm430, %v4977, %v4981
        %v4984 = vshrl.u32 %v4649, 16
        %v4986 = vrot.slane %v4984, 4
        %v4987 = vshll.u32 %v4649, 16
        %v4989 = vrot.slane %v4987, 5
        %v4990 = vor.u32 %v4986, %v4989
        %v4991 = vrot.slane %v4990, 4
        %v4993 = vshll.u32 %v4650, 16
        %v4995 = vrot.slane %v4993, 5
        %v4996 = vsel %vm430, %v4991, %v4995
        %v4997 = vshrl.u32 %v4650, 16
        %v4999 = vrot.slane %v4997, 4
        %v5000 = vor.u32 %v4999, %v4995
        %v5001 = vrot.slane %v5000, 4
        %v5003 = vshll.u32 %v4668, 16
        %v5005 = vrot.slane %v5003, 5
        %v5006 = vsel %vm430, %v5001, %v5005
        %v5008 = vshrl.u32 %v4651, 16
        %v5010 = vrot.slane %v5008, 4
        %v5011 = vshll.u32 %v4651, 16
        %v5013 = vrot.slane %v5011, 5
        %v5014 = vor.u32 %v5010, %v5013
        %v5015 = vrot.slane %v5014, 4
        %v5017 = vshll.u32 %v4652, 16
        %v5019 = vrot.slane %v5017, 5
        %v5020 = vsel %vm430, %v5015, %v5019
        %v5021 = vshrl.u32 %v4652, 16
        %v5023 = vrot.slane %v5021, 4
        %v5024 = vor.u32 %v5023, %v5019
        %v5025 = vrot.slane %v5024, 4
        %v5027 = vshll.u32 %v4669, 16
        %v5029 = vrot.slane %v5027, 5
        %v5030 = vsel %vm430, %v5025, %v5029
        %v5032 = vshrl.u32 %v4653, 16
        %v5034 = vrot.slane %v5032, 4
        %v5035 = vshll.u32 %v4653, 16
        %v5037 = vrot.slane %v5035, 5
        %v5038 = vor.u32 %v5034, %v5037
        %v5039 = vrot.slane %v5038, 4
        %v5041 = vshll.u32 %v4654, 16
        %v5043 = vrot.slane %v5041, 5
        %v5044 = vsel %vm430, %v5039, %v5043
        %v5045 = vshrl.u32 %v4654, 16
        %v5047 = vrot.slane %v5045, 4
        %v5048 = vor.u32 %v5047, %v5043
        %v5049 = vrot.slane %v5048, 4
        %v5051 = vshll.u32 %v4670, 16
        %v5053 = vrot.slane %v5051, 5
        %v5054 = vsel %vm430, %v5049, %v5053
        %v5055 = vld [vmem:[%s4622] sm:$0xe]
        %v5056 = vld [vmem:[%s4622 + $0xc] sm:$0xe]
        %v5057 = vld [vmem:[%s4622 + $0x18] sm:$0xe]
        %v5058 = vld [vmem:[%s4622 + $0x24] sm:$0xe]
        %v5059 = vld [vmem:[%s4622 + $0x30] sm:$0xe]
        %v5060 = vld [vmem:[%s4622 + $0x3c] sm:$0xe]
        %v5061 = vld [vmem:[%s4622 + $0x48] sm:$0xe]
        %v5062 = vld [vmem:[%s4622 + $0x54] sm:$0xe]
        %v5063 = vld [vmem:[%s4622 + $0x60] sm:$0xe]
        %v5064 = vld [vmem:[%s4622 + $0x6c] sm:$0xe]
        %v5065 = vld [vmem:[%s4622 + $0x78] sm:$0xe]
        %v5066 = vld [vmem:[%s4622 + $0x84] sm:$0xe]
        %v5067 = vld [vmem:[%s4622 + $0x90] sm:$0xe]
        %v5068 = vld [vmem:[%s4622 + $0x9c] sm:$0xe]
        %v5069 = vld [vmem:[%s4622 + $0xa8] sm:$0xe]
        %v5070 = vld [vmem:[%s4622 + $0xb4] sm:$0xe]
        %v5119 = vrot.slane %v5055, 5
        %v5120 = vrot.slane %v5119, 4
        %v5121 = vrot.slane %v4624, 5
        %v5122 = vsel %vm865, %v5120, %v5121
        %v5123 = vrot.slane %v5121, 4
        %v5124 = vrot.slane %v4655, 5
        %v5125 = vsel %vm865, %v5123, %v5124
        %v5126 = vrot.slane %v5056, 5
        %v5127 = vrot.slane %v5126, 4
        %v5128 = vrot.slane %v4626, 5
        %v5129 = vsel %vm865, %v5127, %v5128
        %v5130 = vrot.slane %v5128, 4
        %v5131 = vrot.slane %v4656, 5
        %v5132 = vsel %vm865, %v5130, %v5131
        %v5133 = vrot.slane %v5057, 5
        %v5134 = vrot.slane %v5133, 4
        %v5135 = vrot.slane %v4628, 5
        %v5136 = vsel %vm865, %v5134, %v5135
        %v5137 = vrot.slane %v5135, 4
        %v5138 = vrot.slane %v4657, 5
        %v5139 = vsel %vm865, %v5137, %v5138
        %v5140 = vrot.slane %v5058, 5
        %v5141 = vrot.slane %v5140, 4
        %v5142 = vrot.slane %v4630, 5
        %v5143 = vsel %vm865, %v5141, %v5142
        %v5144 = vrot.slane %v5142, 4
        %v5145 = vrot.slane %v4658, 5
        %v5146 = vsel %vm865, %v5144, %v5145
        %v5147 = vrot.slane %v5059, 5
        %v5148 = vrot.slane %v5147, 4
        %v5149 = vrot.slane %v4632, 5
        %v5150 = vsel %vm865, %v5148, %v5149
        %v5151 = vrot.slane %v5149, 4
        %v5152 = vrot.slane %v4659, 5
        %v5153 = vsel %vm865, %v5151, %v5152
        %v5154 = vrot.slane %v5060, 5
        %v5155 = vrot.slane %v5154, 4
        %v5156 = vrot.slane %v4634, 5
        %v5157 = vsel %vm865, %v5155, %v5156
        %v5158 = vrot.slane %v5156, 4
        %v5159 = vrot.slane %v4660, 5
        %v5160 = vsel %vm865, %v5158, %v5159
        %v5161 = vrot.slane %v5061, 5
        %v5162 = vrot.slane %v5161, 4
        %v5163 = vrot.slane %v4636, 5
        %v5164 = vsel %vm865, %v5162, %v5163
        %v5165 = vrot.slane %v5163, 4
        %v5166 = vrot.slane %v4661, 5
        %v5167 = vsel %vm865, %v5165, %v5166
        %v5168 = vrot.slane %v5062, 5
        %v5169 = vrot.slane %v5168, 4
        %v5170 = vrot.slane %v4638, 5
        %v5171 = vsel %vm865, %v5169, %v5170
        %v5172 = vrot.slane %v5170, 4
        %v5173 = vrot.slane %v4662, 5
        %v5174 = vsel %vm865, %v5172, %v5173
        %v5175 = vrot.slane %v5063, 5
        %v5176 = vrot.slane %v5175, 4
        %v5177 = vrot.slane %v4640, 5
        %v5178 = vsel %vm865, %v5176, %v5177
        %v5179 = vrot.slane %v5177, 4
        %v5180 = vrot.slane %v4663, 5
        %v5181 = vsel %vm865, %v5179, %v5180
        %v5182 = vrot.slane %v5064, 5
        %v5183 = vrot.slane %v5182, 4
        %v5184 = vrot.slane %v4642, 5
        %v5185 = vsel %vm865, %v5183, %v5184
        %v5186 = vrot.slane %v5184, 4
        %v5187 = vrot.slane %v4664, 5
        %v5188 = vsel %vm865, %v5186, %v5187
        %v5189 = vrot.slane %v5065, 5
        %v5190 = vrot.slane %v5189, 4
        %v5191 = vrot.slane %v4644, 5
        %v5192 = vsel %vm865, %v5190, %v5191
        %v5193 = vrot.slane %v5191, 4
        %v5194 = vrot.slane %v4665, 5
        %v5195 = vsel %vm865, %v5193, %v5194
        %v5196 = vrot.slane %v5066, 5
        %v5197 = vrot.slane %v5196, 4
        %v5198 = vrot.slane %v4646, 5
        %v5199 = vsel %vm865, %v5197, %v5198
        %v5200 = vrot.slane %v5198, 4
        %v5201 = vrot.slane %v4666, 5
        %v5202 = vsel %vm865, %v5200, %v5201
        %v5203 = vrot.slane %v5067, 5
        %v5204 = vrot.slane %v5203, 4
        %v5205 = vrot.slane %v4648, 5
        %v5206 = vsel %vm865, %v5204, %v5205
        %v5207 = vrot.slane %v5205, 4
        %v5208 = vrot.slane %v4667, 5
        %v5209 = vsel %vm865, %v5207, %v5208
        %v5210 = vrot.slane %v5068, 5
        %v5211 = vrot.slane %v5210, 4
        %v5212 = vrot.slane %v4650, 5
        %v5213 = vsel %vm865, %v5211, %v5212
        %v5214 = vrot.slane %v5212, 4
        %v5215 = vrot.slane %v4668, 5
        %v5216 = vsel %vm865, %v5214, %v5215
        %v5217 = vrot.slane %v5069, 5
        %v5218 = vrot.slane %v5217, 4
        %v5219 = vrot.slane %v4652, 5
        %v5220 = vsel %vm865, %v5218, %v5219
        %v5221 = vrot.slane %v5219, 4
        %v5222 = vrot.slane %v4669, 5
        %v5223 = vsel %vm865, %v5221, %v5222
        %v5224 = vrot.slane %v5070, 5
        %v5225 = vrot.slane %v5224, 4
        %v5226 = vrot.slane %v4654, 5
        %v5227 = vsel %vm865, %v5225, %v5226
        %v5228 = vrot.slane %v5226, 4
        %v5229 = vrot.slane %v4670, 5
        %v5230 = vsel %vm865, %v5228, %v5229
        %v5247 = vunpack.c.l.b16 %v3406
        %v5248 = vunpack.c.l.b16 %v3407
        %v5249 = vunpack.c.l.b16 %v3408
        %v5250 = vunpack.c.l.b16 %v3409
        %v5251 = vunpack.c.l.b16 %v3410
        %v5252 = vunpack.c.l.b16 %v3411
        %v5253 = vunpack.c.l.b16 %v3412
        %v5254 = vunpack.c.l.b16 %v3413
        %v5255 = vunpack.c.l.b16 %v3414
        %v5256 = vunpack.c.l.b16 %v3415
        %v5257 = vunpack.c.l.b16 %v3416
        %v5258 = vunpack.c.l.b16 %v3417
        %v5259 = vunpack.c.l.b16 %v3418
        %v5260 = vunpack.c.l.b16 %v3419
        %v5261 = vunpack.c.l.b16 %v3420
        %v5262 = vunpack.c.l.b16 %v3421
        %v5263 = vunpack.c.l.b16 %v3422
        %v5264 = vunpack.c.l.b16 %v3423
        %v5265 = vunpack.c.l.b16 %v3424
        %v5266 = vunpack.c.l.b16 %v3425
        %v5267 = vunpack.c.l.b16 %v3426
        %v5268 = vunpack.c.l.b16 %v3427
        %v5269 = vunpack.c.l.b16 %v3428
        %v5270 = vunpack.c.l.b16 %v3429
        %v5271 = vunpack.c.l.b16 %v3430
        %v5272 = vunpack.c.l.b16 %v3431
        %v5273 = vunpack.c.l.b16 %v3432
        %v5274 = vunpack.c.l.b16 %v3433
        %v5275 = vunpack.c.l.b16 %v3434
        %v5276 = vunpack.c.l.b16 %v3435
        %v5277 = vunpack.c.l.b16 %v3436
        %v5278 = vunpack.c.l.b16 %v3437
        %v5279 = vpack.c.b16 %v5248, %v5247
        %v5280 = vpack.c.b16 %v5250, %v5249
        %v5281 = vpack.c.b16 %v5252, %v5251
        %v5282 = vpack.c.b16 %v5254, %v5253
        %v5283 = vpack.c.b16 %v5256, %v5255
        %v5284 = vpack.c.b16 %v5258, %v5257
        %v5285 = vpack.c.b16 %v5260, %v5259
        %v5286 = vpack.c.b16 %v5262, %v5261
        %v5287 = vpack.c.b16 %v5264, %v5263
        %v5288 = vpack.c.b16 %v5266, %v5265
        %v5289 = vpack.c.b16 %v5268, %v5267
        %v5290 = vpack.c.b16 %v5270, %v5269
        %v5291 = vpack.c.b16 %v5272, %v5271
        %v5292 = vpack.c.b16 %v5274, %v5273
        %v5293 = vpack.c.b16 %v5276, %v5275
        %v5294 = vpack.c.b16 %v5278, %v5277
        %v5311 = vunpack.c.l.b16 %v3467
        %v5312 = vunpack.c.l.b16 %v3477
        %v5313 = vunpack.c.l.b16 %v3491
        %v5314 = vunpack.c.l.b16 %v3501
        %v5315 = vunpack.c.l.b16 %v3515
        %v5316 = vunpack.c.l.b16 %v3525
        %v5317 = vunpack.c.l.b16 %v3539
        %v5318 = vunpack.c.l.b16 %v3549
        %v5319 = vunpack.c.l.b16 %v3563
        %v5320 = vunpack.c.l.b16 %v3573
        %v5321 = vunpack.c.l.b16 %v3587
        %v5322 = vunpack.c.l.b16 %v3597
        %v5323 = vunpack.c.l.b16 %v3611
        %v5324 = vunpack.c.l.b16 %v3621
        %v5325 = vunpack.c.l.b16 %v3635
        %v5326 = vunpack.c.l.b16 %v3645
        %v5327 = vunpack.c.l.b16 %v3659
        %v5328 = vunpack.c.l.b16 %v3669
        %v5329 = vunpack.c.l.b16 %v3683
        %v5330 = vunpack.c.l.b16 %v3693
        %v5331 = vunpack.c.l.b16 %v3707
        %v5332 = vunpack.c.l.b16 %v3717
        %v5333 = vunpack.c.l.b16 %v3731
        %v5334 = vunpack.c.l.b16 %v3741
        %v5335 = vunpack.c.l.b16 %v3755
        %v5336 = vunpack.c.l.b16 %v3765
        %v5337 = vunpack.c.l.b16 %v3779
        %v5338 = vunpack.c.l.b16 %v3789
        %v5339 = vunpack.c.l.b16 %v3803
        %v5340 = vunpack.c.l.b16 %v3813
        %v5341 = vunpack.c.l.b16 %v3827
        %v5342 = vunpack.c.l.b16 %v3837
        %v5343 = vpack.c.b16 %v5312, %v5311
        %v5344 = vpack.c.b16 %v5314, %v5313
        %v5345 = vpack.c.b16 %v5316, %v5315
        %v5346 = vpack.c.b16 %v5318, %v5317
        %v5347 = vpack.c.b16 %v5320, %v5319
        %v5348 = vpack.c.b16 %v5322, %v5321
        %v5349 = vpack.c.b16 %v5324, %v5323
        %v5350 = vpack.c.b16 %v5326, %v5325
        %v5351 = vpack.c.b16 %v5328, %v5327
        %v5352 = vpack.c.b16 %v5330, %v5329
        %v5353 = vpack.c.b16 %v5332, %v5331
        %v5354 = vpack.c.b16 %v5334, %v5333
        %v5355 = vpack.c.b16 %v5336, %v5335
        %v5356 = vpack.c.b16 %v5338, %v5337
        %v5357 = vpack.c.b16 %v5340, %v5339
        %v5358 = vpack.c.b16 %v5342, %v5341
        %v5375 = vunpack.c.l.b16 %v3905
        %v5376 = vunpack.c.l.b16 %v3908
        %v5377 = vunpack.c.l.b16 %v3912
        %v5378 = vunpack.c.l.b16 %v3915
        %v5379 = vunpack.c.l.b16 %v3919
        %v5380 = vunpack.c.l.b16 %v3922
        %v5381 = vunpack.c.l.b16 %v3926
        %v5382 = vunpack.c.l.b16 %v3929
        %v5383 = vunpack.c.l.b16 %v3933
        %v5384 = vunpack.c.l.b16 %v3936
        %v5385 = vunpack.c.l.b16 %v3940
        %v5386 = vunpack.c.l.b16 %v3943
        %v5387 = vunpack.c.l.b16 %v3947
        %v5388 = vunpack.c.l.b16 %v3950
        %v5389 = vunpack.c.l.b16 %v3954
        %v5390 = vunpack.c.l.b16 %v3957
        %v5391 = vunpack.c.l.b16 %v3961
        %v5392 = vunpack.c.l.b16 %v3964
        %v5393 = vunpack.c.l.b16 %v3968
        %v5394 = vunpack.c.l.b16 %v3971
        %v5395 = vunpack.c.l.b16 %v3975
        %v5396 = vunpack.c.l.b16 %v3978
        %v5397 = vunpack.c.l.b16 %v3982
        %v5398 = vunpack.c.l.b16 %v3985
        %v5399 = vunpack.c.l.b16 %v3989
        %v5400 = vunpack.c.l.b16 %v3992
        %v5401 = vunpack.c.l.b16 %v3996
        %v5402 = vunpack.c.l.b16 %v3999
        %v5403 = vunpack.c.l.b16 %v4003
        %v5404 = vunpack.c.l.b16 %v4006
        %v5405 = vunpack.c.l.b16 %v4010
        %v5406 = vunpack.c.l.b16 %v4013
        %v5407 = vpack.c.b16 %v5376, %v5375
        %v5408 = vpack.c.b16 %v5378, %v5377
        %v5409 = vpack.c.b16 %v5380, %v5379
        %v5410 = vpack.c.b16 %v5382, %v5381
        %v5411 = vpack.c.b16 %v5384, %v5383
        %v5412 = vpack.c.b16 %v5386, %v5385
        %v5413 = vpack.c.b16 %v5388, %v5387
        %v5414 = vpack.c.b16 %v5390, %v5389
        %v5415 = vpack.c.b16 %v5392, %v5391
        %v5416 = vpack.c.b16 %v5394, %v5393
        %v5417 = vpack.c.b16 %v5396, %v5395
        %v5418 = vpack.c.b16 %v5398, %v5397
        %v5419 = vpack.c.b16 %v5400, %v5399
        %v5420 = vpack.c.b16 %v5402, %v5401
        %v5421 = vpack.c.b16 %v5404, %v5403
        %v5422 = vpack.c.b16 %v5406, %v5405
        %v5455 = vunpack.c.l.b16 %v4014
        %v5456 = vunpack.c.l.b16 %v4015
        %v5457 = vunpack.c.l.b16 %v4016
        %v5458 = vunpack.c.l.b16 %v4017
        %v5459 = vunpack.c.l.b16 %v4018
        %v5460 = vunpack.c.l.b16 %v4019
        %v5461 = vunpack.c.l.b16 %v4020
        %v5462 = vunpack.c.l.b16 %v4021
        %v5463 = vunpack.c.l.b16 %v4022
        %v5464 = vunpack.c.l.b16 %v4023
        %v5465 = vunpack.c.l.b16 %v4024
        %v5466 = vunpack.c.l.b16 %v4025
        %v5467 = vunpack.c.l.b16 %v4026
        %v5468 = vunpack.c.l.b16 %v4027
        %v5469 = vunpack.c.l.b16 %v4028
        %v5470 = vunpack.c.l.b16 %v4029
        %v5471 = vunpack.c.l.b16 %v4030
        %v5472 = vunpack.c.l.b16 %v4031
        %v5473 = vunpack.c.l.b16 %v4032
        %v5474 = vunpack.c.l.b16 %v4033
        %v5475 = vunpack.c.l.b16 %v4034
        %v5476 = vunpack.c.l.b16 %v4035
        %v5477 = vunpack.c.l.b16 %v4036
        %v5478 = vunpack.c.l.b16 %v4037
        %v5479 = vunpack.c.l.b16 %v4038
        %v5480 = vunpack.c.l.b16 %v4039
        %v5481 = vunpack.c.l.b16 %v4040
        %v5482 = vunpack.c.l.b16 %v4041
        %v5483 = vunpack.c.l.b16 %v4042
        %v5484 = vunpack.c.l.b16 %v4043
        %v5485 = vunpack.c.l.b16 %v4044
        %v5486 = vunpack.c.l.b16 %v4045
        %v5487 = vpack.c.b16 %v5456, %v5455
        %v5488 = vpack.c.b16 %v5458, %v5457
        %v5489 = vpack.c.b16 %v5460, %v5459
        %v5490 = vpack.c.b16 %v5462, %v5461
        %v5491 = vpack.c.b16 %v5464, %v5463
        %v5492 = vpack.c.b16 %v5466, %v5465
        %v5493 = vpack.c.b16 %v5468, %v5467
        %v5494 = vpack.c.b16 %v5470, %v5469
        %v5495 = vpack.c.b16 %v5472, %v5471
        %v5496 = vpack.c.b16 %v5474, %v5473
        %v5497 = vpack.c.b16 %v5476, %v5475
        %v5498 = vpack.c.b16 %v5478, %v5477
        %v5499 = vpack.c.b16 %v5480, %v5479
        %v5500 = vpack.c.b16 %v5482, %v5481
        %v5501 = vpack.c.b16 %v5484, %v5483
        %v5502 = vpack.c.b16 %v5486, %v5485
        %v5519 = vunpack.c.l.b16 %v4075
        %v5520 = vunpack.c.l.b16 %v4085
        %v5521 = vunpack.c.l.b16 %v4099
        %v5522 = vunpack.c.l.b16 %v4109
        %v5523 = vunpack.c.l.b16 %v4123
        %v5524 = vunpack.c.l.b16 %v4133
        %v5525 = vunpack.c.l.b16 %v4147
        %v5526 = vunpack.c.l.b16 %v4157
        %v5527 = vunpack.c.l.b16 %v4171
        %v5528 = vunpack.c.l.b16 %v4181
        %v5529 = vunpack.c.l.b16 %v4195
        %v5530 = vunpack.c.l.b16 %v4205
        %v5531 = vunpack.c.l.b16 %v4219
        %v5532 = vunpack.c.l.b16 %v4229
        %v5533 = vunpack.c.l.b16 %v4243
        %v5534 = vunpack.c.l.b16 %v4253
        %v5535 = vunpack.c.l.b16 %v4267
        %v5536 = vunpack.c.l.b16 %v4277
        %v5537 = vunpack.c.l.b16 %v4291
        %v5538 = vunpack.c.l.b16 %v4301
        %v5539 = vunpack.c.l.b16 %v4315
        %v5540 = vunpack.c.l.b16 %v4325
        %v5541 = vunpack.c.l.b16 %v4339
        %v5542 = vunpack.c.l.b16 %v4349
        %v5543 = vunpack.c.l.b16 %v4363
        %v5544 = vunpack.c.l.b16 %v4373
        %v5545 = vunpack.c.l.b16 %v4387
        %v5546 = vunpack.c.l.b16 %v4397
        %v5547 = vunpack.c.l.b16 %v4411
        %v5548 = vunpack.c.l.b16 %v4421
        %v5549 = vunpack.c.l.b16 %v4435
        %v5550 = vunpack.c.l.b16 %v4445
        %v5551 = vpack.c.b16 %v5520, %v5519
        %v5552 = vpack.c.b16 %v5522, %v5521
        %v5553 = vpack.c.b16 %v5524, %v5523
        %v5554 = vpack.c.b16 %v5526, %v5525
        %v5555 = vpack.c.b16 %v5528, %v5527
        %v5556 = vpack.c.b16 %v5530, %v5529
        %v5557 = vpack.c.b16 %v5532, %v5531
        %v5558 = vpack.c.b16 %v5534, %v5533
        %v5559 = vpack.c.b16 %v5536, %v5535
        %v5560 = vpack.c.b16 %v5538, %v5537
        %v5561 = vpack.c.b16 %v5540, %v5539
        %v5562 = vpack.c.b16 %v5542, %v5541
        %v5563 = vpack.c.b16 %v5544, %v5543
        %v5564 = vpack.c.b16 %v5546, %v5545
        %v5565 = vpack.c.b16 %v5548, %v5547
        %v5566 = vpack.c.b16 %v5550, %v5549
        %v5583 = vunpack.c.l.b16 %v4513
        %v5584 = vunpack.c.l.b16 %v4516
        %v5585 = vunpack.c.l.b16 %v4520
        %v5586 = vunpack.c.l.b16 %v4523
        %v5587 = vunpack.c.l.b16 %v4527
        %v5588 = vunpack.c.l.b16 %v4530
        %v5589 = vunpack.c.l.b16 %v4534
        %v5590 = vunpack.c.l.b16 %v4537
        %v5591 = vunpack.c.l.b16 %v4541
        %v5592 = vunpack.c.l.b16 %v4544
        %v5593 = vunpack.c.l.b16 %v4548
        %v5594 = vunpack.c.l.b16 %v4551
        %v5595 = vunpack.c.l.b16 %v4555
        %v5596 = vunpack.c.l.b16 %v4558
        %v5597 = vunpack.c.l.b16 %v4562
        %v5598 = vunpack.c.l.b16 %v4565
        %v5599 = vunpack.c.l.b16 %v4569
        %v5600 = vunpack.c.l.b16 %v4572
        %v5601 = vunpack.c.l.b16 %v4576
        %v5602 = vunpack.c.l.b16 %v4579
        %v5603 = vunpack.c.l.b16 %v4583
        %v5604 = vunpack.c.l.b16 %v4586
        %v5605 = vunpack.c.l.b16 %v4590
        %v5606 = vunpack.c.l.b16 %v4593
        %v5607 = vunpack.c.l.b16 %v4597
        %v5608 = vunpack.c.l.b16 %v4600
        %v5609 = vunpack.c.l.b16 %v4604
        %v5610 = vunpack.c.l.b16 %v4607
        %v5611 = vunpack.c.l.b16 %v4611
        %v5612 = vunpack.c.l.b16 %v4614
        %v5613 = vunpack.c.l.b16 %v4618
        %v5614 = vunpack.c.l.b16 %v4621
        %v5615 = vpack.c.b16 %v5584, %v5583
        %v5616 = vpack.c.b16 %v5586, %v5585
        %v5617 = vpack.c.b16 %v5588, %v5587
        %v5618 = vpack.c.b16 %v5590, %v5589
        %v5619 = vpack.c.b16 %v5592, %v5591
        %v5620 = vpack.c.b16 %v5594, %v5593
        %v5621 = vpack.c.b16 %v5596, %v5595
        %v5622 = vpack.c.b16 %v5598, %v5597
        %v5623 = vpack.c.b16 %v5600, %v5599
        %v5624 = vpack.c.b16 %v5602, %v5601
        %v5625 = vpack.c.b16 %v5604, %v5603
        %v5626 = vpack.c.b16 %v5606, %v5605
        %v5627 = vpack.c.b16 %v5608, %v5607
        %v5628 = vpack.c.b16 %v5610, %v5609
        %v5629 = vpack.c.b16 %v5612, %v5611
        %v5630 = vpack.c.b16 %v5614, %v5613
        %v5663 = vunpack.c.l.b16 %v4623
        %v5664 = vunpack.c.l.b16 %v4624
        %v5665 = vunpack.c.l.b16 %v4625
        %v5666 = vunpack.c.l.b16 %v4626
        %v5667 = vunpack.c.l.b16 %v4627
        %v5668 = vunpack.c.l.b16 %v4628
        %v5669 = vunpack.c.l.b16 %v4629
        %v5670 = vunpack.c.l.b16 %v4630
        %v5671 = vunpack.c.l.b16 %v4631
        %v5672 = vunpack.c.l.b16 %v4632
        %v5673 = vunpack.c.l.b16 %v4633
        %v5674 = vunpack.c.l.b16 %v4634
        %v5675 = vunpack.c.l.b16 %v4635
        %v5676 = vunpack.c.l.b16 %v4636
        %v5677 = vunpack.c.l.b16 %v4637
        %v5678 = vunpack.c.l.b16 %v4638
        %v5679 = vunpack.c.l.b16 %v4639
        %v5680 = vunpack.c.l.b16 %v4640
        %v5681 = vunpack.c.l.b16 %v4641
        %v5682 = vunpack.c.l.b16 %v4642
        %v5683 = vunpack.c.l.b16 %v4643
        %v5684 = vunpack.c.l.b16 %v4644
        %v5685 = vunpack.c.l.b16 %v4645
        %v5686 = vunpack.c.l.b16 %v4646
        %v5687 = vunpack.c.l.b16 %v4647
        %v5688 = vunpack.c.l.b16 %v4648
        %v5689 = vunpack.c.l.b16 %v4649
        %v5690 = vunpack.c.l.b16 %v4650
        %v5691 = vunpack.c.l.b16 %v4651
        %v5692 = vunpack.c.l.b16 %v4652
        %v5693 = vunpack.c.l.b16 %v4653
        %v5694 = vunpack.c.l.b16 %v4654
        %v5695 = vpack.c.b16 %v5664, %v5663
        %v5696 = vpack.c.b16 %v5666, %v5665
        %v5697 = vpack.c.b16 %v5668, %v5667
        %v5698 = vpack.c.b16 %v5670, %v5669
        %v5699 = vpack.c.b16 %v5672, %v5671
        %v5700 = vpack.c.b16 %v5674, %v5673
        %v5701 = vpack.c.b16 %v5676, %v5675
        %v5702 = vpack.c.b16 %v5678, %v5677
        %v5703 = vpack.c.b16 %v5680, %v5679
        %v5704 = vpack.c.b16 %v5682, %v5681
        %v5705 = vpack.c.b16 %v5684, %v5683
        %v5706 = vpack.c.b16 %v5686, %v5685
        %v5707 = vpack.c.b16 %v5688, %v5687
        %v5708 = vpack.c.b16 %v5690, %v5689
        %v5709 = vpack.c.b16 %v5692, %v5691
        %v5710 = vpack.c.b16 %v5694, %v5693
        %v5727 = vunpack.c.l.b16 %v4684
        %v5728 = vunpack.c.l.b16 %v4694
        %v5729 = vunpack.c.l.b16 %v4708
        %v5730 = vunpack.c.l.b16 %v4718
        %v5731 = vunpack.c.l.b16 %v4732
        %v5732 = vunpack.c.l.b16 %v4742
        %v5733 = vunpack.c.l.b16 %v4756
        %v5734 = vunpack.c.l.b16 %v4766
        %v5735 = vunpack.c.l.b16 %v4780
        %v5736 = vunpack.c.l.b16 %v4790
        %v5737 = vunpack.c.l.b16 %v4804
        %v5738 = vunpack.c.l.b16 %v4814
        %v5739 = vunpack.c.l.b16 %v4828
        %v5740 = vunpack.c.l.b16 %v4838
        %v5741 = vunpack.c.l.b16 %v4852
        %v5742 = vunpack.c.l.b16 %v4862
        %v5743 = vunpack.c.l.b16 %v4876
        %v5744 = vunpack.c.l.b16 %v4886
        %v5745 = vunpack.c.l.b16 %v4900
        %v5746 = vunpack.c.l.b16 %v4910
        %v5747 = vunpack.c.l.b16 %v4924
        %v5748 = vunpack.c.l.b16 %v4934
        %v5749 = vunpack.c.l.b16 %v4948
        %v5750 = vunpack.c.l.b16 %v4958
        %v5751 = vunpack.c.l.b16 %v4972
        %v5752 = vunpack.c.l.b16 %v4982
        %v5753 = vunpack.c.l.b16 %v4996
        %v5754 = vunpack.c.l.b16 %v5006
        %v5755 = vunpack.c.l.b16 %v5020
        %v5756 = vunpack.c.l.b16 %v5030
        %v5757 = vunpack.c.l.b16 %v5044
        %v5758 = vunpack.c.l.b16 %v5054
        %v5759 = vpack.c.b16 %v5728, %v5727
        %v5760 = vpack.c.b16 %v5730, %v5729
        %v5761 = vpack.c.b16 %v5732, %v5731
        %v5762 = vpack.c.b16 %v5734, %v5733
        %v5763 = vpack.c.b16 %v5736, %v5735
        %v5764 = vpack.c.b16 %v5738, %v5737
        %v5765 = vpack.c.b16 %v5740, %v5739
        %v5766 = vpack.c.b16 %v5742, %v5741
        %v5767 = vpack.c.b16 %v5744, %v5743
        %v5768 = vpack.c.b16 %v5746, %v5745
        %v5769 = vpack.c.b16 %v5748, %v5747
        %v5770 = vpack.c.b16 %v5750, %v5749
        %v5771 = vpack.c.b16 %v5752, %v5751
        %v5772 = vpack.c.b16 %v5754, %v5753
        %v5773 = vpack.c.b16 %v5756, %v5755
        %v5774 = vpack.c.b16 %v5758, %v5757
        %v5791 = vunpack.c.l.b16 %v5122
        %v5792 = vunpack.c.l.b16 %v5125
        %v5793 = vunpack.c.l.b16 %v5129
        %v5794 = vunpack.c.l.b16 %v5132
        %v5795 = vunpack.c.l.b16 %v5136
        %v5796 = vunpack.c.l.b16 %v5139
        %v5797 = vunpack.c.l.b16 %v5143
        %v5798 = vunpack.c.l.b16 %v5146
        %v5799 = vunpack.c.l.b16 %v5150
        %v5800 = vunpack.c.l.b16 %v5153
        %v5801 = vunpack.c.l.b16 %v5157
        %v5802 = vunpack.c.l.b16 %v5160
        %v5803 = vunpack.c.l.b16 %v5164
        %v5804 = vunpack.c.l.b16 %v5167
        %v5805 = vunpack.c.l.b16 %v5171
        %v5806 = vunpack.c.l.b16 %v5174
        %v5807 = vunpack.c.l.b16 %v5178
        %v5808 = vunpack.c.l.b16 %v5181
        %v5809 = vunpack.c.l.b16 %v5185
        %v5810 = vunpack.c.l.b16 %v5188
        %v5811 = vunpack.c.l.b16 %v5192
        %v5812 = vunpack.c.l.b16 %v5195
        %v5813 = vunpack.c.l.b16 %v5199
        %v5814 = vunpack.c.l.b16 %v5202
        %v5815 = vunpack.c.l.b16 %v5206
        %v5816 = vunpack.c.l.b16 %v5209
        %v5817 = vunpack.c.l.b16 %v5213
        %v5818 = vunpack.c.l.b16 %v5216
        %v5819 = vunpack.c.l.b16 %v5220
        %v5820 = vunpack.c.l.b16 %v5223
        %v5821 = vunpack.c.l.b16 %v5227
        %v5822 = vunpack.c.l.b16 %v5230
        %v5823 = vpack.c.b16 %v5792, %v5791
        %v5824 = vpack.c.b16 %v5794, %v5793
        %v5825 = vpack.c.b16 %v5796, %v5795
        %v5826 = vpack.c.b16 %v5798, %v5797
        %v5827 = vpack.c.b16 %v5800, %v5799
        %v5828 = vpack.c.b16 %v5802, %v5801
        %v5829 = vpack.c.b16 %v5804, %v5803
        %v5830 = vpack.c.b16 %v5806, %v5805
        %v5831 = vpack.c.b16 %v5808, %v5807
        %v5832 = vpack.c.b16 %v5810, %v5809
        %v5833 = vpack.c.b16 %v5812, %v5811
        %v5834 = vpack.c.b16 %v5814, %v5813
        %v5835 = vpack.c.b16 %v5816, %v5815
        %v5836 = vpack.c.b16 %v5818, %v5817
        %v5837 = vpack.c.b16 %v5820, %v5819
        %v5838 = vpack.c.b16 %v5822, %v5821
        %v5855 = vld [vmem:[#allocation3] sm:$0xf]
        %v5856 = vld [vmem:[#allocation3 + $0x4] sm:$0xf]
        %v5857 = vld [vmem:[#allocation3 + $0x8] sm:$0xf]
        %v5858 = vld [vmem:[#allocation3 + $0xc] sm:$0xf]
        %v5859 = vld [vmem:[#allocation3 + $0x10] sm:$0xf]
        %v5860 = vld [vmem:[#allocation3 + $0x14] sm:$0xf]
        %v5861 = vld [vmem:[#allocation3 + $0x18] sm:$0xf]
        %v5862 = vld [vmem:[#allocation3 + $0x1c] sm:$0xf]
        %v5863 = vld [vmem:[#allocation3 + $0x20] sm:$0xf]
        %v5864 = vld [vmem:[#allocation3 + $0x24] sm:$0xf]
        %v5865 = vld [vmem:[#allocation3 + $0x28] sm:$0xf]
        %v5866 = vld [vmem:[#allocation3 + $0x2c] sm:$0xf]
        %v5867 = vld [vmem:[#allocation3 + $0x30] sm:$0xf]
        %v5868 = vld [vmem:[#allocation3 + $0x34] sm:$0xf]
        %v5869 = vld [vmem:[#allocation3 + $0x38] sm:$0xf]
        %v5870 = vld [vmem:[#allocation3 + $0x3c] sm:$0xf]
        %v5871 = vld [vmem:[#allocation3 + $0x40] sm:$0xf]
        %v5872 = vld [vmem:[#allocation3 + $0x44] sm:$0xf]
        %v5873 = vld [vmem:[#allocation3 + $0x48] sm:$0xf]
        %v5874 = vld [vmem:[#allocation3 + $0x4c] sm:$0xf]
        %v5875 = vld [vmem:[#allocation3 + $0x50] sm:$0xf]
        %v5876 = vld [vmem:[#allocation3 + $0x54] sm:$0xf]
        %v5877 = vld [vmem:[#allocation3 + $0x58] sm:$0xf]
        %v5878 = vld [vmem:[#allocation3 + $0x5c] sm:$0xf]
        %v5879 = vld [vmem:[#allocation3 + $0x60] sm:$0xf]
        %v5880 = vld [vmem:[#allocation3 + $0x64] sm:$0xf]
        %v5881 = vld [vmem:[#allocation3 + $0x68] sm:$0xf]
        %v5882 = vld [vmem:[#allocation3 + $0x6c] sm:$0xf]
        %v5883 = vld [vmem:[#allocation3 + $0x70] sm:$0xf]
        %v5884 = vld [vmem:[#allocation3 + $0x74] sm:$0xf]
        %v5885 = vld [vmem:[#allocation3 + $0x78] sm:$0xf]
        %v5886 = vld [vmem:[#allocation3 + $0x7c] sm:$0xf]
        %v5887 = vld [vmem:[#allocation3 + $0x80] sm:$0xf]
        %v5888 = vld [vmem:[#allocation3 + $0x84] sm:$0xf]
        %v5889 = vld [vmem:[#allocation3 + $0x88] sm:$0xf]
        %v5890 = vld [vmem:[#allocation3 + $0x8c] sm:$0xf]
        %v5891 = vld [vmem:[#allocation3 + $0x90] sm:$0xf]
        %v5892 = vld [vmem:[#allocation3 + $0x94] sm:$0xf]
        %v5893 = vld [vmem:[#allocation3 + $0x98] sm:$0xf]
        %v5894 = vld [vmem:[#allocation3 + $0x9c] sm:$0xf]
        %v5895 = vld [vmem:[#allocation3 + $0xa0] sm:$0xf]
        %v5896 = vld [vmem:[#allocation3 + $0xa4] sm:$0xf]
        %v5897 = vld [vmem:[#allocation3 + $0xa8] sm:$0xf]
        %v5898 = vld [vmem:[#allocation3 + $0xac] sm:$0xf]
        %v5899 = vld [vmem:[#allocation3 + $0xb0] sm:$0xf]
        %v5900 = vld [vmem:[#allocation3 + $0xb4] sm:$0xf]
        %v5901 = vld [vmem:[#allocation3 + $0xb8] sm:$0xf]
        %v5902 = vld [vmem:[#allocation3 + $0xbc] sm:$0xf]
        %v5903 = vld [vmem:[#allocation3 + $0xc0] sm:$0xf]
        %v5904 = vld [vmem:[#allocation3 + $0xc4] sm:$0xf]
        %v5905 = vld [vmem:[#allocation3 + $0xc8] sm:$0xf]
        %v5906 = vld [vmem:[#allocation3 + $0xcc] sm:$0xf]
        %v5907 = vld [vmem:[#allocation3 + $0xd0] sm:$0xf]
        %v5908 = vld [vmem:[#allocation3 + $0xd4] sm:$0xf]
        %v5909 = vld [vmem:[#allocation3 + $0xd8] sm:$0xf]
        %v5910 = vld [vmem:[#allocation3 + $0xdc] sm:$0xf]
        %v5911 = vld [vmem:[#allocation3 + $0xe0] sm:$0xf]
        %v5912 = vld [vmem:[#allocation3 + $0xe4] sm:$0xf]
        %v5913 = vld [vmem:[#allocation3 + $0xe8] sm:$0xf]
        %v5914 = vld [vmem:[#allocation3 + $0xec] sm:$0xf]
        %v5915 = vld [vmem:[#allocation3 + $0xf0] sm:$0xf]
        %v5916 = vld [vmem:[#allocation3 + $0xf4] sm:$0xf]
        %v5917 = vld [vmem:[#allocation3 + $0xf8] sm:$0xf]
        %v5918 = vld [vmem:[#allocation3 + $0xfc] sm:$0xf]
        %v5919 = vld [vmem:[#allocation3 + $0x100] sm:$0xf]
        %v5920 = vld [vmem:[#allocation3 + $0x104] sm:$0xf]
        %v5921 = vld [vmem:[#allocation3 + $0x108] sm:$0xf]
        %v5922 = vld [vmem:[#allocation3 + $0x10c] sm:$0xf]
        %v5923 = vld [vmem:[#allocation3 + $0x110] sm:$0xf]
        %v5924 = vld [vmem:[#allocation3 + $0x114] sm:$0xf]
        %v5925 = vld [vmem:[#allocation3 + $0x118] sm:$0xf]
        %v5926 = vld [vmem:[#allocation3 + $0x11c] sm:$0xf]
        %v5927 = vld [vmem:[#allocation3 + $0x120] sm:$0xf]
        %v5928 = vld [vmem:[#allocation3 + $0x124] sm:$0xf]
        %v5929 = vld [vmem:[#allocation3 + $0x128] sm:$0xf]
        %v5930 = vld [vmem:[#allocation3 + $0x12c] sm:$0xf]
        %v5931 = vld [vmem:[#allocation3 + $0x130] sm:$0xf]
        %v5932 = vld [vmem:[#allocation3 + $0x134] sm:$0xf]
        %v5933 = vld [vmem:[#allocation3 + $0x138] sm:$0xf]
        %v5934 = vld [vmem:[#allocation3 + $0x13c] sm:$0xf]
        %v5935 = vld [vmem:[#allocation3 + $0x140] sm:$0xf]
        %v5936 = vld [vmem:[#allocation3 + $0x144] sm:$0xf]
        %v5937 = vld [vmem:[#allocation3 + $0x148] sm:$0xf]
        %v5938 = vld [vmem:[#allocation3 + $0x14c] sm:$0xf]
        %v5939 = vld [vmem:[#allocation3 + $0x150] sm:$0xf]
        %v5940 = vld [vmem:[#allocation3 + $0x154] sm:$0xf]
        %v5941 = vld [vmem:[#allocation3 + $0x158] sm:$0xf]
        %v5942 = vld [vmem:[#allocation3 + $0x15c] sm:$0xf]
        %v5943 = vld [vmem:[#allocation3 + $0x160] sm:$0xf]
        %v5944 = vld [vmem:[#allocation3 + $0x164] sm:$0xf]
        %v5945 = vld [vmem:[#allocation3 + $0x168] sm:$0xf]
        %v5946 = vld [vmem:[#allocation3 + $0x16c] sm:$0xf]
        %v5947 = vld [vmem:[#allocation3 + $0x170] sm:$0xf]
        %v5948 = vld [vmem:[#allocation3 + $0x174] sm:$0xf]
        %v5949 = vld [vmem:[#allocation3 + $0x178] sm:$0xf]
        %v5950 = vld [vmem:[#allocation3 + $0x17c] sm:$0xf]
        %v5951 = vld [vmem:[#allocation3 + $0x180] sm:$0xf]
        %v5952 = vld [vmem:[#allocation3 + $0x184] sm:$0xf]
        %v5953 = vld [vmem:[#allocation3 + $0x188] sm:$0xf]
        %v5954 = vld [vmem:[#allocation3 + $0x18c] sm:$0xf]
        %v5955 = vld [vmem:[#allocation3 + $0x190] sm:$0xf]
        %v5956 = vld [vmem:[#allocation3 + $0x194] sm:$0xf]
        %v5957 = vld [vmem:[#allocation3 + $0x198] sm:$0xf]
        %v5958 = vld [vmem:[#allocation3 + $0x19c] sm:$0xf]
        %v5959 = vld [vmem:[#allocation3 + $0x1a0] sm:$0xf]
        %v5960 = vld [vmem:[#allocation3 + $0x1a4] sm:$0xf]
        %v5961 = vld [vmem:[#allocation3 + $0x1a8] sm:$0xf]
        %v5962 = vld [vmem:[#allocation3 + $0x1ac] sm:$0xf]
        %v5963 = vld [vmem:[#allocation3 + $0x1b0] sm:$0xf]
        %v5964 = vld [vmem:[#allocation3 + $0x1b4] sm:$0xf]
        %v5965 = vld [vmem:[#allocation3 + $0x1b8] sm:$0xf]
        %v5966 = vld [vmem:[#allocation3 + $0x1bc] sm:$0xf]
        %v5967 = vld [vmem:[#allocation3 + $0x1c0] sm:$0xf]
        %v5968 = vld [vmem:[#allocation3 + $0x1c4] sm:$0xf]
        %v5969 = vld [vmem:[#allocation3 + $0x1c8] sm:$0xf]
        %v5970 = vld [vmem:[#allocation3 + $0x1cc] sm:$0xf]
        %v5971 = vld [vmem:[#allocation3 + $0x1d0] sm:$0xf]
        %v5972 = vld [vmem:[#allocation3 + $0x1d4] sm:$0xf]
        %v5973 = vld [vmem:[#allocation3 + $0x1d8] sm:$0xf]
        %v5974 = vld [vmem:[#allocation3 + $0x1dc] sm:$0xf]
        %v5975 = vld [vmem:[#allocation3 + $0x1e0] sm:$0xf]
        %v5976 = vld [vmem:[#allocation3 + $0x1e4] sm:$0xf]
        %v5977 = vld [vmem:[#allocation3 + $0x1e8] sm:$0xf]
        %v5978 = vld [vmem:[#allocation3 + $0x1ec] sm:$0xf]
        %v5979 = vld [vmem:[#allocation3 + $0x1f0] sm:$0xf]
        %v5980 = vld [vmem:[#allocation3 + $0x1f4] sm:$0xf]
        %v5981 = vld [vmem:[#allocation3 + $0x1f8] sm:$0xf]
        %v5982 = vld [vmem:[#allocation3 + $0x1fc] sm:$0xf]
        %v5983 = vld [vmem:[#allocation3 + $0x200] sm:$0xf]
        %v5984 = vld [vmem:[#allocation3 + $0x204] sm:$0xf]
        %v5985 = vld [vmem:[#allocation3 + $0x208] sm:$0xf]
        %v5986 = vld [vmem:[#allocation3 + $0x20c] sm:$0xf]
        %v5987 = vld [vmem:[#allocation3 + $0x210] sm:$0xf]
        %v5988 = vld [vmem:[#allocation3 + $0x214] sm:$0xf]
        %v5989 = vld [vmem:[#allocation3 + $0x218] sm:$0xf]
        %v5990 = vld [vmem:[#allocation3 + $0x21c] sm:$0xf]
        %v5991 = vld [vmem:[#allocation3 + $0x220] sm:$0xf]
        %v5992 = vld [vmem:[#allocation3 + $0x224] sm:$0xf]
        %v5993 = vld [vmem:[#allocation3 + $0x228] sm:$0xf]
        %v5994 = vld [vmem:[#allocation3 + $0x22c] sm:$0xf]
        %v5995 = vld [vmem:[#allocation3 + $0x230] sm:$0xf]
        %v5996 = vld [vmem:[#allocation3 + $0x234] sm:$0xf]
        %v5997 = vld [vmem:[#allocation3 + $0x238] sm:$0xf]
        %v5998 = vld [vmem:[#allocation3 + $0x23c] sm:$0xf]
        %v6143 = vunpack.c.l.b16 %v5855
        %v6144 = vunpack.c.l.b16 %v5856
        %v6145 = vunpack.c.l.b16 %v5857
        %v6146 = vunpack.c.l.b16 %v5858
        %v6147 = vunpack.c.l.b16 %v5859
        %v6148 = vunpack.c.l.b16 %v5860
        %v6149 = vunpack.c.l.b16 %v5861
        %v6150 = vunpack.c.l.b16 %v5862
        %v6151 = vunpack.c.l.b16 %v5863
        %v6152 = vunpack.c.l.b16 %v5864
        %v6153 = vunpack.c.l.b16 %v5865
        %v6154 = vunpack.c.l.b16 %v5866
        %v6155 = vunpack.c.l.b16 %v5867
        %v6156 = vunpack.c.l.b16 %v5868
        %v6157 = vunpack.c.l.b16 %v5869
        %v6158 = vunpack.c.l.b16 %v5870
        %v6159 = vunpack.c.l.b16 %v5871
        %v6160 = vunpack.c.l.b16 %v5872
        %v6161 = vunpack.c.l.b16 %v5873
        %v6162 = vunpack.c.l.b16 %v5874
        %v6163 = vunpack.c.l.b16 %v5875
        %v6164 = vunpack.c.l.b16 %v5876
        %v6165 = vunpack.c.l.b16 %v5877
        %v6166 = vunpack.c.l.b16 %v5878
        %v6167 = vunpack.c.l.b16 %v5879
        %v6168 = vunpack.c.l.b16 %v5880
        %v6169 = vunpack.c.l.b16 %v5881
        %v6170 = vunpack.c.l.b16 %v5882
        %v6171 = vunpack.c.l.b16 %v5883
        %v6172 = vunpack.c.l.b16 %v5884
        %v6173 = vunpack.c.l.b16 %v5885
        %v6174 = vunpack.c.l.b16 %v5886
        %v6175 = vunpack.c.l.b16 %v5887
        %v6176 = vunpack.c.l.b16 %v5888
        %v6177 = vunpack.c.l.b16 %v5889
        %v6178 = vunpack.c.l.b16 %v5890
        %v6179 = vunpack.c.l.b16 %v5891
        %v6180 = vunpack.c.l.b16 %v5892
        %v6181 = vunpack.c.l.b16 %v5893
        %v6182 = vunpack.c.l.b16 %v5894
        %v6183 = vunpack.c.l.b16 %v5895
        %v6184 = vunpack.c.l.b16 %v5896
        %v6185 = vunpack.c.l.b16 %v5897
        %v6186 = vunpack.c.l.b16 %v5898
        %v6187 = vunpack.c.l.b16 %v5899
        %v6188 = vunpack.c.l.b16 %v5900
        %v6189 = vunpack.c.l.b16 %v5901
        %v6190 = vunpack.c.l.b16 %v5902
        %v6191 = vunpack.c.l.b16 %v5903
        %v6192 = vunpack.c.l.b16 %v5904
        %v6193 = vunpack.c.l.b16 %v5905
        %v6194 = vunpack.c.l.b16 %v5906
        %v6195 = vunpack.c.l.b16 %v5907
        %v6196 = vunpack.c.l.b16 %v5908
        %v6197 = vunpack.c.l.b16 %v5909
        %v6198 = vunpack.c.l.b16 %v5910
        %v6199 = vunpack.c.l.b16 %v5911
        %v6200 = vunpack.c.l.b16 %v5912
        %v6201 = vunpack.c.l.b16 %v5913
        %v6202 = vunpack.c.l.b16 %v5914
        %v6203 = vunpack.c.l.b16 %v5915
        %v6204 = vunpack.c.l.b16 %v5916
        %v6205 = vunpack.c.l.b16 %v5917
        %v6206 = vunpack.c.l.b16 %v5918
        %v6207 = vunpack.c.l.b16 %v5919
        %v6208 = vunpack.c.l.b16 %v5920
        %v6209 = vunpack.c.l.b16 %v5921
        %v6210 = vunpack.c.l.b16 %v5922
        %v6211 = vunpack.c.l.b16 %v5923
        %v6212 = vunpack.c.l.b16 %v5924
        %v6213 = vunpack.c.l.b16 %v5925
        %v6214 = vunpack.c.l.b16 %v5926
        %v6215 = vunpack.c.l.b16 %v5927
        %v6216 = vunpack.c.l.b16 %v5928
        %v6217 = vunpack.c.l.b16 %v5929
        %v6218 = vunpack.c.l.b16 %v5930
        %v6219 = vunpack.c.l.b16 %v5931
        %v6220 = vunpack.c.l.b16 %v5932
        %v6221 = vunpack.c.l.b16 %v5933
        %v6222 = vunpack.c.l.b16 %v5934
        %v6223 = vunpack.c.l.b16 %v5935
        %v6224 = vunpack.c.l.b16 %v5936
        %v6225 = vunpack.c.l.b16 %v5937
        %v6226 = vunpack.c.l.b16 %v5938
        %v6227 = vunpack.c.l.b16 %v5939
        %v6228 = vunpack.c.l.b16 %v5940
        %v6229 = vunpack.c.l.b16 %v5941
        %v6230 = vunpack.c.l.b16 %v5942
        %v6231 = vunpack.c.l.b16 %v5943
        %v6232 = vunpack.c.l.b16 %v5944
        %v6233 = vunpack.c.l.b16 %v5945
        %v6234 = vunpack.c.l.b16 %v5946
        %v6235 = vunpack.c.l.b16 %v5947
        %v6236 = vunpack.c.l.b16 %v5948
        %v6237 = vunpack.c.l.b16 %v5949
        %v6238 = vunpack.c.l.b16 %v5950
        %v6239 = vunpack.c.l.b16 %v5951
        %v6240 = vunpack.c.l.b16 %v5952
        %v6241 = vunpack.c.l.b16 %v5953
        %v6242 = vunpack.c.l.b16 %v5954
        %v6243 = vunpack.c.l.b16 %v5955
        %v6244 = vunpack.c.l.b16 %v5956
        %v6245 = vunpack.c.l.b16 %v5957
        %v6246 = vunpack.c.l.b16 %v5958
        %v6247 = vunpack.c.l.b16 %v5959
        %v6248 = vunpack.c.l.b16 %v5960
        %v6249 = vunpack.c.l.b16 %v5961
        %v6250 = vunpack.c.l.b16 %v5962
        %v6251 = vunpack.c.l.b16 %v5963
        %v6252 = vunpack.c.l.b16 %v5964
        %v6253 = vunpack.c.l.b16 %v5965
        %v6254 = vunpack.c.l.b16 %v5966
        %v6255 = vunpack.c.l.b16 %v5967
        %v6256 = vunpack.c.l.b16 %v5968
        %v6257 = vunpack.c.l.b16 %v5969
        %v6258 = vunpack.c.l.b16 %v5970
        %v6259 = vunpack.c.l.b16 %v5971
        %v6260 = vunpack.c.l.b16 %v5972
        %v6261 = vunpack.c.l.b16 %v5973
        %v6262 = vunpack.c.l.b16 %v5974
        %v6263 = vunpack.c.l.b16 %v5975
        %v6264 = vunpack.c.l.b16 %v5976
        %v6265 = vunpack.c.l.b16 %v5977
        %v6266 = vunpack.c.l.b16 %v5978
        %v6267 = vunpack.c.l.b16 %v5979
        %v6268 = vunpack.c.l.b16 %v5980
        %v6269 = vunpack.c.l.b16 %v5981
        %v6270 = vunpack.c.l.b16 %v5982
        %v6271 = vunpack.c.l.b16 %v5983
        %v6272 = vunpack.c.l.b16 %v5984
        %v6273 = vunpack.c.l.b16 %v5985
        %v6274 = vunpack.c.l.b16 %v5986
        %v6275 = vunpack.c.l.b16 %v5987
        %v6276 = vunpack.c.l.b16 %v5988
        %v6277 = vunpack.c.l.b16 %v5989
        %v6278 = vunpack.c.l.b16 %v5990
        %v6279 = vunpack.c.l.b16 %v5991
        %v6280 = vunpack.c.l.b16 %v5992
        %v6281 = vunpack.c.l.b16 %v5993
        %v6282 = vunpack.c.l.b16 %v5994
        %v6283 = vunpack.c.l.b16 %v5995
        %v6284 = vunpack.c.l.b16 %v5996
        %v6285 = vunpack.c.l.b16 %v5997
        %v6286 = vunpack.c.l.b16 %v5998
        %v6287 = vpack.c.b16 %v6144, %v6143
        %v6288 = vpack.c.b16 %v6146, %v6145
        %v6289 = vpack.c.b16 %v6148, %v6147
        %v6290 = vpack.c.b16 %v6150, %v6149
        %v6291 = vpack.c.b16 %v6152, %v6151
        %v6292 = vpack.c.b16 %v6154, %v6153
        %v6293 = vpack.c.b16 %v6156, %v6155
        %v6294 = vpack.c.b16 %v6158, %v6157
        %v6295 = vpack.c.b16 %v6160, %v6159
        %v6296 = vpack.c.b16 %v6162, %v6161
        %v6297 = vpack.c.b16 %v6164, %v6163
        %v6298 = vpack.c.b16 %v6166, %v6165
        %v6299 = vpack.c.b16 %v6168, %v6167
        %v6300 = vpack.c.b16 %v6170, %v6169
        %v6301 = vpack.c.b16 %v6172, %v6171
        %v6302 = vpack.c.b16 %v6174, %v6173
        %v6303 = vpack.c.b16 %v6176, %v6175
        %v6304 = vpack.c.b16 %v6178, %v6177
        %v6305 = vpack.c.b16 %v6180, %v6179
        %v6306 = vpack.c.b16 %v6182, %v6181
        %v6307 = vpack.c.b16 %v6184, %v6183
        %v6308 = vpack.c.b16 %v6186, %v6185
        %v6309 = vpack.c.b16 %v6188, %v6187
        %v6310 = vpack.c.b16 %v6190, %v6189
        %v6311 = vpack.c.b16 %v6192, %v6191
        %v6312 = vpack.c.b16 %v6194, %v6193
        %v6313 = vpack.c.b16 %v6196, %v6195
        %v6314 = vpack.c.b16 %v6198, %v6197
        %v6315 = vpack.c.b16 %v6200, %v6199
        %v6316 = vpack.c.b16 %v6202, %v6201
        %v6317 = vpack.c.b16 %v6204, %v6203
        %v6318 = vpack.c.b16 %v6206, %v6205
        %v6319 = vpack.c.b16 %v6208, %v6207
        %v6320 = vpack.c.b16 %v6210, %v6209
        %v6321 = vpack.c.b16 %v6212, %v6211
        %v6322 = vpack.c.b16 %v6214, %v6213
        %v6323 = vpack.c.b16 %v6216, %v6215
        %v6324 = vpack.c.b16 %v6218, %v6217
        %v6325 = vpack.c.b16 %v6220, %v6219
        %v6326 = vpack.c.b16 %v6222, %v6221
        %v6327 = vpack.c.b16 %v6224, %v6223
        %v6328 = vpack.c.b16 %v6226, %v6225
        %v6329 = vpack.c.b16 %v6228, %v6227
        %v6330 = vpack.c.b16 %v6230, %v6229
        %v6331 = vpack.c.b16 %v6232, %v6231
        %v6332 = vpack.c.b16 %v6234, %v6233
        %v6333 = vpack.c.b16 %v6236, %v6235
        %v6334 = vpack.c.b16 %v6238, %v6237
        %v6335 = vpack.c.b16 %v6240, %v6239
        %v6336 = vpack.c.b16 %v6242, %v6241
        %v6337 = vpack.c.b16 %v6244, %v6243
        %v6338 = vpack.c.b16 %v6246, %v6245
        %v6339 = vpack.c.b16 %v6248, %v6247
        %v6340 = vpack.c.b16 %v6250, %v6249
        %v6341 = vpack.c.b16 %v6252, %v6251
        %v6342 = vpack.c.b16 %v6254, %v6253
        %v6343 = vpack.c.b16 %v6256, %v6255
        %v6344 = vpack.c.b16 %v6258, %v6257
        %v6345 = vpack.c.b16 %v6260, %v6259
        %v6346 = vpack.c.b16 %v6262, %v6261
        %v6347 = vpack.c.b16 %v6264, %v6263
        %v6348 = vpack.c.b16 %v6266, %v6265
        %v6349 = vpack.c.b16 %v6268, %v6267
        %v6350 = vpack.c.b16 %v6270, %v6269
        %v6351 = vpack.c.b16 %v6272, %v6271
        %v6352 = vpack.c.b16 %v6274, %v6273
        %v6353 = vpack.c.b16 %v6276, %v6275
        %v6354 = vpack.c.b16 %v6278, %v6277
        %v6355 = vpack.c.b16 %v6280, %v6279
        %v6356 = vpack.c.b16 %v6282, %v6281
        %v6357 = vpack.c.b16 %v6284, %v6283
        %v6358 = vpack.c.b16 %v6286, %v6285
        %6431 = vmatprep.subr.bf16.mxu0 0
        %6432 = vmatpush1.bf16.msra.mxu0 %v6294
        %6433 = vmatprep.subr.bf16.mxu0 0
        %6434 = vmatpush1.bf16.msra.mxu0 %v6293
        %6435 = vmatprep.subr.bf16.mxu0 0
        %6436 = vmatpush1.bf16.msra.mxu0 %v6292
        %6437 = vmatprep.subr.bf16.mxu0 0
        %6438 = vmatpush1.bf16.msra.mxu0 %v6291
        %6439 = vmatprep.subr.bf16.mxu0 0
        %6440 = vmatpush1.bf16.msra.mxu0 %v6290
        %6441 = vmatprep.subr.bf16.mxu0 0
        %6442 = vmatpush1.bf16.msra.mxu0 %v6289
        %6443 = vmatprep.subr.bf16.mxu0 0
        %6444 = vmatpush1.bf16.msra.mxu0 %v6288
        %6445 = vmatprep.subr.bf16.mxu0 0
        %6446 = vmatpush1.bf16.msra.mxu0 %v6287
        %6447 = vmatprep.subr.bf16.mxu0 0
        %6448 = vmatpush2.bf16.msra.mxu0 %v6302
        %6449 = vmatprep.subr.bf16.mxu0 0
        %6450 = vmatpush2.bf16.msra.mxu0 %v6301
        %6451 = vmatprep.subr.bf16.mxu0 0
        %6452 = vmatpush2.bf16.msra.mxu0 %v6300
        %6453 = vmatprep.subr.bf16.mxu0 0
        %6454 = vmatpush2.bf16.msra.mxu0 %v6299
        %6455 = vmatprep.subr.bf16.mxu0 0
        %6456 = vmatpush2.bf16.msra.mxu0 %v6298
        %6457 = vmatprep.subr.bf16.mxu0 0
        %6458 = vmatpush2.bf16.msra.mxu0 %v6297
        %6459 = vmatprep.subr.bf16.mxu0 0
        %6460 = vmatpush2.bf16.msra.mxu0 %v6296
        %6461 = vmatprep.subr.bf16.mxu0 0
        %6462 = vmatpush2.bf16.msra.mxu0 %v6295
        %6463 = vmatprep.mubr.bf16.mxu0 %v5343
        %6464 = vmatmul.mubr.bf16.gmra.mxu0 %v5279
        %v6465 = vpop.f32.mrf.mxu0
        %v6466 = vadd.f32 0.0, %v6465
        %v6467 = vpop.f32.mrf.mxu0
        %v6468 = vpop.f32.mrf.mxu0
        %v6469 = vadd.f32 0.0, %v6468
        %v6470 = vpop.f32.mrf.mxu0
        %6471 = vmatprep.mubr.bf16.mxu0 %v5344
        %6472 = vmatmul.mubr.bf16.gmra.mxu0 %v5280
        %v6473 = vpop.f32.mrf.mxu0
        %v6474 = vadd.f32 0.0, %v6473
        %v6475 = vpop.f32.mrf.mxu0
        %v6476 = vpop.f32.mrf.mxu0
        %v6477 = vadd.f32 0.0, %v6476
        %v6478 = vpop.f32.mrf.mxu0
        %6479 = vmatprep.mubr.bf16.mxu0 %v5345
        %6480 = vmatmul.mubr.bf16.gmra.mxu0 %v5281
        %v6481 = vpop.f32.mrf.mxu0
        %v6482 = vadd.f32 0.0, %v6481
        %v6483 = vpop.f32.mrf.mxu0
        %v6484 = vpop.f32.mrf.mxu0
        %v6485 = vadd.f32 0.0, %v6484
        %v6486 = vpop.f32.mrf.mxu0
        %6487 = vmatprep.mubr.bf16.mxu0 %v5346
        %6488 = vmatmul.mubr.bf16.gmra.mxu0 %v5282
        %v6489 = vpop.f32.mrf.mxu0
        %v6490 = vadd.f32 0.0, %v6489
        %v6491 = vpop.f32.mrf.mxu0
        %v6492 = vpop.f32.mrf.mxu0
        %v6493 = vadd.f32 0.0, %v6492
        %v6494 = vpop.f32.mrf.mxu0
        %6495 = vmatprep.mubr.bf16.mxu0 %v5347
        %6496 = vmatmul.mubr.bf16.gmra.mxu0 %v5283
        %v6497 = vpop.f32.mrf.mxu0
        %v6498 = vadd.f32 0.0, %v6497
        %v6499 = vpop.f32.mrf.mxu0
        %v6500 = vpop.f32.mrf.mxu0
        %v6501 = vadd.f32 0.0, %v6500
        %v6502 = vpop.f32.mrf.mxu0
        %6503 = vmatprep.mubr.bf16.mxu0 %v5348
        %6504 = vmatmul.mubr.bf16.gmra.mxu0 %v5284
        %v6505 = vpop.f32.mrf.mxu0
        %v6506 = vadd.f32 0.0, %v6505
        %v6507 = vpop.f32.mrf.mxu0
        %v6508 = vpop.f32.mrf.mxu0
        %v6509 = vadd.f32 0.0, %v6508
        %v6510 = vpop.f32.mrf.mxu0
        %6511 = vmatprep.mubr.bf16.mxu0 %v5349
        %6512 = vmatmul.mubr.bf16.gmra.mxu0 %v5285
        %v6513 = vpop.f32.mrf.mxu0
        %v6514 = vadd.f32 0.0, %v6513
        %v6515 = vpop.f32.mrf.mxu0
        %v6516 = vpop.f32.mrf.mxu0
        %v6517 = vadd.f32 0.0, %v6516
        %v6518 = vpop.f32.mrf.mxu0
        %6519 = vmatprep.mubr.bf16.mxu0 %v5350
        %6520 = vmatmul.mubr.bf16.gmra.mxu0 %v5286
        %v6521 = vpop.f32.mrf.mxu0
        %v6522 = vadd.f32 0.0, %v6521
        %v6523 = vpop.f32.mrf.mxu0
        %v6524 = vpop.f32.mrf.mxu0
        %v6525 = vadd.f32 0.0, %v6524
        %v6526 = vpop.f32.mrf.mxu0
        %6527 = vmatprep.mubr.bf16.mxu0 %v5351
        %6528 = vmatmul.mubr.bf16.gmra.mxu0 %v5287
        %v6529 = vpop.f32.mrf.mxu0
        %v6530 = vadd.f32 0.0, %v6529
        %v6531 = vpop.f32.mrf.mxu0
        %v6532 = vpop.f32.mrf.mxu0
        %v6533 = vadd.f32 0.0, %v6532
        %v6534 = vpop.f32.mrf.mxu0
        %6535 = vmatprep.mubr.bf16.mxu0 %v5352
        %6536 = vmatmul.mubr.bf16.gmra.mxu0 %v5288
        %v6537 = vpop.f32.mrf.mxu0
        %v6538 = vadd.f32 0.0, %v6537
        %v6539 = vpop.f32.mrf.mxu0
        %v6540 = vpop.f32.mrf.mxu0
        %v6541 = vadd.f32 0.0, %v6540
        %v6542 = vpop.f32.mrf.mxu0
        %6543 = vmatprep.mubr.bf16.mxu0 %v5353
        %6544 = vmatmul.mubr.bf16.gmra.mxu0 %v5289
        %v6545 = vpop.f32.mrf.mxu0
        %v6546 = vadd.f32 0.0, %v6545
        %v6547 = vpop.f32.mrf.mxu0
        %v6548 = vpop.f32.mrf.mxu0
        %v6549 = vadd.f32 0.0, %v6548
        %v6550 = vpop.f32.mrf.mxu0
        %6551 = vmatprep.mubr.bf16.mxu0 %v5354
        %6552 = vmatmul.mubr.bf16.gmra.mxu0 %v5290
        %v6553 = vpop.f32.mrf.mxu0
        %v6554 = vadd.f32 0.0, %v6553
        %v6555 = vpop.f32.mrf.mxu0
        %v6556 = vpop.f32.mrf.mxu0
        %v6557 = vadd.f32 0.0, %v6556
        %v6558 = vpop.f32.mrf.mxu0
        %6559 = vmatprep.mubr.bf16.mxu0 %v5355
        %6560 = vmatmul.mubr.bf16.gmra.mxu0 %v5291
        %v6561 = vpop.f32.mrf.mxu0
        %v6562 = vadd.f32 0.0, %v6561
        %v6563 = vpop.f32.mrf.mxu0
        %v6564 = vpop.f32.mrf.mxu0
        %v6565 = vadd.f32 0.0, %v6564
        %v6566 = vpop.f32.mrf.mxu0
        %6567 = vmatprep.mubr.bf16.mxu0 %v5356
        %6568 = vmatmul.mubr.bf16.gmra.mxu0 %v5292
        %v6569 = vpop.f32.mrf.mxu0
        %v6570 = vadd.f32 0.0, %v6569
        %v6571 = vpop.f32.mrf.mxu0
        %v6572 = vpop.f32.mrf.mxu0
        %v6573 = vadd.f32 0.0, %v6572
        %v6574 = vpop.f32.mrf.mxu0
        %6575 = vmatprep.mubr.bf16.mxu0 %v5357
        %6576 = vmatmul.mubr.bf16.gmra.mxu0 %v5293
        %v6577 = vpop.f32.mrf.mxu0
        %v6578 = vadd.f32 0.0, %v6577
        %v6579 = vpop.f32.mrf.mxu0
        %v6580 = vpop.f32.mrf.mxu0
        %v6581 = vadd.f32 0.0, %v6580
        %v6582 = vpop.f32.mrf.mxu0
        %6583 = vmatprep.mubr.bf16.mxu0 %v5358
        %6584 = vmatmul.mubr.bf16.gmra.mxu0 %v5294
        %v6585 = vpop.f32.mrf.mxu0
        %v6586 = vadd.f32 0.0, %v6585
        %v6587 = vpop.f32.mrf.mxu0
        %v6588 = vpop.f32.mrf.mxu0
        %v6589 = vadd.f32 0.0, %v6588
        %v6590 = vpop.f32.mrf.mxu0
        %6591 = vdwg.mxu0
        %6592 = vmatprep.subr.bf16.mxu0 0
        %6593 = vmatpush1.bf16.msra.mxu0 %v6310
        %6594 = vmatprep.subr.bf16.mxu0 0
        %6595 = vmatpush1.bf16.msra.mxu0 %v6309
        %6596 = vmatprep.subr.bf16.mxu0 0
        %6597 = vmatpush1.bf16.msra.mxu0 %v6308
        %6598 = vmatprep.subr.bf16.mxu0 0
        %6599 = vmatpush1.bf16.msra.mxu0 %v6307
        %6600 = vmatprep.subr.bf16.mxu0 0
        %6601 = vmatpush1.bf16.msra.mxu0 %v6306
        %6602 = vmatprep.subr.bf16.mxu0 0
        %6603 = vmatpush1.bf16.msra.mxu0 %v6305
        %6604 = vmatprep.subr.bf16.mxu0 0
        %6605 = vmatpush1.bf16.msra.mxu0 %v6304
        %6606 = vmatprep.subr.bf16.mxu0 0
        %6607 = vmatpush1.bf16.msra.mxu0 %v6303
        %6608 = vmatprep.subr.bf16.mxu0 0
        %6609 = vmatpush2.bf16.msra.mxu0 %v6318
        %6610 = vmatprep.subr.bf16.mxu0 0
        %6611 = vmatpush2.bf16.msra.mxu0 %v6317
        %6612 = vmatprep.subr.bf16.mxu0 0
        %6613 = vmatpush2.bf16.msra.mxu0 %v6316
        %6614 = vmatprep.subr.bf16.mxu0 0
        %6615 = vmatpush2.bf16.msra.mxu0 %v6315
        %6616 = vmatprep.subr.bf16.mxu0 0
        %6617 = vmatpush2.bf16.msra.mxu0 %v6314
        %6618 = vmatprep.subr.bf16.mxu0 0
        %6619 = vmatpush2.bf16.msra.mxu0 %v6313
        %6620 = vmatprep.subr.bf16.mxu0 0
        %6621 = vmatpush2.bf16.msra.mxu0 %v6312
        %6622 = vmatprep.subr.bf16.mxu0 0
        %6623 = vmatpush2.bf16.msra.mxu0 %v6311
        %6624 = vmatprep.mubr.bf16.mxu0 %v5487
        %6625 = vmatmul.mubr.bf16.gmra.mxu0 %v5407
        %v6626 = vpop.f32.mrf.mxu0
        %v6627 = vadd.f32 %v6466, %v6626
        %v6628 = vpop.f32.mrf.mxu0
        %v6629 = vpop.f32.mrf.mxu0
        %v6630 = vadd.f32 %v6469, %v6629
        %v6631 = vpop.f32.mrf.mxu0
        %6632 = vmatprep.mubr.bf16.mxu0 %v5488
        %6633 = vmatmul.mubr.bf16.gmra.mxu0 %v5408
        %v6634 = vpop.f32.mrf.mxu0
        %v6635 = vadd.f32 %v6474, %v6634
        %v6636 = vpop.f32.mrf.mxu0
        %v6637 = vpop.f32.mrf.mxu0
        %v6638 = vadd.f32 %v6477, %v6637
        %v6639 = vpop.f32.mrf.mxu0
        %6640 = vmatprep.mubr.bf16.mxu0 %v5489
        %6641 = vmatmul.mubr.bf16.gmra.mxu0 %v5409
        %v6642 = vpop.f32.mrf.mxu0
        %v6643 = vadd.f32 %v6482, %v6642
        %v6644 = vpop.f32.mrf.mxu0
        %v6645 = vpop.f32.mrf.mxu0
        %v6646 = vadd.f32 %v6485, %v6645
        %v6647 = vpop.f32.mrf.mxu0
        %6648 = vmatprep.mubr.bf16.mxu0 %v5490
        %6649 = vmatmul.mubr.bf16.gmra.mxu0 %v5410
        %v6650 = vpop.f32.mrf.mxu0
        %v6651 = vadd.f32 %v6490, %v6650
        %v6652 = vpop.f32.mrf.mxu0
        %v6653 = vpop.f32.mrf.mxu0
        %v6654 = vadd.f32 %v6493, %v6653
        %v6655 = vpop.f32.mrf.mxu0
        %6656 = vmatprep.mubr.bf16.mxu0 %v5491
        %6657 = vmatmul.mubr.bf16.gmra.mxu0 %v5411
        %v6658 = vpop.f32.mrf.mxu0
        %v6659 = vadd.f32 %v6498, %v6658
        %v6660 = vpop.f32.mrf.mxu0
        %v6661 = vpop.f32.mrf.mxu0
        %v6662 = vadd.f32 %v6501, %v6661
        %v6663 = vpop.f32.mrf.mxu0
        %6664 = vmatprep.mubr.bf16.mxu0 %v5492
        %6665 = vmatmul.mubr.bf16.gmra.mxu0 %v5412
        %v6666 = vpop.f32.mrf.mxu0
        %v6667 = vadd.f32 %v6506, %v6666
        %v6668 = vpop.f32.mrf.mxu0
        %v6669 = vpop.f32.mrf.mxu0
        %v6670 = vadd.f32 %v6509, %v6669
        %v6671 = vpop.f32.mrf.mxu0
        %6672 = vmatprep.mubr.bf16.mxu0 %v5493
        %6673 = vmatmul.mubr.bf16.gmra.mxu0 %v5413
        %v6674 = vpop.f32.mrf.mxu0
        %v6675 = vadd.f32 %v6514, %v6674
        %v6676 = vpop.f32.mrf.mxu0
        %v6677 = vpop.f32.mrf.mxu0
        %v6678 = vadd.f32 %v6517, %v6677
        %v6679 = vpop.f32.mrf.mxu0
        %6680 = vmatprep.mubr.bf16.mxu0 %v5494
        %6681 = vmatmul.mubr.bf16.gmra.mxu0 %v5414
        %v6682 = vpop.f32.mrf.mxu0
        %v6683 = vadd.f32 %v6522, %v6682
        %v6684 = vpop.f32.mrf.mxu0
        %v6685 = vpop.f32.mrf.mxu0
        %v6686 = vadd.f32 %v6525, %v6685
        %v6687 = vpop.f32.mrf.mxu0
        %6688 = vmatprep.mubr.bf16.mxu0 %v5495
        %6689 = vmatmul.mubr.bf16.gmra.mxu0 %v5415
        %v6690 = vpop.f32.mrf.mxu0
        %v6691 = vadd.f32 %v6530, %v6690
        %v6692 = vpop.f32.mrf.mxu0
        %v6693 = vpop.f32.mrf.mxu0
        %v6694 = vadd.f32 %v6533, %v6693
        %v6695 = vpop.f32.mrf.mxu0
        %6696 = vmatprep.mubr.bf16.mxu0 %v5496
        %6697 = vmatmul.mubr.bf16.gmra.mxu0 %v5416
        %v6698 = vpop.f32.mrf.mxu0
        %v6699 = vadd.f32 %v6538, %v6698
        %v6700 = vpop.f32.mrf.mxu0
        %v6701 = vpop.f32.mrf.mxu0
        %v6702 = vadd.f32 %v6541, %v6701
        %v6703 = vpop.f32.mrf.mxu0
        %6704 = vmatprep.mubr.bf16.mxu0 %v5497
        %6705 = vmatmul.mubr.bf16.gmra.mxu0 %v5417
        %v6706 = vpop.f32.mrf.mxu0
        %v6707 = vadd.f32 %v6546, %v6706
        %v6708 = vpop.f32.mrf.mxu0
        %v6709 = vpop.f32.mrf.mxu0
        %v6710 = vadd.f32 %v6549, %v6709
        %v6711 = vpop.f32.mrf.mxu0
        %6712 = vmatprep.mubr.bf16.mxu0 %v5498
        %6713 = vmatmul.mubr.bf16.gmra.mxu0 %v5418
        %v6714 = vpop.f32.mrf.mxu0
        %v6715 = vadd.f32 %v6554, %v6714
        %v6716 = vpop.f32.mrf.mxu0
        %v6717 = vpop.f32.mrf.mxu0
        %v6718 = vadd.f32 %v6557, %v6717
        %v6719 = vpop.f32.mrf.mxu0
        %6720 = vmatprep.mubr.bf16.mxu0 %v5499
        %6721 = vmatmul.mubr.bf16.gmra.mxu0 %v5419
        %v6722 = vpop.f32.mrf.mxu0
        %v6723 = vadd.f32 %v6562, %v6722
        %v6724 = vpop.f32.mrf.mxu0
        %v6725 = vpop.f32.mrf.mxu0
        %v6726 = vadd.f32 %v6565, %v6725
        %v6727 = vpop.f32.mrf.mxu0
        %6728 = vmatprep.mubr.bf16.mxu0 %v5500
        %6729 = vmatmul.mubr.bf16.gmra.mxu0 %v5420
        %v6730 = vpop.f32.mrf.mxu0
        %v6731 = vadd.f32 %v6570, %v6730
        %v6732 = vpop.f32.mrf.mxu0
        %v6733 = vpop.f32.mrf.mxu0
        %v6734 = vadd.f32 %v6573, %v6733
        %v6735 = vpop.f32.mrf.mxu0
        %6736 = vmatprep.mubr.bf16.mxu0 %v5501
        %6737 = vmatmul.mubr.bf16.gmra.mxu0 %v5421
        %v6738 = vpop.f32.mrf.mxu0
        %v6739 = vadd.f32 %v6578, %v6738
        %v6740 = vpop.f32.mrf.mxu0
        %v6741 = vpop.f32.mrf.mxu0
        %v6742 = vadd.f32 %v6581, %v6741
        %v6743 = vpop.f32.mrf.mxu0
        %6744 = vmatprep.mubr.bf16.mxu0 %v5502
        %6745 = vmatmul.mubr.bf16.gmra.mxu0 %v5422
        %v6746 = vpop.f32.mrf.mxu0
        %v6747 = vadd.f32 %v6586, %v6746
        %v6748 = vpop.f32.mrf.mxu0
        %v6749 = vpop.f32.mrf.mxu0
        %v6750 = vadd.f32 %v6589, %v6749
        %v6751 = vpop.f32.mrf.mxu0
        %6752 = vdwg.mxu0
        %6753 = vmatprep.subr.bf16.mxu0 0
        %6754 = vmatpush1.bf16.msra.mxu0 %v6326
        %6755 = vmatprep.subr.bf16.mxu0 0
        %6756 = vmatpush1.bf16.msra.mxu0 %v6325
        %6757 = vmatprep.subr.bf16.mxu0 0
        %6758 = vmatpush1.bf16.msra.mxu0 %v6324
        %6759 = vmatprep.subr.bf16.mxu0 0
        %6760 = vmatpush1.bf16.msra.mxu0 %v6323
        %6761 = vmatprep.subr.bf16.mxu0 0
        %6762 = vmatpush1.bf16.msra.mxu0 %v6322
        %6763 = vmatprep.subr.bf16.mxu0 0
        %6764 = vmatpush1.bf16.msra.mxu0 %v6321
        %6765 = vmatprep.subr.bf16.mxu0 0
        %6766 = vmatpush1.bf16.msra.mxu0 %v6320
        %6767 = vmatprep.subr.bf16.mxu0 0
        %6768 = vmatpush1.bf16.msra.mxu0 %v6319
        %6769 = vmatprep.subr.bf16.mxu0 0
        %6770 = vmatpush2.bf16.msra.mxu0 %v6334
        %6771 = vmatprep.subr.bf16.mxu0 0
        %6772 = vmatpush2.bf16.msra.mxu0 %v6333
        %6773 = vmatprep.subr.bf16.mxu0 0
        %6774 = vmatpush2.bf16.msra.mxu0 %v6332
        %6775 = vmatprep.subr.bf16.mxu0 0
        %6776 = vmatpush2.bf16.msra.mxu0 %v6331
        %6777 = vmatprep.subr.bf16.mxu0 0
        %6778 = vmatpush2.bf16.msra.mxu0 %v6330
        %6779 = vmatprep.subr.bf16.mxu0 0
        %6780 = vmatpush2.bf16.msra.mxu0 %v6329
        %6781 = vmatprep.subr.bf16.mxu0 0
        %6782 = vmatpush2.bf16.msra.mxu0 %v6328
        %6783 = vmatprep.subr.bf16.mxu0 0
        %6784 = vmatpush2.bf16.msra.mxu0 %v6327
        %6785 = vmatprep.mubr.bf16.mxu0 %v5615
        %6786 = vmatmul.mubr.bf16.gmra.mxu0 %v5551
        %v6787 = vpop.f32.mrf.mxu0
        %v6788 = vadd.f32 %v6627, %v6787
        %v6789 = vpop.f32.mrf.mxu0
        %v6790 = vpop.f32.mrf.mxu0
        %v6791 = vadd.f32 %v6630, %v6790
        %v6792 = vpop.f32.mrf.mxu0
        %6793 = vmatprep.mubr.bf16.mxu0 %v5616
        %6794 = vmatmul.mubr.bf16.gmra.mxu0 %v5552
        %v6795 = vpop.f32.mrf.mxu0
        %v6796 = vadd.f32 %v6635, %v6795
        %v6797 = vpop.f32.mrf.mxu0
        %v6798 = vpop.f32.mrf.mxu0
        %v6799 = vadd.f32 %v6638, %v6798
        %v6800 = vpop.f32.mrf.mxu0
        %6801 = vmatprep.mubr.bf16.mxu0 %v5617
        %6802 = vmatmul.mubr.bf16.gmra.mxu0 %v5553
        %v6803 = vpop.f32.mrf.mxu0
        %v6804 = vadd.f32 %v6643, %v6803
        %v6805 = vpop.f32.mrf.mxu0
        %v6806 = vpop.f32.mrf.mxu0
        %v6807 = vadd.f32 %v6646, %v6806
        %v6808 = vpop.f32.mrf.mxu0
        %6809 = vmatprep.mubr.bf16.mxu0 %v5618
        %6810 = vmatmul.mubr.bf16.gmra.mxu0 %v5554
        %v6811 = vpop.f32.mrf.mxu0
        %v6812 = vadd.f32 %v6651, %v6811
        %v6813 = vpop.f32.mrf.mxu0
        %v6814 = vpop.f32.mrf.mxu0
        %v6815 = vadd.f32 %v6654, %v6814
        %v6816 = vpop.f32.mrf.mxu0
        %6817 = vmatprep.mubr.bf16.mxu0 %v5619
        %6818 = vmatmul.mubr.bf16.gmra.mxu0 %v5555
        %v6819 = vpop.f32.mrf.mxu0
        %v6820 = vadd.f32 %v6659, %v6819
        %v6821 = vpop.f32.mrf.mxu0
        %v6822 = vpop.f32.mrf.mxu0
        %v6823 = vadd.f32 %v6662, %v6822
        %v6824 = vpop.f32.mrf.mxu0
        %6825 = vmatprep.mubr.bf16.mxu0 %v5620
        %6826 = vmatmul.mubr.bf16.gmra.mxu0 %v5556
        %v6827 = vpop.f32.mrf.mxu0
        %v6828 = vadd.f32 %v6667, %v6827
        %v6829 = vpop.f32.mrf.mxu0
        %v6830 = vpop.f32.mrf.mxu0
        %v6831 = vadd.f32 %v6670, %v6830
        %v6832 = vpop.f32.mrf.mxu0
        %6833 = vmatprep.mubr.bf16.mxu0 %v5621
        %6834 = vmatmul.mubr.bf16.gmra.mxu0 %v5557
        %v6835 = vpop.f32.mrf.mxu0
        %v6836 = vadd.f32 %v6675, %v6835
        %v6837 = vpop.f32.mrf.mxu0
        %v6838 = vpop.f32.mrf.mxu0
        %v6839 = vadd.f32 %v6678, %v6838
        %v6840 = vpop.f32.mrf.mxu0
        %6841 = vmatprep.mubr.bf16.mxu0 %v5622
        %6842 = vmatmul.mubr.bf16.gmra.mxu0 %v5558
        %v6843 = vpop.f32.mrf.mxu0
        %v6844 = vadd.f32 %v6683, %v6843
        %v6845 = vpop.f32.mrf.mxu0
        %v6846 = vpop.f32.mrf.mxu0
        %v6847 = vadd.f32 %v6686, %v6846
        %v6848 = vpop.f32.mrf.mxu0
        %6849 = vmatprep.mubr.bf16.mxu0 %v5623
        %6850 = vmatmul.mubr.bf16.gmra.mxu0 %v5559
        %v6851 = vpop.f32.mrf.mxu0
        %v6852 = vadd.f32 %v6691, %v6851
        %v6853 = vpop.f32.mrf.mxu0
        %v6854 = vpop.f32.mrf.mxu0
        %v6855 = vadd.f32 %v6694, %v6854
        %v6856 = vpop.f32.mrf.mxu0
        %6857 = vmatprep.mubr.bf16.mxu0 %v5624
        %6858 = vmatmul.mubr.bf16.gmra.mxu0 %v5560
        %v6859 = vpop.f32.mrf.mxu0
        %v6860 = vadd.f32 %v6699, %v6859
        %v6861 = vpop.f32.mrf.mxu0
        %v6862 = vpop.f32.mrf.mxu0
        %v6863 = vadd.f32 %v6702, %v6862
        %v6864 = vpop.f32.mrf.mxu0
        %6865 = vmatprep.mubr.bf16.mxu0 %v5625
        %6866 = vmatmul.mubr.bf16.gmra.mxu0 %v5561
        %v6867 = vpop.f32.mrf.mxu0
        %v6868 = vadd.f32 %v6707, %v6867
        %v6869 = vpop.f32.mrf.mxu0
        %v6870 = vpop.f32.mrf.mxu0
        %v6871 = vadd.f32 %v6710, %v6870
        %v6872 = vpop.f32.mrf.mxu0
        %6873 = vmatprep.mubr.bf16.mxu0 %v5626
        %6874 = vmatmul.mubr.bf16.gmra.mxu0 %v5562
        %v6875 = vpop.f32.mrf.mxu0
        %v6876 = vadd.f32 %v6715, %v6875
        %v6877 = vpop.f32.mrf.mxu0
        %v6878 = vpop.f32.mrf.mxu0
        %v6879 = vadd.f32 %v6718, %v6878
        %v6880 = vpop.f32.mrf.mxu0
        %6881 = vmatprep.mubr.bf16.mxu0 %v5627
        %6882 = vmatmul.mubr.bf16.gmra.mxu0 %v5563
        %v6883 = vpop.f32.mrf.mxu0
        %v6884 = vadd.f32 %v6723, %v6883
        %v6885 = vpop.f32.mrf.mxu0
        %v6886 = vpop.f32.mrf.mxu0
        %v6887 = vadd.f32 %v6726, %v6886
        %v6888 = vpop.f32.mrf.mxu0
        %6889 = vmatprep.mubr.bf16.mxu0 %v5628
        %6890 = vmatmul.mubr.bf16.gmra.mxu0 %v5564
        %v6891 = vpop.f32.mrf.mxu0
        %v6892 = vadd.f32 %v6731, %v6891
        %v6893 = vpop.f32.mrf.mxu0
        %v6894 = vpop.f32.mrf.mxu0
        %v6895 = vadd.f32 %v6734, %v6894
        %v6896 = vpop.f32.mrf.mxu0
        %6897 = vmatprep.mubr.bf16.mxu0 %v5629
        %6898 = vmatmul.mubr.bf16.gmra.mxu0 %v5565
        %v6899 = vpop.f32.mrf.mxu0
        %v6900 = vadd.f32 %v6739, %v6899
        %v6901 = vpop.f32.mrf.mxu0
        %v6902 = vpop.f32.mrf.mxu0
        %v6903 = vadd.f32 %v6742, %v6902
        %v6904 = vpop.f32.mrf.mxu0
        %6905 = vmatprep.mubr.bf16.mxu0 %v5630
        %6906 = vmatmul.mubr.bf16.gmra.mxu0 %v5566
        %v6907 = vpop.f32.mrf.mxu0
        %v6908 = vadd.f32 %v6747, %v6907
        %v6909 = vpop.f32.mrf.mxu0
        %v6910 = vpop.f32.mrf.mxu0
        %v6911 = vadd.f32 %v6750, %v6910
        %v6912 = vpop.f32.mrf.mxu0
        %6913 = vdwg.mxu0
        %6914 = vmatprep.subr.bf16.mxu0 0
        %6915 = vmatpush1.bf16.msra.mxu0 %v6342
        %6916 = vmatprep.subr.bf16.mxu0 0
        %6917 = vmatpush1.bf16.msra.mxu0 %v6341
        %6918 = vmatprep.subr.bf16.mxu0 0
        %6919 = vmatpush1.bf16.msra.mxu0 %v6340
        %6920 = vmatprep.subr.bf16.mxu0 0
        %6921 = vmatpush1.bf16.msra.mxu0 %v6339
        %6922 = vmatprep.subr.bf16.mxu0 0
        %6923 = vmatpush1.bf16.msra.mxu0 %v6338
        %6924 = vmatprep.subr.bf16.mxu0 0
        %6925 = vmatpush1.bf16.msra.mxu0 %v6337
        %6926 = vmatprep.subr.bf16.mxu0 0
        %6927 = vmatpush1.bf16.msra.mxu0 %v6336
        %6928 = vmatprep.subr.bf16.mxu0 0
        %6929 = vmatpush1.bf16.msra.mxu0 %v6335
        %6930 = vmatprep.subr.bf16.mxu0 0
        %6931 = vmatpush2.bf16.msra.mxu0 %v6350
        %6932 = vmatprep.subr.bf16.mxu0 0
        %6933 = vmatpush2.bf16.msra.mxu0 %v6349
        %6934 = vmatprep.subr.bf16.mxu0 0
        %6935 = vmatpush2.bf16.msra.mxu0 %v6348
        %6936 = vmatprep.subr.bf16.mxu0 0
        %6937 = vmatpush2.bf16.msra.mxu0 %v6347
        %6938 = vmatprep.subr.bf16.mxu0 0
        %6939 = vmatpush2.bf16.msra.mxu0 %v6346
        %6940 = vmatprep.subr.bf16.mxu0 0
        %6941 = vmatpush2.bf16.msra.mxu0 %v6345
        %6942 = vmatprep.subr.bf16.mxu0 0
        %6943 = vmatpush2.bf16.msra.mxu0 %v6344
        %6944 = vmatprep.subr.bf16.mxu0 0
        %6945 = vmatpush2.bf16.msra.mxu0 %v6343
        %6946 = vmatprep.mubr.bf16.mxu0 %v5759
        %6947 = vmatmul.mubr.bf16.gmra.mxu0 %v5695
        %v6948 = vpop.f32.mrf.mxu0
        %v6949 = vadd.f32 %v6788, %v6948
        %v6950 = vpop.f32.mrf.mxu0
        %v6951 = vpop.f32.mrf.mxu0
        %v6952 = vadd.f32 %v6791, %v6951
        %v6953 = vpop.f32.mrf.mxu0
        %6954 = vmatprep.mubr.bf16.mxu0 %v5760
        %6955 = vmatmul.mubr.bf16.gmra.mxu0 %v5696
        %v6956 = vpop.f32.mrf.mxu0
        %v6957 = vadd.f32 %v6796, %v6956
        %v6958 = vpop.f32.mrf.mxu0
        %v6959 = vpop.f32.mrf.mxu0
        %v6960 = vadd.f32 %v6799, %v6959
        %v6961 = vpop.f32.mrf.mxu0
        %6962 = vmatprep.mubr.bf16.mxu0 %v5761
        %6963 = vmatmul.mubr.bf16.gmra.mxu0 %v5697
        %v6964 = vpop.f32.mrf.mxu0
        %v6965 = vadd.f32 %v6804, %v6964
        %v6966 = vpop.f32.mrf.mxu0
        %v6967 = vpop.f32.mrf.mxu0
        %v6968 = vadd.f32 %v6807, %v6967
        %v6969 = vpop.f32.mrf.mxu0
        %6970 = vmatprep.mubr.bf16.mxu0 %v5762
        %6971 = vmatmul.mubr.bf16.gmra.mxu0 %v5698
        %v6972 = vpop.f32.mrf.mxu0
        %v6973 = vadd.f32 %v6812, %v6972
        %v6974 = vpop.f32.mrf.mxu0
        %v6975 = vpop.f32.mrf.mxu0
        %v6976 = vadd.f32 %v6815, %v6975
        %v6977 = vpop.f32.mrf.mxu0
        %6978 = vmatprep.mubr.bf16.mxu0 %v5763
        %6979 = vmatmul.mubr.bf16.gmra.mxu0 %v5699
        %v6980 = vpop.f32.mrf.mxu0
        %v6981 = vadd.f32 %v6820, %v6980
        %v6982 = vpop.f32.mrf.mxu0
        %v6983 = vpop.f32.mrf.mxu0
        %v6984 = vadd.f32 %v6823, %v6983
        %v6985 = vpop.f32.mrf.mxu0
        %6986 = vmatprep.mubr.bf16.mxu0 %v5764
        %6987 = vmatmul.mubr.bf16.gmra.mxu0 %v5700
        %v6988 = vpop.f32.mrf.mxu0
        %v6989 = vadd.f32 %v6828, %v6988
        %v6990 = vpop.f32.mrf.mxu0
        %v6991 = vpop.f32.mrf.mxu0
        %v6992 = vadd.f32 %v6831, %v6991
        %v6993 = vpop.f32.mrf.mxu0
        %6994 = vmatprep.mubr.bf16.mxu0 %v5765
        %6995 = vmatmul.mubr.bf16.gmra.mxu0 %v5701
        %v6996 = vpop.f32.mrf.mxu0
        %v6997 = vadd.f32 %v6836, %v6996
        %v6998 = vpop.f32.mrf.mxu0
        %v6999 = vpop.f32.mrf.mxu0
        %v7000 = vadd.f32 %v6839, %v6999
        %v7001 = vpop.f32.mrf.mxu0
        %7002 = vmatprep.mubr.bf16.mxu0 %v5766
        %7003 = vmatmul.mubr.bf16.gmra.mxu0 %v5702
        %v7004 = vpop.f32.mrf.mxu0
        %v7005 = vadd.f32 %v6844, %v7004
        %v7006 = vpop.f32.mrf.mxu0
        %v7007 = vpop.f32.mrf.mxu0
        %v7008 = vadd.f32 %v6847, %v7007
        %v7009 = vpop.f32.mrf.mxu0
        %7010 = vmatprep.mubr.bf16.mxu0 %v5767
        %7011 = vmatmul.mubr.bf16.gmra.mxu0 %v5703
        %v7012 = vpop.f32.mrf.mxu0
        %v7013 = vadd.f32 %v6852, %v7012
        %v7014 = vpop.f32.mrf.mxu0
        %v7015 = vpop.f32.mrf.mxu0
        %v7016 = vadd.f32 %v6855, %v7015
        %v7017 = vpop.f32.mrf.mxu0
        %7018 = vmatprep.mubr.bf16.mxu0 %v5768
        %7019 = vmatmul.mubr.bf16.gmra.mxu0 %v5704
        %v7020 = vpop.f32.mrf.mxu0
        %v7021 = vadd.f32 %v6860, %v7020
        %v7022 = vpop.f32.mrf.mxu0
        %v7023 = vpop.f32.mrf.mxu0
        %v7024 = vadd.f32 %v6863, %v7023
        %v7025 = vpop.f32.mrf.mxu0
        %7026 = vmatprep.mubr.bf16.mxu0 %v5769
        %7027 = vmatmul.mubr.bf16.gmra.mxu0 %v5705
        %v7028 = vpop.f32.mrf.mxu0
        %v7029 = vadd.f32 %v6868, %v7028
        %v7030 = vpop.f32.mrf.mxu0
        %v7031 = vpop.f32.mrf.mxu0
        %v7032 = vadd.f32 %v6871, %v7031
        %v7033 = vpop.f32.mrf.mxu0
        %7034 = vmatprep.mubr.bf16.mxu0 %v5770
        %7035 = vmatmul.mubr.bf16.gmra.mxu0 %v5706
        %v7036 = vpop.f32.mrf.mxu0
        %v7037 = vadd.f32 %v6876, %v7036
        %v7038 = vpop.f32.mrf.mxu0
        %v7039 = vpop.f32.mrf.mxu0
        %v7040 = vadd.f32 %v6879, %v7039
        %v7041 = vpop.f32.mrf.mxu0
        %7042 = vmatprep.mubr.bf16.mxu0 %v5771
        %7043 = vmatmul.mubr.bf16.gmra.mxu0 %v5707
        %v7044 = vpop.f32.mrf.mxu0
        %v7045 = vadd.f32 %v6884, %v7044
        %v7046 = vpop.f32.mrf.mxu0
        %v7047 = vpop.f32.mrf.mxu0
        %v7048 = vadd.f32 %v6887, %v7047
        %v7049 = vpop.f32.mrf.mxu0
        %7050 = vmatprep.mubr.bf16.mxu0 %v5772
        %7051 = vmatmul.mubr.bf16.gmra.mxu0 %v5708
        %v7052 = vpop.f32.mrf.mxu0
        %v7053 = vadd.f32 %v6892, %v7052
        %v7054 = vpop.f32.mrf.mxu0
        %v7055 = vpop.f32.mrf.mxu0
        %v7056 = vadd.f32 %v6895, %v7055
        %v7057 = vpop.f32.mrf.mxu0
        %7058 = vmatprep.mubr.bf16.mxu0 %v5773
        %7059 = vmatmul.mubr.bf16.gmra.mxu0 %v5709
        %v7060 = vpop.f32.mrf.mxu0
        %v7061 = vadd.f32 %v6900, %v7060
        %v7062 = vpop.f32.mrf.mxu0
        %v7063 = vpop.f32.mrf.mxu0
        %v7064 = vadd.f32 %v6903, %v7063
        %v7065 = vpop.f32.mrf.mxu0
        %7066 = vmatprep.mubr.bf16.mxu0 %v5774
        %7067 = vmatmul.mubr.bf16.gmra.mxu0 %v5710
        %v7068 = vpop.f32.mrf.mxu0
        %v7069 = vadd.f32 %v6908, %v7068
        %v7070 = vpop.f32.mrf.mxu0
        %v7071 = vpop.f32.mrf.mxu0
        %v7072 = vadd.f32 %v6911, %v7071
        %v7073 = vpop.f32.mrf.mxu0
        %7074 = vdwg.mxu0
        %7075 = vmatprep.subr.bf16.mxu0 0
        %7076 = vmatpush1.bf16.msra.mxu0 %v6358
        %7077 = vmatprep.subr.bf16.mxu0 0
        %7078 = vmatpush1.bf16.msra.mxu0 %v6357
        %7079 = vmatprep.subr.bf16.mxu0 0
        %7080 = vmatpush1.bf16.msra.mxu0 %v6356
        %7081 = vmatprep.subr.bf16.mxu0 0
        %7082 = vmatpush1.bf16.msra.mxu0 %v6355
        %7083 = vmatprep.subr.bf16.mxu0 0
        %7084 = vmatpush1.bf16.msra.mxu0 %v6354
        %7085 = vmatprep.subr.bf16.mxu0 0
        %7086 = vmatpush1.bf16.msra.mxu0 %v6353
        %7087 = vmatprep.subr.bf16.mxu0 0
        %7088 = vmatpush1.bf16.msra.mxu0 %v6352
        %7089 = vmatprep.subr.bf16.mxu0 0
        %7090 = vmatpush1.bf16.msra.mxu0 %v6351
        %7091 = vmatprep.subr.bf16.mxu0 0
        %7092 = vmatpush2.bf16.msra.mxu0 0
        %7093 = vmatprep.subr.bf16.mxu0 0
        %7094 = vmatpush2.bf16.msra.mxu0 0
        %7095 = vmatprep.subr.bf16.mxu0 0
        %7096 = vmatpush2.bf16.msra.mxu0 0
        %7097 = vmatprep.subr.bf16.mxu0 0
        %7098 = vmatpush2.bf16.msra.mxu0 0
        %7099 = vmatprep.subr.bf16.mxu0 0
        %7100 = vmatpush2.bf16.msra.mxu0 0
        %7101 = vmatprep.subr.bf16.mxu0 0
        %7102 = vmatpush2.bf16.msra.mxu0 0
        %7103 = vmatprep.subr.bf16.mxu0 0
        %7104 = vmatpush2.bf16.msra.mxu0 0
        %7105 = vmatprep.subr.bf16.mxu0 0
        %7106 = vmatpush2.bf16.msra.mxu0 0
        %7107 = vmatprep.mubr.bf16.mxu0 0
        %7108 = vmatmul.mubr.bf16.gmra.mxu0 %v5823
        %v7109 = vpop.f32.mrf.mxu0
        %v7110 = vadd.f32 %v6949, %v7109
        %v7111 = vpop.f32.mrf.mxu0
        %v7112 = vpop.f32.mrf.mxu0
        %v7113 = vadd.f32 %v6952, %v7112
        %v7114 = vpop.f32.mrf.mxu0
        %7115 = vmatprep.mubr.bf16.mxu0 0
        %7116 = vmatmul.mubr.bf16.gmra.mxu0 %v5824
        %v7117 = vpop.f32.mrf.mxu0
        %v7118 = vadd.f32 %v6957, %v7117
        %v7119 = vpop.f32.mrf.mxu0
        %v7120 = vpop.f32.mrf.mxu0
        %v7121 = vadd.f32 %v6960, %v7120
        %v7122 = vpop.f32.mrf.mxu0
        %7123 = vmatprep.mubr.bf16.mxu0 0
        %7124 = vmatmul.mubr.bf16.gmra.mxu0 %v5825
        %v7125 = vpop.f32.mrf.mxu0
        %v7126 = vadd.f32 %v6965, %v7125
        %v7127 = vpop.f32.mrf.mxu0
        %v7128 = vpop.f32.mrf.mxu0
        %v7129 = vadd.f32 %v6968, %v7128
        %v7130 = vpop.f32.mrf.mxu0
        %7131 = vmatprep.mubr.bf16.mxu0 0
        %7132 = vmatmul.mubr.bf16.gmra.mxu0 %v5826
        %v7133 = vpop.f32.mrf.mxu0
        %v7134 = vadd.f32 %v6973, %v7133
        %v7135 = vpop.f32.mrf.mxu0
        %v7136 = vpop.f32.mrf.mxu0
        %v7137 = vadd.f32 %v6976, %v7136
        %v7138 = vpop.f32.mrf.mxu0
        %7139 = vmatprep.mubr.bf16.mxu0 0
        %7140 = vmatmul.mubr.bf16.gmra.mxu0 %v5827
        %v7141 = vpop.f32.mrf.mxu0
        %v7142 = vadd.f32 %v6981, %v7141
        %v7143 = vpop.f32.mrf.mxu0
        %v7144 = vpop.f32.mrf.mxu0
        %v7145 = vadd.f32 %v6984, %v7144
        %v7146 = vpop.f32.mrf.mxu0
        %7147 = vmatprep.mubr.bf16.mxu0 0
        %7148 = vmatmul.mubr.bf16.gmra.mxu0 %v5828
        %v7149 = vpop.f32.mrf.mxu0
        %v7150 = vadd.f32 %v6989, %v7149
        %v7151 = vpop.f32.mrf.mxu0
        %v7152 = vpop.f32.mrf.mxu0
        %v7153 = vadd.f32 %v6992, %v7152
        %v7154 = vpop.f32.mrf.mxu0
        %7155 = vmatprep.mubr.bf16.mxu0 0
        %7156 = vmatmul.mubr.bf16.gmra.mxu0 %v5829
        %v7157 = vpop.f32.mrf.mxu0
        %v7158 = vadd.f32 %v6997, %v7157
        %v7159 = vpop.f32.mrf.mxu0
        %v7160 = vpop.f32.mrf.mxu0
        %v7161 = vadd.f32 %v7000, %v7160
        %v7162 = vpop.f32.mrf.mxu0
        %7163 = vmatprep.mubr.bf16.mxu0 0
        %7164 = vmatmul.mubr.bf16.gmra.mxu0 %v5830
        %v7165 = vpop.f32.mrf.mxu0
        %v7166 = vadd.f32 %v7005, %v7165
        %v7167 = vpop.f32.mrf.mxu0
        %v7168 = vpop.f32.mrf.mxu0
        %v7169 = vadd.f32 %v7008, %v7168
        %v7170 = vpop.f32.mrf.mxu0
        %7171 = vmatprep.mubr.bf16.mxu0 0
        %7172 = vmatmul.mubr.bf16.gmra.mxu0 %v5831
        %v7173 = vpop.f32.mrf.mxu0
        %v7174 = vadd.f32 %v7013, %v7173
        %v7175 = vpop.f32.mrf.mxu0
        %v7176 = vpop.f32.mrf.mxu0
        %v7177 = vadd.f32 %v7016, %v7176
        %v7178 = vpop.f32.mrf.mxu0
        %7179 = vmatprep.mubr.bf16.mxu0 0
        %7180 = vmatmul.mubr.bf16.gmra.mxu0 %v5832
        %v7181 = vpop.f32.mrf.mxu0
        %v7182 = vadd.f32 %v7021, %v7181
        %v7183 = vpop.f32.mrf.mxu0
        %v7184 = vpop.f32.mrf.mxu0
        %v7185 = vadd.f32 %v7024, %v7184
        %v7186 = vpop.f32.mrf.mxu0
        %7187 = vmatprep.mubr.bf16.mxu0 0
        %7188 = vmatmul.mubr.bf16.gmra.mxu0 %v5833
        %v7189 = vpop.f32.mrf.mxu0
        %v7190 = vadd.f32 %v7029, %v7189
        %v7191 = vpop.f32.mrf.mxu0
        %v7192 = vpop.f32.mrf.mxu0
        %v7193 = vadd.f32 %v7032, %v7192
        %v7194 = vpop.f32.mrf.mxu0
        %7195 = vmatprep.mubr.bf16.mxu0 0
        %7196 = vmatmul.mubr.bf16.gmra.mxu0 %v5834
        %v7197 = vpop.f32.mrf.mxu0
        %v7198 = vadd.f32 %v7037, %v7197
        %v7199 = vpop.f32.mrf.mxu0
        %v7200 = vpop.f32.mrf.mxu0
        %v7201 = vadd.f32 %v7040, %v7200
        %v7202 = vpop.f32.mrf.mxu0
        %7203 = vmatprep.mubr.bf16.mxu0 0
        %7204 = vmatmul.mubr.bf16.gmra.mxu0 %v5835
        %v7205 = vpop.f32.mrf.mxu0
        %v7206 = vadd.f32 %v7045, %v7205
        %v7207 = vpop.f32.mrf.mxu0
        %v7208 = vpop.f32.mrf.mxu0
        %v7209 = vadd.f32 %v7048, %v7208
        %v7210 = vpop.f32.mrf.mxu0
        %7211 = vmatprep.mubr.bf16.mxu0 0
        %7212 = vmatmul.mubr.bf16.gmra.mxu0 %v5836
        %v7213 = vpop.f32.mrf.mxu0
        %v7214 = vadd.f32 %v7053, %v7213
        %v7215 = vpop.f32.mrf.mxu0
        %v7216 = vpop.f32.mrf.mxu0
        %v7217 = vadd.f32 %v7056, %v7216
        %v7218 = vpop.f32.mrf.mxu0
        %7219 = vmatprep.mubr.bf16.mxu0 0
        %7220 = vmatmul.mubr.bf16.gmra.mxu0 %v5837
        %v7221 = vpop.f32.mrf.mxu0
        %v7222 = vadd.f32 %v7061, %v7221
        %v7223 = vpop.f32.mrf.mxu0
        %v7224 = vpop.f32.mrf.mxu0
        %v7225 = vadd.f32 %v7064, %v7224
        %v7226 = vpop.f32.mrf.mxu0
        %7227 = vmatprep.mubr.bf16.mxu0 0
        %7228 = vmatmul.mubr.bf16.gmra.mxu0 %v5838
        %v7229 = vpop.f32.mrf.mxu0
        %v7230 = vadd.f32 %v7069, %v7229
        %v7231 = vpop.f32.mrf.mxu0
        %v7232 = vpop.f32.mrf.mxu0
        %v7233 = vadd.f32 %v7072, %v7232
        %v7234 = vpop.f32.mrf.mxu0
        %7235 = vdwg.mxu0
        %v7236 = vld [vmem:[%s5] sm:$0x1]
        %v7238 = vlaneseq
        %v7239 = vshrl.u32 %v7238, 7
        %v7240 = vsub.s32 0, %v7239
        %v7241 = vrot.slane %v7236, %v7240
        %v7243 = vmul.f32 %v7110, %v7241
        %v7244 = vmul.f32 %v7113, %v7241
        %v7245 = vmul.f32 %v7118, %v7241
        %v7246 = vmul.f32 %v7121, %v7241
        %v7247 = vmul.f32 %v7126, %v7241
        %v7248 = vmul.f32 %v7129, %v7241
        %v7249 = vmul.f32 %v7134, %v7241
        %v7250 = vmul.f32 %v7137, %v7241
        %v7251 = vmul.f32 %v7142, %v7241
        %v7252 = vmul.f32 %v7145, %v7241
        %v7253 = vmul.f32 %v7150, %v7241
        %v7254 = vmul.f32 %v7153, %v7241
        %v7255 = vmul.f32 %v7158, %v7241
        %v7256 = vmul.f32 %v7161, %v7241
        %v7257 = vmul.f32 %v7166, %v7241
        %v7258 = vmul.f32 %v7169, %v7241
        %v7259 = vmul.f32 %v7174, %v7241
        %v7260 = vmul.f32 %v7177, %v7241
        %v7261 = vmul.f32 %v7182, %v7241
        %v7262 = vmul.f32 %v7185, %v7241
        %v7263 = vmul.f32 %v7190, %v7241
        %v7264 = vmul.f32 %v7193, %v7241
        %v7265 = vmul.f32 %v7198, %v7241
        %v7266 = vmul.f32 %v7201, %v7241
        %v7267 = vmul.f32 %v7206, %v7241
        %v7268 = vmul.f32 %v7209, %v7241
        %v7269 = vmul.f32 %v7214, %v7241
        %v7270 = vmul.f32 %v7217, %v7241
        %v7271 = vmul.f32 %v7222, %v7241
        %v7272 = vmul.f32 %v7225, %v7241
        %v7273 = vmul.f32 %v7230, %v7241
        %v7274 = vmul.f32 %v7233, %v7241
        %v7275 = vld [vmem:[%s6] sm:$0x1]
        %v7277 = vlaneseq
        %v7278 = vshrl.u32 %v7277, 7
        %v7279 = vsub.s32 0, %v7278
        %v7280 = vrot.slane %v7275, %v7279
        %v7282 = vadd.f32 %v7243, %v7280
        %v7283 = vadd.f32 %v7244, %v7280
        %v7284 = vadd.f32 %v7245, %v7280
        %v7285 = vadd.f32 %v7246, %v7280
        %v7286 = vadd.f32 %v7247, %v7280
        %v7287 = vadd.f32 %v7248, %v7280
        %v7288 = vadd.f32 %v7249, %v7280
        %v7289 = vadd.f32 %v7250, %v7280
        %v7290 = vadd.f32 %v7251, %v7280
        %v7291 = vadd.f32 %v7252, %v7280
        %v7292 = vadd.f32 %v7253, %v7280
        %v7293 = vadd.f32 %v7254, %v7280
        %v7294 = vadd.f32 %v7255, %v7280
        %v7295 = vadd.f32 %v7256, %v7280
        %v7296 = vadd.f32 %v7257, %v7280
        %v7297 = vadd.f32 %v7258, %v7280
        %v7298 = vadd.f32 %v7259, %v7280
        %v7299 = vadd.f32 %v7260, %v7280
        %v7300 = vadd.f32 %v7261, %v7280
        %v7301 = vadd.f32 %v7262, %v7280
        %v7302 = vadd.f32 %v7263, %v7280
        %v7303 = vadd.f32 %v7264, %v7280
        %v7304 = vadd.f32 %v7265, %v7280
        %v7305 = vadd.f32 %v7266, %v7280
        %v7306 = vadd.f32 %v7267, %v7280
        %v7307 = vadd.f32 %v7268, %v7280
        %v7308 = vadd.f32 %v7269, %v7280
        %v7309 = vadd.f32 %v7270, %v7280
        %v7310 = vadd.f32 %v7271, %v7280
        %v7311 = vadd.f32 %v7272, %v7280
        %v7312 = vadd.f32 %v7273, %v7280
        %v7313 = vadd.f32 %v7274, %v7280
        %v7314 = vld [vmem:[%s7] sm:$0xf]
        %v7315 = vld [vmem:[%s7 + $0x4] sm:$0xf]
        %v7316 = vld [vmem:[%s7 + $0x8] sm:$0xf]
        %v7317 = vld [vmem:[%s7 + $0xc] sm:$0xf]
        %v7318 = vld [vmem:[%s7 + $0x10] sm:$0xf]
        %v7319 = vld [vmem:[%s7 + $0x14] sm:$0xf]
        %v7320 = vld [vmem:[%s7 + $0x18] sm:$0xf]
        %v7321 = vld [vmem:[%s7 + $0x1c] sm:$0xf]
        %v7322 = vld [vmem:[%s7 + $0x20] sm:$0xf]
        %v7323 = vld [vmem:[%s7 + $0x24] sm:$0xf]
        %v7324 = vld [vmem:[%s7 + $0x28] sm:$0xf]
        %v7325 = vld [vmem:[%s7 + $0x2c] sm:$0xf]
        %v7326 = vld [vmem:[%s7 + $0x30] sm:$0xf]
        %v7327 = vld [vmem:[%s7 + $0x34] sm:$0xf]
        %v7328 = vld [vmem:[%s7 + $0x38] sm:$0xf]
        %v7329 = vld [vmem:[%s7 + $0x3c] sm:$0xf]
        %v7346 = vunpack.c.l.b16 %v7314
        %v7347 = vunpack.c.l.b16 %v7315
        %v7348 = vunpack.c.l.b16 %v7316
        %v7349 = vunpack.c.l.b16 %v7317
        %v7350 = vunpack.c.l.b16 %v7318
        %v7351 = vunpack.c.l.b16 %v7319
        %v7352 = vunpack.c.l.b16 %v7320
        %v7353 = vunpack.c.l.b16 %v7321
        %v7354 = vunpack.c.l.b16 %v7322
        %v7355 = vunpack.c.l.b16 %v7323
        %v7356 = vunpack.c.l.b16 %v7324
        %v7357 = vunpack.c.l.b16 %v7325
        %v7358 = vunpack.c.l.b16 %v7326
        %v7359 = vunpack.c.l.b16 %v7327
        %v7360 = vunpack.c.l.b16 %v7328
        %v7361 = vunpack.c.l.b16 %v7329
        %v7362 = vpack.c.b16 %v7347, %v7346
        %v7363 = vpack.c.b16 %v7349, %v7348
        %v7364 = vpack.c.b16 %v7351, %v7350
        %v7365 = vpack.c.b16 %v7353, %v7352
        %v7366 = vpack.c.b16 %v7355, %v7354
        %v7367 = vpack.c.b16 %v7357, %v7356
        %v7368 = vpack.c.b16 %v7359, %v7358
        %v7369 = vpack.c.b16 %v7361, %v7360
        %7378 = vmatprep.subr.bf16.mxu0 0
        %7379 = vmatpush1.bf16.msra.mxu0 %v7369
        %7380 = vmatprep.subr.bf16.mxu0 0
        %7381 = vmatpush1.bf16.msra.mxu0 %v7368
        %7382 = vmatprep.subr.bf16.mxu0 0
        %7383 = vmatpush1.bf16.msra.mxu0 %v7367
        %7384 = vmatprep.subr.bf16.mxu0 0
        %7385 = vmatpush1.bf16.msra.mxu0 %v7366
        %7386 = vmatprep.subr.bf16.mxu0 0
        %7387 = vmatpush1.bf16.msra.mxu0 %v7365
        %7388 = vmatprep.subr.bf16.mxu0 0
        %7389 = vmatpush1.bf16.msra.mxu0 %v7364
        %7390 = vmatprep.subr.bf16.mxu0 0
        %7391 = vmatpush1.bf16.msra.mxu0 %v7363
        %7392 = vmatprep.subr.bf16.mxu0 0
        %7393 = vmatpush1.bf16.msra.mxu0 %v7362
        %7394 = vmatprep.subr.bf16.mxu0 0
        %7395 = vmatpush2.bf16.msra.mxu0 0
        %7396 = vmatprep.subr.bf16.mxu0 0
        %7397 = vmatpush2.bf16.msra.mxu0 0
        %7398 = vmatprep.subr.bf16.mxu0 0
        %7399 = vmatpush2.bf16.msra.mxu0 0
        %7400 = vmatprep.subr.bf16.mxu0 0
        %7401 = vmatpush2.bf16.msra.mxu0 0
        %7402 = vmatprep.subr.bf16.mxu0 0
        %7403 = vmatpush2.bf16.msra.mxu0 0
        %7404 = vmatprep.subr.bf16.mxu0 0
        %7405 = vmatpush2.bf16.msra.mxu0 0
        %7406 = vmatprep.subr.bf16.mxu0 0
        %7407 = vmatpush2.bf16.msra.mxu0 0
        %7408 = vmatprep.subr.bf16.mxu0 0
        %7409 = vmatpush2.bf16.msra.mxu0 0
        %7410 = vmatprep.mubr.bf16.mxu0 0
        %7411 = vmatmul.mubr.bf16.gmra.mxu0 %v1143
        %v7412 = vpop.f32.mrf.mxu0
        %v7413 = vadd.f32 0.0, %v7412
        %v7414 = vpop.f32.mrf.mxu0
        %v7415 = vpop.f32.mrf.mxu0
        %v7416 = vadd.f32 0.0, %v7415
        %v7417 = vpop.f32.mrf.mxu0
        %7418 = vmatprep.mubr.bf16.mxu0 0
        %7419 = vmatmul.mubr.bf16.gmra.mxu0 %v1144
        %v7420 = vpop.f32.mrf.mxu0
        %v7421 = vadd.f32 0.0, %v7420
        %v7422 = vpop.f32.mrf.mxu0
        %v7423 = vpop.f32.mrf.mxu0
        %v7424 = vadd.f32 0.0, %v7423
        %v7425 = vpop.f32.mrf.mxu0
        %7426 = vmatprep.mubr.bf16.mxu0 0
        %7427 = vmatmul.mubr.bf16.gmra.mxu0 %v1145
        %v7428 = vpop.f32.mrf.mxu0
        %v7429 = vadd.f32 0.0, %v7428
        %v7430 = vpop.f32.mrf.mxu0
        %v7431 = vpop.f32.mrf.mxu0
        %v7432 = vadd.f32 0.0, %v7431
        %v7433 = vpop.f32.mrf.mxu0
        %7434 = vmatprep.mubr.bf16.mxu0 0
        %7435 = vmatmul.mubr.bf16.gmra.mxu0 %v1146
        %v7436 = vpop.f32.mrf.mxu0
        %v7437 = vadd.f32 0.0, %v7436
        %v7438 = vpop.f32.mrf.mxu0
        %v7439 = vpop.f32.mrf.mxu0
        %v7440 = vadd.f32 0.0, %v7439
        %v7441 = vpop.f32.mrf.mxu0
        %7442 = vmatprep.mubr.bf16.mxu0 0
        %7443 = vmatmul.mubr.bf16.gmra.mxu0 %v1147
        %v7444 = vpop.f32.mrf.mxu0
        %v7445 = vadd.f32 0.0, %v7444
        %v7446 = vpop.f32.mrf.mxu0
        %v7447 = vpop.f32.mrf.mxu0
        %v7448 = vadd.f32 0.0, %v7447
        %v7449 = vpop.f32.mrf.mxu0
        %7450 = vmatprep.mubr.bf16.mxu0 0
        %7451 = vmatmul.mubr.bf16.gmra.mxu0 %v1148
        %v7452 = vpop.f32.mrf.mxu0
        %v7453 = vadd.f32 0.0, %v7452
        %v7454 = vpop.f32.mrf.mxu0
        %v7455 = vpop.f32.mrf.mxu0
        %v7456 = vadd.f32 0.0, %v7455
        %v7457 = vpop.f32.mrf.mxu0
        %7458 = vmatprep.mubr.bf16.mxu0 0
        %7459 = vmatmul.mubr.bf16.gmra.mxu0 %v1149
        %v7460 = vpop.f32.mrf.mxu0
        %v7461 = vadd.f32 0.0, %v7460
        %v7462 = vpop.f32.mrf.mxu0
        %v7463 = vpop.f32.mrf.mxu0
        %v7464 = vadd.f32 0.0, %v7463
        %v7465 = vpop.f32.mrf.mxu0
        %7466 = vmatprep.mubr.bf16.mxu0 0
        %7467 = vmatmul.mubr.bf16.gmra.mxu0 %v1150
        %v7468 = vpop.f32.mrf.mxu0
        %v7469 = vadd.f32 0.0, %v7468
        %v7470 = vpop.f32.mrf.mxu0
        %v7471 = vpop.f32.mrf.mxu0
        %v7472 = vadd.f32 0.0, %v7471
        %v7473 = vpop.f32.mrf.mxu0
        %7474 = vmatprep.mubr.bf16.mxu0 0
        %7475 = vmatmul.mubr.bf16.gmra.mxu0 %v1151
        %v7476 = vpop.f32.mrf.mxu0
        %v7477 = vadd.f32 0.0, %v7476
        %v7478 = vpop.f32.mrf.mxu0
        %v7479 = vpop.f32.mrf.mxu0
        %v7480 = vadd.f32 0.0, %v7479
        %v7481 = vpop.f32.mrf.mxu0
        %7482 = vmatprep.mubr.bf16.mxu0 0
        %7483 = vmatmul.mubr.bf16.gmra.mxu0 %v1152
        %v7484 = vpop.f32.mrf.mxu0
        %v7485 = vadd.f32 0.0, %v7484
        %v7486 = vpop.f32.mrf.mxu0
        %v7487 = vpop.f32.mrf.mxu0
        %v7488 = vadd.f32 0.0, %v7487
        %v7489 = vpop.f32.mrf.mxu0
        %7490 = vmatprep.mubr.bf16.mxu0 0
        %7491 = vmatmul.mubr.bf16.gmra.mxu0 %v1153
        %v7492 = vpop.f32.mrf.mxu0
        %v7493 = vadd.f32 0.0, %v7492
        %v7494 = vpop.f32.mrf.mxu0
        %v7495 = vpop.f32.mrf.mxu0
        %v7496 = vadd.f32 0.0, %v7495
        %v7497 = vpop.f32.mrf.mxu0
        %7498 = vmatprep.mubr.bf16.mxu0 0
        %7499 = vmatmul.mubr.bf16.gmra.mxu0 %v1154
        %v7500 = vpop.f32.mrf.mxu0
        %v7501 = vadd.f32 0.0, %v7500
        %v7502 = vpop.f32.mrf.mxu0
        %v7503 = vpop.f32.mrf.mxu0
        %v7504 = vadd.f32 0.0, %v7503
        %v7505 = vpop.f32.mrf.mxu0
        %7506 = vmatprep.mubr.bf16.mxu0 0
        %7507 = vmatmul.mubr.bf16.gmra.mxu0 %v1155
        %v7508 = vpop.f32.mrf.mxu0
        %v7509 = vadd.f32 0.0, %v7508
        %v7510 = vpop.f32.mrf.mxu0
        %v7511 = vpop.f32.mrf.mxu0
        %v7512 = vadd.f32 0.0, %v7511
        %v7513 = vpop.f32.mrf.mxu0
        %7514 = vmatprep.mubr.bf16.mxu0 0
        %7515 = vmatmul.mubr.bf16.gmra.mxu0 %v1156
        %v7516 = vpop.f32.mrf.mxu0
        %v7517 = vadd.f32 0.0, %v7516
        %v7518 = vpop.f32.mrf.mxu0
        %v7519 = vpop.f32.mrf.mxu0
        %v7520 = vadd.f32 0.0, %v7519
        %v7521 = vpop.f32.mrf.mxu0
        %7522 = vmatprep.mubr.bf16.mxu0 0
        %7523 = vmatmul.mubr.bf16.gmra.mxu0 %v1157
        %v7524 = vpop.f32.mrf.mxu0
        %v7525 = vadd.f32 0.0, %v7524
        %v7526 = vpop.f32.mrf.mxu0
        %v7527 = vpop.f32.mrf.mxu0
        %v7528 = vadd.f32 0.0, %v7527
        %v7529 = vpop.f32.mrf.mxu0
        %7530 = vmatprep.mubr.bf16.mxu0 0
        %7531 = vmatmul.mubr.bf16.gmra.mxu0 %v1244
        %v7532 = vpop.f32.mrf.mxu0
        %v7533 = vadd.f32 0.0, %v7532
        %v7534 = vpop.f32.mrf.mxu0
        %v7535 = vpop.f32.mrf.mxu0
        %v7536 = vadd.f32 0.0, %v7535
        %v7537 = vpop.f32.mrf.mxu0
        %7538 = vdwg.mxu0
        %v7539 = vld [vmem:[%s8] sm:$0x1]
        %v7541 = vlaneseq
        %v7542 = vshrl.u32 %v7541, 7
        %v7543 = vsub.s32 0, %v7542
        %v7544 = vrot.slane %v7539, %v7543
        %v7546 = vmul.f32 %v7413, %v7544
        %v7547 = vmul.f32 %v7416, %v7544
        %v7548 = vmul.f32 %v7421, %v7544
        %v7549 = vmul.f32 %v7424, %v7544
        %v7550 = vmul.f32 %v7429, %v7544
        %v7551 = vmul.f32 %v7432, %v7544
        %v7552 = vmul.f32 %v7437, %v7544
        %v7553 = vmul.f32 %v7440, %v7544
        %v7554 = vmul.f32 %v7445, %v7544
        %v7555 = vmul.f32 %v7448, %v7544
        %v7556 = vmul.f32 %v7453, %v7544
        %v7557 = vmul.f32 %v7456, %v7544
        %v7558 = vmul.f32 %v7461, %v7544
        %v7559 = vmul.f32 %v7464, %v7544
        %v7560 = vmul.f32 %v7469, %v7544
        %v7561 = vmul.f32 %v7472, %v7544
        %v7562 = vmul.f32 %v7477, %v7544
        %v7563 = vmul.f32 %v7480, %v7544
        %v7564 = vmul.f32 %v7485, %v7544
        %v7565 = vmul.f32 %v7488, %v7544
        %v7566 = vmul.f32 %v7493, %v7544
        %v7567 = vmul.f32 %v7496, %v7544
        %v7568 = vmul.f32 %v7501, %v7544
        %v7569 = vmul.f32 %v7504, %v7544
        %v7570 = vmul.f32 %v7509, %v7544
        %v7571 = vmul.f32 %v7512, %v7544
        %v7572 = vmul.f32 %v7517, %v7544
        %v7573 = vmul.f32 %v7520, %v7544
        %v7574 = vmul.f32 %v7525, %v7544
        %v7575 = vmul.f32 %v7528, %v7544
        %v7576 = vmul.f32 %v7533, %v7544
        %v7577 = vmul.f32 %v7536, %v7544
        %v7578 = vld [vmem:[%s9] sm:$0x1]
        %v7580 = vlaneseq
        %v7581 = vshrl.u32 %v7580, 7
        %v7582 = vsub.s32 0, %v7581
        %v7583 = vrot.slane %v7578, %v7582
        %v7585 = vadd.f32 %v7546, %v7583
        %v7586 = vadd.f32 %v7547, %v7583
        %v7587 = vadd.f32 %v7548, %v7583
        %v7588 = vadd.f32 %v7549, %v7583
        %v7589 = vadd.f32 %v7550, %v7583
        %v7590 = vadd.f32 %v7551, %v7583
        %v7591 = vadd.f32 %v7552, %v7583
        %v7592 = vadd.f32 %v7553, %v7583
        %v7593 = vadd.f32 %v7554, %v7583
        %v7594 = vadd.f32 %v7555, %v7583
        %v7595 = vadd.f32 %v7556, %v7583
        %v7596 = vadd.f32 %v7557, %v7583
        %v7597 = vadd.f32 %v7558, %v7583
        %v7598 = vadd.f32 %v7559, %v7583
        %v7599 = vadd.f32 %v7560, %v7583
        %v7600 = vadd.f32 %v7561, %v7583
        %v7601 = vadd.f32 %v7562, %v7583
        %v7602 = vadd.f32 %v7563, %v7583
        %v7603 = vadd.f32 %v7564, %v7583
        %v7604 = vadd.f32 %v7565, %v7583
        %v7605 = vadd.f32 %v7566, %v7583
        %v7606 = vadd.f32 %v7567, %v7583
        %v7607 = vadd.f32 %v7568, %v7583
        %v7608 = vadd.f32 %v7569, %v7583
        %v7609 = vadd.f32 %v7570, %v7583
        %v7610 = vadd.f32 %v7571, %v7583
        %v7611 = vadd.f32 %v7572, %v7583
        %v7612 = vadd.f32 %v7573, %v7583
        %v7613 = vadd.f32 %v7574, %v7583
        %v7614 = vadd.f32 %v7575, %v7583
        %v7615 = vadd.f32 %v7576, %v7583
        %v7616 = vadd.f32 %v7577, %v7583
        %v7617 = vadd.f32 %v7282, %v7585
        %v7618 = vadd.f32 %v7283, %v7586
        %v7619 = vadd.f32 %v7284, %v7587
        %v7620 = vadd.f32 %v7285, %v7588
        %v7621 = vadd.f32 %v7286, %v7589
        %v7622 = vadd.f32 %v7287, %v7590
        %v7623 = vadd.f32 %v7288, %v7591
        %v7624 = vadd.f32 %v7289, %v7592
        %v7625 = vadd.f32 %v7290, %v7593
        %v7626 = vadd.f32 %v7291, %v7594
        %v7627 = vadd.f32 %v7292, %v7595
        %v7628 = vadd.f32 %v7293, %v7596
        %v7629 = vadd.f32 %v7294, %v7597
        %v7630 = vadd.f32 %v7295, %v7598
        %v7631 = vadd.f32 %v7296, %v7599
        %v7632 = vadd.f32 %v7297, %v7600
        %v7633 = vadd.f32 %v7298, %v7601
        %v7634 = vadd.f32 %v7299, %v7602
        %v7635 = vadd.f32 %v7300, %v7603
        %v7636 = vadd.f32 %v7301, %v7604
        %v7637 = vadd.f32 %v7302, %v7605
        %v7638 = vadd.f32 %v7303, %v7606
        %v7639 = vadd.f32 %v7304, %v7607
        %v7640 = vadd.f32 %v7305, %v7608
        %v7641 = vadd.f32 %v7306, %v7609
        %v7642 = vadd.f32 %v7307, %v7610
        %v7643 = vadd.f32 %v7308, %v7611
        %v7644 = vadd.f32 %v7309, %v7612
        %v7645 = vadd.f32 %v7310, %v7613
        %v7646 = vadd.f32 %v7311, %v7614
        %v7647 = vadd.f32 %v7312, %v7615
        %v7648 = vadd.f32 %v7313, %v7616
        %v7649 = vmax.f32 %v7617, 0.0
        %v7650 = vmax.f32 %v7618, 0.0
        %v7651 = vmax.f32 %v7619, 0.0
        %v7652 = vmax.f32 %v7620, 0.0
        %v7653 = vmax.f32 %v7621, 0.0
        %v7654 = vmax.f32 %v7622, 0.0
        %v7655 = vmax.f32 %v7623, 0.0
        %v7656 = vmax.f32 %v7624, 0.0
        %v7657 = vmax.f32 %v7625, 0.0
        %v7658 = vmax.f32 %v7626, 0.0
        %v7659 = vmax.f32 %v7627, 0.0
        %v7660 = vmax.f32 %v7628, 0.0
        %v7661 = vmax.f32 %v7629, 0.0
        %v7662 = vmax.f32 %v7630, 0.0
        %v7663 = vmax.f32 %v7631, 0.0
        %v7664 = vmax.f32 %v7632, 0.0
        %v7665 = vmax.f32 %v7633, 0.0
        %v7666 = vmax.f32 %v7634, 0.0
        %v7667 = vmax.f32 %v7635, 0.0
        %v7668 = vmax.f32 %v7636, 0.0
        %v7669 = vmax.f32 %v7637, 0.0
        %v7670 = vmax.f32 %v7638, 0.0
        %v7671 = vmax.f32 %v7639, 0.0
        %v7672 = vmax.f32 %v7640, 0.0
        %v7673 = vmax.f32 %v7641, 0.0
        %v7674 = vmax.f32 %v7642, 0.0
        %v7675 = vmax.f32 %v7643, 0.0
        %v7676 = vmax.f32 %v7644, 0.0
        %v7677 = vmax.f32 %v7645, 0.0
        %v7678 = vmax.f32 %v7646, 0.0
        %v7679 = vmax.f32 %v7647, 0.0
        %v7680 = vmax.f32 %v7648, 0.0
        %7681 = vst [vmem:[%s367] sm:$0xff] %v7649
        %7682 = vst [vmem:[%s367 + $0x8] sm:$0xff] %v7650
        %7683 = vst [vmem:[%s367 + $0x10] sm:$0xff] %v7651
        %7684 = vst [vmem:[%s367 + $0x18] sm:$0xff] %v7652
        %7685 = vst [vmem:[%s367 + $0x20] sm:$0xff] %v7653
        %7686 = vst [vmem:[%s367 + $0x28] sm:$0xff] %v7654
        %7687 = vst [vmem:[%s367 + $0x30] sm:$0xff] %v7655
        %7688 = vst [vmem:[%s367 + $0x38] sm:$0xff] %v7656
        %7689 = vst [vmem:[%s367 + $0x40] sm:$0xff] %v7657
        %7690 = vst [vmem:[%s367 + $0x48] sm:$0xff] %v7658
        %7691 = vst [vmem:[%s367 + $0x50] sm:$0xff] %v7659
        %7692 = vst [vmem:[%s367 + $0x58] sm:$0xff] %v7660
        %7693 = vst [vmem:[%s367 + $0x60] sm:$0xff] %v7661
        %7694 = vst [vmem:[%s367 + $0x68] sm:$0xff] %v7662
        %7695 = vst [vmem:[%s367 + $0x70] sm:$0xff] %v7663
        %7696 = vst [vmem:[%s367 + $0x78] sm:$0xff] %v7664
        %7697 = vst [vmem:[%s367 + $0x80] sm:$0xff] %v7665
        %7698 = vst [vmem:[%s367 + $0x88] sm:$0xff] %v7666
        %7699 = vst [vmem:[%s367 + $0x90] sm:$0xff] %v7667
        %7700 = vst [vmem:[%s367 + $0x98] sm:$0xff] %v7668
        %7701 = vst [vmem:[%s367 + $0xa0] sm:$0xff] %v7669
        %7702 = vst [vmem:[%s367 + $0xa8] sm:$0xff] %v7670
        %7703 = vst [vmem:[%s367 + $0xb0] sm:$0xff] %v7671
        %7704 = vst [vmem:[%s367 + $0xb8] sm:$0xff] %v7672
        %7705 = vst [vmem:[%s367 + $0xc0] sm:$0xff] %v7673
        %7706 = vst [vmem:[%s367 + $0xc8] sm:$0xff] %v7674
        %7707 = vst [vmem:[%s367 + $0xd0] sm:$0xff] %v7675
        %7708 = vst [vmem:[%s367 + $0xd8] sm:$0xff] %v7676
        %7709 = vst [vmem:[%s367 + $0xe0] sm:$0xff] %v7677
        %7710 = vst [vmem:[%s367 + $0xe8] sm:$0xff] %v7678
        %7711 = vst [vmem:[%s367 + $0xf0] sm:$0xff] %v7679
        %7712 = vst [vmem:[%s367 + $0xf8] sm:$0xff] %v7680
        %s7713 = sand.u32 %s248, 1
        %s7714 = scalar_lea.sflag [#allocation5], %s7713
        %s7715 = sand.u32 %s248, 1
        %s7716 = smul.addr %s7715, 256
        %s7717 = scalar_lea.vmem [#allocation6], %s7716
        // Predicated region
        $region65: #{tpu_custom_call.1} parent=59 // pred_check
          %p7718 = pneg %p258
        $region66: #{tpu_custom_call.1} parent=59 // pred_check_branch
          %7720 = sbr.rel (%p7718) target = $region68
        $region67: #{tpu_custom_call.1} parent=59 // pred_region
          %s7722 = ssub.s32 4096, 4096
          %7723 = vsyncadd %s7714, %s7722
          %s7724 = smul.addr %s25, 32
          %s7725 = smul.addr %s7724, 128
          %s7726 = scalar_lea.hbm %s10, %s7725
          %s7727 = sshll.u32 %s7717, 4
          %s7728 = int_to_ptr.vmem [resolvable:$true] %s7727
          %7733 = dma.vmem_to_hbm [thread:$0]  %s7728, 4096, %s7726, %s7714, 128, 128, 8
        $region68: #{tpu_custom_call.1} parent=59 // pred_fallthru
          _
      $region60: #{tpu_custom_call.1} parent=5 // pred_fallthru
        _
      %p7734 = scmp.le.s32.totalorder 2, %s20
      // Predicated region
      $region69: #{tpu_custom_call.1} parent=5 // pred_check
        %p7735 = pneg %p7734
      $region70: #{tpu_custom_call.1} parent=5 // pred_check_branch
        %7737 = sbr.rel (%p7735) target = $region72
      $region71: #{tpu_custom_call.1} parent=5 // pred_region
        %s7738 = ssub.s32 %s20, 2
        // Predicated region
        $region73: #{tpu_custom_call.1} parent=71 // pred_check
          %p7739 = pneg %p264
        $region74: #{tpu_custom_call.1} parent=71 // pred_check_branch
          %7741 = sbr.rel (%p7739) target = $region76
        $region75: #{tpu_custom_call.1} parent=71 // pred_region
          %s7742 = sand.u32 %s249, 1
          %s7743 = scalar_lea.sflag [#allocation5], %s7742
          %s7744 = sand.u32 %s249, 1
          %s7745 = smul.addr %s7744, 256
          %s7746 = scalar_lea.vmem [#allocation6], %s7745
          %7747 = dma.done %s7743, 4096
        $region76: #{tpu_custom_call.1} parent=71 // pred_fallthru
          _
      $region72: #{tpu_custom_call.1} parent=5 // pred_fallthru
        _
    $region6: #{tpu_custom_call.1} parent=1 // loop_footer
      %s24 = sadd.s32 1, %s20
    $region7: #{tpu_custom_call.1} parent=1 // loop_footer_branch
      %19 = sbr.rel target = $region3
    $region8: #{tpu_custom_call.1} parent=1 // loop_exit
      _
    %7748 = vsyncpa [#allocation4], 1
    %s7749 = scalar_lea.sflag [#allocation4], 1
    %7750 = vsyncpa %s7749, 1
    %7751 = vsyncpa [#allocation5], 1
    %s7752 = scalar_lea.sflag [#allocation5], 1
    %7753 = vsyncpa %s7752, 1

</llo_original>
